<compile_context>
chip_gen: v7x
topology: tpu7x:2x2x1
jax: 0.10.0
libtpu: 0.0.40
codegen_flags: <defaults>
</compile_context>

<pallas_src>
import functools

import jax
import jax.numpy as jnp
from jax import lax
from jax.experimental import pallas as pl
from jax.experimental.pallas import tpu as pltpu

_VMEM_LIMIT = 48 * 1024 * 1024  # explicit scoped-VMEM limit, safe on v5e/v6e/v7x


def _pick_hw_tile(total, candidates=(8192, 4096, 2048, 1024, 512, 256, 128)):
    """Largest lane-aligned tile that divides the flattened spatial extent."""
    for c in candidates:
        if total % c == 0:
            return c
    return total  # full extent (block == full dim is always legal)


def _pick_h_strip(H, candidates=(64, 32, 16, 8)):
    """Row-strip height: multiple of 8, divides H, with >=2 strips if possible."""
    if H % 8 == 0:
        for c in candidates:
            if H % c == 0 and H // c >= 2:
                return c
    return H


# ----------------------------------------------------------------------------
# Kernel 1 (fused): qkv 1x1 conv (weight-stationary MXU matmul over channels)
# + 3x3 depthwise conv, tiled over (batch, H-strip) with a 1-row halo.
# ----------------------------------------------------------------------------
def _qkv_dwconv_kernel(x_mid_ref, x_top_ref, x_bot_ref,
                       wq_ref, bq_ref, wd_ref, bd_ref, o_ref):
    C = x_mid_ref.shape[1]
    th = x_mid_ref.shape[2]
    W = x_mid_ref.shape[3]
    C3 = wq_ref.shape[0]
    hb = x_top_ref.shape[2]

    s = pl.program_id(1)
    ns = pl.num_programs(1)
    top_valid = (s > 0).astype(jnp.float32)            # image-border masks for
    bot_valid = (s < ns - 1).astype(jnp.float32)       # the halo rows

    wq = wq_ref[...].astype(jnp.float32)               # (3C, C)
    bq = bq_ref[...].astype(jnp.float32)               # (3C, 1)

    # 1x1 conv for the strip ...
    x_mid = x_mid_ref[0].astype(jnp.float32).reshape(C, th * W)
    y_mid = (jnp.dot(wq, x_mid, preferred_element_type=jnp.float32)
             + bq).reshape(C3, th, W)

    # ... and for the single halo rows directly above / below the strip.
    x_top = x_top_ref[0, :, hb - 1, :].astype(jnp.float32)        # (C, W)
    x_bot = x_bot_ref[0, :, 0, :].astype(jnp.float32)             # (C, W)
    y_top = (jnp.dot(wq, x_top, preferred_element_type=jnp.float32) + bq) * top_valid
    y_bot = (jnp.dot(wq, x_bot, preferred_element_type=jnp.float32) + bq) * bot_valid

    # 3x3 depthwise conv.  No padded scratch / no double zero-fill: build the
    # haloed strip once as a value; left/right border = explicit zero columns.
    ycore = jnp.concatenate([y_top[:, None, :], y_mid, y_bot[:, None, :]], axis=1)
    zcol = jnp.zeros((C3, th + 2, 1), jnp.float32)
    ypad = jnp.concatenate([zcol, ycore, zcol], axis=2)           # (3C, th+2, W+2)

    bd = bd_ref[...].astype(jnp.float32)[:, :, None]              # (3C, 1, 1)
    acc = jnp.broadcast_to(bd, (C3, th, W))
    for ky in range(3):
        for kx in range(3):
            i = 3 * ky + kx
            tap = wd_ref[:, i:i + 1].astype(jnp.float32)[:, :, None]
            acc = acc + ypad[:, ky:ky + th, kx:kx + W] * tap
    o_ref[0] = acc.astype(o_ref.dtype)


def qkv_dwconv(x, w_qkv, b_qkv, w_dw, b_dw):
    # x: (B, C, H, W); w_qkv: (3C, C); b_qkv: (3C, 1); w_dw: (3C, 9); b_dw: (3C, 1)
    B, C, H, W = x.shape
    C3 = w_qkv.shape[0]
    th = _pick_h_strip(H)
    hb = 8 if (H % 8 == 0 and th % 8 == 0) else H      # halo block height
    nb = th // hb                                       # strip height in halo blocks
    n_strips = H // th

    mid_map = lambda b, s: (b, 0, s, 0)
    top_map = lambda b, s: (b, 0, jnp.maximum(s * nb - 1, 0), 0)
    bot_map = lambda b, s: (b, 0, jnp.minimum(s * nb + nb, H // hb - 1), 0)

    return pl.pallas_call(
        _qkv_dwconv_kernel,
        out_shape=jax.ShapeDtypeStruct((B, C3, H, W), x.dtype),
        grid=(B, n_strips),
        in_specs=[
            pl.BlockSpec((1, C, th, W), mid_map),
            pl.BlockSpec((1, C, hb, W), top_map),
            pl.BlockSpec((1, C, hb, W), bot_map),
            pl.BlockSpec((C3, C), lambda b, s: (0, 0)),
            pl.BlockSpec((C3, 1), lambda b, s: (0, 0)),
            pl.BlockSpec((C3, 9), lambda b, s: (0, 0)),
            pl.BlockSpec((C3, 1), lambda b, s: (0, 0)),
        ],
        out_specs=pl.BlockSpec((1, C3, th, W), mid_map),
        compiler_params=pltpu.CompilerParams(
            dimension_semantics=("parallel", "parallel"),
            vmem_limit_bytes=_VMEM_LIMIT),
    )(x, x, x, w_qkv, b_qkv, w_dw, b_dw)


# ----------------------------------------------------------------------------
# Kernel 2: stream q||k as one (2C, hw_t) block per tile, accumulate the full
# (C, C) Gram G = q k^T and the combined (2C, 1) sum-of-squares over hw tiles
# ('arbitrary' reduction axis, outputs resident in VMEM).
# ----------------------------------------------------------------------------
def _gram_stats_kernel(qk_ref, g_ref, ss_ref, *, C):
    @pl.when(pl.program_id(1) == 0)
    def _():
        g_ref[...] = jnp.zeros_like(g_ref)
        ss_ref[...] = jnp.zeros_like(ss_ref)

    qk = qk_ref[0, :2 * C, :].astype(jnp.float32)                 # (2C, hw_t)
    q = qk[:C]
    k = qk[C:]
    g_ref[0] += lax.dot_general(q, k, (((1,), (1,)), ((), ())),
                                preferred_element_type=jnp.float32)
    ss_ref[0] += jnp.sum(qk * qk, axis=-1, keepdims=True)         # (2C, 1)


def gram_stats(qkv_flat, C):
    B, C3, HW = qkv_flat.shape
    hw_t = _pick_hw_tile(HW)
    # sublane-aligned 2C block when possible; else fall back to the full 3C rows.
    qk_rows = 2 * C if (2 * C) % 8 == 0 else C3
    kernel = functools.partial(_gram_stats_kernel, C=C)
    return pl.pallas_call(
        kernel,
        out_shape=(
            jax.ShapeDtypeStruct((B, C, C), jnp.float32),
            jax.ShapeDtypeStruct((B, 2 * C, 1), jnp.float32),
        ),
        grid=(B, HW // hw_t),
        in_specs=[pl.BlockSpec((1, qk_rows, hw_t), lambda b, t: (b, 0, t))],
        out_specs=(
            pl.BlockSpec((1, C, C), lambda b, t: (b, 0, 0)),
            pl.BlockSpec((1, 2 * C, 1), lambda b, t: (b, 0, 0)),
        ),
        compiler_params=pltpu.CompilerParams(
            dimension_semantics=("parallel", "arbitrary"),
            vmem_limit_bytes=_VMEM_LIMIT),
    )(qkv_flat)


# ----------------------------------------------------------------------------
# Tiny per-batch mixing matrix (plain JAX: O(B*C*C) work, negligible):
#   M = W_proj @ blockdiag_h( softmax(temp_h * G_h / (||q|| ||k||^T)) )
# ----------------------------------------------------------------------------
def mixing_matrix(g, ss, temperature, w_proj, num_heads):
    B, C, _ = g.shape
    cph = C // num_heads
    eps = 1e-12                                   # torch F.normalize default
    qn = jnp.maximum(jnp.sqrt(ss[:, :C, :]), eps)                 # (B, C, 1)
    kn = jnp.maximum(jnp.sqrt(ss[:, C:, :]), eps)                 # (B, C, 1)
    logits = g / (qn * jnp.swapaxes(kn, 1, 2))                    # (B, C, C)
    head = jnp.arange(C) // cph
    logits = logits * temperature[head][None, :, None]
    block_mask = head[:, None] == head[None, :]
    logits = jnp.where(block_mask[None], logits, -jnp.inf)
    attn = jax.nn.softmax(logits, axis=-1)        # block-diagonal attention
    return jnp.einsum("oi,bij->boj", w_proj, attn,
                      precision=lax.Precision.HIGHEST)            # (B, C, C)


# ----------------------------------------------------------------------------
# Kernel 3: out = M @ v + b_proj, streamed over hw tiles (lane-dense output).
# ----------------------------------------------------------------------------
def _mixv_kernel(m_ref, v_ref, bp_ref, o_ref, *, v_start, C):
    v = v_ref[0, v_start:v_start + C, :].astype(jnp.float32)      # (C, hw_t)
    acc = jnp.dot(m_ref[0], v, preferred_element_type=jnp.float32)
    o_ref[0] = (acc + bp_ref[...]).astype(o_ref.dtype)


def attn_project(qkv_flat, m, b_proj, C):
    B, C3, HW = qkv_flat.shape
    hw_t = _pick_hw_tile(HW)
    if C % 8 == 0:
        v_rows, v_block_idx, v_start = C, 2, 0     # read only the v channels
    else:
        v_rows, v_block_idx, v_start = C3, 0, 2 * C
    kernel = functools.partial(_mixv_kernel, v_start=v_start, C=C)
    return pl.pallas_call(
        kernel,
        out_shape=jax.ShapeDtypeStruct((B, C, HW), qkv_flat.dtype),
        grid=(B, HW // hw_t),
        in_specs=[
            pl.BlockSpec((1, C, C), lambda b, t: (b, 0, 0)),
            pl.BlockSpec((1, v_rows, hw_t), lambda b, t: (b, v_block_idx, t)),
            pl.BlockSpec((C, 1), lambda b, t: (0, 0)),
        ],
        out_specs=pl.BlockSpec((1, C, hw_t), lambda b, t: (b, 0, t)),
        compiler_params=pltpu.CompilerParams(
            dimension_semantics=("parallel", "parallel"),
            vmem_limit_bytes=_VMEM_LIMIT),
    )(m, qkv_flat, b_proj)


# ----------------------------------------------------------------------------
# Full forward pass.
# ----------------------------------------------------------------------------
@functools.partial(jax.jit, static_argnames=("num_heads",))
def attention_forward(x, params, num_heads):
    b, c, h, w = x.shape
    qkv = qkv_dwconv(x, params["w_qkv"], params["b_qkv"],
                     params["w_dw"], params["b_dw"])
    qkv_flat = qkv.reshape(b, 3 * c, h * w)                       # free reshape
    g, ss = gram_stats(qkv_flat, c)
    m = mixing_matrix(g, ss, params["temperature"], params["w_proj"], num_heads)
    out_flat = attn_project(qkv_flat, m, params["b_proj"], c)
    return out_flat.reshape(b, c, h, w)                           # NCHW


def init_params(key, dim, num_heads):
    # PyTorch weights (Cout, Cin, 1, 1) / (3C, 1, 3, 3) stored pre-flattened.
    k1, k2, k3, k4, k5, k6 = jax.random.split(key, 6)
    s = 0.1
    return {
        "w_qkv": jax.random.normal(k1, (3 * dim, dim), jnp.float32) * s,
        "b_qkv": jax.random.normal(k2, (3 * dim, 1), jnp.float32) * s,
        "w_dw": jax.random.normal(k3, (3 * dim, 9), jnp.float32) * s,
        "b_dw": jax.random.normal(k4, (3 * dim, 1), jnp.float32) * s,
        "w_proj": jax.random.normal(k5, (dim, dim), jnp.float32) * s,
        "b_proj": jax.random.normal(k6, (dim, 1), jnp.float32) * s,
        # nn.Parameter(torch.ones(num_heads, 1, 1)) -> stored flat
        "temperature": jnp.ones((num_heads,), jnp.float32),
    }


def reference_forward(x, params, num_heads):
    """Plain-JAX reference matching the PyTorch module."""
    b, c, h, w = x.shape
    hp = lax.Precision.HIGHEST
    qkv = jnp.einsum("oc,bchw->bohw", params["w_qkv"], x, precision=hp)
    qkv = qkv + params["b_qkv"].reshape(1, -1, 1, 1)
    xp = jnp.pad(qkv, ((0, 0), (0, 0), (1, 1), (1, 1)))
    wd = params["w_dw"].reshape(-1, 3, 3)
    out = jnp.zeros_like(qkv)
    for ky in range(3):
        for kx in range(3):
            out = out + xp[:, :, ky:ky + h, kx:kx + w] * wd[None, :, ky, kx, None, None]
    qkv = out + params["b_dw"].reshape(1, -1, 1, 1)
    q, k, v = jnp.split(qkv, 3, axis=1)
    cph = c // num_heads
    hd = lambda t: t.reshape(b, num_heads, cph, h * w)
    q, k, v = hd(q), hd(k), hd(v)
    qn = q / jnp.maximum(jnp.sqrt(jnp.sum(q * q, -1, keepdims=True)), 1e-12)
    kn = k / jnp.maximum(jnp.sqrt(jnp.sum(k * k, -1, keepdims=True)), 1e-12)
    attn = jnp.einsum("bhcd,bhed->bhce", qn, kn, precision=hp)
    attn = attn * params["temperature"].reshape(1, num_heads, 1, 1)
    attn = jax.nn.softmax(attn, axis=-1)
    o = jnp.einsum("bhce,bhed->bhcd", attn, v, precision=hp).reshape(b, c, h * w)
    o = jnp.einsum("oc,bcd->bod", params["w_proj"], o, precision=hp)
    o = o + params["b_proj"].reshape(1, -1, 1)
    return o.reshape(b, c, h, w)


if __name__ == "__main__":
    dim, num_heads = 8, 2
    b, h, w = 2, 16, 16

    key = jax.random.PRNGKey(0)
    k_x, k_p = jax.random.split(key)
    x = jax.random.normal(k_x, (b, dim, h, w), jnp.float32)   # NCHW like PyTorch
    params = init_params(k_p, dim, num_heads)

    out = attention_forward(x, params, num_heads=num_heads)
    out = jax.block_until_ready(out)
    assert out.shape == (b, dim, h, w), out.shape

    ref = reference_forward(x, params, num_heads)
    max_err = float(jnp.max(jnp.abs(out - ref)))
    assert max_err < 5e-2, f"max abs error vs reference too large: {max_err}"
    print("KERNEL_OK")
</pallas_src>

<mosaic_0001>
module attributes {stable_mosaic.version = 11 : i64} {
  func.func @_qkv_dwconv_kernel(%arg0: i32, %arg1: i32, %arg2: memref<1x8x8x16xf32, #tpu.memory_space<vmem>>, %arg3: memref<1x8x8x16xf32, #tpu.memory_space<vmem>>, %arg4: memref<1x8x8x16xf32, #tpu.memory_space<vmem>>, %arg5: memref<24x8xf32, #tpu.memory_space<vmem>>, %arg6: memref<24x1xf32, #tpu.memory_space<vmem>>, %arg7: memref<24x9xf32, #tpu.memory_space<vmem>>, %arg8: memref<24x1xf32, #tpu.memory_space<vmem>>, %arg9: memref<1x24x8x16xf32, #tpu.memory_space<vmem>>) attributes {dimension_semantics = [#tpu.dimension_semantics<parallel>, #tpu.dimension_semantics<parallel>], iteration_bounds = array<i64: 2, 2>, scalar_prefetch = 0 : i64, scratch_operands = 0 : i64, tpu.core_type = #tpu.core_type<tc>, window_params = [{transform_indices = @transform_0, window_bounds = array<i64: 1, 8, 8, 16>}, {transform_indices = @transform_1, window_bounds = array<i64: 1, 8, 8, 16>}, {transform_indices = @transform_2, window_bounds = array<i64: 1, 8, 8, 16>}, {pipeline_mode = #tpu.pipeline_mode<synchronous>, transform_indices = @transform_3, window_bounds = array<i64: 24, 8>}, {pipeline_mode = #tpu.pipeline_mode<synchronous>, transform_indices = @transform_4, window_bounds = array<i64: 24, 1>}, {pipeline_mode = #tpu.pipeline_mode<synchronous>, transform_indices = @transform_5, window_bounds = array<i64: 24, 9>}, {pipeline_mode = #tpu.pipeline_mode<synchronous>, transform_indices = @transform_6, window_bounds = array<i64: 24, 1>}, {transform_indices = @transform_7, window_bounds = array<i64: 1, 24, 8, 16>}]} {
    %c0_i32 = arith.constant 0 : i32
    %0 = arith.cmpi sgt, %arg1, %c0_i32 : i32
    %1 = arith.extui %0 : i1 to i32
    %2 = arith.sitofp %1 : i32 to f32
    %c1_i32 = arith.constant 1 : i32
    %3 = arith.cmpi slt, %arg1, %c1_i32 : i32
    %4 = arith.extui %3 : i1 to i32
    %5 = arith.sitofp %4 : i32 to f32
    %c0 = arith.constant 0 : index
    %c0_0 = arith.constant 0 : index
    %6 = vector.load %arg5[%c0, %c0_0] : memref<24x8xf32, #tpu.memory_space<vmem>>, vector<24x8xf32>
    %c0_1 = arith.constant 0 : index
    %c0_2 = arith.constant 0 : index
    %7 = vector.load %arg6[%c0_1, %c0_2] : memref<24x1xf32, #tpu.memory_space<vmem>>, vector<24x1xf32>
    %c0_3 = arith.constant 0 : index
    %c0_4 = arith.constant 0 : index
    %c0_5 = arith.constant 0 : index
    %c0_6 = arith.constant 0 : index
    %8 = vector.load %arg2[%c0_3, %c0_4, %c0_5, %c0_6] : memref<1x8x8x16xf32, #tpu.memory_space<vmem>>, vector<1x8x8x16xf32>
    %9 = vector.shape_cast %8 : vector<1x8x8x16xf32> to vector<8x8x16xf32>
    %10 = vector.shape_cast %9 : vector<8x8x16xf32> to vector<8x128xf32>
    %cst = arith.constant dense<0.000000e+00> : vector<24x128xf32>
    %11 = tpu.matmul %6, %10, %cst {dimension_numbers = #tpu.dot_dimension_numbers<[1], [0], [0], [1], [0, 0, 1, 1], [], []>} : vector<24x8xf32>, vector<8x128xf32>, vector<24x128xf32> -> vector<24x128xf32>
    %12 = vector.broadcast %7 : vector<24x1xf32> to vector<24x128xf32>
    %13 = arith.addf %11, %12 : vector<24x128xf32>
    %14 = vector.shape_cast %13 : vector<24x128xf32> to vector<24x8x16xf32>
    %c0_7 = arith.constant 0 : index
    %c0_8 = arith.constant 0 : index
    %c7 = arith.constant 7 : index
    %c0_9 = arith.constant 0 : index
    %15 = vector.load %arg3[%c0_7, %c0_8, %c7, %c0_9] : memref<1x8x8x16xf32, #tpu.memory_space<vmem>>, vector<1x8x1x16xf32>
    %16 = vector.shape_cast %15 : vector<1x8x1x16xf32> to vector<8x16xf32>
    %c0_10 = arith.constant 0 : index
    %c0_11 = arith.constant 0 : index
    %c0_12 = arith.constant 0 : index
    %c0_13 = arith.constant 0 : index
    %17 = vector.load %arg4[%c0_10, %c0_11, %c0_12, %c0_13] : memref<1x8x8x16xf32, #tpu.memory_space<vmem>>, vector<1x8x1x16xf32>
    %18 = vector.shape_cast %17 : vector<1x8x1x16xf32> to vector<8x16xf32>
    %cst_14 = arith.constant dense<0.000000e+00> : vector<24x16xf32>
    %19 = tpu.matmul %6, %16, %cst_14 {dimension_numbers = #tpu.dot_dimension_numbers<[1], [0], [0], [1], [0, 0, 1, 1], [], []>} : vector<24x8xf32>, vector<8x16xf32>, vector<24x16xf32> -> vector<24x16xf32>
    %20 = vector.broadcast %7 : vector<24x1xf32> to vector<24x16xf32>
    %21 = arith.addf %19, %20 : vector<24x16xf32>
    %22 = vector.broadcast %2 : f32 to vector<24x16xf32>
    %23 = arith.mulf %21, %22 : vector<24x16xf32>
    %cst_15 = arith.constant dense<0.000000e+00> : vector<24x16xf32>
    %24 = tpu.matmul %6, %18, %cst_15 {dimension_numbers = #tpu.dot_dimension_numbers<[1], [0], [0], [1], [0, 0, 1, 1], [], []>} : vector<24x8xf32>, vector<8x16xf32>, vector<24x16xf32> -> vector<24x16xf32>
    %25 = vector.broadcast %7 : vector<24x1xf32> to vector<24x16xf32>
    %26 = arith.addf %24, %25 : vector<24x16xf32>
    %27 = vector.broadcast %5 : f32 to vector<24x16xf32>
    %28 = arith.mulf %26, %27 : vector<24x16xf32>
    %29 = vector.shape_cast %23 : vector<24x16xf32> to vector<24x1x16xf32>
    %30 = vector.shape_cast %28 : vector<24x16xf32> to vector<24x1x16xf32>
    %31 = tpu.concatenate %29, %14, %30 in 1 : vector<24x1x16xf32>, vector<24x8x16xf32>, vector<24x1x16xf32> -> vector<24x10x16xf32>
    %cst_16 = arith.constant 0.000000e+00 : f32
    %32 = vector.broadcast %cst_16 : f32 to vector<24x10x1xf32>
    %33 = tpu.concatenate %32, %31, %32 in 2 : vector<24x10x1xf32>, vector<24x10x16xf32>, vector<24x10x1xf32> -> vector<24x10x18xf32>
    %c0_17 = arith.constant 0 : index
    %c0_18 = arith.constant 0 : index
    %34 = vector.load %arg8[%c0_17, %c0_18] : memref<24x1xf32, #tpu.memory_space<vmem>>, vector<24x1xf32>
    %35 = vector.shape_cast %34 : vector<24x1xf32> to vector<24x1x1xf32>
    %36 = vector.shape_cast %35 : vector<24x1x1xf32> to vector<24x1x1xf32>
    %37 = vector.broadcast %36 : vector<24x1x1xf32> to vector<24x8x16xf32>
    %c0_19 = arith.constant 0 : index
    %c0_20 = arith.constant 0 : index
    %38 = vector.load %arg7[%c0_19, %c0_20] : memref<24x9xf32, #tpu.memory_space<vmem>>, vector<24x1xf32>
    %39 = vector.shape_cast %38 : vector<24x1xf32> to vector<24x1x1xf32>
    %40 = vector.extract_strided_slice %33 {offsets = [0, 0, 0], sizes = [24, 8, 16], strides = [1, 1, 1]} : vector<24x10x18xf32> to vector<24x8x16xf32>
    %41 = vector.broadcast %39 : vector<24x1x1xf32> to vector<24x8x16xf32>
    %42 = arith.mulf %40, %41 : vector<24x8x16xf32>
    %43 = arith.addf %37, %42 : vector<24x8x16xf32>
    %c0_21 = arith.constant 0 : index
    %c1 = arith.constant 1 : index
    %44 = vector.load %arg7[%c0_21, %c1] : memref<24x9xf32, #tpu.memory_space<vmem>>, vector<24x1xf32>
    %45 = vector.shape_cast %44 : vector<24x1xf32> to vector<24x1x1xf32>
    %46 = vector.extract_strided_slice %33 {offsets = [0, 0, 1], sizes = [24, 8, 16], strides = [1, 1, 1]} : vector<24x10x18xf32> to vector<24x8x16xf32>
    %47 = vector.broadcast %45 : vector<24x1x1xf32> to vector<24x8x16xf32>
    %48 = arith.mulf %46, %47 : vector<24x8x16xf32>
    %49 = arith.addf %43, %48 : vector<24x8x16xf32>
    %c0_22 = arith.constant 0 : index
    %c2 = arith.constant 2 : index
    %50 = vector.load %arg7[%c0_22, %c2] : memref<24x9xf32, #tpu.memory_space<vmem>>, vector<24x1xf32>
    %51 = vector.shape_cast %50 : vector<24x1xf32> to vector<24x1x1xf32>
    %52 = vector.extract_strided_slice %33 {offsets = [0, 0, 2], sizes = [24, 8, 16], strides = [1, 1, 1]} : vector<24x10x18xf32> to vector<24x8x16xf32>
    %53 = vector.broadcast %51 : vector<24x1x1xf32> to vector<24x8x16xf32>
    %54 = arith.mulf %52, %53 : vector<24x8x16xf32>
    %55 = arith.addf %49, %54 : vector<24x8x16xf32>
    %c0_23 = arith.constant 0 : index
    %c3 = arith.constant 3 : index
    %56 = vector.load %arg7[%c0_23, %c3] : memref<24x9xf32, #tpu.memory_space<vmem>>, vector<24x1xf32>
    %57 = vector.shape_cast %56 : vector<24x1xf32> to vector<24x1x1xf32>
    %58 = vector.extract_strided_slice %33 {offsets = [0, 1, 0], sizes = [24, 8, 16], strides = [1, 1, 1]} : vector<24x10x18xf32> to vector<24x8x16xf32>
    %59 = vector.broadcast %57 : vector<24x1x1xf32> to vector<24x8x16xf32>
    %60 = arith.mulf %58, %59 : vector<24x8x16xf32>
    %61 = arith.addf %55, %60 : vector<24x8x16xf32>
    %c0_24 = arith.constant 0 : index
    %c4 = arith.constant 4 : index
    %62 = vector.load %arg7[%c0_24, %c4] : memref<24x9xf32, #tpu.memory_space<vmem>>, vector<24x1xf32>
    %63 = vector.shape_cast %62 : vector<24x1xf32> to vector<24x1x1xf32>
    %64 = vector.extract_strided_slice %33 {offsets = [0, 1, 1], sizes = [24, 8, 16], strides = [1, 1, 1]} : vector<24x10x18xf32> to vector<24x8x16xf32>
    %65 = vector.broadcast %63 : vector<24x1x1xf32> to vector<24x8x16xf32>
    %66 = arith.mulf %64, %65 : vector<24x8x16xf32>
    %67 = arith.addf %61, %66 : vector<24x8x16xf32>
    %c0_25 = arith.constant 0 : index
    %c5 = arith.constant 5 : index
    %68 = vector.load %arg7[%c0_25, %c5] : memref<24x9xf32, #tpu.memory_space<vmem>>, vector<24x1xf32>
    %69 = vector.shape_cast %68 : vector<24x1xf32> to vector<24x1x1xf32>
    %70 = vector.extract_strided_slice %33 {offsets = [0, 1, 2], sizes = [24, 8, 16], strides = [1, 1, 1]} : vector<24x10x18xf32> to vector<24x8x16xf32>
    %71 = vector.broadcast %69 : vector<24x1x1xf32> to vector<24x8x16xf32>
    %72 = arith.mulf %70, %71 : vector<24x8x16xf32>
    %73 = arith.addf %67, %72 : vector<24x8x16xf32>
    %c0_26 = arith.constant 0 : index
    %c6 = arith.constant 6 : index
    %74 = vector.load %arg7[%c0_26, %c6] : memref<24x9xf32, #tpu.memory_space<vmem>>, vector<24x1xf32>
    %75 = vector.shape_cast %74 : vector<24x1xf32> to vector<24x1x1xf32>
    %76 = vector.extract_strided_slice %33 {offsets = [0, 2, 0], sizes = [24, 8, 16], strides = [1, 1, 1]} : vector<24x10x18xf32> to vector<24x8x16xf32>
    %77 = vector.broadcast %75 : vector<24x1x1xf32> to vector<24x8x16xf32>
    %78 = arith.mulf %76, %77 : vector<24x8x16xf32>
    %79 = arith.addf %73, %78 : vector<24x8x16xf32>
    %c0_27 = arith.constant 0 : index
    %c7_28 = arith.constant 7 : index
    %80 = vector.load %arg7[%c0_27, %c7_28] : memref<24x9xf32, #tpu.memory_space<vmem>>, vector<24x1xf32>
    %81 = vector.shape_cast %80 : vector<24x1xf32> to vector<24x1x1xf32>
    %82 = vector.extract_strided_slice %33 {offsets = [0, 2, 1], sizes = [24, 8, 16], strides = [1, 1, 1]} : vector<24x10x18xf32> to vector<24x8x16xf32>
    %83 = vector.broadcast %81 : vector<24x1x1xf32> to vector<24x8x16xf32>
    %84 = arith.mulf %82, %83 : vector<24x8x16xf32>
    %85 = arith.addf %79, %84 : vector<24x8x16xf32>
    %c0_29 = arith.constant 0 : index
    %c8 = arith.constant 8 : index
    %86 = vector.load %arg7[%c0_29, %c8] : memref<24x9xf32, #tpu.memory_space<vmem>>, vector<24x1xf32>
    %87 = vector.shape_cast %86 : vector<24x1xf32> to vector<24x1x1xf32>
    %88 = vector.extract_strided_slice %33 {offsets = [0, 2, 2], sizes = [24, 8, 16], strides = [1, 1, 1]} : vector<24x10x18xf32> to vector<24x8x16xf32>
    %89 = vector.broadcast %87 : vector<24x1x1xf32> to vector<24x8x16xf32>
    %90 = arith.mulf %88, %89 : vector<24x8x16xf32>
    %91 = arith.addf %85, %90 : vector<24x8x16xf32>
    %c0_30 = arith.constant 0 : index
    %c0_31 = arith.constant 0 : index
    %c0_32 = arith.constant 0 : index
    %c0_33 = arith.constant 0 : index
    %92 = vector.load %arg9[%c0_30, %c0_31, %c0_32, %c0_33] : memref<1x24x8x16xf32, #tpu.memory_space<vmem>>, vector<1x24x8x16xf32>
    %93 = vector.shape_cast %92 : vector<1x24x8x16xf32> to vector<24x8x16xf32>
    %94 = vector.shape_cast %91 : vector<24x8x16xf32> to vector<1x24x8x16xf32>
    tpu.vector_store %arg9[%c0_30, %c0_31, %c0_32, %c0_33], %94 {strides = array<i32>} : memref<1x24x8x16xf32, #tpu.memory_space<vmem>>, vector<1x24x8x16xf32>,
    return
  }
  func.func @transform_0(%arg0: i32, %arg1: i32) -> (i32, i32, i32, i32) {
    %c0_i32 = arith.constant 0 : i32
    %c0_i32_0 = arith.constant 0 : i32
    %c0_i32_1 = arith.constant 0 : i32
    return %arg0, %c0_i32, %arg1, %c0_i32_0 : i32, i32, i32, i32
  }
  func.func @transform_1(%arg0: i32, %arg1: i32) -> (i32, i32, i32, i32) {
    %c1_i32 = arith.constant 1 : i32
    %0 = arith.muli %arg1, %c1_i32 : i32
    %c1_i32_0 = arith.constant 1 : i32
    %1 = arith.subi %0, %c1_i32_0 : i32
    %c0_i32 = arith.constant 0 : i32
    %2 = arith.maxsi %1, %c0_i32 : i32
    %c0_i32_1 = arith.constant 0 : i32
    %c0_i32_2 = arith.constant 0 : i32
    %c0_i32_3 = arith.constant 0 : i32
    return %arg0, %c0_i32_1, %2, %c0_i32_2 : i32, i32, i32, i32
  }
  func.func @transform_2(%arg0: i32, %arg1: i32) -> (i32, i32, i32, i32) {
    %c1_i32 = arith.constant 1 : i32
    %0 = arith.muli %arg1, %c1_i32 : i32
    %c1_i32_0 = arith.constant 1 : i32
    %1 = arith.addi %0, %c1_i32_0 : i32
    %c1_i32_1 = arith.constant 1 : i32
    %2 = arith.minsi %1, %c1_i32_1 : i32
    %c0_i32 = arith.constant 0 : i32
    %c0_i32_2 = arith.constant 0 : i32
    %c0_i32_3 = arith.constant 0 : i32
    return %arg0, %c0_i32, %2, %c0_i32_2 : i32, i32, i32, i32
  }
  func.func @transform_3(%arg0: i32, %arg1: i32) -> (i32, i32) {
    %c0_i32 = arith.constant 0 : i32
    %c0_i32_0 = arith.constant 0 : i32
    %c0_i32_1 = arith.constant 0 : i32
    return %c0_i32, %c0_i32_0 : i32, i32
  }
  func.func @transform_4(%arg0: i32, %arg1: i32) -> (i32, i32) {
    %c0_i32 = arith.constant 0 : i32
    %c0_i32_0 = arith.constant 0 : i32
    %c0_i32_1 = arith.constant 0 : i32
    return %c0_i32, %c0_i32_0 : i32, i32
  }
  func.func @transform_5(%arg0: i32, %arg1: i32) -> (i32, i32) {
    %c0_i32 = arith.constant 0 : i32
    %c0_i32_0 = arith.constant 0 : i32
    %c0_i32_1 = arith.constant 0 : i32
    return %c0_i32, %c0_i32_0 : i32, i32
  }
  func.func @transform_6(%arg0: i32, %arg1: i32) -> (i32, i32) {
    %c0_i32 = arith.constant 0 : i32
    %c0_i32_0 = arith.constant 0 : i32
    %c0_i32_1 = arith.constant 0 : i32
    return %c0_i32, %c0_i32_0 : i32, i32
  }
  func.func @transform_7(%arg0: i32, %arg1: i32) -> (i32, i32, i32, i32) {
    %c0_i32 = arith.constant 0 : i32
    %c0_i32_0 = arith.constant 0 : i32
    %c0_i32_1 = arith.constant 0 : i32
    return %arg0, %c0_i32, %arg1, %c0_i32_0 : i32, i32, i32, i32
  }
}

module attributes {stable_mosaic.version = 11 : i64} {
  func.func @_gram_stats_kernel(%arg0: i32, %arg1: i32, %arg2: memref<1x16x256xf32, #tpu.memory_space<vmem>>, %arg3: memref<1x8x8xf32, #tpu.memory_space<vmem>>, %arg4: memref<1x16x1xf32, #tpu.memory_space<vmem>>) attributes {dimension_semantics = [#tpu.dimension_semantics<parallel>, #tpu.dimension_semantics<arbitrary>], iteration_bounds = array<i64: 2, 1>, scalar_prefetch = 0 : i64, scratch_operands = 0 : i64, tpu.core_type = #tpu.core_type<tc>, window_params = [{transform_indices = @transform_0, window_bounds = array<i64: 1, 16, 256>}, {transform_indices = @transform_1, window_bounds = array<i64: 1, 8, 8>}, {transform_indices = @transform_2, window_bounds = array<i64: 1, 16, 1>}]} {
    %c0_i32 = arith.constant 0 : i32
    %0 = arith.cmpi eq, %arg1, %c0_i32 : i32
    %1 = arith.extui %0 : i1 to i32
    %c0_i32_0 = arith.constant 0 : i32
    %2 = arith.cmpi ne, %1, %c0_i32_0 : i32
    scf.if %2 {
      %cst_16 = arith.constant 0.000000e+00 : f32
      %23 = vector.broadcast %cst_16 : f32 to vector<1x8x8xf32>
      %c0_17 = arith.constant 0 : index
      %c0_18 = arith.constant 0 : index
      %c0_19 = arith.constant 0 : index
      %24 = vector.load %arg3[%c0_17, %c0_18, %c0_19] : memref<1x8x8xf32, #tpu.memory_space<vmem>>, vector<1x8x8xf32>
      tpu.vector_store %arg3[%c0_17, %c0_18, %c0_19], %23 {strides = array<i32>} : memref<1x8x8xf32, #tpu.memory_space<vmem>>, vector<1x8x8xf32>,
      %cst_20 = arith.constant 0.000000e+00 : f32
      %25 = vector.broadcast %cst_20 : f32 to vector<1x16x1xf32>
      %c0_21 = arith.constant 0 : index
      %c0_22 = arith.constant 0 : index
      %c0_23 = arith.constant 0 : index
      %26 = vector.load %arg4[%c0_21, %c0_22, %c0_23] : memref<1x16x1xf32, #tpu.memory_space<vmem>>, vector<1x16x1xf32>
      tpu.vector_store %arg4[%c0_21, %c0_22, %c0_23], %25 {strides = array<i32>} : memref<1x16x1xf32, #tpu.memory_space<vmem>>, vector<1x16x1xf32>,
    } else {
    }
    %c0 = arith.constant 0 : index
    %c0_1 = arith.constant 0 : index
    %c0_2 = arith.constant 0 : index
    %3 = vector.load %arg2[%c0, %c0_1, %c0_2] : memref<1x16x256xf32, #tpu.memory_space<vmem>>, vector<1x16x256xf32>
    %4 = vector.shape_cast %3 : vector<1x16x256xf32> to vector<16x256xf32>
    %5 = vector.extract_strided_slice %4 {offsets = [0, 0], sizes = [8, 256], strides = [1, 1]} : vector<16x256xf32> to vector<8x256xf32>
    %6 = vector.extract_strided_slice %4 {offsets = [8, 0], sizes = [8, 256], strides = [1, 1]} : vector<16x256xf32> to vector<8x256xf32>
    %c0_3 = arith.constant 0 : index
    %c0_4 = arith.constant 0 : index
    %c0_5 = arith.constant 0 : index
    %7 = vector.load %arg3[%c0_3, %c0_4, %c0_5] : memref<1x8x8xf32, #tpu.memory_space<vmem>>, vector<1x8x8xf32>
    %8 = vector.shape_cast %7 : vector<1x8x8xf32> to vector<8x8xf32>
    %cst = arith.constant dense<0.000000e+00> : vector<8x8xf32>
    %9 = tpu.matmul %5, %6, %cst {dimension_numbers = #tpu.dot_dimension_numbers<[1], [1], [0], [0], [0, 0, 1, 0], [], []>} : vector<8x256xf32>, vector<8x256xf32>, vector<8x8xf32> -> vector<8x8xf32>
    %10 = arith.addf %8, %9 : vector<8x8xf32>
    %c0_6 = arith.constant 0 : index
    %c0_7 = arith.constant 0 : index
    %c0_8 = arith.constant 0 : index
    %11 = vector.load %arg3[%c0_6, %c0_7, %c0_8] : memref<1x8x8xf32, #tpu.memory_space<vmem>>, vector<1x8x8xf32>
    %12 = vector.shape_cast %11 : vector<1x8x8xf32> to vector<8x8xf32>
    %13 = vector.shape_cast %10 : vector<8x8xf32> to vector<1x8x8xf32>
    tpu.vector_store %arg3[%c0_6, %c0_7, %c0_8], %13 {strides = array<i32>} : memref<1x8x8xf32, #tpu.memory_space<vmem>>, vector<1x8x8xf32>,
    %c0_9 = arith.constant 0 : index
    %c0_10 = arith.constant 0 : index
    %c0_11 = arith.constant 0 : index
    %14 = vector.load %arg4[%c0_9, %c0_10, %c0_11] : memref<1x16x1xf32, #tpu.memory_space<vmem>>, vector<1x16x1xf32>
    %15 = vector.shape_cast %14 : vector<1x16x1xf32> to vector<16x1xf32>
    %16 = arith.mulf %4, %4 : vector<16x256xf32>
    %cst_12 = arith.constant dense<0.000000e+00> : vector<16xf32>
    %17 = vector.multi_reduction <add>, %16, %cst_12 [1] : vector<16x256xf32> to vector<16xf32>
    %18 = vector.shape_cast %17 : vector<16xf32> to vector<16x1xf32>
    %19 = arith.addf %15, %18 : vector<16x1xf32>
    %c0_13 = arith.constant 0 : index
    %c0_14 = arith.constant 0 : index
    %c0_15 = arith.constant 0 : index
    %20 = vector.load %arg4[%c0_13, %c0_14, %c0_15] : memref<1x16x1xf32, #tpu.memory_space<vmem>>, vector<1x16x1xf32>
    %21 = vector.shape_cast %20 : vector<1x16x1xf32> to vector<16x1xf32>
    %22 = vector.shape_cast %19 : vector<16x1xf32> to vector<1x16x1xf32>
    tpu.vector_store %arg4[%c0_13, %c0_14, %c0_15], %22 {strides = array<i32>} : memref<1x16x1xf32, #tpu.memory_space<vmem>>, vector<1x16x1xf32>,
    return
  }
  func.func @transform_0(%arg0: i32, %arg1: i32) -> (i32, i32, i32) {
    %c0_i32 = arith.constant 0 : i32
    %c0_i32_0 = arith.constant 0 : i32
    return %arg0, %c0_i32, %arg1 : i32, i32, i32
  }
  func.func @transform_1(%arg0: i32, %arg1: i32) -> (i32, i32, i32) {
    %c0_i32 = arith.constant 0 : i32
    %c0_i32_0 = arith.constant 0 : i32
    %c0_i32_1 = arith.constant 0 : i32
    return %arg0, %c0_i32, %c0_i32_0 : i32, i32, i32
  }
  func.func @transform_2(%arg0: i32, %arg1: i32) -> (i32, i32, i32) {
    %c0_i32 = arith.constant 0 : i32
    %c0_i32_0 = arith.constant 0 : i32
    %c0_i32_1 = arith.constant 0 : i32
    return %arg0, %c0_i32, %c0_i32_0 : i32, i32, i32
  }
}

module attributes {stable_mosaic.version = 11 : i64} {
  func.func @_mixv_kernel(%arg0: i32, %arg1: i32, %arg2: memref<1x8x8xf32, #tpu.memory_space<vmem>>, %arg3: memref<1x8x256xf32, #tpu.memory_space<vmem>>, %arg4: memref<8x1xf32, #tpu.memory_space<vmem>>, %arg5: memref<1x8x256xf32, #tpu.memory_space<vmem>>) attributes {dimension_semantics = [#tpu.dimension_semantics<parallel>, #tpu.dimension_semantics<parallel>], iteration_bounds = array<i64: 2, 1>, scalar_prefetch = 0 : i64, scratch_operands = 0 : i64, tpu.core_type = #tpu.core_type<tc>, window_params = [{transform_indices = @transform_0, window_bounds = array<i64: 1, 8, 8>}, {transform_indices = @transform_1, window_bounds = array<i64: 1, 8, 256>}, {pipeline_mode = #tpu.pipeline_mode<synchronous>, transform_indices = @transform_2, window_bounds = array<i64: 8, 1>}, {transform_indices = @transform_3, window_bounds = array<i64: 1, 8, 256>}]} {
    %c0 = arith.constant 0 : index
    %c0_0 = arith.constant 0 : index
    %c0_1 = arith.constant 0 : index
    %0 = vector.load %arg3[%c0, %c0_0, %c0_1] : memref<1x8x256xf32, #tpu.memory_space<vmem>>, vector<1x8x256xf32>
    %1 = vector.shape_cast %0 : vector<1x8x256xf32> to vector<8x256xf32>
    %c0_2 = arith.constant 0 : index
    %c0_3 = arith.constant 0 : index
    %c0_4 = arith.constant 0 : index
    %2 = vector.load %arg2[%c0_2, %c0_3, %c0_4] : memref<1x8x8xf32, #tpu.memory_space<vmem>>, vector<1x8x8xf32>
    %3 = vector.shape_cast %2 : vector<1x8x8xf32> to vector<8x8xf32>
    %cst = arith.constant dense<0.000000e+00> : vector<8x256xf32>
    %4 = tpu.matmul %3, %1, %cst {dimension_numbers = #tpu.dot_dimension_numbers<[1], [0], [0], [1], [0, 0, 1, 1], [], []>} : vector<8x8xf32>, vector<8x256xf32>, vector<8x256xf32> -> vector<8x256xf32>
    %c0_5 = arith.constant 0 : index
    %c0_6 = arith.constant 0 : index
    %5 = vector.load %arg4[%c0_5, %c0_6] : memref<8x1xf32, #tpu.memory_space<vmem>>, vector<8x1xf32>
    %6 = vector.broadcast %5 : vector<8x1xf32> to vector<8x256xf32>
    %7 = arith.addf %4, %6 : vector<8x256xf32>
    %c0_7 = arith.constant 0 : index
    %c0_8 = arith.constant 0 : index
    %c0_9 = arith.constant 0 : index
    %8 = vector.load %arg5[%c0_7, %c0_8, %c0_9] : memref<1x8x256xf32, #tpu.memory_space<vmem>>, vector<1x8x256xf32>
    %9 = vector.shape_cast %8 : vector<1x8x256xf32> to vector<8x256xf32>
    %10 = vector.shape_cast %7 : vector<8x256xf32> to vector<1x8x256xf32>
    tpu.vector_store %arg5[%c0_7, %c0_8, %c0_9], %10 {strides = array<i32>} : memref<1x8x256xf32, #tpu.memory_space<vmem>>, vector<1x8x256xf32>,
    return
  }
  func.func @transform_0(%arg0: i32, %arg1: i32) -> (i32, i32, i32) {
    %c0_i32 = arith.constant 0 : i32
    %c0_i32_0 = arith.constant 0 : i32
    %c0_i32_1 = arith.constant 0 : i32
    return %arg0, %c0_i32, %c0_i32_0 : i32, i32, i32
  }
  func.func @transform_1(%arg0: i32, %arg1: i32) -> (i32, i32, i32) {
    %c2_i32 = arith.constant 2 : i32
    %c0_i32 = arith.constant 0 : i32
    return %arg0, %c2_i32, %arg1 : i32, i32, i32
  }
  func.func @transform_2(%arg0: i32, %arg1: i32) -> (i32, i32) {
    %c0_i32 = arith.constant 0 : i32
    %c0_i32_0 = arith.constant 0 : i32
    %c0_i32_1 = arith.constant 0 : i32
    return %c0_i32, %c0_i32_0 : i32, i32
  }
  func.func @transform_3(%arg0: i32, %arg1: i32) -> (i32, i32, i32) {
    %c0_i32 = arith.constant 0 : i32
    %c0_i32_0 = arith.constant 0 : i32
    return %arg0, %c0_i32, %arg1 : i32, i32, i32
  }
}

</mosaic_0001>

<llo_original>
// kernel: attention_forward.4
$region0: #{attention_forward.4}
  #allocation0 [shape = 'u32[]', space=smem, size = 0x4, offset = 0x4, fixed_abs, tag = 'smem constant byte address 0x4 - core index']
  #allocation1 [shape = 'u32[144,128]{1,0:T(1,128)}', space=vmem, size = 0x12000, scoped, tag = 'internal scratch']
  %s0 = inlined_call_operand.vmem [shape: f32[2,24,256], index: 0, kind: input, shape index: {}]
  %s1 = inlined_call_operand.vmem [shape: f32[2,8,8], index: 1, kind: output, shape index: {0}]
  %s2 = inlined_call_operand.vmem [shape: f32[2,16,1], index: 2, kind: output, shape index: {1}]
  %3 = xla_tuple %s1, %s2
  %s4 = sld [smem:[#allocation0]]
  $region49: #{attention_forward.4} parent=0
    _
  %s6 = ssub.s32 1, %s4
  %s7 = scalar_select 0, %s6, %s4
  loop: start=0, step=1, limit=4
  $region2: #{attention_forward.4} parent=0 // loop_pre_header
    _
  $region3: #{attention_forward.4} parent=0 // loop_header
    %s9 = sphi 0, %s13
    %p10 = scmp.ge.s32.totalorder %s9, 4
    %s16 = sphi 0, %s28
    %s17 = sphi 0, %s24
    %s18 = sphi 0, %s16
    %s19 = sphi 0, %s17
    %s20 = sphi 0, %s18
    %s21 = sphi 0, %s19
    %s33 = sphi 0, %s35
    %s36 = sphi 0, %s33
    %s37 = sphi 0, %s36
    %s53 = sphi 0, %s37
    %s59 = sphi 0, %s61
    %s62 = sphi 0, %s59
    %s63 = sphi 0, %s62
    %s79 = sphi 0, %s63
    %s85 = sphi 0, %s87
    %s88 = sphi 0, %s85
    %s89 = sphi 0, %s88
    %s105 = sphi 0, %s89
  $region4: #{attention_forward.4} parent=0 // loop_header_branch
    %12 = sbr.rel (%p10) target = $region8
  $region5: #{attention_forward.4} parent=0 // loop_body
    %s14 = ssub.s32 %s9, 1
    %s15 = ssub.s32 %s9, 2
    %s22 = sadd.s32 1, %s17
    %p23 = scmp.ge.s32.totalorder %s22, 1
    %s24 = scalar_select %p23, 0, %s22
    %s25 = sadd.s32 1, %s16
    %s26 = scalar_select %p23, %s25, %s16
    %p27 = scmp.ge.s32.totalorder %s26, 2
    %s28 = scalar_select %p27, 0, %s26
    %s29 = ssub.s32 %s16, %s28
    %s30 = ssub.s32 %s17, %s24
    %s31 = sor.u32 %s29, %s30
    %p32 = scmp.eq.s32.totalorder %s31, 0
    %s34 = sadd.s32 %s33, 1
    %s35 = scalar_select %p32, %s33, %s34
    %p38 = pneg %p32
    %p39 = scmp.eq.s32.totalorder %s9, 1
    %p40 = por %p38, %p39
    %p41 = scmp.ne.s32.totalorder %s33, %s36
    %p42 = scmp.eq.s32.totalorder %s9, 0
    %p43 = por %p41, %p42
    %p44 = scmp.ne.s32.totalorder %s33, %s36
    %p45 = scmp.eq.s32.totalorder %s14, 1
    %p46 = por %p44, %p45
    %p47 = scmp.ne.s32.totalorder %s36, %s37
    %p48 = scmp.eq.s32.totalorder %s14, 0
    %p49 = por %p47, %p48
    %p50 = scmp.ne.s32.totalorder %s36, %s37
    %p51 = scmp.eq.s32.totalorder %s15, 1
    %p52 = por %p50, %p51
    %p54 = scmp.ne.s32.totalorder %s37, %s53
    %p55 = scmp.eq.s32.totalorder %s15, 0
    %p56 = por %p54, %p55
    %s57 = ssub.s32 %s16, %s28
    %p58 = scmp.eq.s32.totalorder %s57, 0
    %s60 = sadd.s32 %s59, 1
    %s61 = scalar_select %p58, %s59, %s60
    %p64 = pneg %p58
    %p65 = scmp.eq.s32.totalorder %s9, 1
    %p66 = por %p64, %p65
    %p67 = scmp.ne.s32.totalorder %s59, %s62
    %p68 = scmp.eq.s32.totalorder %s9, 0
    %p69 = por %p67, %p68
    %p70 = scmp.ne.s32.totalorder %s59, %s62
    %p71 = scmp.eq.s32.totalorder %s14, 1
    %p72 = por %p70, %p71
    %p73 = scmp.ne.s32.totalorder %s62, %s63
    %p74 = scmp.eq.s32.totalorder %s14, 0
    %p75 = por %p73, %p74
    %p76 = scmp.ne.s32.totalorder %s62, %s63
    %p77 = scmp.eq.s32.totalorder %s15, 1
    %p78 = por %p76, %p77
    %p80 = scmp.ne.s32.totalorder %s63, %s79
    %p81 = scmp.eq.s32.totalorder %s15, 0
    %p82 = por %p80, %p81
    %s83 = ssub.s32 %s16, %s28
    %p84 = scmp.eq.s32.totalorder %s83, 0
    %s86 = sadd.s32 %s85, 1
    %s87 = scalar_select %p84, %s85, %s86
    %p90 = pneg %p84
    %p91 = scmp.eq.s32.totalorder %s9, 1
    %p92 = por %p90, %p91
    %p93 = scmp.ne.s32.totalorder %s85, %s88
    %p94 = scmp.eq.s32.totalorder %s9, 0
    %p95 = por %p93, %p94
    %p96 = scmp.ne.s32.totalorder %s85, %s88
    %p97 = scmp.eq.s32.totalorder %s14, 1
    %p98 = por %p96, %p97
    %p99 = scmp.ne.s32.totalorder %s88, %s89
    %p100 = scmp.eq.s32.totalorder %s14, 0
    %p101 = por %p99, %p100
    %p102 = scmp.ne.s32.totalorder %s88, %s89
    %p103 = scmp.eq.s32.totalorder %s15, 1
    %p104 = por %p102, %p103
    %p106 = scmp.ne.s32.totalorder %s89, %s105
    %p107 = scmp.eq.s32.totalorder %s15, 0
    %p108 = por %p106, %p107
    %p109 = scmp.le.s32.totalorder 1, %s9
    %p110 = scmp.lt.s32.totalorder %s9, 3
    %p111 = pnand %p109, %p110
    %p112 = pneg %p111
    // Predicated region
    $region9: #{attention_forward.4} parent=5 // pred_check
      _
    $region10: #{attention_forward.4} parent=5 // pred_check_branch
      %114 = sbr.rel (%p111) target = $region12
    $region11: #{attention_forward.4} parent=5 // pred_region
      %s115 = ssub.s32 %s9, 1
    $region12: #{attention_forward.4} parent=5 // pred_fallthru
      _
    %p116 = scmp.lt.s32.totalorder %s9, 2
    // Predicated region
    $region13: #{attention_forward.4} parent=5 // pred_check
      %p117 = pneg %p116
    $region14: #{attention_forward.4} parent=5 // pred_check_branch
      %119 = sbr.rel (%p117) target = $region16
    $region15: #{attention_forward.4} parent=5 // pred_region
      // Predicated region
      $region17: #{attention_forward.4} parent=15 // pred_check
        %p120 = pneg %p43
      $region18: #{attention_forward.4} parent=15 // pred_check_branch
        %122 = sbr.rel (%p120) target = $region20
      $region19: #{attention_forward.4} parent=15 // pred_region
        %s123 = smul.u32 2, %s17
        %p124 = scmp.lt.s32.totalorder %s16, 1
        %s125 = scalar_select %p124, %s16, 1
        %p126 = scmp.lt.s32.totalorder %s123, 1
        %s127 = scalar_select %p126, %s123, 1
        %s128 = smul.addr %s125, 6
        %s129 = sadd.s32 %s127, %s128
        %s130 = smul.addr %s129, 8
        %s131 = scalar_lea.vmem %s0, %s130
        %s132 = smul.u32 2, %s17
      $region20: #{attention_forward.4} parent=15 // pred_fallthru
        _
    $region16: #{attention_forward.4} parent=5 // pred_fallthru
      _
    %p133 = scmp.le.s32.totalorder 1, %s9
    %p134 = scmp.lt.s32.totalorder %s9, 3
    %p135 = pnand %p133, %p134
    %p136 = pneg %p135
    // Predicated region
    $region21: #{attention_forward.4} parent=5 // pred_check
      _
    $region22: #{attention_forward.4} parent=5 // pred_check_branch
      %138 = sbr.rel (%p135) target = $region24
    $region23: #{attention_forward.4} parent=5 // pred_region
      %s139 = ssub.s32 %s9, 1
      %s140 = smul.u32 2, %s19
      %p141 = scmp.lt.s32.totalorder %s18, 1
      %s142 = scalar_select %p141, %s18, 1
      %p143 = scmp.lt.s32.totalorder %s140, 1
      %s144 = scalar_select %p143, %s140, 1
      %s145 = smul.addr %s142, 6
      %s146 = sadd.s32 %s144, %s145
      %s147 = smul.addr %s146, 8
      %s148 = scalar_lea.vmem %s0, %s147
      %p149 = pneg %p49
      %p150 = pneg %p46
      %p151 = pneg %p75
      %p152 = pneg %p72
      %p153 = scmp.lt.s32.totalorder %s18, 1
      %s154 = scalar_select %p153, %s18, 1
      %s155 = smul.addr %s154, 8
      %s156 = scalar_lea.vmem %s1, %s155
      %p157 = pneg %p101
      %p158 = pneg %p98
      %p159 = scmp.lt.s32.totalorder %s18, 1
      %s160 = scalar_select %p159, %s18, 1
      %s161 = smul.addr %s160, 2
      %s162 = smul.addr %s161, 8
      %s163 = scalar_lea.vmem %s2, %s162
      %s164 = smul.u32 2, %s19
      %p165 = scmp.lt.s32.totalorder %s18, 1
      %s166 = scalar_select %p165, %s18, 1
      %p167 = scmp.lt.s32.totalorder %s164, 1
      %s168 = scalar_select %p167, %s164, 1
      %s169 = smul.addr %s166, 6
      %s170 = sadd.s32 %s168, %s169
      %s171 = smul.addr %s170, 8
      %s172 = scalar_lea.vmem %s0, %s171
      %s173 = smul.u32 2, %s19
      %p174 = scmp.lt.s32.totalorder %s18, 1
      %s175 = scalar_select %p174, %s18, 1
      %s176 = smul.addr %s175, 8
      %s177 = scalar_lea.vmem %s1, %s176
      %p178 = scmp.lt.s32.totalorder %s18, 1
      %s179 = scalar_select %p178, %s18, 1
      %s180 = smul.addr %s179, 2
      %s181 = smul.addr %s180, 8
      %s182 = scalar_lea.vmem %s2, %s181
      %p183 = scmp.eq.s32.totalorder %s19, 0
      // Predicated region
      $region25: #{attention_forward.4} parent=23 // pred_check
        %p184 = pneg %p183
      $region26: #{attention_forward.4} parent=23 // pred_check_branch
        %186 = sbr.rel (%p184) target = $region28
      $region27: #{attention_forward.4} parent=23 // pred_region
        %vm187 = vcmask 64512
        %188 = vst.msk [vmem:[%s177] sm:$0xff] %vm187, 0.0
        %vm189 = vcmask 7168
        %190 = vst.msk [vmem:[%s182] sm:$0xff] %vm189, 0.0
        %191 = vst.msk [vmem:[%s182 + $0x8] sm:$0xff] %vm189, 0.0
      $region28: #{attention_forward.4} parent=23 // pred_fallthru
        _
      %v192 = vld [vmem:[%s172] sm:$0xff]
      %v193 = vld [vmem:[%s172 + $0x8] sm:$0xff]
      %v194 = vld [vmem:[%s172 + $0x10] sm:$0xff]
      %v195 = vld [vmem:[%s172 + $0x18] sm:$0xff]
      %v196 = vld [vmem:[%s177] sm:$0xff]
      %197 = vmatprep.subr.mxu0 %v195
      %198 = vmatpush1.xpose.msra.mxu0 %v194
      %199 = vmatprep.subr.mxu0 0.0
      %200 = vmatpush1.xpose.msra.mxu0 0.0
      %201 = vmatprep.subr.mxu0 0.0
      %202 = vmatpush1.xpose.msra.mxu0 0.0
      %203 = vmatprep.subr.mxu0 0.0
      %204 = vmatpush1.xpose.msra.mxu0 0.0
      %205 = vmatprep.subr.mxu0 0.0
      %206 = vmatpush1.xpose.msra.mxu0 0.0
      %207 = vmatprep.subr.mxu0 0.0
      %208 = vmatpush1.xpose.msra.mxu0 0.0
      %209 = vmatprep.subr.mxu0 0.0
      %210 = vmatpush1.xpose.msra.mxu0 0.0
      %211 = vmatprep.subr.mxu0 0.0
      %212 = vmatpush1.xpose.msra.mxu0 0.0
      %213 = vmatprep.subr.mxu0 0.0
      %214 = vmatpush1.xpose.msra.mxu0 0.0
      %215 = vmatprep.subr.mxu0 0.0
      %216 = vmatpush1.xpose.msra.mxu0 0.0
      %217 = vmatprep.subr.mxu0 0.0
      %218 = vmatpush1.xpose.msra.mxu0 0.0
      %219 = vmatprep.subr.mxu0 0.0
      %220 = vmatpush1.xpose.msra.mxu0 0.0
      %221 = vmatprep.subr.mxu0 0.0
      %222 = vmatpush1.xpose.msra.mxu0 0.0
      %223 = vmatprep.subr.mxu0 0.0
      %224 = vmatpush1.xpose.msra.mxu0 0.0
      %225 = vmatprep.subr.mxu0 0.0
      %226 = vmatpush1.xpose.msra.mxu0 0.0
      %227 = vmatprep.subr.mxu0 0.0
      %228 = vmatpush1.xpose.msra.mxu0 0.0
      %229 = vmatprep.subr.mxu0 0.0
      %230 = vmatpush1.xpose.msra.mxu0 0.0
      %231 = vmatprep.subr.mxu0 0.0
      %232 = vmatpush1.xpose.msra.mxu0 0.0
      %233 = vmatprep.subr.mxu0 0.0
      %234 = vmatpush1.xpose.msra.mxu0 0.0
      %235 = vmatprep.subr.mxu0 0.0
      %236 = vmatpush1.xpose.msra.mxu0 0.0
      %237 = vmatprep.subr.mxu0 0.0
      %238 = vmatpush1.xpose.msra.mxu0 0.0
      %239 = vmatprep.subr.mxu0 0.0
      %240 = vmatpush1.xpose.msra.mxu0 0.0
      %241 = vmatprep.subr.mxu0 0.0
      %242 = vmatpush1.xpose.msra.mxu0 0.0
      %243 = vmatprep.subr.mxu0 0.0
      %244 = vmatpush1.xpose.msra.mxu0 0.0
      %245 = vmatprep.subr.mxu0 0.0
      %246 = vmatpush1.xpose.msra.mxu0 0.0
      %247 = vmatprep.subr.mxu0 0.0
      %248 = vmatpush1.xpose.msra.mxu0 0.0
      %249 = vmatprep.subr.mxu0 0.0
      %250 = vmatpush1.xpose.msra.mxu0 0.0
      %251 = vmatprep.subr.mxu0 0.0
      %252 = vmatpush1.xpose.msra.mxu0 0.0
      %253 = vmatprep.subr.mxu0 0.0
      %254 = vmatpush1.xpose.msra.mxu0 0.0
      %255 = vmatprep.subr.mxu0 0.0
      %256 = vmatpush1.xpose.msra.mxu0 0.0
      %257 = vmatprep.subr.mxu0 0.0
      %258 = vmatpush1.xpose.msra.mxu0 0.0
      %259 = vmatprep.subr.mxu0 0.0
      %260 = vmatpush1.xpose.msra.mxu0 0.0
      %261 = vmatprep.mubr.f32.mxu0 %v193
      %262 = vmatmul.mubr.f32.gmra.mrb[0].mxu0 %v192
      %v263 = vpop.f32.mrb[0].mxu0
      %v264 = vadd.f32 0.0, %v263
      %v265 = vpop.f32.mrb[0].mxu0
      %266 = vdwg.mxu0
      %v267 = vadd.f32 %v196, %v264
      %vm268 = vcmask 64512
      %269 = vst.msk [vmem:[%s177] sm:$0xff] %vm268, %v267
      %v270 = vld [vmem:[%s182] sm:$0xff]
      %v271 = vld [vmem:[%s182 + $0x8] sm:$0xff]
      %v272 = vmul.f32 %v192, %v192
      %v273 = vmul.f32 %v193, %v193
      %v274 = vmul.f32 %v194, %v194
      %v275 = vmul.f32 %v195, %v195
      %v276 = vadd.f32 %v272, %v273
      %277 = vadd.xlane.f32.xlu0 %v276
      %v278 = vpop.xlane.xlu0 %277
      %v279 = vadd.f32 %v274, %v275
      %280 = vadd.xlane.f32.xlu0 %v279
      %v281 = vpop.xlane.xlu0 %280
      %v282 = vadd.f32 %v270, %v278
      %v283 = vadd.f32 %v271, %v281
      %vm284 = vcmask 7168
      %285 = vst.msk [vmem:[%s182] sm:$0xff] %vm284, %v282
      %286 = vst.msk [vmem:[%s182 + $0x8] sm:$0xff] %vm284, %v283
      %p287 = scmp.lt.s32.totalorder %s18, 1
      %s288 = scalar_select %p287, %s18, 1
      %s289 = smul.addr %s288, 8
      %s290 = scalar_lea.vmem %s1, %s289
      %p291 = scmp.lt.s32.totalorder %s18, 1
      %s292 = scalar_select %p291, %s18, 1
      %s293 = smul.addr %s292, 2
      %s294 = smul.addr %s293, 8
      %s295 = scalar_lea.vmem %s2, %s294
      // Predicated region
      $region29: #{attention_forward.4} parent=23 // pred_check
        %p296 = pneg %p72
      $region30: #{attention_forward.4} parent=23 // pred_check_branch
        %298 = sbr.rel (%p296) target = $region32
      $region31: #{attention_forward.4} parent=23 // pred_region
        _
      $region32: #{attention_forward.4} parent=23 // pred_fallthru
        _
      // Predicated region
      $region33: #{attention_forward.4} parent=23 // pred_check
        %p299 = pneg %p98
      $region34: #{attention_forward.4} parent=23 // pred_check_branch
        %301 = sbr.rel (%p299) target = $region36
      $region35: #{attention_forward.4} parent=23 // pred_region
        _
      $region36: #{attention_forward.4} parent=23 // pred_fallthru
        _
    $region24: #{attention_forward.4} parent=5 // pred_fallthru
      _
    %p302 = scmp.le.s32.totalorder 2, %s9
    // Predicated region
    $region37: #{attention_forward.4} parent=5 // pred_check
      %p303 = pneg %p302
    $region38: #{attention_forward.4} parent=5 // pred_check_branch
      %305 = sbr.rel (%p303) target = $region40
    $region39: #{attention_forward.4} parent=5 // pred_region
      %s306 = ssub.s32 %s9, 2
      // Predicated region
      $region41: #{attention_forward.4} parent=39 // pred_check
        %p307 = pneg %p78
      $region42: #{attention_forward.4} parent=39 // pred_check_branch
        %309 = sbr.rel (%p307) target = $region44
      $region43: #{attention_forward.4} parent=39 // pred_region
        %p310 = scmp.lt.s32.totalorder %s20, 1
        %s311 = scalar_select %p310, %s20, 1
        %s312 = smul.addr %s311, 8
        %s313 = scalar_lea.vmem %s1, %s312
      $region44: #{attention_forward.4} parent=39 // pred_fallthru
        _
      // Predicated region
      $region45: #{attention_forward.4} parent=39 // pred_check
        %p314 = pneg %p104
      $region46: #{attention_forward.4} parent=39 // pred_check_branch
        %316 = sbr.rel (%p314) target = $region48
      $region47: #{attention_forward.4} parent=39 // pred_region
        %p317 = scmp.lt.s32.totalorder %s20, 1
        %s318 = scalar_select %p317, %s20, 1
        %s319 = smul.addr %s318, 2
        %s320 = smul.addr %s319, 8
        %s321 = scalar_lea.vmem %s2, %s320
      $region48: #{attention_forward.4} parent=39 // pred_fallthru
        _
    $region40: #{attention_forward.4} parent=5 // pred_fallthru
      _
  $region6: #{attention_forward.4} parent=0 // loop_footer
    %s13 = sadd.s32 1, %s9
  $region7: #{attention_forward.4} parent=0 // loop_footer_branch
    %8 = sbr.rel target = $region3
  $region8: #{attention_forward.4} parent=0 // loop_exit
    _

// kernel: attention_forward.5
$region0: #{attention_forward.5}
  #allocation0 [shape = 'u32[]', space=smem, size = 0x4, offset = 0x4, fixed_abs, tag = 'smem constant byte address 0x4 - core index']
  #allocation1 [shape = 'u32[144,128]{1,0:T(1,128)}', space=vmem, size = 0x12000, scoped, tag = 'internal scratch']
  %s0 = inlined_call_operand.vmem [shape: f32[2,8,8], index: 0, kind: input, shape index: {}]
  %s1 = inlined_call_operand.vmem [shape: f32[2,24,256], index: 1, kind: input, shape index: {}]
  %s2 = inlined_call_operand.vmem [shape: f32[8,1], index: 2, kind: input, shape index: {}]
  %s3 = inlined_call_operand.vmem [shape: f32[2,8,256], index: 3, kind: output, shape index: {}]
  %s4 = sld [smem:[#allocation0]]
  $region45: #{attention_forward.5} parent=0
    _
  %s6 = ssub.s32 1, %s4
  %s7 = scalar_select 0, %s6, %s4
  loop: start=0, step=1, limit=4
  $region2: #{attention_forward.5} parent=0 // loop_pre_header
    _
  $region3: #{attention_forward.5} parent=0 // loop_header
    %s9 = sphi 0, %s13
    %p10 = scmp.ge.s32.totalorder %s9, 4
    %s16 = sphi 0, %s28
    %s17 = sphi 0, %s24
    %s18 = sphi 0, %s16
    %s19 = sphi 0, %s17
    %s20 = sphi 0, %s18
    %s21 = sphi 0, %s19
    %s31 = sphi 0, %s33
    %s34 = sphi 0, %s31
    %s35 = sphi 0, %s34
    %s51 = sphi 0, %s35
    %s59 = sphi 0, %s61
    %s62 = sphi 0, %s59
    %s63 = sphi 0, %s62
    %s79 = sphi 0, %s63
    %s83 = sphi 0, %s83
    %s85 = sphi 0, %s83
    %s86 = sphi 0, %s85
    %s100 = sphi 0, %s86
    %s108 = sphi 0, %s110
    %s111 = sphi 0, %s108
    %s112 = sphi 0, %s111
    %s128 = sphi 0, %s112
  $region4: #{attention_forward.5} parent=0 // loop_header_branch
    %12 = sbr.rel (%p10) target = $region8
  $region5: #{attention_forward.5} parent=0 // loop_body
    %s14 = ssub.s32 %s9, 1
    %s15 = ssub.s32 %s9, 2
    %s22 = sadd.s32 1, %s17
    %p23 = scmp.ge.s32.totalorder %s22, 1
    %s24 = scalar_select %p23, 0, %s22
    %s25 = sadd.s32 1, %s16
    %s26 = scalar_select %p23, %s25, %s16
    %p27 = scmp.ge.s32.totalorder %s26, 2
    %s28 = scalar_select %p27, 0, %s26
    %s29 = ssub.s32 %s16, %s28
    %p30 = scmp.eq.s32.totalorder %s29, 0
    %s32 = sadd.s32 %s31, 1
    %s33 = scalar_select %p30, %s31, %s32
    %p36 = pneg %p30
    %p37 = scmp.eq.s32.totalorder %s9, 1
    %p38 = por %p36, %p37
    %p39 = scmp.ne.s32.totalorder %s31, %s34
    %p40 = scmp.eq.s32.totalorder %s9, 0
    %p41 = por %p39, %p40
    %p42 = scmp.ne.s32.totalorder %s31, %s34
    %p43 = scmp.eq.s32.totalorder %s14, 1
    %p44 = por %p42, %p43
    %p45 = scmp.ne.s32.totalorder %s34, %s35
    %p46 = scmp.eq.s32.totalorder %s14, 0
    %p47 = por %p45, %p46
    %p48 = scmp.ne.s32.totalorder %s34, %s35
    %p49 = scmp.eq.s32.totalorder %s15, 1
    %p50 = por %p48, %p49
    %p52 = scmp.ne.s32.totalorder %s35, %s51
    %p53 = scmp.eq.s32.totalorder %s15, 0
    %p54 = por %p52, %p53
    %s55 = ssub.s32 %s16, %s28
    %s56 = ssub.s32 %s17, %s24
    %s57 = sor.u32 %s55, %s56
    %p58 = scmp.eq.s32.totalorder %s57, 0
    %s60 = sadd.s32 %s59, 1
    %s61 = scalar_select %p58, %s59, %s60
    %p64 = pneg %p58
    %p65 = scmp.eq.s32.totalorder %s9, 1
    %p66 = por %p64, %p65
    %p67 = scmp.ne.s32.totalorder %s59, %s62
    %p68 = scmp.eq.s32.totalorder %s9, 0
    %p69 = por %p67, %p68
    %p70 = scmp.ne.s32.totalorder %s59, %s62
    %p71 = scmp.eq.s32.totalorder %s14, 1
    %p72 = por %p70, %p71
    %p73 = scmp.ne.s32.totalorder %s62, %s63
    %p74 = scmp.eq.s32.totalorder %s14, 0
    %p75 = por %p73, %p74
    %p76 = scmp.ne.s32.totalorder %s62, %s63
    %p77 = scmp.eq.s32.totalorder %s15, 1
    %p78 = por %p76, %p77
    %p80 = scmp.ne.s32.totalorder %s63, %s79
    %p81 = scmp.eq.s32.totalorder %s15, 0
    %p82 = por %p80, %p81
    %s84 = sadd.s32 %s83, 1
    %p87 = scmp.eq.s32.totalorder %s9, 1
    %p88 = scmp.ne.s32.totalorder %s83, %s85
    %p89 = scmp.eq.s32.totalorder %s9, 0
    %p90 = por %p88, %p89
    %p91 = scmp.ne.s32.totalorder %s83, %s85
    %p92 = scmp.eq.s32.totalorder %s14, 1
    %p93 = por %p91, %p92
    %p94 = scmp.ne.s32.totalorder %s85, %s86
    %p95 = scmp.eq.s32.totalorder %s14, 0
    %p96 = por %p94, %p95
    %p97 = scmp.ne.s32.totalorder %s85, %s86
    %p98 = scmp.eq.s32.totalorder %s15, 1
    %p99 = por %p97, %p98
    %p101 = scmp.ne.s32.totalorder %s86, %s100
    %p102 = scmp.eq.s32.totalorder %s15, 0
    %p103 = por %p101, %p102
    %s104 = ssub.s32 %s16, %s28
    %s105 = ssub.s32 %s17, %s24
    %s106 = sor.u32 %s104, %s105
    %p107 = scmp.eq.s32.totalorder %s106, 0
    %s109 = sadd.s32 %s108, 1
    %s110 = scalar_select %p107, %s108, %s109
    %p113 = pneg %p107
    %p114 = scmp.eq.s32.totalorder %s9, 1
    %p115 = por %p113, %p114
    %p116 = scmp.ne.s32.totalorder %s108, %s111
    %p117 = scmp.eq.s32.totalorder %s9, 0
    %p118 = por %p116, %p117
    %p119 = scmp.ne.s32.totalorder %s108, %s111
    %p120 = scmp.eq.s32.totalorder %s14, 1
    %p121 = por %p119, %p120
    %p122 = scmp.ne.s32.totalorder %s111, %s112
    %p123 = scmp.eq.s32.totalorder %s14, 0
    %p124 = por %p122, %p123
    %p125 = scmp.ne.s32.totalorder %s111, %s112
    %p126 = scmp.eq.s32.totalorder %s15, 1
    %p127 = por %p125, %p126
    %p129 = scmp.ne.s32.totalorder %s112, %s128
    %p130 = scmp.eq.s32.totalorder %s15, 0
    %p131 = por %p129, %p130
    %p132 = scmp.le.s32.totalorder 1, %s9
    %p133 = scmp.lt.s32.totalorder %s9, 3
    %p134 = pnand %p132, %p133
    %p135 = pneg %p134
    // Predicated region
    $region9: #{attention_forward.5} parent=5 // pred_check
      _
    $region10: #{attention_forward.5} parent=5 // pred_check_branch
      %137 = sbr.rel (%p134) target = $region12
    $region11: #{attention_forward.5} parent=5 // pred_region
      %s138 = ssub.s32 %s9, 1
      // Predicated region
      $region13: #{attention_forward.5} parent=11 // pred_check
        %p139 = pneg %p96
      $region14: #{attention_forward.5} parent=11 // pred_check_branch
        %141 = sbr.rel (%p139) target = $region16
      $region15: #{attention_forward.5} parent=11 // pred_region
        _
      $region16: #{attention_forward.5} parent=11 // pred_fallthru
        _
    $region12: #{attention_forward.5} parent=5 // pred_fallthru
      _
    %p142 = scmp.lt.s32.totalorder %s9, 2
    // Predicated region
    $region17: #{attention_forward.5} parent=5 // pred_check
      %p143 = pneg %p142
    $region18: #{attention_forward.5} parent=5 // pred_check_branch
      %145 = sbr.rel (%p143) target = $region20
    $region19: #{attention_forward.5} parent=5 // pred_region
      // Predicated region
      $region21: #{attention_forward.5} parent=19 // pred_check
        %p146 = pneg %p41
      $region22: #{attention_forward.5} parent=19 // pred_check_branch
        %148 = sbr.rel (%p146) target = $region24
      $region23: #{attention_forward.5} parent=19 // pred_region
        %p149 = scmp.lt.s32.totalorder %s16, 1
        %s150 = scalar_select %p149, %s16, 1
        %s151 = smul.addr %s150, 8
        %s152 = scalar_lea.vmem %s0, %s151
      $region24: #{attention_forward.5} parent=19 // pred_fallthru
        _
      // Predicated region
      $region25: #{attention_forward.5} parent=19 // pred_check
        %p153 = pneg %p69
      $region26: #{attention_forward.5} parent=19 // pred_check_branch
        %155 = sbr.rel (%p153) target = $region28
      $region27: #{attention_forward.5} parent=19 // pred_region
        %s156 = smul.u32 2, %s17
        %p157 = scmp.lt.s32.totalorder %s16, 1
        %s158 = scalar_select %p157, %s16, 1
        %p159 = scmp.lt.s32.totalorder %s156, 1
        %s160 = scalar_select %p159, %s156, 1
        %s161 = sadd.s32 %s160, 4
        %s162 = smul.addr %s158, 6
        %s163 = sadd.s32 %s161, %s162
        %s164 = smul.addr %s163, 8
        %s165 = scalar_lea.vmem %s1, %s164
        %s166 = smul.u32 2, %s17
      $region28: #{attention_forward.5} parent=19 // pred_fallthru
        _
    $region20: #{attention_forward.5} parent=5 // pred_fallthru
      _
    %p167 = scmp.le.s32.totalorder 1, %s9
    %p168 = scmp.lt.s32.totalorder %s9, 3
    %p169 = pnand %p167, %p168
    %p170 = pneg %p169
    // Predicated region
    $region29: #{attention_forward.5} parent=5 // pred_check
      _
    $region30: #{attention_forward.5} parent=5 // pred_check_branch
      %172 = sbr.rel (%p169) target = $region32
    $region31: #{attention_forward.5} parent=5 // pred_region
      %s173 = ssub.s32 %s9, 1
      %p174 = scmp.lt.s32.totalorder %s18, 1
      %s175 = scalar_select %p174, %s18, 1
      %s176 = smul.addr %s175, 8
      %s177 = scalar_lea.vmem %s0, %s176
      %p178 = pneg %p47
      %p179 = pneg %p44
      %s180 = smul.u32 2, %s19
      %p181 = scmp.lt.s32.totalorder %s18, 1
      %s182 = scalar_select %p181, %s18, 1
      %p183 = scmp.lt.s32.totalorder %s180, 1
      %s184 = scalar_select %p183, %s180, 1
      %s185 = sadd.s32 %s184, 4
      %s186 = smul.addr %s182, 6
      %s187 = sadd.s32 %s185, %s186
      %s188 = smul.addr %s187, 8
      %s189 = scalar_lea.vmem %s1, %s188
      %p190 = pneg %p75
      %p191 = pneg %p72
      %p192 = pneg %p96
      %p193 = pneg %p93
      %p194 = pneg %p124
      %p195 = pneg %p121
      %s196 = smul.u32 2, %s19
      %p197 = scmp.lt.s32.totalorder %s18, 1
      %s198 = scalar_select %p197, %s18, 1
      %p199 = scmp.lt.s32.totalorder %s196, 1
      %s200 = scalar_select %p199, %s196, 1
      %s201 = smul.addr %s198, 2
      %s202 = sadd.s32 %s200, %s201
      %s203 = smul.addr %s202, 8
      %s204 = scalar_lea.vmem %s3, %s203
      %p205 = scmp.lt.s32.totalorder %s18, 1
      %s206 = scalar_select %p205, %s18, 1
      %s207 = smul.addr %s206, 8
      %s208 = scalar_lea.vmem %s0, %s207
      %s209 = smul.u32 2, %s19
      %p210 = scmp.lt.s32.totalorder %s18, 1
      %s211 = scalar_select %p210, %s18, 1
      %p212 = scmp.lt.s32.totalorder %s209, 1
      %s213 = scalar_select %p212, %s209, 1
      %s214 = sadd.s32 %s213, 4
      %s215 = smul.addr %s211, 6
      %s216 = sadd.s32 %s214, %s215
      %s217 = smul.addr %s216, 8
      %s218 = scalar_lea.vmem %s1, %s217
      %s219 = smul.u32 2, %s19
      %s220 = smul.u32 2, %s19
      %p221 = scmp.lt.s32.totalorder %s18, 1
      %s222 = scalar_select %p221, %s18, 1
      %p223 = scmp.lt.s32.totalorder %s220, 1
      %s224 = scalar_select %p223, %s220, 1
      %s225 = smul.addr %s222, 2
      %s226 = sadd.s32 %s224, %s225
      %s227 = smul.addr %s226, 8
      %s228 = scalar_lea.vmem %s3, %s227
      %s229 = smul.u32 2, %s19
      %v230 = vld [vmem:[%s218] sm:$0xff]
      %v231 = vld [vmem:[%s218 + $0x8] sm:$0xff]
      %v232 = vld [vmem:[%s208] sm:$0xff]
      %v233 = vld [vmem:[%s2] sm:$0xff]
      %235 = vset.pattern.permute.xlu0 0
      %236 = vperm.xlu0 %235, %v233
      %v237 = vpop.permute.xlu0 %236
      %vm239 = vcmask 64512
      %v241 = vsel %vm239, %v232, 0
      %243 = vmatprep.subr.mxu0 %v231
      %244 = vmatpush1.msra.mxu0 %v230
      %245 = vmatprep.subr.mxu0 0.0
      %246 = vmatpush1.msra.mxu0 0.0
      %247 = vmatprep.subr.mxu0 0.0
      %248 = vmatpush1.msra.mxu0 0.0
      %249 = vmatprep.subr.mxu0 0.0
      %250 = vmatpush1.msra.mxu0 0.0
      %251 = vmatprep.subr.mxu0 0.0
      %252 = vmatpush1.msra.mxu0 0.0
      %253 = vmatprep.subr.mxu0 0.0
      %254 = vmatpush1.msra.mxu0 0.0
      %255 = vmatprep.subr.mxu0 0.0
      %256 = vmatpush1.msra.mxu0 0.0
      %257 = vmatprep.subr.mxu0 0.0
      %258 = vmatpush1.msra.mxu0 0.0
      %259 = vmatprep.subr.mxu0 0.0
      %260 = vmatpush1.msra.mxu0 0.0
      %261 = vmatprep.subr.mxu0 0.0
      %262 = vmatpush1.msra.mxu0 0.0
      %263 = vmatprep.subr.mxu0 0.0
      %264 = vmatpush1.msra.mxu0 0.0
      %265 = vmatprep.subr.mxu0 0.0
      %266 = vmatpush1.msra.mxu0 0.0
      %267 = vmatprep.subr.mxu0 0.0
      %268 = vmatpush1.msra.mxu0 0.0
      %269 = vmatprep.subr.mxu0 0.0
      %270 = vmatpush1.msra.mxu0 0.0
      %271 = vmatprep.subr.mxu0 0.0
      %272 = vmatpush1.msra.mxu0 0.0
      %273 = vmatprep.subr.mxu0 0.0
      %274 = vmatpush1.msra.mxu0 0.0
      %275 = vmatprep.subr.mxu0 0.0
      %276 = vmatpush1.msra.mxu0 0.0
      %277 = vmatprep.subr.mxu0 0.0
      %278 = vmatpush1.msra.mxu0 0.0
      %279 = vmatprep.subr.mxu0 0.0
      %280 = vmatpush1.msra.mxu0 0.0
      %281 = vmatprep.subr.mxu0 0.0
      %282 = vmatpush1.msra.mxu0 0.0
      %283 = vmatprep.subr.mxu0 0.0
      %284 = vmatpush1.msra.mxu0 0.0
      %285 = vmatprep.subr.mxu0 0.0
      %286 = vmatpush1.msra.mxu0 0.0
      %287 = vmatprep.subr.mxu0 0.0
      %288 = vmatpush1.msra.mxu0 0.0
      %289 = vmatprep.subr.mxu0 0.0
      %290 = vmatpush1.msra.mxu0 0.0
      %291 = vmatprep.subr.mxu0 0.0
      %292 = vmatpush1.msra.mxu0 0.0
      %293 = vmatprep.subr.mxu0 0.0
      %294 = vmatpush1.msra.mxu0 0.0
      %295 = vmatprep.subr.mxu0 0.0
      %296 = vmatpush1.msra.mxu0 0.0
      %297 = vmatprep.subr.mxu0 0.0
      %298 = vmatpush1.msra.mxu0 0.0
      %299 = vmatprep.subr.mxu0 0.0
      %300 = vmatpush1.msra.mxu0 0.0
      %301 = vmatprep.subr.mxu0 0.0
      %302 = vmatpush1.msra.mxu0 0.0
      %303 = vmatprep.subr.mxu0 0.0
      %304 = vmatpush1.msra.mxu0 0.0
      %305 = vmatprep.subr.mxu0 0.0
      %306 = vmatpush1.msra.mxu0 0.0
      %307 = vmatprep.mubr.f32.mxu0 0.0
      %308 = vmatmul.mubr.f32.gmra.mrb[0].mxu0 %v241
      %v309 = vpop.f32.mrb[0].mxu0
      %v310 = vadd.f32 %v237, %v309
      %v311 = vpop.f32.mrb[0].mxu0
      %v312 = vadd.f32 %v237, %v311
      %313 = vdwg.mxu0
      %314 = vst [vmem:[%s228] sm:$0xff] %v310
      %315 = vst [vmem:[%s228 + $0x8] sm:$0xff] %v312
      %s316 = smul.u32 2, %s19
      %p317 = scmp.lt.s32.totalorder %s18, 1
      %s318 = scalar_select %p317, %s18, 1
      %p319 = scmp.lt.s32.totalorder %s316, 1
      %s320 = scalar_select %p319, %s316, 1
      %s321 = smul.addr %s318, 2
      %s322 = sadd.s32 %s320, %s321
      %s323 = smul.addr %s322, 8
      %s324 = scalar_lea.vmem %s3, %s323
      // Predicated region
      $region33: #{attention_forward.5} parent=31 // pred_check
        %p325 = pneg %p121
      $region34: #{attention_forward.5} parent=31 // pred_check_branch
        %327 = sbr.rel (%p325) target = $region36
      $region35: #{attention_forward.5} parent=31 // pred_region
        %s328 = smul.u32 2, %s19
      $region36: #{attention_forward.5} parent=31 // pred_fallthru
        _
    $region32: #{attention_forward.5} parent=5 // pred_fallthru
      _
    %p329 = scmp.le.s32.totalorder 2, %s9
    // Predicated region
    $region37: #{attention_forward.5} parent=5 // pred_check
      %p330 = pneg %p329
    $region38: #{attention_forward.5} parent=5 // pred_check_branch
      %332 = sbr.rel (%p330) target = $region40
    $region39: #{attention_forward.5} parent=5 // pred_region
      %s333 = ssub.s32 %s9, 2
      // Predicated region
      $region41: #{attention_forward.5} parent=39 // pred_check
        %p334 = pneg %p127
      $region42: #{attention_forward.5} parent=39 // pred_check_branch
        %336 = sbr.rel (%p334) target = $region44
      $region43: #{attention_forward.5} parent=39 // pred_region
        %s337 = smul.u32 2, %s21
        %p338 = scmp.lt.s32.totalorder %s20, 1
        %s339 = scalar_select %p338, %s20, 1
        %p340 = scmp.lt.s32.totalorder %s337, 1
        %s341 = scalar_select %p340, %s337, 1
        %s342 = smul.addr %s339, 2
        %s343 = sadd.s32 %s341, %s342
        %s344 = smul.addr %s343, 8
        %s345 = scalar_lea.vmem %s3, %s344
      $region44: #{attention_forward.5} parent=39 // pred_fallthru
        _
    $region40: #{attention_forward.5} parent=5 // pred_fallthru
      _
  $region6: #{attention_forward.5} parent=0 // loop_footer
    %s13 = sadd.s32 1, %s9
  $region7: #{attention_forward.5} parent=0 // loop_footer_branch
    %8 = sbr.rel target = $region3
  $region8: #{attention_forward.5} parent=0 // loop_exit
    _

// kernel: attention_forward.3
$region0: #{attention_forward.3}
  #allocation0 [shape = 'u32[]', space=smem, size = 0x4, offset = 0x4, fixed_abs, tag = 'smem constant byte address 0x4 - core index']
  #allocation1 [shape = 'u32[144,128]{1,0:T(1,128)}', space=vmem, size = 0x12000, scoped, tag = 'internal scratch']
  %s0 = inlined_call_operand.hbm [shape: f32[2,8,16,16], index: 0, kind: input, shape index: {}, may-alias: {0,1,2}]
  %s1 = inlined_call_operand.hbm [shape: f32[2,8,16,16], index: 1, kind: input, shape index: {}, may-alias: {0,1,2}]
  %s2 = inlined_call_operand.hbm [shape: f32[2,8,16,16], index: 2, kind: input, shape index: {}, may-alias: {0,1,2}]
  %s3 = inlined_call_operand.vmem [shape: f32[24,8], index: 3, kind: input, shape index: {}]
  %s4 = inlined_call_operand.vmem [shape: f32[24,1], index: 4, kind: input, shape index: {}]
  %s5 = inlined_call_operand.vmem [shape: f32[24,9], index: 5, kind: input, shape index: {}]
  %s6 = inlined_call_operand.vmem [shape: f32[24,1], index: 6, kind: input, shape index: {}]
  %s7 = inlined_call_operand.vmem [shape: f32[2,24,16,16], index: 7, kind: output, shape index: {}]
  %s8 = sld [smem:[#allocation0]]
  $region107: #{attention_forward.3} parent=0
    _
  %s10 = ssub.s32 1, %s8
  %s11 = scalar_select 0, %s10, %s8
  $region1: #{attention_forward.3} parent=0
    #allocation2 [shape = 'u8[65536]{0}', space=vmem, size = 0x10000, scoped, tag = 'input window, operand 0']
    #allocation3 [shape = 's32[2]{0}', space=sflag, size = 0x8, scoped, tag = 'scoped memory for attention_forward.3']
    #allocation4 [shape = 'u8[65536]{0}', space=vmem, size = 0x10000, scoped, tag = 'input window, operand 1']
    #allocation5 [shape = 's32[2]{0}', space=sflag, size = 0x8, scoped, tag = 'scoped memory for attention_forward.3']
    #allocation6 [shape = 'u8[65536]{0}', space=vmem, size = 0x10000, scoped, tag = 'input window, operand 2']
    #allocation7 [shape = 'u8[196608]{0}', space=vmem, size = 0x30000, scoped, tag = 'output window, operand 0']
    %12 = vsyncpa [#allocation3], 0
    %s13 = scalar_lea.sflag [#allocation3], 1
    %14 = vsyncpa %s13, 0
    %15 = vsyncpa [#allocation5], 0
    %s16 = scalar_lea.sflag [#allocation5], 1
    %17 = vsyncpa %s16, 0
    loop: start=0, step=1, limit=6
    $region2: #{attention_forward.3} parent=1 // loop_pre_header
      _
    $region3: #{attention_forward.3} parent=1 // loop_header
      %s19 = sphi 0, %s23
      %p20 = scmp.ge.s32.totalorder %s19, 6
      %s26 = sphi 0, %s38
      %s27 = sphi 0, %s34
      %s28 = sphi 0, %s26
      %s29 = sphi 0, %s27
      %s30 = sphi 0, %s28
      %s31 = sphi 0, %s29
      %s43 = sphi 0, %s45
      %s46 = sphi 0, %s43
      %s47 = sphi 0, %s46
      %s63 = sphi 0, %s47
      %s77 = sphi 0, %s79
      %s80 = sphi 0, %s77
      %s81 = sphi 0, %s80
      %s97 = sphi 0, %s81
      %s111 = sphi 0, %s113
      %s114 = sphi 0, %s111
      %s115 = sphi 0, %s114
      %s131 = sphi 0, %s115
      %s135 = sphi 0, %s135
      %s137 = sphi 0, %s135
      %s138 = sphi 0, %s137
      %s152 = sphi 0, %s138
      %s156 = sphi 0, %s156
      %s158 = sphi 0, %s156
      %s159 = sphi 0, %s158
      %s173 = sphi 0, %s159
      %s177 = sphi 0, %s177
      %s179 = sphi 0, %s177
      %s180 = sphi 0, %s179
      %s194 = sphi 0, %s180
      %s198 = sphi 0, %s198
      %s200 = sphi 0, %s198
      %s201 = sphi 0, %s200
      %s215 = sphi 0, %s201
      %s223 = sphi 0, %s225
      %s226 = sphi 0, %s223
      %s227 = sphi 0, %s226
      %s243 = sphi 0, %s227
    $region4: #{attention_forward.3} parent=1 // loop_header_branch
      %22 = sbr.rel (%p20) target = $region8
    $region5: #{attention_forward.3} parent=1 // loop_body
      %s24 = ssub.s32 %s19, 1
      %s25 = ssub.s32 %s19, 2
      %s32 = sadd.s32 1, %s27
      %p33 = scmp.ge.s32.totalorder %s32, 2
      %s34 = scalar_select %p33, 0, %s32
      %s35 = sadd.s32 1, %s26
      %s36 = scalar_select %p33, %s35, %s26
      %p37 = scmp.ge.s32.totalorder %s36, 2
      %s38 = scalar_select %p37, 0, %s36
      %s39 = ssub.s32 %s26, %s38
      %s40 = ssub.s32 %s27, %s34
      %s41 = sor.u32 %s39, %s40
      %p42 = scmp.eq.s32.totalorder %s41, 0
      %s44 = sadd.s32 %s43, 1
      %s45 = scalar_select %p42, %s43, %s44
      %p48 = pneg %p42
      %p49 = scmp.eq.s32.totalorder %s19, 3
      %p50 = por %p48, %p49
      %p51 = scmp.ne.s32.totalorder %s43, %s46
      %p52 = scmp.eq.s32.totalorder %s19, 0
      %p53 = por %p51, %p52
      %p54 = scmp.ne.s32.totalorder %s43, %s46
      %p55 = scmp.eq.s32.totalorder %s24, 3
      %p56 = por %p54, %p55
      %p57 = scmp.ne.s32.totalorder %s46, %s47
      %p58 = scmp.eq.s32.totalorder %s24, 0
      %p59 = por %p57, %p58
      %p60 = scmp.ne.s32.totalorder %s46, %s47
      %p61 = scmp.eq.s32.totalorder %s25, 3
      %p62 = por %p60, %p61
      %p64 = scmp.ne.s32.totalorder %s47, %s63
      %p65 = scmp.eq.s32.totalorder %s25, 0
      %p66 = por %p64, %p65
      %s67 = ssub.s32 %s27, 1
      %p68 = scmp.gt.s32.totalorder %s67, 0
      %s69 = scalar_select %p68, %s67, 0
      %s70 = ssub.s32 %s34, 1
      %p71 = scmp.gt.s32.totalorder %s70, 0
      %s72 = scalar_select %p71, %s70, 0
      %s73 = ssub.s32 %s26, %s38
      %s74 = ssub.s32 %s69, %s72
      %s75 = sor.u32 %s73, %s74
      %p76 = scmp.eq.s32.totalorder %s75, 0
      %s78 = sadd.s32 %s77, 1
      %s79 = scalar_select %p76, %s77, %s78
      %p82 = pneg %p76
      %p83 = scmp.eq.s32.totalorder %s19, 3
      %p84 = por %p82, %p83
      %p85 = scmp.ne.s32.totalorder %s77, %s80
      %p86 = scmp.eq.s32.totalorder %s19, 0
      %p87 = por %p85, %p86
      %p88 = scmp.ne.s32.totalorder %s77, %s80
      %p89 = scmp.eq.s32.totalorder %s24, 3
      %p90 = por %p88, %p89
      %p91 = scmp.ne.s32.totalorder %s80, %s81
      %p92 = scmp.eq.s32.totalorder %s24, 0
      %p93 = por %p91, %p92
      %p94 = scmp.ne.s32.totalorder %s80, %s81
      %p95 = scmp.eq.s32.totalorder %s25, 3
      %p96 = por %p94, %p95
      %p98 = scmp.ne.s32.totalorder %s81, %s97
      %p99 = scmp.eq.s32.totalorder %s25, 0
      %p100 = por %p98, %p99
      %s101 = sadd.s32 %s27, 1
      %p102 = scmp.lt.s32.totalorder %s101, 1
      %s103 = scalar_select %p102, %s101, 1
      %s104 = sadd.s32 %s34, 1
      %p105 = scmp.lt.s32.totalorder %s104, 1
      %s106 = scalar_select %p105, %s104, 1
      %s107 = ssub.s32 %s26, %s38
      %s108 = ssub.s32 %s103, %s106
      %s109 = sor.u32 %s107, %s108
      %p110 = scmp.eq.s32.totalorder %s109, 0
      %s112 = sadd.s32 %s111, 1
      %s113 = scalar_select %p110, %s111, %s112
      %p116 = pneg %p110
      %p117 = scmp.eq.s32.totalorder %s19, 3
      %p118 = por %p116, %p117
      %p119 = scmp.ne.s32.totalorder %s111, %s114
      %p120 = scmp.eq.s32.totalorder %s19, 0
      %p121 = por %p119, %p120
      %p122 = scmp.ne.s32.totalorder %s111, %s114
      %p123 = scmp.eq.s32.totalorder %s24, 3
      %p124 = por %p122, %p123
      %p125 = scmp.ne.s32.totalorder %s114, %s115
      %p126 = scmp.eq.s32.totalorder %s24, 0
      %p127 = por %p125, %p126
      %p128 = scmp.ne.s32.totalorder %s114, %s115
      %p129 = scmp.eq.s32.totalorder %s25, 3
      %p130 = por %p128, %p129
      %p132 = scmp.ne.s32.totalorder %s115, %s131
      %p133 = scmp.eq.s32.totalorder %s25, 0
      %p134 = por %p132, %p133
      %s136 = sadd.s32 %s135, 1
      %p139 = scmp.eq.s32.totalorder %s19, 3
      %p140 = scmp.ne.s32.totalorder %s135, %s137
      %p141 = scmp.eq.s32.totalorder %s19, 0
      %p142 = por %p140, %p141
      %p143 = scmp.ne.s32.totalorder %s135, %s137
      %p144 = scmp.eq.s32.totalorder %s24, 3
      %p145 = por %p143, %p144
      %p146 = scmp.ne.s32.totalorder %s137, %s138
      %p147 = scmp.eq.s32.totalorder %s24, 0
      %p148 = por %p146, %p147
      %p149 = scmp.ne.s32.totalorder %s137, %s138
      %p150 = scmp.eq.s32.totalorder %s25, 3
      %p151 = por %p149, %p150
      %p153 = scmp.ne.s32.totalorder %s138, %s152
      %p154 = scmp.eq.s32.totalorder %s25, 0
      %p155 = por %p153, %p154
      %s157 = sadd.s32 %s156, 1
      %p160 = scmp.eq.s32.totalorder %s19, 3
      %p161 = scmp.ne.s32.totalorder %s156, %s158
      %p162 = scmp.eq.s32.totalorder %s19, 0
      %p163 = por %p161, %p162
      %p164 = scmp.ne.s32.totalorder %s156, %s158
      %p165 = scmp.eq.s32.totalorder %s24, 3
      %p166 = por %p164, %p165
      %p167 = scmp.ne.s32.totalorder %s158, %s159
      %p168 = scmp.eq.s32.totalorder %s24, 0
      %p169 = por %p167, %p168
      %p170 = scmp.ne.s32.totalorder %s158, %s159
      %p171 = scmp.eq.s32.totalorder %s25, 3
      %p172 = por %p170, %p171
      %p174 = scmp.ne.s32.totalorder %s159, %s173
      %p175 = scmp.eq.s32.totalorder %s25, 0
      %p176 = por %p174, %p175
      %s178 = sadd.s32 %s177, 1
      %p181 = scmp.eq.s32.totalorder %s19, 3
      %p182 = scmp.ne.s32.totalorder %s177, %s179
      %p183 = scmp.eq.s32.totalorder %s19, 0
      %p184 = por %p182, %p183
      %p185 = scmp.ne.s32.totalorder %s177, %s179
      %p186 = scmp.eq.s32.totalorder %s24, 3
      %p187 = por %p185, %p186
      %p188 = scmp.ne.s32.totalorder %s179, %s180
      %p189 = scmp.eq.s32.totalorder %s24, 0
      %p190 = por %p188, %p189
      %p191 = scmp.ne.s32.totalorder %s179, %s180
      %p192 = scmp.eq.s32.totalorder %s25, 3
      %p193 = por %p191, %p192
      %p195 = scmp.ne.s32.totalorder %s180, %s194
      %p196 = scmp.eq.s32.totalorder %s25, 0
      %p197 = por %p195, %p196
      %s199 = sadd.s32 %s198, 1
      %p202 = scmp.eq.s32.totalorder %s19, 3
      %p203 = scmp.ne.s32.totalorder %s198, %s200
      %p204 = scmp.eq.s32.totalorder %s19, 0
      %p205 = por %p203, %p204
      %p206 = scmp.ne.s32.totalorder %s198, %s200
      %p207 = scmp.eq.s32.totalorder %s24, 3
      %p208 = por %p206, %p207
      %p209 = scmp.ne.s32.totalorder %s200, %s201
      %p210 = scmp.eq.s32.totalorder %s24, 0
      %p211 = por %p209, %p210
      %p212 = scmp.ne.s32.totalorder %s200, %s201
      %p213 = scmp.eq.s32.totalorder %s25, 3
      %p214 = por %p212, %p213
      %p216 = scmp.ne.s32.totalorder %s201, %s215
      %p217 = scmp.eq.s32.totalorder %s25, 0
      %p218 = por %p216, %p217
      %s219 = ssub.s32 %s26, %s38
      %s220 = ssub.s32 %s27, %s34
      %s221 = sor.u32 %s219, %s220
      %p222 = scmp.eq.s32.totalorder %s221, 0
      %s224 = sadd.s32 %s223, 1
      %s225 = scalar_select %p222, %s223, %s224
      %p228 = pneg %p222
      %p229 = scmp.eq.s32.totalorder %s19, 3
      %p230 = por %p228, %p229
      %p231 = scmp.ne.s32.totalorder %s223, %s226
      %p232 = scmp.eq.s32.totalorder %s19, 0
      %p233 = por %p231, %p232
      %p234 = scmp.ne.s32.totalorder %s223, %s226
      %p235 = scmp.eq.s32.totalorder %s24, 3
      %p236 = por %p234, %p235
      %p237 = scmp.ne.s32.totalorder %s226, %s227
      %p238 = scmp.eq.s32.totalorder %s24, 0
      %p239 = por %p237, %p238
      %p240 = scmp.ne.s32.totalorder %s226, %s227
      %p241 = scmp.eq.s32.totalorder %s25, 3
      %p242 = por %p240, %p241
      %p244 = scmp.ne.s32.totalorder %s227, %s243
      %p245 = scmp.eq.s32.totalorder %s25, 0
      %p246 = por %p244, %p245
      %p247 = scmp.le.s32.totalorder 1, %s19
      %p248 = scmp.lt.s32.totalorder %s19, 5
      %p249 = pnand %p247, %p248
      %p250 = pneg %p249
      // Predicated region
      $region9: #{attention_forward.3} parent=5 // pred_check
        _
      $region10: #{attention_forward.3} parent=5 // pred_check_branch
        %252 = sbr.rel (%p249) target = $region12
      $region11: #{attention_forward.3} parent=5 // pred_region
        %s253 = ssub.s32 %s19, 1
        // Predicated region
        $region13: #{attention_forward.3} parent=11 // pred_check
          %p254 = pneg %p148
        $region14: #{attention_forward.3} parent=11 // pred_check_branch
          %256 = sbr.rel (%p254) target = $region16
        $region15: #{attention_forward.3} parent=11 // pred_region
          _
        $region16: #{attention_forward.3} parent=11 // pred_fallthru
          _
        // Predicated region
        $region17: #{attention_forward.3} parent=11 // pred_check
          %p257 = pneg %p169
        $region18: #{attention_forward.3} parent=11 // pred_check_branch
          %259 = sbr.rel (%p257) target = $region20
        $region19: #{attention_forward.3} parent=11 // pred_region
          _
        $region20: #{attention_forward.3} parent=11 // pred_fallthru
          _
        // Predicated region
        $region21: #{attention_forward.3} parent=11 // pred_check
          %p260 = pneg %p190
        $region22: #{attention_forward.3} parent=11 // pred_check_branch
          %262 = sbr.rel (%p260) target = $region24
        $region23: #{attention_forward.3} parent=11 // pred_region
          _
        $region24: #{attention_forward.3} parent=11 // pred_fallthru
          _
        // Predicated region
        $region25: #{attention_forward.3} parent=11 // pred_check
          %p263 = pneg %p211
        $region26: #{attention_forward.3} parent=11 // pred_check_branch
          %265 = sbr.rel (%p263) target = $region28
        $region27: #{attention_forward.3} parent=11 // pred_region
          _
        $region28: #{attention_forward.3} parent=11 // pred_fallthru
          _
      $region12: #{attention_forward.3} parent=5 // pred_fallthru
        _
      %p266 = scmp.lt.s32.totalorder %s19, 4
      // Predicated region
      $region29: #{attention_forward.3} parent=5 // pred_check
        %p267 = pneg %p266
      $region30: #{attention_forward.3} parent=5 // pred_check_branch
        %269 = sbr.rel (%p267) target = $region32
      $region31: #{attention_forward.3} parent=5 // pred_region
        // Predicated region
        $region33: #{attention_forward.3} parent=31 // pred_check
          %p270 = pneg %p53
        $region34: #{attention_forward.3} parent=31 // pred_check_branch
          %272 = sbr.rel (%p270) target = $region36
        $region35: #{attention_forward.3} parent=31 // pred_region
          %s273 = sand.u32 %s43, 1
          %s274 = scalar_lea.sflag [#allocation3], %s273
          %s275 = sand.u32 %s43, 1
          %s276 = smul.addr %s275, 64
          %s277 = scalar_lea.vmem [#allocation2], %s276
          %s279 = ssub.s32 1024, 1024
          %280 = vsyncadd %s274, %s279
          %s281 = smul.addr %s26, 16
          %s282 = sadd.s32 %s27, %s281
          %s283 = smul.addr %s282, 128
          %s284 = scalar_lea.hbm %s0, %s283
          %s285 = sshll.u32 %s277, 4
          %s286 = int_to_ptr.vmem [resolvable:$true] %s285
          %291 = dma.hbm_to_vmem [thread:$0]  %s284, 1024, %s286, %s274, 256, 128, 8
        $region36: #{attention_forward.3} parent=31 // pred_fallthru
          _
        // Predicated region
        $region37: #{attention_forward.3} parent=31 // pred_check
          %p292 = pneg %p87
        $region38: #{attention_forward.3} parent=31 // pred_check_branch
          %294 = sbr.rel (%p292) target = $region40
        $region39: #{attention_forward.3} parent=31 // pred_region
          %s295 = sand.u32 %s19, 1
          %s296 = scalar_lea.sflag [#allocation5], %s295
          %s297 = sand.u32 %s77, 1
          %s298 = smul.addr %s297, 64
          %s299 = scalar_lea.vmem [#allocation4], %s298
          %s300 = ssub.s32 %s27, 1
          %p301 = scmp.gt.s32.totalorder %s300, 0
          %s302 = scalar_select %p301, %s300, 0
          %s304 = ssub.s32 1024, 1024
          %305 = vsyncadd %s296, %s304
          %s306 = smul.addr %s26, 16
          %s307 = sadd.s32 %s302, %s306
          %s308 = smul.addr %s307, 128
          %s309 = scalar_lea.hbm %s1, %s308
          %s310 = sshll.u32 %s299, 4
          %s311 = int_to_ptr.vmem [resolvable:$true] %s310
          %316 = dma.hbm_to_vmem [thread:$0]  %s309, 1024, %s311, %s296, 256, 128, 8
        $region40: #{attention_forward.3} parent=31 // pred_fallthru
          _
        // Predicated region
        $region41: #{attention_forward.3} parent=31 // pred_check
          %p317 = pneg %p121
        $region42: #{attention_forward.3} parent=31 // pred_check_branch
          %319 = sbr.rel (%p317) target = $region44
        $region43: #{attention_forward.3} parent=31 // pred_region
          %s320 = sand.u32 %s19, 1
          %s321 = scalar_lea.sflag [#allocation5], %s320
          %s322 = sand.u32 %s111, 1
          %s323 = smul.addr %s322, 64
          %s324 = scalar_lea.vmem [#allocation6], %s323
          %s325 = sadd.s32 %s27, 1
          %p326 = scmp.lt.s32.totalorder %s325, 1
          %s327 = scalar_select %p326, %s325, 1
          %s329 = ssub.s32 1024, 1024
          %330 = vsyncadd %s321, %s329
          %s331 = smul.addr %s26, 16
          %s332 = sadd.s32 %s327, %s331
          %s333 = smul.addr %s332, 128
          %s334 = scalar_lea.hbm %s2, %s333
          %s335 = sshll.u32 %s324, 4
          %s336 = int_to_ptr.vmem [resolvable:$true] %s335
          %341 = dma.hbm_to_vmem [thread:$0]  %s334, 1024, %s336, %s321, 256, 128, 8
        $region44: #{attention_forward.3} parent=31 // pred_fallthru
          _
      $region32: #{attention_forward.3} parent=5 // pred_fallthru
        _
      %p342 = scmp.le.s32.totalorder 1, %s19
      %p343 = scmp.lt.s32.totalorder %s19, 5
      %p344 = pnand %p342, %p343
      %p345 = pneg %p344
      // Predicated region
      $region45: #{attention_forward.3} parent=5 // pred_check
        _
      $region46: #{attention_forward.3} parent=5 // pred_check_branch
        %347 = sbr.rel (%p344) target = $region48
      $region47: #{attention_forward.3} parent=5 // pred_region
        %s348 = ssub.s32 %s19, 1
        %s349 = sand.u32 %s46, 1
        %s350 = scalar_lea.sflag [#allocation3], %s349
        %s351 = sand.u32 %s46, 1
        %s352 = smul.addr %s351, 64
        %s353 = scalar_lea.vmem [#allocation2], %s352
        // Predicated region
        $region49: #{attention_forward.3} parent=47 // pred_check
          %p354 = pneg %p59
        $region50: #{attention_forward.3} parent=47 // pred_check_branch
          %356 = sbr.rel (%p354) target = $region52
        $region51: #{attention_forward.3} parent=47 // pred_region
          %357 = dma.done %s350, 1024
        $region52: #{attention_forward.3} parent=47 // pred_fallthru
          _
        %s358 = sand.u32 %s24, 1
        %s359 = scalar_lea.sflag [#allocation5], %s358
        %s360 = sand.u32 %s80, 1
        %s361 = smul.addr %s360, 64
        %s362 = scalar_lea.vmem [#allocation4], %s361
        // Predicated region
        $region53: #{attention_forward.3} parent=47 // pred_check
          %p363 = pneg %p93
        $region54: #{attention_forward.3} parent=47 // pred_check_branch
          %365 = sbr.rel (%p363) target = $region56
        $region55: #{attention_forward.3} parent=47 // pred_region
          %366 = dma.done %s359, 1024
        $region56: #{attention_forward.3} parent=47 // pred_fallthru
          _
        %s367 = sand.u32 %s24, 1
        %s368 = scalar_lea.sflag [#allocation5], %s367
        %s369 = sand.u32 %s114, 1
        %s370 = smul.addr %s369, 64
        %s371 = scalar_lea.vmem [#allocation6], %s370
        // Predicated region
        $region57: #{attention_forward.3} parent=47 // pred_check
          %p372 = pneg %p127
        $region58: #{attention_forward.3} parent=47 // pred_check_branch
          %374 = sbr.rel (%p372) target = $region60
        $region59: #{attention_forward.3} parent=47 // pred_region
          %375 = dma.done %s368, 1024
        $region60: #{attention_forward.3} parent=47 // pred_fallthru
          _
        %s376 = sand.u32 %s46, 1
        %s377 = scalar_lea.sflag [#allocation3], %s376
        %s378 = sand.u32 %s46, 1
        %s379 = smul.addr %s378, 64
        %s380 = scalar_lea.vmem [#allocation2], %s379
        %p381 = pneg %p59
        %p382 = pneg %p56
        %s383 = sand.u32 %s24, 1
        %s384 = scalar_lea.sflag [#allocation5], %s383
        %s385 = sand.u32 %s80, 1
        %s386 = smul.addr %s385, 64
        %s387 = scalar_lea.vmem [#allocation4], %s386
        %p388 = pneg %p93
        %p389 = pneg %p90
        %s390 = sand.u32 %s24, 1
        %s391 = scalar_lea.sflag [#allocation5], %s390
        %s392 = sand.u32 %s114, 1
        %s393 = smul.addr %s392, 64
        %s394 = scalar_lea.vmem [#allocation6], %s393
        %p395 = pneg %p127
        %p396 = pneg %p124
        %p397 = pneg %p148
        %p398 = pneg %p145
        %p399 = pneg %p169
        %p400 = pneg %p166
        %p401 = pneg %p190
        %p402 = pneg %p187
        %p403 = pneg %p211
        %p404 = pneg %p208
        %p405 = pneg %p239
        %p406 = pneg %p236
        %s407 = sand.u32 %s226, 1
        %s408 = sand.u32 %s226, 1
        %s409 = smul.addr %s408, 192
        %s410 = scalar_lea.vmem [#allocation7], %s409
        %s411 = ssub.s32 %s29, 1
        %p412 = scmp.gt.s32.totalorder %s411, 0
        %s413 = scalar_select %p412, %s411, 0
        %s414 = sadd.s32 %s29, 1
        %p415 = scmp.lt.s32.totalorder %s414, 1
        %s416 = scalar_select %p415, %s414, 1
        %p417 = scmp.gt.s32.totalorder %s29, 0
        %s418 = scalar_select %p417, 1, 0
        %s419 = scvt.s32.f32 %s418
        %p420 = scmp.lt.s32.totalorder %s29, 1
        %s421 = scalar_select %p420, 1, 0
        %s422 = scvt.s32.f32 %s421
        %v423 = vld [vmem:[%s3] sm:$0xff]
        %v424 = vld [vmem:[%s3 + $0x8] sm:$0xff]
        %v425 = vld [vmem:[%s3 + $0x10] sm:$0xff]
        %v426 = vld [vmem:[%s4] sm:$0xff]
        %v427 = vld [vmem:[%s4 + $0x8] sm:$0xff]
        %v428 = vld [vmem:[%s4 + $0x10] sm:$0xff]
        %v429 = vld [vmem:[%s353] sm:$0xff]
        %v430 = vld [vmem:[%s353 + $0x8] sm:$0xff]
        %v431 = vld [vmem:[%s353 + $0x10] sm:$0xff]
        %v432 = vld [vmem:[%s353 + $0x18] sm:$0xff]
        %v433 = vld [vmem:[%s353 + $0x20] sm:$0xff]
        %v434 = vld [vmem:[%s353 + $0x28] sm:$0xff]
        %v435 = vld [vmem:[%s353 + $0x30] sm:$0xff]
        %v436 = vld [vmem:[%s353 + $0x38] sm:$0xff]
        %v437 = vcombine.low %v429, %v431
        %v438 = vcombine.high %v429, %v431
        %v440 = vunpack.c.l.s4 1983009808
        %v441 = vunpack.c.0.s8 %v440
        %v442 = vlaneseq
        %v443 = vshrl.u32 %v442, 7
        %v444 = vsub.s32 %v441, %v443
        %v445 = vrot.slane %v437, %v444
        %v447 = vunpack.c.l.s4 1983009808
        %v448 = vunpack.c.0.s8 %v447
        %v449 = vlaneseq
        %v450 = vshrl.u32 %v449, 7
        %v451 = vsub.s32 %v448, %v450
        %v452 = vrot.slane %v438, %v451
        %v453 = vcombine.low %v430, %v432
        %v454 = vcombine.high %v430, %v432
        %v456 = vunpack.c.l.s4 1983009808
        %v457 = vunpack.c.0.s8 %v456
        %v458 = vlaneseq
        %v459 = vshrl.u32 %v458, 7
        %v460 = vsub.s32 %v457, %v459
        %v461 = vrot.slane %v453, %v460
        %v463 = vunpack.c.l.s4 1983009808
        %v464 = vunpack.c.0.s8 %v463
        %v465 = vlaneseq
        %v466 = vshrl.u32 %v465, 7
        %v467 = vsub.s32 %v464, %v466
        %v468 = vrot.slane %v454, %v467
        %v469 = vcombine.low %v433, %v435
        %v470 = vcombine.high %v433, %v435
        %v472 = vunpack.c.l.s4 1983009808
        %v473 = vunpack.c.0.s8 %v472
        %v474 = vlaneseq
        %v475 = vshrl.u32 %v474, 7
        %v476 = vsub.s32 %v473, %v475
        %v477 = vrot.slane %v469, %v476
        %v479 = vunpack.c.l.s4 1983009808
        %v480 = vunpack.c.0.s8 %v479
        %v481 = vlaneseq
        %v482 = vshrl.u32 %v481, 7
        %v483 = vsub.s32 %v480, %v482
        %v484 = vrot.slane %v470, %v483
        %v485 = vcombine.low %v434, %v436
        %v486 = vcombine.high %v434, %v436
        %v488 = vunpack.c.l.s4 1983009808
        %v489 = vunpack.c.0.s8 %v488
        %v490 = vlaneseq
        %v491 = vshrl.u32 %v490, 7
        %v492 = vsub.s32 %v489, %v491
        %v493 = vrot.slane %v485, %v492
        %v495 = vunpack.c.l.s4 1983009808
        %v496 = vunpack.c.0.s8 %v495
        %v497 = vlaneseq
        %v498 = vshrl.u32 %v497, 7
        %v499 = vsub.s32 %v496, %v498
        %v500 = vrot.slane %v486, %v499
        %v501 = vcombine.low %v445, %v461
        %v502 = vcombine.high %v445, %v461
        %v504 = vunpack.c.l.s4 1934713408
        %v505 = vunpack.c.0.s8 %v504
        %v506 = vlaneseq
        %v507 = vshrl.u32 %v506, 7
        %v508 = vsub.s32 %v505, %v507
        %v509 = vrot.slane %v501, %v508
        %v511 = vunpack.c.l.s4 1934713408
        %v512 = vunpack.c.0.s8 %v511
        %v513 = vlaneseq
        %v514 = vshrl.u32 %v513, 7
        %v515 = vsub.s32 %v512, %v514
        %v516 = vrot.slane %v502, %v515
        %v517 = vcombine.low %v452, %v468
        %v518 = vcombine.high %v452, %v468
        %v520 = vunpack.c.l.s4 1934713408
        %v521 = vunpack.c.0.s8 %v520
        %v522 = vlaneseq
        %v523 = vshrl.u32 %v522, 7
        %v524 = vsub.s32 %v521, %v523
        %v525 = vrot.slane %v517, %v524
        %v527 = vunpack.c.l.s4 1934713408
        %v528 = vunpack.c.0.s8 %v527
        %v529 = vlaneseq
        %v530 = vshrl.u32 %v529, 7
        %v531 = vsub.s32 %v528, %v530
        %v532 = vrot.slane %v518, %v531
        %v533 = vcombine.low %v477, %v493
        %v534 = vcombine.high %v477, %v493
        %v536 = vunpack.c.l.s4 1934713408
        %v537 = vunpack.c.0.s8 %v536
        %v538 = vlaneseq
        %v539 = vshrl.u32 %v538, 7
        %v540 = vsub.s32 %v537, %v539
        %v541 = vrot.slane %v533, %v540
        %v543 = vunpack.c.l.s4 1934713408
        %v544 = vunpack.c.0.s8 %v543
        %v545 = vlaneseq
        %v546 = vshrl.u32 %v545, 7
        %v547 = vsub.s32 %v544, %v546
        %v548 = vrot.slane %v534, %v547
        %v549 = vcombine.low %v484, %v500
        %v550 = vcombine.high %v484, %v500
        %v552 = vunpack.c.l.s4 1934713408
        %v553 = vunpack.c.0.s8 %v552
        %v554 = vlaneseq
        %v555 = vshrl.u32 %v554, 7
        %v556 = vsub.s32 %v553, %v555
        %v557 = vrot.slane %v549, %v556
        %v559 = vunpack.c.l.s4 1934713408
        %v560 = vunpack.c.0.s8 %v559
        %v561 = vlaneseq
        %v562 = vshrl.u32 %v561, 7
        %v563 = vsub.s32 %v560, %v562
        %v564 = vrot.slane %v550, %v563
        %v565 = vcombine.low %v509, %v541
        %v566 = vcombine.high %v509, %v541
        %v567 = vcombine.low %v516, %v548
        %v568 = vcombine.high %v516, %v548
        %v569 = vcombine.low %v525, %v557
        %v570 = vcombine.high %v525, %v557
        %v571 = vcombine.low %v532, %v564
        %v572 = vcombine.high %v532, %v564
        %574 = vrot.lane.b32.xlu0 %v566, 16
        %v575 = vpop.permute.xlu0 %574
        %578 = vrot.lane.b32.xlu0 %v567, 32
        %v579 = vpop.permute.xlu0 %578
        %582 = vrot.lane.b32.xlu0 %v568, 48
        %v583 = vpop.permute.xlu0 %582
        %586 = vrot.lane.b32.xlu0 %v569, 64
        %v587 = vpop.permute.xlu0 %586
        %590 = vrot.lane.b32.xlu0 %v570, 80
        %v591 = vpop.permute.xlu0 %590
        %594 = vrot.lane.b32.xlu0 %v571, 96
        %v595 = vpop.permute.xlu0 %594
        %598 = vrot.lane.b32.xlu0 %v572, 112
        %v599 = vpop.permute.xlu0 %598
        %vm601 = vcmask 130048
        %v602 = vsel %vm601, %v565, %v575
        %vm603 = vcmask 261120
        %v604 = vsel %vm603, %v602, %v579
        %vm605 = vcmask 392192
        %v606 = vsel %vm605, %v604, %v583
        %vm607 = vcmask 523264
        %v608 = vsel %vm607, %v606, %v587
        %vm609 = vcmask 654336
        %v610 = vsel %vm609, %v608, %v591
        %vm611 = vcmask 785408
        %v612 = vsel %vm611, %v610, %v595
        %vm613 = vcmask 916480
        %v614 = vsel %vm613, %v612, %v599
        %616 = vset.pattern.permute.xlu0 0
        %617 = vperm.xlu0 %616, %v426
        %v618 = vpop.permute.xlu0 %617
        %621 = vset.pattern.permute.xlu0 0
        %622 = vperm.xlu0 %621, %v427
        %v623 = vpop.permute.xlu0 %622
        %626 = vset.pattern.permute.xlu0 0
        %627 = vperm.xlu0 %626, %v428
        %v628 = vpop.permute.xlu0 %627
        %vm630 = vcmask 64512
        %v632 = vsel %vm630, %v423, 0
        %v635 = vsel %vm630, %v424, 0
        %v638 = vsel %vm630, %v425, 0
        %640 = vmatprep.subr.mxu0 0.0
        %641 = vmatpush1.msra.mxu0 %v614
        %642 = vmatprep.subr.mxu0 0.0
        %643 = vmatpush1.msra.mxu0 0.0
        %644 = vmatprep.subr.mxu0 0.0
        %645 = vmatpush1.msra.mxu0 0.0
        %646 = vmatprep.subr.mxu0 0.0
        %647 = vmatpush1.msra.mxu0 0.0
        %648 = vmatprep.subr.mxu0 0.0
        %649 = vmatpush1.msra.mxu0 0.0
        %650 = vmatprep.subr.mxu0 0.0
        %651 = vmatpush1.msra.mxu0 0.0
        %652 = vmatprep.subr.mxu0 0.0
        %653 = vmatpush1.msra.mxu0 0.0
        %654 = vmatprep.subr.mxu0 0.0
        %655 = vmatpush1.msra.mxu0 0.0
        %656 = vmatprep.subr.mxu0 0.0
        %657 = vmatpush1.msra.mxu0 0.0
        %658 = vmatprep.subr.mxu0 0.0
        %659 = vmatpush1.msra.mxu0 0.0
        %660 = vmatprep.subr.mxu0 0.0
        %661 = vmatpush1.msra.mxu0 0.0
        %662 = vmatprep.subr.mxu0 0.0
        %663 = vmatpush1.msra.mxu0 0.0
        %664 = vmatprep.subr.mxu0 0.0
        %665 = vmatpush1.msra.mxu0 0.0
        %666 = vmatprep.subr.mxu0 0.0
        %667 = vmatpush1.msra.mxu0 0.0
        %668 = vmatprep.subr.mxu0 0.0
        %669 = vmatpush1.msra.mxu0 0.0
        %670 = vmatprep.subr.mxu0 0.0
        %671 = vmatpush1.msra.mxu0 0.0
        %672 = vmatprep.subr.mxu0 0.0
        %673 = vmatpush1.msra.mxu0 0.0
        %674 = vmatprep.subr.mxu0 0.0
        %675 = vmatpush1.msra.mxu0 0.0
        %676 = vmatprep.subr.mxu0 0.0
        %677 = vmatpush1.msra.mxu0 0.0
        %678 = vmatprep.subr.mxu0 0.0
        %679 = vmatpush1.msra.mxu0 0.0
        %680 = vmatprep.subr.mxu0 0.0
        %681 = vmatpush1.msra.mxu0 0.0
        %682 = vmatprep.subr.mxu0 0.0
        %683 = vmatpush1.msra.mxu0 0.0
        %684 = vmatprep.subr.mxu0 0.0
        %685 = vmatpush1.msra.mxu0 0.0
        %686 = vmatprep.subr.mxu0 0.0
        %687 = vmatpush1.msra.mxu0 0.0
        %688 = vmatprep.subr.mxu0 0.0
        %689 = vmatpush1.msra.mxu0 0.0
        %690 = vmatprep.subr.mxu0 0.0
        %691 = vmatpush1.msra.mxu0 0.0
        %692 = vmatprep.subr.mxu0 0.0
        %693 = vmatpush1.msra.mxu0 0.0
        %694 = vmatprep.subr.mxu0 0.0
        %695 = vmatpush1.msra.mxu0 0.0
        %696 = vmatprep.subr.mxu0 0.0
        %697 = vmatpush1.msra.mxu0 0.0
        %698 = vmatprep.subr.mxu0 0.0
        %699 = vmatpush1.msra.mxu0 0.0
        %700 = vmatprep.subr.mxu0 0.0
        %701 = vmatpush1.msra.mxu0 0.0
        %702 = vmatprep.subr.mxu0 0.0
        %703 = vmatpush1.msra.mxu0 0.0
        %704 = vmatprep.mubr.f32.mxu0 0.0
        %705 = vmatmul.mubr.f32.gmra.mrb[0].mxu0 %v632
        %v706 = vpop.f32.mrb[0].mxu0
        %v707 = vadd.f32 %v618, %v706
        %v708 = vpop.f32.mrb[0].mxu0
        %709 = vmatprep.mubr.f32.mxu0 0.0
        %710 = vmatmul.mubr.f32.gmra.mrb[0].mxu0 %v635
        %v711 = vpop.f32.mrb[0].mxu0
        %v712 = vadd.f32 %v623, %v711
        %v713 = vpop.f32.mrb[0].mxu0
        %714 = vmatprep.mubr.f32.mxu0 0.0
        %715 = vmatmul.mubr.f32.gmra.mrb[0].mxu0 %v638
        %v716 = vpop.f32.mrb[0].mxu0
        %v717 = vadd.f32 %v628, %v716
        %v718 = vpop.f32.mrb[0].mxu0
        %719 = vdwg.mxu0
        %723 = vrot.lane.b32.xlu0 %v707, 112
        %v724 = vpop.permute.xlu0 %723
        %725 = vrot.lane.b32.xlu0 %v712, 112
        %v726 = vpop.permute.xlu0 %725
        %727 = vrot.lane.b32.xlu0 %v717, 112
        %v728 = vpop.permute.xlu0 %727
        %732 = vrot.lane.b32.xlu0 %v707, 96
        %v733 = vpop.permute.xlu0 %732
        %734 = vrot.lane.b32.xlu0 %v712, 96
        %v735 = vpop.permute.xlu0 %734
        %736 = vrot.lane.b32.xlu0 %v717, 96
        %v737 = vpop.permute.xlu0 %736
        %741 = vrot.lane.b32.xlu0 %v707, 80
        %v742 = vpop.permute.xlu0 %741
        %743 = vrot.lane.b32.xlu0 %v712, 80
        %v744 = vpop.permute.xlu0 %743
        %745 = vrot.lane.b32.xlu0 %v717, 80
        %v746 = vpop.permute.xlu0 %745
        %750 = vrot.lane.b32.xlu0 %v707, 64
        %v751 = vpop.permute.xlu0 %750
        %752 = vrot.lane.b32.xlu0 %v712, 64
        %v753 = vpop.permute.xlu0 %752
        %754 = vrot.lane.b32.xlu0 %v717, 64
        %v755 = vpop.permute.xlu0 %754
        %759 = vrot.lane.b32.xlu0 %v707, 48
        %v760 = vpop.permute.xlu0 %759
        %761 = vrot.lane.b32.xlu0 %v712, 48
        %v762 = vpop.permute.xlu0 %761
        %763 = vrot.lane.b32.xlu0 %v717, 48
        %v764 = vpop.permute.xlu0 %763
        %768 = vrot.lane.b32.xlu0 %v707, 32
        %v769 = vpop.permute.xlu0 %768
        %770 = vrot.lane.b32.xlu0 %v712, 32
        %v771 = vpop.permute.xlu0 %770
        %772 = vrot.lane.b32.xlu0 %v717, 32
        %v773 = vpop.permute.xlu0 %772
        %777 = vrot.lane.b32.xlu0 %v707, 16
        %v778 = vpop.permute.xlu0 %777
        %779 = vrot.lane.b32.xlu0 %v712, 16
        %v780 = vpop.permute.xlu0 %779
        %781 = vrot.lane.b32.xlu0 %v717, 16
        %v782 = vpop.permute.xlu0 %781
        %v786 = vcombine.low %v707, %v733
        %v787 = vcombine.high %v707, %v733
        %v789 = vunpack.c.l.s4 1983009808
        %v790 = vunpack.c.0.s8 %v789
        %v791 = vlaneseq
        %v792 = vshrl.u32 %v791, 7
        %v793 = vsub.s32 %v790, %v792
        %v794 = vrot.slane %v786, %v793
        %v796 = vunpack.c.l.s4 1983009808
        %v797 = vunpack.c.0.s8 %v796
        %v798 = vlaneseq
        %v799 = vshrl.u32 %v798, 7
        %v800 = vsub.s32 %v797, %v799
        %v801 = vrot.slane %v787, %v800
        %v802 = vcombine.low %v724, %v742
        %v803 = vcombine.high %v724, %v742
        %v805 = vunpack.c.l.s4 1983009808
        %v806 = vunpack.c.0.s8 %v805
        %v807 = vlaneseq
        %v808 = vshrl.u32 %v807, 7
        %v809 = vsub.s32 %v806, %v808
        %v810 = vrot.slane %v802, %v809
        %v812 = vunpack.c.l.s4 1983009808
        %v813 = vunpack.c.0.s8 %v812
        %v814 = vlaneseq
        %v815 = vshrl.u32 %v814, 7
        %v816 = vsub.s32 %v813, %v815
        %v817 = vrot.slane %v803, %v816
        %v818 = vcombine.low %v751, %v769
        %v819 = vcombine.high %v751, %v769
        %v821 = vunpack.c.l.s4 1983009808
        %v822 = vunpack.c.0.s8 %v821
        %v823 = vlaneseq
        %v824 = vshrl.u32 %v823, 7
        %v825 = vsub.s32 %v822, %v824
        %v826 = vrot.slane %v818, %v825
        %v828 = vunpack.c.l.s4 1983009808
        %v829 = vunpack.c.0.s8 %v828
        %v830 = vlaneseq
        %v831 = vshrl.u32 %v830, 7
        %v832 = vsub.s32 %v829, %v831
        %v833 = vrot.slane %v819, %v832
        %v834 = vcombine.low %v760, %v778
        %v835 = vcombine.high %v760, %v778
        %v837 = vunpack.c.l.s4 1983009808
        %v838 = vunpack.c.0.s8 %v837
        %v839 = vlaneseq
        %v840 = vshrl.u32 %v839, 7
        %v841 = vsub.s32 %v838, %v840
        %v842 = vrot.slane %v834, %v841
        %v844 = vunpack.c.l.s4 1983009808
        %v845 = vunpack.c.0.s8 %v844
        %v846 = vlaneseq
        %v847 = vshrl.u32 %v846, 7
        %v848 = vsub.s32 %v845, %v847
        %v849 = vrot.slane %v835, %v848
        %v850 = vcombine.low %v794, %v810
        %v851 = vcombine.high %v794, %v810
        %v853 = vunpack.c.l.s4 1934713408
        %v854 = vunpack.c.0.s8 %v853
        %v855 = vlaneseq
        %v856 = vshrl.u32 %v855, 7
        %v857 = vsub.s32 %v854, %v856
        %v858 = vrot.slane %v850, %v857
        %v860 = vunpack.c.l.s4 1934713408
        %v861 = vunpack.c.0.s8 %v860
        %v862 = vlaneseq
        %v863 = vshrl.u32 %v862, 7
        %v864 = vsub.s32 %v861, %v863
        %v865 = vrot.slane %v851, %v864
        %v866 = vcombine.low %v801, %v817
        %v867 = vcombine.high %v801, %v817
        %v869 = vunpack.c.l.s4 1934713408
        %v870 = vunpack.c.0.s8 %v869
        %v871 = vlaneseq
        %v872 = vshrl.u32 %v871, 7
        %v873 = vsub.s32 %v870, %v872
        %v874 = vrot.slane %v866, %v873
        %v876 = vunpack.c.l.s4 1934713408
        %v877 = vunpack.c.0.s8 %v876
        %v878 = vlaneseq
        %v879 = vshrl.u32 %v878, 7
        %v880 = vsub.s32 %v877, %v879
        %v881 = vrot.slane %v867, %v880
        %v882 = vcombine.low %v826, %v842
        %v883 = vcombine.high %v826, %v842
        %v885 = vunpack.c.l.s4 1934713408
        %v886 = vunpack.c.0.s8 %v885
        %v887 = vlaneseq
        %v888 = vshrl.u32 %v887, 7
        %v889 = vsub.s32 %v886, %v888
        %v890 = vrot.slane %v882, %v889
        %v892 = vunpack.c.l.s4 1934713408
        %v893 = vunpack.c.0.s8 %v892
        %v894 = vlaneseq
        %v895 = vshrl.u32 %v894, 7
        %v896 = vsub.s32 %v893, %v895
        %v897 = vrot.slane %v883, %v896
        %v898 = vcombine.low %v833, %v849
        %v899 = vcombine.high %v833, %v849
        %v901 = vunpack.c.l.s4 1934713408
        %v902 = vunpack.c.0.s8 %v901
        %v903 = vlaneseq
        %v904 = vshrl.u32 %v903, 7
        %v905 = vsub.s32 %v902, %v904
        %v906 = vrot.slane %v898, %v905
        %v908 = vunpack.c.l.s4 1934713408
        %v909 = vunpack.c.0.s8 %v908
        %v910 = vlaneseq
        %v911 = vshrl.u32 %v910, 7
        %v912 = vsub.s32 %v909, %v911
        %v913 = vrot.slane %v899, %v912
        %v914 = vcombine.low %v858, %v890
        %v915 = vcombine.high %v858, %v890
        %v916 = vcombine.low %v865, %v897
        %v917 = vcombine.high %v865, %v897
        %v918 = vcombine.low %v874, %v906
        %v919 = vcombine.high %v874, %v906
        %v920 = vcombine.low %v881, %v913
        %v921 = vcombine.high %v881, %v913
        %v922 = vcombine.low %v712, %v735
        %v923 = vcombine.high %v712, %v735
        %v925 = vunpack.c.l.s4 1983009808
        %v926 = vunpack.c.0.s8 %v925
        %v927 = vlaneseq
        %v928 = vshrl.u32 %v927, 7
        %v929 = vsub.s32 %v926, %v928
        %v930 = vrot.slane %v922, %v929
        %v932 = vunpack.c.l.s4 1983009808
        %v933 = vunpack.c.0.s8 %v932
        %v934 = vlaneseq
        %v935 = vshrl.u32 %v934, 7
        %v936 = vsub.s32 %v933, %v935
        %v937 = vrot.slane %v923, %v936
        %v938 = vcombine.low %v726, %v744
        %v939 = vcombine.high %v726, %v744
        %v941 = vunpack.c.l.s4 1983009808
        %v942 = vunpack.c.0.s8 %v941
        %v943 = vlaneseq
        %v944 = vshrl.u32 %v943, 7
        %v945 = vsub.s32 %v942, %v944
        %v946 = vrot.slane %v938, %v945
        %v948 = vunpack.c.l.s4 1983009808
        %v949 = vunpack.c.0.s8 %v948
        %v950 = vlaneseq
        %v951 = vshrl.u32 %v950, 7
        %v952 = vsub.s32 %v949, %v951
        %v953 = vrot.slane %v939, %v952
        %v954 = vcombine.low %v753, %v771
        %v955 = vcombine.high %v753, %v771
        %v957 = vunpack.c.l.s4 1983009808
        %v958 = vunpack.c.0.s8 %v957
        %v959 = vlaneseq
        %v960 = vshrl.u32 %v959, 7
        %v961 = vsub.s32 %v958, %v960
        %v962 = vrot.slane %v954, %v961
        %v964 = vunpack.c.l.s4 1983009808
        %v965 = vunpack.c.0.s8 %v964
        %v966 = vlaneseq
        %v967 = vshrl.u32 %v966, 7
        %v968 = vsub.s32 %v965, %v967
        %v969 = vrot.slane %v955, %v968
        %v970 = vcombine.low %v762, %v780
        %v971 = vcombine.high %v762, %v780
        %v973 = vunpack.c.l.s4 1983009808
        %v974 = vunpack.c.0.s8 %v973
        %v975 = vlaneseq
        %v976 = vshrl.u32 %v975, 7
        %v977 = vsub.s32 %v974, %v976
        %v978 = vrot.slane %v970, %v977
        %v980 = vunpack.c.l.s4 1983009808
        %v981 = vunpack.c.0.s8 %v980
        %v982 = vlaneseq
        %v983 = vshrl.u32 %v982, 7
        %v984 = vsub.s32 %v981, %v983
        %v985 = vrot.slane %v971, %v984
        %v986 = vcombine.low %v930, %v946
        %v987 = vcombine.high %v930, %v946
        %v989 = vunpack.c.l.s4 1934713408
        %v990 = vunpack.c.0.s8 %v989
        %v991 = vlaneseq
        %v992 = vshrl.u32 %v991, 7
        %v993 = vsub.s32 %v990, %v992
        %v994 = vrot.slane %v986, %v993
        %v996 = vunpack.c.l.s4 1934713408
        %v997 = vunpack.c.0.s8 %v996
        %v998 = vlaneseq
        %v999 = vshrl.u32 %v998, 7
        %v1000 = vsub.s32 %v997, %v999
        %v1001 = vrot.slane %v987, %v1000
        %v1002 = vcombine.low %v937, %v953
        %v1003 = vcombine.high %v937, %v953
        %v1005 = vunpack.c.l.s4 1934713408
        %v1006 = vunpack.c.0.s8 %v1005
        %v1007 = vlaneseq
        %v1008 = vshrl.u32 %v1007, 7
        %v1009 = vsub.s32 %v1006, %v1008
        %v1010 = vrot.slane %v1002, %v1009
        %v1012 = vunpack.c.l.s4 1934713408
        %v1013 = vunpack.c.0.s8 %v1012
        %v1014 = vlaneseq
        %v1015 = vshrl.u32 %v1014, 7
        %v1016 = vsub.s32 %v1013, %v1015
        %v1017 = vrot.slane %v1003, %v1016
        %v1018 = vcombine.low %v962, %v978
        %v1019 = vcombine.high %v962, %v978
        %v1021 = vunpack.c.l.s4 1934713408
        %v1022 = vunpack.c.0.s8 %v1021
        %v1023 = vlaneseq
        %v1024 = vshrl.u32 %v1023, 7
        %v1025 = vsub.s32 %v1022, %v1024
        %v1026 = vrot.slane %v1018, %v1025
        %v1028 = vunpack.c.l.s4 1934713408
        %v1029 = vunpack.c.0.s8 %v1028
        %v1030 = vlaneseq
        %v1031 = vshrl.u32 %v1030, 7
        %v1032 = vsub.s32 %v1029, %v1031
        %v1033 = vrot.slane %v1019, %v1032
        %v1034 = vcombine.low %v969, %v985
        %v1035 = vcombine.high %v969, %v985
        %v1037 = vunpack.c.l.s4 1934713408
        %v1038 = vunpack.c.0.s8 %v1037
        %v1039 = vlaneseq
        %v1040 = vshrl.u32 %v1039, 7
        %v1041 = vsub.s32 %v1038, %v1040
        %v1042 = vrot.slane %v1034, %v1041
        %v1044 = vunpack.c.l.s4 1934713408
        %v1045 = vunpack.c.0.s8 %v1044
        %v1046 = vlaneseq
        %v1047 = vshrl.u32 %v1046, 7
        %v1048 = vsub.s32 %v1045, %v1047
        %v1049 = vrot.slane %v1035, %v1048
        %v1050 = vcombine.low %v994, %v1026
        %v1051 = vcombine.high %v994, %v1026
        %v1052 = vcombine.low %v1001, %v1033
        %v1053 = vcombine.high %v1001, %v1033
        %v1054 = vcombine.low %v1010, %v1042
        %v1055 = vcombine.high %v1010, %v1042
        %v1056 = vcombine.low %v1017, %v1049
        %v1057 = vcombine.high %v1017, %v1049
        %v1058 = vcombine.low %v717, %v737
        %v1059 = vcombine.high %v717, %v737
        %v1061 = vunpack.c.l.s4 1983009808
        %v1062 = vunpack.c.0.s8 %v1061
        %v1063 = vlaneseq
        %v1064 = vshrl.u32 %v1063, 7
        %v1065 = vsub.s32 %v1062, %v1064
        %v1066 = vrot.slane %v1058, %v1065
        %v1068 = vunpack.c.l.s4 1983009808
        %v1069 = vunpack.c.0.s8 %v1068
        %v1070 = vlaneseq
        %v1071 = vshrl.u32 %v1070, 7
        %v1072 = vsub.s32 %v1069, %v1071
        %v1073 = vrot.slane %v1059, %v1072
        %v1074 = vcombine.low %v728, %v746
        %v1075 = vcombine.high %v728, %v746
        %v1077 = vunpack.c.l.s4 1983009808
        %v1078 = vunpack.c.0.s8 %v1077
        %v1079 = vlaneseq
        %v1080 = vshrl.u32 %v1079, 7
        %v1081 = vsub.s32 %v1078, %v1080
        %v1082 = vrot.slane %v1074, %v1081
        %v1084 = vunpack.c.l.s4 1983009808
        %v1085 = vunpack.c.0.s8 %v1084
        %v1086 = vlaneseq
        %v1087 = vshrl.u32 %v1086, 7
        %v1088 = vsub.s32 %v1085, %v1087
        %v1089 = vrot.slane %v1075, %v1088
        %v1090 = vcombine.low %v755, %v773
        %v1091 = vcombine.high %v755, %v773
        %v1093 = vunpack.c.l.s4 1983009808
        %v1094 = vunpack.c.0.s8 %v1093
        %v1095 = vlaneseq
        %v1096 = vshrl.u32 %v1095, 7
        %v1097 = vsub.s32 %v1094, %v1096
        %v1098 = vrot.slane %v1090, %v1097
        %v1100 = vunpack.c.l.s4 1983009808
        %v1101 = vunpack.c.0.s8 %v1100
        %v1102 = vlaneseq
        %v1103 = vshrl.u32 %v1102, 7
        %v1104 = vsub.s32 %v1101, %v1103
        %v1105 = vrot.slane %v1091, %v1104
        %v1106 = vcombine.low %v764, %v782
        %v1107 = vcombine.high %v764, %v782
        %v1109 = vunpack.c.l.s4 1983009808
        %v1110 = vunpack.c.0.s8 %v1109
        %v1111 = vlaneseq
        %v1112 = vshrl.u32 %v1111, 7
        %v1113 = vsub.s32 %v1110, %v1112
        %v1114 = vrot.slane %v1106, %v1113
        %v1116 = vunpack.c.l.s4 1983009808
        %v1117 = vunpack.c.0.s8 %v1116
        %v1118 = vlaneseq
        %v1119 = vshrl.u32 %v1118, 7
        %v1120 = vsub.s32 %v1117, %v1119
        %v1121 = vrot.slane %v1107, %v1120
        %v1122 = vcombine.low %v1066, %v1082
        %v1123 = vcombine.high %v1066, %v1082
        %v1125 = vunpack.c.l.s4 1934713408
        %v1126 = vunpack.c.0.s8 %v1125
        %v1127 = vlaneseq
        %v1128 = vshrl.u32 %v1127, 7
        %v1129 = vsub.s32 %v1126, %v1128
        %v1130 = vrot.slane %v1122, %v1129
        %v1132 = vunpack.c.l.s4 1934713408
        %v1133 = vunpack.c.0.s8 %v1132
        %v1134 = vlaneseq
        %v1135 = vshrl.u32 %v1134, 7
        %v1136 = vsub.s32 %v1133, %v1135
        %v1137 = vrot.slane %v1123, %v1136
        %v1138 = vcombine.low %v1073, %v1089
        %v1139 = vcombine.high %v1073, %v1089
        %v1141 = vunpack.c.l.s4 1934713408
        %v1142 = vunpack.c.0.s8 %v1141
        %v1143 = vlaneseq
        %v1144 = vshrl.u32 %v1143, 7
        %v1145 = vsub.s32 %v1142, %v1144
        %v1146 = vrot.slane %v1138, %v1145
        %v1148 = vunpack.c.l.s4 1934713408
        %v1149 = vunpack.c.0.s8 %v1148
        %v1150 = vlaneseq
        %v1151 = vshrl.u32 %v1150, 7
        %v1152 = vsub.s32 %v1149, %v1151
        %v1153 = vrot.slane %v1139, %v1152
        %v1154 = vcombine.low %v1098, %v1114
        %v1155 = vcombine.high %v1098, %v1114
        %v1157 = vunpack.c.l.s4 1934713408
        %v1158 = vunpack.c.0.s8 %v1157
        %v1159 = vlaneseq
        %v1160 = vshrl.u32 %v1159, 7
        %v1161 = vsub.s32 %v1158, %v1160
        %v1162 = vrot.slane %v1154, %v1161
        %v1164 = vunpack.c.l.s4 1934713408
        %v1165 = vunpack.c.0.s8 %v1164
        %v1166 = vlaneseq
        %v1167 = vshrl.u32 %v1166, 7
        %v1168 = vsub.s32 %v1165, %v1167
        %v1169 = vrot.slane %v1155, %v1168
        %v1170 = vcombine.low %v1105, %v1121
        %v1171 = vcombine.high %v1105, %v1121
        %v1173 = vunpack.c.l.s4 1934713408
        %v1174 = vunpack.c.0.s8 %v1173
        %v1175 = vlaneseq
        %v1176 = vshrl.u32 %v1175, 7
        %v1177 = vsub.s32 %v1174, %v1176
        %v1178 = vrot.slane %v1170, %v1177
        %v1180 = vunpack.c.l.s4 1934713408
        %v1181 = vunpack.c.0.s8 %v1180
        %v1182 = vlaneseq
        %v1183 = vshrl.u32 %v1182, 7
        %v1184 = vsub.s32 %v1181, %v1183
        %v1185 = vrot.slane %v1171, %v1184
        %v1186 = vcombine.low %v1130, %v1162
        %v1187 = vcombine.high %v1130, %v1162
        %v1188 = vcombine.low %v1137, %v1169
        %v1189 = vcombine.high %v1137, %v1169
        %v1190 = vcombine.low %v1146, %v1178
        %v1191 = vcombine.high %v1146, %v1178
        %v1192 = vcombine.low %v1153, %v1185
        %v1193 = vcombine.high %v1153, %v1185
        %v1194 = vld [vmem:[%s362 + $0x7] sm:$0x1]
        %v1195 = vld [vmem:[%s362 + $0xf] sm:$0x1]
        %v1196 = vld [vmem:[%s362 + $0x17] sm:$0x1]
        %v1197 = vld [vmem:[%s362 + $0x1f] sm:$0x1]
        %v1198 = vld [vmem:[%s362 + $0x27] sm:$0x1]
        %v1199 = vld [vmem:[%s362 + $0x2f] sm:$0x1]
        %v1200 = vld [vmem:[%s362 + $0x37] sm:$0x1]
        %v1201 = vld [vmem:[%s362 + $0x3f] sm:$0x1]
        %v1202 = vld [vmem:[%s371] sm:$0x1]
        %v1203 = vld [vmem:[%s371 + $0x8] sm:$0x1]
        %v1204 = vld [vmem:[%s371 + $0x10] sm:$0x1]
        %v1205 = vld [vmem:[%s371 + $0x18] sm:$0x1]
        %v1206 = vld [vmem:[%s371 + $0x20] sm:$0x1]
        %v1207 = vld [vmem:[%s371 + $0x28] sm:$0x1]
        %v1208 = vld [vmem:[%s371 + $0x30] sm:$0x1]
        %v1209 = vld [vmem:[%s371 + $0x38] sm:$0x1]
        %v1218 = vrot.slane %v1195, 7
        %vm1219 = vcmask 1041409
        %v1220 = vsel %vm1219, %v1218, %v1194
        %v1221 = vrot.slane %v1196, 6
        %vm1222 = vcmask 1042434
        %v1223 = vsel %vm1222, %v1221, %v1220
        %v1224 = vrot.slane %v1197, 5
        %vm1225 = vcmask 1043459
        %v1226 = vsel %vm1225, %v1224, %v1223
        %v1227 = vrot.slane %v1198, 4
        %vm1228 = vcmask 1044484
        %v1229 = vsel %vm1228, %v1227, %v1226
        %v1230 = vrot.slane %v1199, 3
        %vm1231 = vcmask 1045509
        %v1232 = vsel %vm1231, %v1230, %v1229
        %v1233 = vrot.slane %v1200, 2
        %vm1234 = vcmask 1046534
        %v1235 = vsel %vm1234, %v1233, %v1232
        %v1236 = vrot.slane %v1201, 1
        %vm1237 = vcmask 1047559
        %v1238 = vsel %vm1237, %v1236, %v1235
        %1240 = vmatprep.subr.mxu0 0.0
        %1241 = vmatpush1.msra.mxu0 %v1238
        %1242 = vmatprep.subr.mxu0 0.0
        %1243 = vmatpush1.msra.mxu0 0.0
        %1244 = vmatprep.subr.mxu0 0.0
        %1245 = vmatpush1.msra.mxu0 0.0
        %1246 = vmatprep.subr.mxu0 0.0
        %1247 = vmatpush1.msra.mxu0 0.0
        %1248 = vmatprep.subr.mxu0 0.0
        %1249 = vmatpush1.msra.mxu0 0.0
        %1250 = vmatprep.subr.mxu0 0.0
        %1251 = vmatpush1.msra.mxu0 0.0
        %1252 = vmatprep.subr.mxu0 0.0
        %1253 = vmatpush1.msra.mxu0 0.0
        %1254 = vmatprep.subr.mxu0 0.0
        %1255 = vmatpush1.msra.mxu0 0.0
        %1256 = vmatprep.subr.mxu0 0.0
        %1257 = vmatpush1.msra.mxu0 0.0
        %1258 = vmatprep.subr.mxu0 0.0
        %1259 = vmatpush1.msra.mxu0 0.0
        %1260 = vmatprep.subr.mxu0 0.0
        %1261 = vmatpush1.msra.mxu0 0.0
        %1262 = vmatprep.subr.mxu0 0.0
        %1263 = vmatpush1.msra.mxu0 0.0
        %1264 = vmatprep.subr.mxu0 0.0
        %1265 = vmatpush1.msra.mxu0 0.0
        %1266 = vmatprep.subr.mxu0 0.0
        %1267 = vmatpush1.msra.mxu0 0.0
        %1268 = vmatprep.subr.mxu0 0.0
        %1269 = vmatpush1.msra.mxu0 0.0
        %1270 = vmatprep.subr.mxu0 0.0
        %1271 = vmatpush1.msra.mxu0 0.0
        %1272 = vmatprep.subr.mxu0 0.0
        %1273 = vmatpush1.msra.mxu0 0.0
        %1274 = vmatprep.subr.mxu0 0.0
        %1275 = vmatpush1.msra.mxu0 0.0
        %1276 = vmatprep.subr.mxu0 0.0
        %1277 = vmatpush1.msra.mxu0 0.0
        %1278 = vmatprep.subr.mxu0 0.0
        %1279 = vmatpush1.msra.mxu0 0.0
        %1280 = vmatprep.subr.mxu0 0.0
        %1281 = vmatpush1.msra.mxu0 0.0
        %1282 = vmatprep.subr.mxu0 0.0
        %1283 = vmatpush1.msra.mxu0 0.0
        %1284 = vmatprep.subr.mxu0 0.0
        %1285 = vmatpush1.msra.mxu0 0.0
        %1286 = vmatprep.subr.mxu0 0.0
        %1287 = vmatpush1.msra.mxu0 0.0
        %1288 = vmatprep.subr.mxu0 0.0
        %1289 = vmatpush1.msra.mxu0 0.0
        %1290 = vmatprep.subr.mxu0 0.0
        %1291 = vmatpush1.msra.mxu0 0.0
        %1292 = vmatprep.subr.mxu0 0.0
        %1293 = vmatpush1.msra.mxu0 0.0
        %1294 = vmatprep.subr.mxu0 0.0
        %1295 = vmatpush1.msra.mxu0 0.0
        %1296 = vmatprep.subr.mxu0 0.0
        %1297 = vmatpush1.msra.mxu0 0.0
        %1298 = vmatprep.subr.mxu0 0.0
        %1299 = vmatpush1.msra.mxu0 0.0
        %1300 = vmatprep.subr.mxu0 0.0
        %1301 = vmatpush1.msra.mxu0 0.0
        %1302 = vmatprep.subr.mxu0 0.0
        %1303 = vmatpush1.msra.mxu0 0.0
        %1304 = vmatprep.mubr.f32.mxu0 0.0
        %1305 = vmatmul.mubr.f32.gmra.mrb[0].mxu0 %v632
        %v1306 = vpop.f32.mrb[0].mxu0
        %v1307 = vadd.f32 %v618, %v1306
        %v1308 = vpop.f32.mrb[0].mxu0
        %1309 = vmatprep.mubr.f32.mxu0 0.0
        %1310 = vmatmul.mubr.f32.gmra.mrb[0].mxu0 %v635
        %v1311 = vpop.f32.mrb[0].mxu0
        %v1312 = vadd.f32 %v623, %v1311
        %v1313 = vpop.f32.mrb[0].mxu0
        %1314 = vmatprep.mubr.f32.mxu0 0.0
        %1315 = vmatmul.mubr.f32.gmra.mrb[0].mxu0 %v638
        %v1316 = vpop.f32.mrb[0].mxu0
        %v1317 = vadd.f32 %v628, %v1316
        %v1318 = vpop.f32.mrb[0].mxu0
        %1319 = vdwg.mxu0
        %v1320 = vstv %s419
        %v1321 = vmul.f32 %v1307, %v1320
        %v1322 = vmul.f32 %v1312, %v1320
        %v1323 = vmul.f32 %v1317, %v1320
        %v1332 = vrot.slane %v1203, 7
        %v1333 = vsel %vm1219, %v1332, %v1202
        %v1334 = vrot.slane %v1204, 6
        %v1335 = vsel %vm1222, %v1334, %v1333
        %v1336 = vrot.slane %v1205, 5
        %v1337 = vsel %vm1225, %v1336, %v1335
        %v1338 = vrot.slane %v1206, 4
        %v1339 = vsel %vm1228, %v1338, %v1337
        %v1340 = vrot.slane %v1207, 3
        %v1341 = vsel %vm1231, %v1340, %v1339
        %v1342 = vrot.slane %v1208, 2
        %v1343 = vsel %vm1234, %v1342, %v1341
        %v1344 = vrot.slane %v1209, 1
        %v1345 = vsel %vm1237, %v1344, %v1343
        %1347 = vmatprep.subr.mxu0 0.0
        %1348 = vmatpush1.msra.mxu0 %v1345
        %1349 = vmatprep.subr.mxu0 0.0
        %1350 = vmatpush1.msra.mxu0 0.0
        %1351 = vmatprep.subr.mxu0 0.0
        %1352 = vmatpush1.msra.mxu0 0.0
        %1353 = vmatprep.subr.mxu0 0.0
        %1354 = vmatpush1.msra.mxu0 0.0
        %1355 = vmatprep.subr.mxu0 0.0
        %1356 = vmatpush1.msra.mxu0 0.0
        %1357 = vmatprep.subr.mxu0 0.0
        %1358 = vmatpush1.msra.mxu0 0.0
        %1359 = vmatprep.subr.mxu0 0.0
        %1360 = vmatpush1.msra.mxu0 0.0
        %1361 = vmatprep.subr.mxu0 0.0
        %1362 = vmatpush1.msra.mxu0 0.0
        %1363 = vmatprep.subr.mxu0 0.0
        %1364 = vmatpush1.msra.mxu0 0.0
        %1365 = vmatprep.subr.mxu0 0.0
        %1366 = vmatpush1.msra.mxu0 0.0
        %1367 = vmatprep.subr.mxu0 0.0
        %1368 = vmatpush1.msra.mxu0 0.0
        %1369 = vmatprep.subr.mxu0 0.0
        %1370 = vmatpush1.msra.mxu0 0.0
        %1371 = vmatprep.subr.mxu0 0.0
        %1372 = vmatpush1.msra.mxu0 0.0
        %1373 = vmatprep.subr.mxu0 0.0
        %1374 = vmatpush1.msra.mxu0 0.0
        %1375 = vmatprep.subr.mxu0 0.0
        %1376 = vmatpush1.msra.mxu0 0.0
        %1377 = vmatprep.subr.mxu0 0.0
        %1378 = vmatpush1.msra.mxu0 0.0
        %1379 = vmatprep.subr.mxu0 0.0
        %1380 = vmatpush1.msra.mxu0 0.0
        %1381 = vmatprep.subr.mxu0 0.0
        %1382 = vmatpush1.msra.mxu0 0.0
        %1383 = vmatprep.subr.mxu0 0.0
        %1384 = vmatpush1.msra.mxu0 0.0
        %1385 = vmatprep.subr.mxu0 0.0
        %1386 = vmatpush1.msra.mxu0 0.0
        %1387 = vmatprep.subr.mxu0 0.0
        %1388 = vmatpush1.msra.mxu0 0.0
        %1389 = vmatprep.subr.mxu0 0.0
        %1390 = vmatpush1.msra.mxu0 0.0
        %1391 = vmatprep.subr.mxu0 0.0
        %1392 = vmatpush1.msra.mxu0 0.0
        %1393 = vmatprep.subr.mxu0 0.0
        %1394 = vmatpush1.msra.mxu0 0.0
        %1395 = vmatprep.subr.mxu0 0.0
        %1396 = vmatpush1.msra.mxu0 0.0
        %1397 = vmatprep.subr.mxu0 0.0
        %1398 = vmatpush1.msra.mxu0 0.0
        %1399 = vmatprep.subr.mxu0 0.0
        %1400 = vmatpush1.msra.mxu0 0.0
        %1401 = vmatprep.subr.mxu0 0.0
        %1402 = vmatpush1.msra.mxu0 0.0
        %1403 = vmatprep.subr.mxu0 0.0
        %1404 = vmatpush1.msra.mxu0 0.0
        %1405 = vmatprep.subr.mxu0 0.0
        %1406 = vmatpush1.msra.mxu0 0.0
        %1407 = vmatprep.subr.mxu0 0.0
        %1408 = vmatpush1.msra.mxu0 0.0
        %1409 = vmatprep.subr.mxu0 0.0
        %1410 = vmatpush1.msra.mxu0 0.0
        %1411 = vmatprep.mubr.f32.mxu0 0.0
        %1412 = vmatmul.mubr.f32.gmra.mrb[0].mxu0 %v632
        %v1413 = vpop.f32.mrb[0].mxu0
        %v1414 = vadd.f32 %v618, %v1413
        %v1415 = vpop.f32.mrb[0].mxu0
        %1416 = vmatprep.mubr.f32.mxu0 0.0
        %1417 = vmatmul.mubr.f32.gmra.mrb[0].mxu0 %v635
        %v1418 = vpop.f32.mrb[0].mxu0
        %v1419 = vadd.f32 %v623, %v1418
        %v1420 = vpop.f32.mrb[0].mxu0
        %1421 = vmatprep.mubr.f32.mxu0 0.0
        %1422 = vmatmul.mubr.f32.gmra.mrb[0].mxu0 %v638
        %v1423 = vpop.f32.mrb[0].mxu0
        %v1424 = vadd.f32 %v628, %v1423
        %v1425 = vpop.f32.mrb[0].mxu0
        %1426 = vdwg.mxu0
        %v1427 = vstv %s422
        %v1428 = vmul.f32 %v1414, %v1427
        %v1429 = vmul.f32 %v1419, %v1427
        %v1430 = vmul.f32 %v1424, %v1427
        %v1434 = vcombine.high %v1321, %v1321
        %v1436 = vunpack.c.l.s4 1966171168
        %v1437 = vunpack.c.0.s8 %v1436
        %v1438 = vlaneseq
        %v1439 = vshrl.u32 %v1438, 7
        %v1440 = vsub.s32 %v1437, %v1439
        %v1441 = vrot.slane %v1321, %v1440
        %v1443 = vunpack.c.l.s4 1966171168
        %v1444 = vunpack.c.0.s8 %v1443
        %v1445 = vlaneseq
        %v1446 = vshrl.u32 %v1445, 7
        %v1447 = vsub.s32 %v1444, %v1446
        %v1448 = vrot.slane %v1434, %v1447
        %v1449 = vcombine.high %v1441, %v1441
        %v1450 = vcombine.high %v1448, %v1448
        %v1452 = vunpack.c.l.s4 1966171168
        %v1453 = vunpack.c.0.s8 %v1452
        %v1454 = vlaneseq
        %v1455 = vshrl.u32 %v1454, 7
        %v1456 = vsub.s32 %v1453, %v1455
        %v1457 = vrot.slane %v1441, %v1456
        %v1459 = vunpack.c.l.s4 1966171168
        %v1460 = vunpack.c.0.s8 %v1459
        %v1461 = vlaneseq
        %v1462 = vshrl.u32 %v1461, 7
        %v1463 = vsub.s32 %v1460, %v1462
        %v1464 = vrot.slane %v1448, %v1463
        %v1466 = vunpack.c.l.s4 1966171168
        %v1467 = vunpack.c.0.s8 %v1466
        %v1468 = vlaneseq
        %v1469 = vshrl.u32 %v1468, 7
        %v1470 = vsub.s32 %v1467, %v1469
        %v1471 = vrot.slane %v1449, %v1470
        %v1473 = vunpack.c.l.s4 1966171168
        %v1474 = vunpack.c.0.s8 %v1473
        %v1475 = vlaneseq
        %v1476 = vshrl.u32 %v1475, 7
        %v1477 = vsub.s32 %v1474, %v1476
        %v1478 = vrot.slane %v1450, %v1477
        %v1479 = vcombine.high %v1457, %v1457
        %v1480 = vcombine.high %v1464, %v1464
        %v1481 = vcombine.high %v1471, %v1471
        %v1482 = vcombine.high %v1478, %v1478
        %v1483 = vcombine.high %v1322, %v1322
        %v1485 = vunpack.c.l.s4 1966171168
        %v1486 = vunpack.c.0.s8 %v1485
        %v1487 = vlaneseq
        %v1488 = vshrl.u32 %v1487, 7
        %v1489 = vsub.s32 %v1486, %v1488
        %v1490 = vrot.slane %v1322, %v1489
        %v1492 = vunpack.c.l.s4 1966171168
        %v1493 = vunpack.c.0.s8 %v1492
        %v1494 = vlaneseq
        %v1495 = vshrl.u32 %v1494, 7
        %v1496 = vsub.s32 %v1493, %v1495
        %v1497 = vrot.slane %v1483, %v1496
        %v1498 = vcombine.high %v1490, %v1490
        %v1499 = vcombine.high %v1497, %v1497
        %v1501 = vunpack.c.l.s4 1966171168
        %v1502 = vunpack.c.0.s8 %v1501
        %v1503 = vlaneseq
        %v1504 = vshrl.u32 %v1503, 7
        %v1505 = vsub.s32 %v1502, %v1504
        %v1506 = vrot.slane %v1490, %v1505
        %v1508 = vunpack.c.l.s4 1966171168
        %v1509 = vunpack.c.0.s8 %v1508
        %v1510 = vlaneseq
        %v1511 = vshrl.u32 %v1510, 7
        %v1512 = vsub.s32 %v1509, %v1511
        %v1513 = vrot.slane %v1497, %v1512
        %v1515 = vunpack.c.l.s4 1966171168
        %v1516 = vunpack.c.0.s8 %v1515
        %v1517 = vlaneseq
        %v1518 = vshrl.u32 %v1517, 7
        %v1519 = vsub.s32 %v1516, %v1518
        %v1520 = vrot.slane %v1498, %v1519
        %v1522 = vunpack.c.l.s4 1966171168
        %v1523 = vunpack.c.0.s8 %v1522
        %v1524 = vlaneseq
        %v1525 = vshrl.u32 %v1524, 7
        %v1526 = vsub.s32 %v1523, %v1525
        %v1527 = vrot.slane %v1499, %v1526
        %v1528 = vcombine.high %v1506, %v1506
        %v1529 = vcombine.high %v1513, %v1513
        %v1530 = vcombine.high %v1520, %v1520
        %v1531 = vcombine.high %v1527, %v1527
        %v1532 = vcombine.high %v1323, %v1323
        %v1534 = vunpack.c.l.s4 1966171168
        %v1535 = vunpack.c.0.s8 %v1534
        %v1536 = vlaneseq
        %v1537 = vshrl.u32 %v1536, 7
        %v1538 = vsub.s32 %v1535, %v1537
        %v1539 = vrot.slane %v1323, %v1538
        %v1541 = vunpack.c.l.s4 1966171168
        %v1542 = vunpack.c.0.s8 %v1541
        %v1543 = vlaneseq
        %v1544 = vshrl.u32 %v1543, 7
        %v1545 = vsub.s32 %v1542, %v1544
        %v1546 = vrot.slane %v1532, %v1545
        %v1547 = vcombine.high %v1539, %v1539
        %v1548 = vcombine.high %v1546, %v1546
        %v1550 = vunpack.c.l.s4 1966171168
        %v1551 = vunpack.c.0.s8 %v1550
        %v1552 = vlaneseq
        %v1553 = vshrl.u32 %v1552, 7
        %v1554 = vsub.s32 %v1551, %v1553
        %v1555 = vrot.slane %v1539, %v1554
        %v1557 = vunpack.c.l.s4 1966171168
        %v1558 = vunpack.c.0.s8 %v1557
        %v1559 = vlaneseq
        %v1560 = vshrl.u32 %v1559, 7
        %v1561 = vsub.s32 %v1558, %v1560
        %v1562 = vrot.slane %v1546, %v1561
        %v1564 = vunpack.c.l.s4 1966171168
        %v1565 = vunpack.c.0.s8 %v1564
        %v1566 = vlaneseq
        %v1567 = vshrl.u32 %v1566, 7
        %v1568 = vsub.s32 %v1565, %v1567
        %v1569 = vrot.slane %v1547, %v1568
        %v1571 = vunpack.c.l.s4 1966171168
        %v1572 = vunpack.c.0.s8 %v1571
        %v1573 = vlaneseq
        %v1574 = vshrl.u32 %v1573, 7
        %v1575 = vsub.s32 %v1572, %v1574
        %v1576 = vrot.slane %v1548, %v1575
        %v1577 = vcombine.high %v1555, %v1555
        %v1578 = vcombine.high %v1562, %v1562
        %v1579 = vcombine.high %v1569, %v1569
        %v1580 = vcombine.high %v1576, %v1576
        %v1608 = vcombine.high %v1428, %v1428
        %v1610 = vunpack.c.l.s4 1966171168
        %v1611 = vunpack.c.0.s8 %v1610
        %v1612 = vlaneseq
        %v1613 = vshrl.u32 %v1612, 7
        %v1614 = vsub.s32 %v1611, %v1613
        %v1615 = vrot.slane %v1428, %v1614
        %v1617 = vunpack.c.l.s4 1966171168
        %v1618 = vunpack.c.0.s8 %v1617
        %v1619 = vlaneseq
        %v1620 = vshrl.u32 %v1619, 7
        %v1621 = vsub.s32 %v1618, %v1620
        %v1622 = vrot.slane %v1608, %v1621
        %v1623 = vcombine.high %v1615, %v1615
        %v1624 = vcombine.high %v1622, %v1622
        %v1626 = vunpack.c.l.s4 1966171168
        %v1627 = vunpack.c.0.s8 %v1626
        %v1628 = vlaneseq
        %v1629 = vshrl.u32 %v1628, 7
        %v1630 = vsub.s32 %v1627, %v1629
        %v1631 = vrot.slane %v1615, %v1630
        %v1633 = vunpack.c.l.s4 1966171168
        %v1634 = vunpack.c.0.s8 %v1633
        %v1635 = vlaneseq
        %v1636 = vshrl.u32 %v1635, 7
        %v1637 = vsub.s32 %v1634, %v1636
        %v1638 = vrot.slane %v1622, %v1637
        %v1640 = vunpack.c.l.s4 1966171168
        %v1641 = vunpack.c.0.s8 %v1640
        %v1642 = vlaneseq
        %v1643 = vshrl.u32 %v1642, 7
        %v1644 = vsub.s32 %v1641, %v1643
        %v1645 = vrot.slane %v1623, %v1644
        %v1647 = vunpack.c.l.s4 1966171168
        %v1648 = vunpack.c.0.s8 %v1647
        %v1649 = vlaneseq
        %v1650 = vshrl.u32 %v1649, 7
        %v1651 = vsub.s32 %v1648, %v1650
        %v1652 = vrot.slane %v1624, %v1651
        %v1653 = vcombine.high %v1631, %v1631
        %v1654 = vcombine.high %v1638, %v1638
        %v1655 = vcombine.high %v1645, %v1645
        %v1656 = vcombine.high %v1652, %v1652
        %v1657 = vcombine.high %v1429, %v1429
        %v1659 = vunpack.c.l.s4 1966171168
        %v1660 = vunpack.c.0.s8 %v1659
        %v1661 = vlaneseq
        %v1662 = vshrl.u32 %v1661, 7
        %v1663 = vsub.s32 %v1660, %v1662
        %v1664 = vrot.slane %v1429, %v1663
        %v1666 = vunpack.c.l.s4 1966171168
        %v1667 = vunpack.c.0.s8 %v1666
        %v1668 = vlaneseq
        %v1669 = vshrl.u32 %v1668, 7
        %v1670 = vsub.s32 %v1667, %v1669
        %v1671 = vrot.slane %v1657, %v1670
        %v1672 = vcombine.high %v1664, %v1664
        %v1673 = vcombine.high %v1671, %v1671
        %v1675 = vunpack.c.l.s4 1966171168
        %v1676 = vunpack.c.0.s8 %v1675
        %v1677 = vlaneseq
        %v1678 = vshrl.u32 %v1677, 7
        %v1679 = vsub.s32 %v1676, %v1678
        %v1680 = vrot.slane %v1664, %v1679
        %v1682 = vunpack.c.l.s4 1966171168
        %v1683 = vunpack.c.0.s8 %v1682
        %v1684 = vlaneseq
        %v1685 = vshrl.u32 %v1684, 7
        %v1686 = vsub.s32 %v1683, %v1685
        %v1687 = vrot.slane %v1671, %v1686
        %v1689 = vunpack.c.l.s4 1966171168
        %v1690 = vunpack.c.0.s8 %v1689
        %v1691 = vlaneseq
        %v1692 = vshrl.u32 %v1691, 7
        %v1693 = vsub.s32 %v1690, %v1692
        %v1694 = vrot.slane %v1672, %v1693
        %v1696 = vunpack.c.l.s4 1966171168
        %v1697 = vunpack.c.0.s8 %v1696
        %v1698 = vlaneseq
        %v1699 = vshrl.u32 %v1698, 7
        %v1700 = vsub.s32 %v1697, %v1699
        %v1701 = vrot.slane %v1673, %v1700
        %v1702 = vcombine.high %v1680, %v1680
        %v1703 = vcombine.high %v1687, %v1687
        %v1704 = vcombine.high %v1694, %v1694
        %v1705 = vcombine.high %v1701, %v1701
        %v1706 = vcombine.high %v1430, %v1430
        %v1708 = vunpack.c.l.s4 1966171168
        %v1709 = vunpack.c.0.s8 %v1708
        %v1710 = vlaneseq
        %v1711 = vshrl.u32 %v1710, 7
        %v1712 = vsub.s32 %v1709, %v1711
        %v1713 = vrot.slane %v1430, %v1712
        %v1715 = vunpack.c.l.s4 1966171168
        %v1716 = vunpack.c.0.s8 %v1715
        %v1717 = vlaneseq
        %v1718 = vshrl.u32 %v1717, 7
        %v1719 = vsub.s32 %v1716, %v1718
        %v1720 = vrot.slane %v1706, %v1719
        %v1721 = vcombine.high %v1713, %v1713
        %v1722 = vcombine.high %v1720, %v1720
        %v1724 = vunpack.c.l.s4 1966171168
        %v1725 = vunpack.c.0.s8 %v1724
        %v1726 = vlaneseq
        %v1727 = vshrl.u32 %v1726, 7
        %v1728 = vsub.s32 %v1725, %v1727
        %v1729 = vrot.slane %v1713, %v1728
        %v1731 = vunpack.c.l.s4 1966171168
        %v1732 = vunpack.c.0.s8 %v1731
        %v1733 = vlaneseq
        %v1734 = vshrl.u32 %v1733, 7
        %v1735 = vsub.s32 %v1732, %v1734
        %v1736 = vrot.slane %v1720, %v1735
        %v1738 = vunpack.c.l.s4 1966171168
        %v1739 = vunpack.c.0.s8 %v1738
        %v1740 = vlaneseq
        %v1741 = vshrl.u32 %v1740, 7
        %v1742 = vsub.s32 %v1739, %v1741
        %v1743 = vrot.slane %v1721, %v1742
        %v1745 = vunpack.c.l.s4 1966171168
        %v1746 = vunpack.c.0.s8 %v1745
        %v1747 = vlaneseq
        %v1748 = vshrl.u32 %v1747, 7
        %v1749 = vsub.s32 %v1746, %v1748
        %v1750 = vrot.slane %v1722, %v1749
        %v1751 = vcombine.high %v1729, %v1729
        %v1752 = vcombine.high %v1736, %v1736
        %v1753 = vcombine.high %v1743, %v1743
        %v1754 = vcombine.high %v1750, %v1750
        %v1779 = vrot.slane %v914, 7
        %v1780 = vrot.slane %v915, 7
        %v1781 = vrot.slane %v916, 7
        %v1782 = vrot.slane %v917, 7
        %v1783 = vrot.slane %v918, 7
        %v1784 = vrot.slane %v919, 7
        %v1785 = vrot.slane %v920, 7
        %v1786 = vrot.slane %v921, 7
        %v1787 = vrot.slane %v1050, 7
        %v1788 = vrot.slane %v1051, 7
        %v1789 = vrot.slane %v1052, 7
        %v1790 = vrot.slane %v1053, 7
        %v1791 = vrot.slane %v1054, 7
        %v1792 = vrot.slane %v1055, 7
        %v1793 = vrot.slane %v1056, 7
        %v1794 = vrot.slane %v1057, 7
        %v1795 = vrot.slane %v1186, 7
        %v1796 = vrot.slane %v1187, 7
        %v1797 = vrot.slane %v1188, 7
        %v1798 = vrot.slane %v1189, 7
        %v1799 = vrot.slane %v1190, 7
        %v1800 = vrot.slane %v1191, 7
        %v1801 = vrot.slane %v1192, 7
        %v1802 = vrot.slane %v1193, 7
        %v1827 = vlaneseq
        %v1828 = vshrl.u32 %v1827, 7
        %v1829 = vsub.s32 0, %v1828
        %v1830 = vrot.slane %v1631, %v1829
        %v1831 = vlaneseq
        %v1832 = vshrl.u32 %v1831, 7
        %v1833 = vsub.s32 0, %v1832
        %v1834 = vrot.slane %v1645, %v1833
        %v1835 = vlaneseq
        %v1836 = vshrl.u32 %v1835, 7
        %v1837 = vsub.s32 0, %v1836
        %v1838 = vrot.slane %v1653, %v1837
        %v1839 = vlaneseq
        %v1840 = vshrl.u32 %v1839, 7
        %v1841 = vsub.s32 0, %v1840
        %v1842 = vrot.slane %v1655, %v1841
        %v1843 = vlaneseq
        %v1844 = vshrl.u32 %v1843, 7
        %v1845 = vsub.s32 0, %v1844
        %v1846 = vrot.slane %v1638, %v1845
        %v1847 = vlaneseq
        %v1848 = vshrl.u32 %v1847, 7
        %v1849 = vsub.s32 0, %v1848
        %v1850 = vrot.slane %v1652, %v1849
        %v1851 = vlaneseq
        %v1852 = vshrl.u32 %v1851, 7
        %v1853 = vsub.s32 0, %v1852
        %v1854 = vrot.slane %v1654, %v1853
        %v1855 = vlaneseq
        %v1856 = vshrl.u32 %v1855, 7
        %v1857 = vsub.s32 0, %v1856
        %v1858 = vrot.slane %v1656, %v1857
        %v1859 = vlaneseq
        %v1860 = vshrl.u32 %v1859, 7
        %v1861 = vsub.s32 0, %v1860
        %v1862 = vrot.slane %v1680, %v1861
        %v1863 = vlaneseq
        %v1864 = vshrl.u32 %v1863, 7
        %v1865 = vsub.s32 0, %v1864
        %v1866 = vrot.slane %v1694, %v1865
        %v1867 = vlaneseq
        %v1868 = vshrl.u32 %v1867, 7
        %v1869 = vsub.s32 0, %v1868
        %v1870 = vrot.slane %v1702, %v1869
        %v1871 = vlaneseq
        %v1872 = vshrl.u32 %v1871, 7
        %v1873 = vsub.s32 0, %v1872
        %v1874 = vrot.slane %v1704, %v1873
        %v1875 = vlaneseq
        %v1876 = vshrl.u32 %v1875, 7
        %v1877 = vsub.s32 0, %v1876
        %v1878 = vrot.slane %v1687, %v1877
        %v1879 = vlaneseq
        %v1880 = vshrl.u32 %v1879, 7
        %v1881 = vsub.s32 0, %v1880
        %v1882 = vrot.slane %v1701, %v1881
        %v1883 = vlaneseq
        %v1884 = vshrl.u32 %v1883, 7
        %v1885 = vsub.s32 0, %v1884
        %v1886 = vrot.slane %v1703, %v1885
        %v1887 = vlaneseq
        %v1888 = vshrl.u32 %v1887, 7
        %v1889 = vsub.s32 0, %v1888
        %v1890 = vrot.slane %v1705, %v1889
        %v1891 = vlaneseq
        %v1892 = vshrl.u32 %v1891, 7
        %v1893 = vsub.s32 0, %v1892
        %v1894 = vrot.slane %v1729, %v1893
        %v1895 = vlaneseq
        %v1896 = vshrl.u32 %v1895, 7
        %v1897 = vsub.s32 0, %v1896
        %v1898 = vrot.slane %v1743, %v1897
        %v1899 = vlaneseq
        %v1900 = vshrl.u32 %v1899, 7
        %v1901 = vsub.s32 0, %v1900
        %v1902 = vrot.slane %v1751, %v1901
        %v1903 = vlaneseq
        %v1904 = vshrl.u32 %v1903, 7
        %v1905 = vsub.s32 0, %v1904
        %v1906 = vrot.slane %v1753, %v1905
        %v1907 = vlaneseq
        %v1908 = vshrl.u32 %v1907, 7
        %v1909 = vsub.s32 0, %v1908
        %v1910 = vrot.slane %v1736, %v1909
        %v1911 = vlaneseq
        %v1912 = vshrl.u32 %v1911, 7
        %v1913 = vsub.s32 0, %v1912
        %v1914 = vrot.slane %v1750, %v1913
        %v1915 = vlaneseq
        %v1916 = vshrl.u32 %v1915, 7
        %v1917 = vsub.s32 0, %v1916
        %v1918 = vrot.slane %v1752, %v1917
        %v1919 = vlaneseq
        %v1920 = vshrl.u32 %v1919, 7
        %v1921 = vsub.s32 0, %v1920
        %v1922 = vrot.slane %v1754, %v1921
        %vm1947 = vcmask 1040384
        %v1948 = vsel %vm1947, %v1457, %v1779
        %v1949 = vsel %vm1947, %v1471, %v1780
        %v1950 = vsel %vm1947, %v1479, %v1781
        %v1951 = vsel %vm1947, %v1481, %v1782
        %v1952 = vsel %vm1947, %v1464, %v1783
        %v1953 = vsel %vm1947, %v1478, %v1784
        %v1954 = vsel %vm1947, %v1480, %v1785
        %v1955 = vsel %vm1947, %v1482, %v1786
        %v1956 = vsel %vm1947, %v1506, %v1787
        %v1957 = vsel %vm1947, %v1520, %v1788
        %v1958 = vsel %vm1947, %v1528, %v1789
        %v1959 = vsel %vm1947, %v1530, %v1790
        %v1960 = vsel %vm1947, %v1513, %v1791
        %v1961 = vsel %vm1947, %v1527, %v1792
        %v1962 = vsel %vm1947, %v1529, %v1793
        %v1963 = vsel %vm1947, %v1531, %v1794
        %v1964 = vsel %vm1947, %v1555, %v1795
        %v1965 = vsel %vm1947, %v1569, %v1796
        %v1966 = vsel %vm1947, %v1577, %v1797
        %v1967 = vsel %vm1947, %v1579, %v1798
        %v1968 = vsel %vm1947, %v1562, %v1799
        %v1969 = vsel %vm1947, %v1576, %v1800
        %v1970 = vsel %vm1947, %v1578, %v1801
        %v1971 = vsel %vm1947, %v1580, %v1802
        %v1972 = vsel %vm1947, %v1779, %v1830
        %v1973 = vsel %vm1947, %v1780, %v1834
        %v1974 = vsel %vm1947, %v1781, %v1838
        %v1975 = vsel %vm1947, %v1782, %v1842
        %v1976 = vsel %vm1947, %v1783, %v1846
        %v1977 = vsel %vm1947, %v1784, %v1850
        %v1978 = vsel %vm1947, %v1785, %v1854
        %v1979 = vsel %vm1947, %v1786, %v1858
        %v1980 = vsel %vm1947, %v1787, %v1862
        %v1981 = vsel %vm1947, %v1788, %v1866
        %v1982 = vsel %vm1947, %v1789, %v1870
        %v1983 = vsel %vm1947, %v1790, %v1874
        %v1984 = vsel %vm1947, %v1791, %v1878
        %v1985 = vsel %vm1947, %v1792, %v1882
        %v1986 = vsel %vm1947, %v1793, %v1886
        %v1987 = vsel %vm1947, %v1794, %v1890
        %v1988 = vsel %vm1947, %v1795, %v1894
        %v1989 = vsel %vm1947, %v1796, %v1898
        %v1990 = vsel %vm1947, %v1797, %v1902
        %v1991 = vsel %vm1947, %v1798, %v1906
        %v1992 = vsel %vm1947, %v1799, %v1910
        %v1993 = vsel %vm1947, %v1800, %v1914
        %v1994 = vsel %vm1947, %v1801, %v1918
        %v1995 = vsel %vm1947, %v1802, %v1922
        %2044 = vrot.lane.b32.xlu0 %v1948, 1
        %v2045 = vpop.permute.xlu0 %2044
        %2046 = vrot.lane.b32.xlu0 %v1972, 1
        %v2047 = vpop.permute.xlu0 %2046
        %2048 = vrot.lane.b32.xlu0 %v1949, 1
        %v2049 = vpop.permute.xlu0 %2048
        %2050 = vrot.lane.b32.xlu0 %v1973, 1
        %v2051 = vpop.permute.xlu0 %2050
        %2052 = vrot.lane.b32.xlu0 %v1950, 1
        %v2053 = vpop.permute.xlu0 %2052
        %2054 = vrot.lane.b32.xlu0 %v1974, 1
        %v2055 = vpop.permute.xlu0 %2054
        %2056 = vrot.lane.b32.xlu0 %v1951, 1
        %v2057 = vpop.permute.xlu0 %2056
        %2058 = vrot.lane.b32.xlu0 %v1975, 1
        %v2059 = vpop.permute.xlu0 %2058
        %2060 = vrot.lane.b32.xlu0 %v1952, 1
        %v2061 = vpop.permute.xlu0 %2060
        %2062 = vrot.lane.b32.xlu0 %v1976, 1
        %v2063 = vpop.permute.xlu0 %2062
        %2064 = vrot.lane.b32.xlu0 %v1953, 1
        %v2065 = vpop.permute.xlu0 %2064
        %2066 = vrot.lane.b32.xlu0 %v1977, 1
        %v2067 = vpop.permute.xlu0 %2066
        %2068 = vrot.lane.b32.xlu0 %v1954, 1
        %v2069 = vpop.permute.xlu0 %2068
        %2070 = vrot.lane.b32.xlu0 %v1978, 1
        %v2071 = vpop.permute.xlu0 %2070
        %2072 = vrot.lane.b32.xlu0 %v1955, 1
        %v2073 = vpop.permute.xlu0 %2072
        %2074 = vrot.lane.b32.xlu0 %v1979, 1
        %v2075 = vpop.permute.xlu0 %2074
        %2076 = vrot.lane.b32.xlu0 %v1956, 1
        %v2077 = vpop.permute.xlu0 %2076
        %2078 = vrot.lane.b32.xlu0 %v1980, 1
        %v2079 = vpop.permute.xlu0 %2078
        %2080 = vrot.lane.b32.xlu0 %v1957, 1
        %v2081 = vpop.permute.xlu0 %2080
        %2082 = vrot.lane.b32.xlu0 %v1981, 1
        %v2083 = vpop.permute.xlu0 %2082
        %2084 = vrot.lane.b32.xlu0 %v1958, 1
        %v2085 = vpop.permute.xlu0 %2084
        %2086 = vrot.lane.b32.xlu0 %v1982, 1
        %v2087 = vpop.permute.xlu0 %2086
        %2088 = vrot.lane.b32.xlu0 %v1959, 1
        %v2089 = vpop.permute.xlu0 %2088
        %2090 = vrot.lane.b32.xlu0 %v1983, 1
        %v2091 = vpop.permute.xlu0 %2090
        %2092 = vrot.lane.b32.xlu0 %v1960, 1
        %v2093 = vpop.permute.xlu0 %2092
        %2094 = vrot.lane.b32.xlu0 %v1984, 1
        %v2095 = vpop.permute.xlu0 %2094
        %2096 = vrot.lane.b32.xlu0 %v1961, 1
        %v2097 = vpop.permute.xlu0 %2096
        %2098 = vrot.lane.b32.xlu0 %v1985, 1
        %v2099 = vpop.permute.xlu0 %2098
        %2100 = vrot.lane.b32.xlu0 %v1962, 1
        %v2101 = vpop.permute.xlu0 %2100
        %2102 = vrot.lane.b32.xlu0 %v1986, 1
        %v2103 = vpop.permute.xlu0 %2102
        %2104 = vrot.lane.b32.xlu0 %v1963, 1
        %v2105 = vpop.permute.xlu0 %2104
        %2106 = vrot.lane.b32.xlu0 %v1987, 1
        %v2107 = vpop.permute.xlu0 %2106
        %2108 = vrot.lane.b32.xlu0 %v1964, 1
        %v2109 = vpop.permute.xlu0 %2108
        %2110 = vrot.lane.b32.xlu0 %v1988, 1
        %v2111 = vpop.permute.xlu0 %2110
        %2112 = vrot.lane.b32.xlu0 %v1965, 1
        %v2113 = vpop.permute.xlu0 %2112
        %2114 = vrot.lane.b32.xlu0 %v1989, 1
        %v2115 = vpop.permute.xlu0 %2114
        %2116 = vrot.lane.b32.xlu0 %v1966, 1
        %v2117 = vpop.permute.xlu0 %2116
        %2118 = vrot.lane.b32.xlu0 %v1990, 1
        %v2119 = vpop.permute.xlu0 %2118
        %2120 = vrot.lane.b32.xlu0 %v1967, 1
        %v2121 = vpop.permute.xlu0 %2120
        %2122 = vrot.lane.b32.xlu0 %v1991, 1
        %v2123 = vpop.permute.xlu0 %2122
        %2124 = vrot.lane.b32.xlu0 %v1968, 1
        %v2125 = vpop.permute.xlu0 %2124
        %2126 = vrot.lane.b32.xlu0 %v1992, 1
        %v2127 = vpop.permute.xlu0 %2126
        %2128 = vrot.lane.b32.xlu0 %v1969, 1
        %v2129 = vpop.permute.xlu0 %2128
        %2130 = vrot.lane.b32.xlu0 %v1993, 1
        %v2131 = vpop.permute.xlu0 %2130
        %2132 = vrot.lane.b32.xlu0 %v1970, 1
        %v2133 = vpop.permute.xlu0 %2132
        %2134 = vrot.lane.b32.xlu0 %v1994, 1
        %v2135 = vpop.permute.xlu0 %2134
        %2136 = vrot.lane.b32.xlu0 %v1971, 1
        %v2137 = vpop.permute.xlu0 %2136
        %2138 = vrot.lane.b32.xlu0 %v1995, 1
        %v2139 = vpop.permute.xlu0 %2138
        %vm2188 = vcmask 7168
        %v2189 = vsel %vm2188, 0.0, %v2045
        %v2190 = vsel %vm2188, 0.0, %v2047
        %v2191 = vsel %vm2188, 0.0, %v2049
        %v2192 = vsel %vm2188, 0.0, %v2051
        %v2193 = vsel %vm2188, 0.0, %v2053
        %v2194 = vsel %vm2188, 0.0, %v2055
        %v2195 = vsel %vm2188, 0.0, %v2057
        %v2196 = vsel %vm2188, 0.0, %v2059
        %v2197 = vsel %vm2188, 0.0, %v2061
        %v2198 = vsel %vm2188, 0.0, %v2063
        %v2199 = vsel %vm2188, 0.0, %v2065
        %v2200 = vsel %vm2188, 0.0, %v2067
        %v2201 = vsel %vm2188, 0.0, %v2069
        %v2202 = vsel %vm2188, 0.0, %v2071
        %v2203 = vsel %vm2188, 0.0, %v2073
        %v2204 = vsel %vm2188, 0.0, %v2075
        %v2205 = vsel %vm2188, 0.0, %v2077
        %v2206 = vsel %vm2188, 0.0, %v2079
        %v2207 = vsel %vm2188, 0.0, %v2081
        %v2208 = vsel %vm2188, 0.0, %v2083
        %v2209 = vsel %vm2188, 0.0, %v2085
        %v2210 = vsel %vm2188, 0.0, %v2087
        %v2211 = vsel %vm2188, 0.0, %v2089
        %v2212 = vsel %vm2188, 0.0, %v2091
        %v2213 = vsel %vm2188, 0.0, %v2093
        %v2214 = vsel %vm2188, 0.0, %v2095
        %v2215 = vsel %vm2188, 0.0, %v2097
        %v2216 = vsel %vm2188, 0.0, %v2099
        %v2217 = vsel %vm2188, 0.0, %v2101
        %v2218 = vsel %vm2188, 0.0, %v2103
        %v2219 = vsel %vm2188, 0.0, %v2105
        %v2220 = vsel %vm2188, 0.0, %v2107
        %v2221 = vsel %vm2188, 0.0, %v2109
        %v2222 = vsel %vm2188, 0.0, %v2111
        %v2223 = vsel %vm2188, 0.0, %v2113
        %v2224 = vsel %vm2188, 0.0, %v2115
        %v2225 = vsel %vm2188, 0.0, %v2117
        %v2226 = vsel %vm2188, 0.0, %v2119
        %v2227 = vsel %vm2188, 0.0, %v2121
        %v2228 = vsel %vm2188, 0.0, %v2123
        %v2229 = vsel %vm2188, 0.0, %v2125
        %v2230 = vsel %vm2188, 0.0, %v2127
        %v2231 = vsel %vm2188, 0.0, %v2129
        %v2232 = vsel %vm2188, 0.0, %v2131
        %v2233 = vsel %vm2188, 0.0, %v2133
        %v2234 = vsel %vm2188, 0.0, %v2135
        %v2235 = vsel %vm2188, 0.0, %v2137
        %v2236 = vsel %vm2188, 0.0, %v2139
        %vm2237 = vcmask 138240
        %v2238 = vsel %vm2237, %v2189, 0.0
        %v2239 = vsel %vm2237, %v2190, 0.0
        %v2240 = vsel %vm2237, %v2191, 0.0
        %v2241 = vsel %vm2237, %v2192, 0.0
        %v2242 = vsel %vm2237, %v2193, 0.0
        %v2243 = vsel %vm2237, %v2194, 0.0
        %v2244 = vsel %vm2237, %v2195, 0.0
        %v2245 = vsel %vm2237, %v2196, 0.0
        %v2246 = vsel %vm2237, %v2197, 0.0
        %v2247 = vsel %vm2237, %v2198, 0.0
        %v2248 = vsel %vm2237, %v2199, 0.0
        %v2249 = vsel %vm2237, %v2200, 0.0
        %v2250 = vsel %vm2237, %v2201, 0.0
        %v2251 = vsel %vm2237, %v2202, 0.0
        %v2252 = vsel %vm2237, %v2203, 0.0
        %v2253 = vsel %vm2237, %v2204, 0.0
        %v2254 = vsel %vm2237, %v2205, 0.0
        %v2255 = vsel %vm2237, %v2206, 0.0
        %v2256 = vsel %vm2237, %v2207, 0.0
        %v2257 = vsel %vm2237, %v2208, 0.0
        %v2258 = vsel %vm2237, %v2209, 0.0
        %v2259 = vsel %vm2237, %v2210, 0.0
        %v2260 = vsel %vm2237, %v2211, 0.0
        %v2261 = vsel %vm2237, %v2212, 0.0
        %v2262 = vsel %vm2237, %v2213, 0.0
        %v2263 = vsel %vm2237, %v2214, 0.0
        %v2264 = vsel %vm2237, %v2215, 0.0
        %v2265 = vsel %vm2237, %v2216, 0.0
        %v2266 = vsel %vm2237, %v2217, 0.0
        %v2267 = vsel %vm2237, %v2218, 0.0
        %v2268 = vsel %vm2237, %v2219, 0.0
        %v2269 = vsel %vm2237, %v2220, 0.0
        %v2270 = vsel %vm2237, %v2221, 0.0
        %v2271 = vsel %vm2237, %v2222, 0.0
        %v2272 = vsel %vm2237, %v2223, 0.0
        %v2273 = vsel %vm2237, %v2224, 0.0
        %v2274 = vsel %vm2237, %v2225, 0.0
        %v2275 = vsel %vm2237, %v2226, 0.0
        %v2276 = vsel %vm2237, %v2227, 0.0
        %v2277 = vsel %vm2237, %v2228, 0.0
        %v2278 = vsel %vm2237, %v2229, 0.0
        %v2279 = vsel %vm2237, %v2230, 0.0
        %v2280 = vsel %vm2237, %v2231, 0.0
        %v2281 = vsel %vm2237, %v2232, 0.0
        %v2282 = vsel %vm2237, %v2233, 0.0
        %v2283 = vsel %vm2237, %v2234, 0.0
        %v2284 = vsel %vm2237, %v2235, 0.0
        %v2285 = vsel %vm2237, %v2236, 0.0
        %v2286 = vld [vmem:[%s6] sm:$0xff]
        %v2287 = vld [vmem:[%s6 + $0x8] sm:$0xff]
        %v2288 = vld [vmem:[%s6 + $0x10] sm:$0xff]
        %v2292 = vcombine.high %v2286, %v2286
        %v2294 = vunpack.c.l.s4 1966171168
        %v2295 = vunpack.c.0.s8 %v2294
        %v2296 = vlaneseq
        %v2297 = vshrl.u32 %v2296, 7
        %v2298 = vsub.s32 %v2295, %v2297
        %v2299 = vrot.slane %v2286, %v2298
        %v2301 = vunpack.c.l.s4 1966171168
        %v2302 = vunpack.c.0.s8 %v2301
        %v2303 = vlaneseq
        %v2304 = vshrl.u32 %v2303, 7
        %v2305 = vsub.s32 %v2302, %v2304
        %v2306 = vrot.slane %v2292, %v2305
        %v2307 = vcombine.high %v2299, %v2299
        %v2308 = vcombine.high %v2306, %v2306
        %v2310 = vunpack.c.l.s4 1966171168
        %v2311 = vunpack.c.0.s8 %v2310
        %v2312 = vlaneseq
        %v2313 = vshrl.u32 %v2312, 7
        %v2314 = vsub.s32 %v2311, %v2313
        %v2315 = vrot.slane %v2299, %v2314
        %v2317 = vunpack.c.l.s4 1966171168
        %v2318 = vunpack.c.0.s8 %v2317
        %v2319 = vlaneseq
        %v2320 = vshrl.u32 %v2319, 7
        %v2321 = vsub.s32 %v2318, %v2320
        %v2322 = vrot.slane %v2306, %v2321
        %v2324 = vunpack.c.l.s4 1966171168
        %v2325 = vunpack.c.0.s8 %v2324
        %v2326 = vlaneseq
        %v2327 = vshrl.u32 %v2326, 7
        %v2328 = vsub.s32 %v2325, %v2327
        %v2329 = vrot.slane %v2307, %v2328
        %v2331 = vunpack.c.l.s4 1966171168
        %v2332 = vunpack.c.0.s8 %v2331
        %v2333 = vlaneseq
        %v2334 = vshrl.u32 %v2333, 7
        %v2335 = vsub.s32 %v2332, %v2334
        %v2336 = vrot.slane %v2308, %v2335
        %v2337 = vcombine.high %v2315, %v2315
        %v2338 = vcombine.high %v2322, %v2322
        %v2339 = vcombine.high %v2329, %v2329
        %v2340 = vcombine.high %v2336, %v2336
        %v2341 = vcombine.high %v2287, %v2287
        %v2343 = vunpack.c.l.s4 1966171168
        %v2344 = vunpack.c.0.s8 %v2343
        %v2345 = vlaneseq
        %v2346 = vshrl.u32 %v2345, 7
        %v2347 = vsub.s32 %v2344, %v2346
        %v2348 = vrot.slane %v2287, %v2347
        %v2350 = vunpack.c.l.s4 1966171168
        %v2351 = vunpack.c.0.s8 %v2350
        %v2352 = vlaneseq
        %v2353 = vshrl.u32 %v2352, 7
        %v2354 = vsub.s32 %v2351, %v2353
        %v2355 = vrot.slane %v2341, %v2354
        %v2356 = vcombine.high %v2348, %v2348
        %v2357 = vcombine.high %v2355, %v2355
        %v2359 = vunpack.c.l.s4 1966171168
        %v2360 = vunpack.c.0.s8 %v2359
        %v2361 = vlaneseq
        %v2362 = vshrl.u32 %v2361, 7
        %v2363 = vsub.s32 %v2360, %v2362
        %v2364 = vrot.slane %v2348, %v2363
        %v2366 = vunpack.c.l.s4 1966171168
        %v2367 = vunpack.c.0.s8 %v2366
        %v2368 = vlaneseq
        %v2369 = vshrl.u32 %v2368, 7
        %v2370 = vsub.s32 %v2367, %v2369
        %v2371 = vrot.slane %v2355, %v2370
        %v2373 = vunpack.c.l.s4 1966171168
        %v2374 = vunpack.c.0.s8 %v2373
        %v2375 = vlaneseq
        %v2376 = vshrl.u32 %v2375, 7
        %v2377 = vsub.s32 %v2374, %v2376
        %v2378 = vrot.slane %v2356, %v2377
        %v2380 = vunpack.c.l.s4 1966171168
        %v2381 = vunpack.c.0.s8 %v2380
        %v2382 = vlaneseq
        %v2383 = vshrl.u32 %v2382, 7
        %v2384 = vsub.s32 %v2381, %v2383
        %v2385 = vrot.slane %v2357, %v2384
        %v2386 = vcombine.high %v2364, %v2364
        %v2387 = vcombine.high %v2371, %v2371
        %v2388 = vcombine.high %v2378, %v2378
        %v2389 = vcombine.high %v2385, %v2385
        %v2390 = vcombine.high %v2288, %v2288
        %v2392 = vunpack.c.l.s4 1966171168
        %v2393 = vunpack.c.0.s8 %v2392
        %v2394 = vlaneseq
        %v2395 = vshrl.u32 %v2394, 7
        %v2396 = vsub.s32 %v2393, %v2395
        %v2397 = vrot.slane %v2288, %v2396
        %v2399 = vunpack.c.l.s4 1966171168
        %v2400 = vunpack.c.0.s8 %v2399
        %v2401 = vlaneseq
        %v2402 = vshrl.u32 %v2401, 7
        %v2403 = vsub.s32 %v2400, %v2402
        %v2404 = vrot.slane %v2390, %v2403
        %v2405 = vcombine.high %v2397, %v2397
        %v2406 = vcombine.high %v2404, %v2404
        %v2408 = vunpack.c.l.s4 1966171168
        %v2409 = vunpack.c.0.s8 %v2408
        %v2410 = vlaneseq
        %v2411 = vshrl.u32 %v2410, 7
        %v2412 = vsub.s32 %v2409, %v2411
        %v2413 = vrot.slane %v2397, %v2412
        %v2415 = vunpack.c.l.s4 1966171168
        %v2416 = vunpack.c.0.s8 %v2415
        %v2417 = vlaneseq
        %v2418 = vshrl.u32 %v2417, 7
        %v2419 = vsub.s32 %v2416, %v2418
        %v2420 = vrot.slane %v2404, %v2419
        %v2422 = vunpack.c.l.s4 1966171168
        %v2423 = vunpack.c.0.s8 %v2422
        %v2424 = vlaneseq
        %v2425 = vshrl.u32 %v2424, 7
        %v2426 = vsub.s32 %v2423, %v2425
        %v2427 = vrot.slane %v2405, %v2426
        %v2429 = vunpack.c.l.s4 1966171168
        %v2430 = vunpack.c.0.s8 %v2429
        %v2431 = vlaneseq
        %v2432 = vshrl.u32 %v2431, 7
        %v2433 = vsub.s32 %v2430, %v2432
        %v2434 = vrot.slane %v2406, %v2433
        %v2435 = vcombine.high %v2413, %v2413
        %v2436 = vcombine.high %v2420, %v2420
        %v2437 = vcombine.high %v2427, %v2427
        %v2438 = vcombine.high %v2434, %v2434
        %v2439 = vlaneseq
        %v2440 = vshrl.u32 %v2439, 7
        %v2441 = vsub.s32 0, %v2440
        %v2442 = vrot.slane %v2315, %v2441
        %v2443 = vlaneseq
        %v2444 = vshrl.u32 %v2443, 7
        %v2445 = vsub.s32 0, %v2444
        %v2446 = vrot.slane %v2329, %v2445
        %v2447 = vlaneseq
        %v2448 = vshrl.u32 %v2447, 7
        %v2449 = vsub.s32 0, %v2448
        %v2450 = vrot.slane %v2337, %v2449
        %v2451 = vlaneseq
        %v2452 = vshrl.u32 %v2451, 7
        %v2453 = vsub.s32 0, %v2452
        %v2454 = vrot.slane %v2339, %v2453
        %v2455 = vlaneseq
        %v2456 = vshrl.u32 %v2455, 7
        %v2457 = vsub.s32 0, %v2456
        %v2458 = vrot.slane %v2322, %v2457
        %v2459 = vlaneseq
        %v2460 = vshrl.u32 %v2459, 7
        %v2461 = vsub.s32 0, %v2460
        %v2462 = vrot.slane %v2336, %v2461
        %v2463 = vlaneseq
        %v2464 = vshrl.u32 %v2463, 7
        %v2465 = vsub.s32 0, %v2464
        %v2466 = vrot.slane %v2338, %v2465
        %v2467 = vlaneseq
        %v2468 = vshrl.u32 %v2467, 7
        %v2469 = vsub.s32 0, %v2468
        %v2470 = vrot.slane %v2340, %v2469
        %v2471 = vlaneseq
        %v2472 = vshrl.u32 %v2471, 7
        %v2473 = vsub.s32 0, %v2472
        %v2474 = vrot.slane %v2364, %v2473
        %v2475 = vlaneseq
        %v2476 = vshrl.u32 %v2475, 7
        %v2477 = vsub.s32 0, %v2476
        %v2478 = vrot.slane %v2378, %v2477
        %v2479 = vlaneseq
        %v2480 = vshrl.u32 %v2479, 7
        %v2481 = vsub.s32 0, %v2480
        %v2482 = vrot.slane %v2386, %v2481
        %v2483 = vlaneseq
        %v2484 = vshrl.u32 %v2483, 7
        %v2485 = vsub.s32 0, %v2484
        %v2486 = vrot.slane %v2388, %v2485
        %v2487 = vlaneseq
        %v2488 = vshrl.u32 %v2487, 7
        %v2489 = vsub.s32 0, %v2488
        %v2490 = vrot.slane %v2371, %v2489
        %v2491 = vlaneseq
        %v2492 = vshrl.u32 %v2491, 7
        %v2493 = vsub.s32 0, %v2492
        %v2494 = vrot.slane %v2385, %v2493
        %v2495 = vlaneseq
        %v2496 = vshrl.u32 %v2495, 7
        %v2497 = vsub.s32 0, %v2496
        %v2498 = vrot.slane %v2387, %v2497
        %v2499 = vlaneseq
        %v2500 = vshrl.u32 %v2499, 7
        %v2501 = vsub.s32 0, %v2500
        %v2502 = vrot.slane %v2389, %v2501
        %v2503 = vlaneseq
        %v2504 = vshrl.u32 %v2503, 7
        %v2505 = vsub.s32 0, %v2504
        %v2506 = vrot.slane %v2413, %v2505
        %v2507 = vlaneseq
        %v2508 = vshrl.u32 %v2507, 7
        %v2509 = vsub.s32 0, %v2508
        %v2510 = vrot.slane %v2427, %v2509
        %v2511 = vlaneseq
        %v2512 = vshrl.u32 %v2511, 7
        %v2513 = vsub.s32 0, %v2512
        %v2514 = vrot.slane %v2435, %v2513
        %v2515 = vlaneseq
        %v2516 = vshrl.u32 %v2515, 7
        %v2517 = vsub.s32 0, %v2516
        %v2518 = vrot.slane %v2437, %v2517
        %v2519 = vlaneseq
        %v2520 = vshrl.u32 %v2519, 7
        %v2521 = vsub.s32 0, %v2520
        %v2522 = vrot.slane %v2420, %v2521
        %v2523 = vlaneseq
        %v2524 = vshrl.u32 %v2523, 7
        %v2525 = vsub.s32 0, %v2524
        %v2526 = vrot.slane %v2434, %v2525
        %v2527 = vlaneseq
        %v2528 = vshrl.u32 %v2527, 7
        %v2529 = vsub.s32 0, %v2528
        %v2530 = vrot.slane %v2436, %v2529
        %v2531 = vlaneseq
        %v2532 = vshrl.u32 %v2531, 7
        %v2533 = vsub.s32 0, %v2532
        %v2534 = vrot.slane %v2438, %v2533
        %2535 = vset.pattern.permute.xlu0 0
        %2536 = vperm.xlu0 %2535, %v2442
        %v2537 = vpop.permute.xlu0 %2536
        %2539 = vset.pattern.permute.xlu0 0
        %2540 = vperm.xlu0 %2539, %v2446
        %v2541 = vpop.permute.xlu0 %2540
        %2543 = vset.pattern.permute.xlu0 0
        %2544 = vperm.xlu0 %2543, %v2450
        %v2545 = vpop.permute.xlu0 %2544
        %2547 = vset.pattern.permute.xlu0 0
        %2548 = vperm.xlu0 %2547, %v2454
        %v2549 = vpop.permute.xlu0 %2548
        %2551 = vset.pattern.permute.xlu0 0
        %2552 = vperm.xlu0 %2551, %v2458
        %v2553 = vpop.permute.xlu0 %2552
        %2555 = vset.pattern.permute.xlu0 0
        %2556 = vperm.xlu0 %2555, %v2462
        %v2557 = vpop.permute.xlu0 %2556
        %2559 = vset.pattern.permute.xlu0 0
        %2560 = vperm.xlu0 %2559, %v2466
        %v2561 = vpop.permute.xlu0 %2560
        %2563 = vset.pattern.permute.xlu0 0
        %2564 = vperm.xlu0 %2563, %v2470
        %v2565 = vpop.permute.xlu0 %2564
        %2567 = vset.pattern.permute.xlu0 0
        %2568 = vperm.xlu0 %2567, %v2474
        %v2569 = vpop.permute.xlu0 %2568
        %2571 = vset.pattern.permute.xlu0 0
        %2572 = vperm.xlu0 %2571, %v2478
        %v2573 = vpop.permute.xlu0 %2572
        %2575 = vset.pattern.permute.xlu0 0
        %2576 = vperm.xlu0 %2575, %v2482
        %v2577 = vpop.permute.xlu0 %2576
        %2579 = vset.pattern.permute.xlu0 0
        %2580 = vperm.xlu0 %2579, %v2486
        %v2581 = vpop.permute.xlu0 %2580
        %2583 = vset.pattern.permute.xlu0 0
        %2584 = vperm.xlu0 %2583, %v2490
        %v2585 = vpop.permute.xlu0 %2584
        %2587 = vset.pattern.permute.xlu0 0
        %2588 = vperm.xlu0 %2587, %v2494
        %v2589 = vpop.permute.xlu0 %2588
        %2591 = vset.pattern.permute.xlu0 0
        %2592 = vperm.xlu0 %2591, %v2498
        %v2593 = vpop.permute.xlu0 %2592
        %2595 = vset.pattern.permute.xlu0 0
        %2596 = vperm.xlu0 %2595, %v2502
        %v2597 = vpop.permute.xlu0 %2596
        %2599 = vset.pattern.permute.xlu0 0
        %2600 = vperm.xlu0 %2599, %v2506
        %v2601 = vpop.permute.xlu0 %2600
        %2603 = vset.pattern.permute.xlu0 0
        %2604 = vperm.xlu0 %2603, %v2510
        %v2605 = vpop.permute.xlu0 %2604
        %2607 = vset.pattern.permute.xlu0 0
        %2608 = vperm.xlu0 %2607, %v2514
        %v2609 = vpop.permute.xlu0 %2608
        %2611 = vset.pattern.permute.xlu0 0
        %2612 = vperm.xlu0 %2611, %v2518
        %v2613 = vpop.permute.xlu0 %2612
        %2615 = vset.pattern.permute.xlu0 0
        %2616 = vperm.xlu0 %2615, %v2522
        %v2617 = vpop.permute.xlu0 %2616
        %2619 = vset.pattern.permute.xlu0 0
        %2620 = vperm.xlu0 %2619, %v2526
        %v2621 = vpop.permute.xlu0 %2620
        %2623 = vset.pattern.permute.xlu0 0
        %2624 = vperm.xlu0 %2623, %v2530
        %v2625 = vpop.permute.xlu0 %2624
        %2627 = vset.pattern.permute.xlu0 0
        %2628 = vperm.xlu0 %2627, %v2534
        %v2629 = vpop.permute.xlu0 %2628
        %v2631 = vld [vmem:[%s5] sm:$0xff]
        %v2632 = vld [vmem:[%s5 + $0x8] sm:$0xff]
        %v2633 = vld [vmem:[%s5 + $0x10] sm:$0xff]
        %v2637 = vcombine.high %v2631, %v2631
        %v2639 = vunpack.c.l.s4 1966171168
        %v2640 = vunpack.c.0.s8 %v2639
        %v2641 = vlaneseq
        %v2642 = vshrl.u32 %v2641, 7
        %v2643 = vsub.s32 %v2640, %v2642
        %v2644 = vrot.slane %v2631, %v2643
        %v2646 = vunpack.c.l.s4 1966171168
        %v2647 = vunpack.c.0.s8 %v2646
        %v2648 = vlaneseq
        %v2649 = vshrl.u32 %v2648, 7
        %v2650 = vsub.s32 %v2647, %v2649
        %v2651 = vrot.slane %v2637, %v2650
        %v2652 = vcombine.high %v2644, %v2644
        %v2653 = vcombine.high %v2651, %v2651
        %v2655 = vunpack.c.l.s4 1966171168
        %v2656 = vunpack.c.0.s8 %v2655
        %v2657 = vlaneseq
        %v2658 = vshrl.u32 %v2657, 7
        %v2659 = vsub.s32 %v2656, %v2658
        %v2660 = vrot.slane %v2644, %v2659
        %v2662 = vunpack.c.l.s4 1966171168
        %v2663 = vunpack.c.0.s8 %v2662
        %v2664 = vlaneseq
        %v2665 = vshrl.u32 %v2664, 7
        %v2666 = vsub.s32 %v2663, %v2665
        %v2667 = vrot.slane %v2651, %v2666
        %v2669 = vunpack.c.l.s4 1966171168
        %v2670 = vunpack.c.0.s8 %v2669
        %v2671 = vlaneseq
        %v2672 = vshrl.u32 %v2671, 7
        %v2673 = vsub.s32 %v2670, %v2672
        %v2674 = vrot.slane %v2652, %v2673
        %v2676 = vunpack.c.l.s4 1966171168
        %v2677 = vunpack.c.0.s8 %v2676
        %v2678 = vlaneseq
        %v2679 = vshrl.u32 %v2678, 7
        %v2680 = vsub.s32 %v2677, %v2679
        %v2681 = vrot.slane %v2653, %v2680
        %v2682 = vcombine.high %v2660, %v2660
        %v2683 = vcombine.high %v2667, %v2667
        %v2684 = vcombine.high %v2674, %v2674
        %v2685 = vcombine.high %v2681, %v2681
        %v2686 = vcombine.high %v2632, %v2632
        %v2688 = vunpack.c.l.s4 1966171168
        %v2689 = vunpack.c.0.s8 %v2688
        %v2690 = vlaneseq
        %v2691 = vshrl.u32 %v2690, 7
        %v2692 = vsub.s32 %v2689, %v2691
        %v2693 = vrot.slane %v2632, %v2692
        %v2695 = vunpack.c.l.s4 1966171168
        %v2696 = vunpack.c.0.s8 %v2695
        %v2697 = vlaneseq
        %v2698 = vshrl.u32 %v2697, 7
        %v2699 = vsub.s32 %v2696, %v2698
        %v2700 = vrot.slane %v2686, %v2699
        %v2701 = vcombine.high %v2693, %v2693
        %v2702 = vcombine.high %v2700, %v2700
        %v2704 = vunpack.c.l.s4 1966171168
        %v2705 = vunpack.c.0.s8 %v2704
        %v2706 = vlaneseq
        %v2707 = vshrl.u32 %v2706, 7
        %v2708 = vsub.s32 %v2705, %v2707
        %v2709 = vrot.slane %v2693, %v2708
        %v2711 = vunpack.c.l.s4 1966171168
        %v2712 = vunpack.c.0.s8 %v2711
        %v2713 = vlaneseq
        %v2714 = vshrl.u32 %v2713, 7
        %v2715 = vsub.s32 %v2712, %v2714
        %v2716 = vrot.slane %v2700, %v2715
        %v2718 = vunpack.c.l.s4 1966171168
        %v2719 = vunpack.c.0.s8 %v2718
        %v2720 = vlaneseq
        %v2721 = vshrl.u32 %v2720, 7
        %v2722 = vsub.s32 %v2719, %v2721
        %v2723 = vrot.slane %v2701, %v2722
        %v2725 = vunpack.c.l.s4 1966171168
        %v2726 = vunpack.c.0.s8 %v2725
        %v2727 = vlaneseq
        %v2728 = vshrl.u32 %v2727, 7
        %v2729 = vsub.s32 %v2726, %v2728
        %v2730 = vrot.slane %v2702, %v2729
        %v2731 = vcombine.high %v2709, %v2709
        %v2732 = vcombine.high %v2716, %v2716
        %v2733 = vcombine.high %v2723, %v2723
        %v2734 = vcombine.high %v2730, %v2730
        %v2735 = vcombine.high %v2633, %v2633
        %v2737 = vunpack.c.l.s4 1966171168
        %v2738 = vunpack.c.0.s8 %v2737
        %v2739 = vlaneseq
        %v2740 = vshrl.u32 %v2739, 7
        %v2741 = vsub.s32 %v2738, %v2740
        %v2742 = vrot.slane %v2633, %v2741
        %v2744 = vunpack.c.l.s4 1966171168
        %v2745 = vunpack.c.0.s8 %v2744
        %v2746 = vlaneseq
        %v2747 = vshrl.u32 %v2746, 7
        %v2748 = vsub.s32 %v2745, %v2747
        %v2749 = vrot.slane %v2735, %v2748
        %v2750 = vcombine.high %v2742, %v2742
        %v2751 = vcombine.high %v2749, %v2749
        %v2753 = vunpack.c.l.s4 1966171168
        %v2754 = vunpack.c.0.s8 %v2753
        %v2755 = vlaneseq
        %v2756 = vshrl.u32 %v2755, 7
        %v2757 = vsub.s32 %v2754, %v2756
        %v2758 = vrot.slane %v2742, %v2757
        %v2760 = vunpack.c.l.s4 1966171168
        %v2761 = vunpack.c.0.s8 %v2760
        %v2762 = vlaneseq
        %v2763 = vshrl.u32 %v2762, 7
        %v2764 = vsub.s32 %v2761, %v2763
        %v2765 = vrot.slane %v2749, %v2764
        %v2767 = vunpack.c.l.s4 1966171168
        %v2768 = vunpack.c.0.s8 %v2767
        %v2769 = vlaneseq
        %v2770 = vshrl.u32 %v2769, 7
        %v2771 = vsub.s32 %v2768, %v2770
        %v2772 = vrot.slane %v2750, %v2771
        %v2774 = vunpack.c.l.s4 1966171168
        %v2775 = vunpack.c.0.s8 %v2774
        %v2776 = vlaneseq
        %v2777 = vshrl.u32 %v2776, 7
        %v2778 = vsub.s32 %v2775, %v2777
        %v2779 = vrot.slane %v2751, %v2778
        %v2780 = vcombine.high %v2758, %v2758
        %v2781 = vcombine.high %v2765, %v2765
        %v2782 = vcombine.high %v2772, %v2772
        %v2783 = vcombine.high %v2779, %v2779
        %v2784 = vlaneseq
        %v2785 = vshrl.u32 %v2784, 7
        %v2786 = vsub.s32 0, %v2785
        %v2787 = vrot.slane %v2660, %v2786
        %v2788 = vlaneseq
        %v2789 = vshrl.u32 %v2788, 7
        %v2790 = vsub.s32 0, %v2789
        %v2791 = vrot.slane %v2674, %v2790
        %v2792 = vlaneseq
        %v2793 = vshrl.u32 %v2792, 7
        %v2794 = vsub.s32 0, %v2793
        %v2795 = vrot.slane %v2682, %v2794
        %v2796 = vlaneseq
        %v2797 = vshrl.u32 %v2796, 7
        %v2798 = vsub.s32 0, %v2797
        %v2799 = vrot.slane %v2684, %v2798
        %v2800 = vlaneseq
        %v2801 = vshrl.u32 %v2800, 7
        %v2802 = vsub.s32 0, %v2801
        %v2803 = vrot.slane %v2667, %v2802
        %v2804 = vlaneseq
        %v2805 = vshrl.u32 %v2804, 7
        %v2806 = vsub.s32 0, %v2805
        %v2807 = vrot.slane %v2681, %v2806
        %v2808 = vlaneseq
        %v2809 = vshrl.u32 %v2808, 7
        %v2810 = vsub.s32 0, %v2809
        %v2811 = vrot.slane %v2683, %v2810
        %v2812 = vlaneseq
        %v2813 = vshrl.u32 %v2812, 7
        %v2814 = vsub.s32 0, %v2813
        %v2815 = vrot.slane %v2685, %v2814
        %v2816 = vlaneseq
        %v2817 = vshrl.u32 %v2816, 7
        %v2818 = vsub.s32 0, %v2817
        %v2819 = vrot.slane %v2709, %v2818
        %v2820 = vlaneseq
        %v2821 = vshrl.u32 %v2820, 7
        %v2822 = vsub.s32 0, %v2821
        %v2823 = vrot.slane %v2723, %v2822
        %v2824 = vlaneseq
        %v2825 = vshrl.u32 %v2824, 7
        %v2826 = vsub.s32 0, %v2825
        %v2827 = vrot.slane %v2731, %v2826
        %v2828 = vlaneseq
        %v2829 = vshrl.u32 %v2828, 7
        %v2830 = vsub.s32 0, %v2829
        %v2831 = vrot.slane %v2733, %v2830
        %v2832 = vlaneseq
        %v2833 = vshrl.u32 %v2832, 7
        %v2834 = vsub.s32 0, %v2833
        %v2835 = vrot.slane %v2716, %v2834
        %v2836 = vlaneseq
        %v2837 = vshrl.u32 %v2836, 7
        %v2838 = vsub.s32 0, %v2837
        %v2839 = vrot.slane %v2730, %v2838
        %v2840 = vlaneseq
        %v2841 = vshrl.u32 %v2840, 7
        %v2842 = vsub.s32 0, %v2841
        %v2843 = vrot.slane %v2732, %v2842
        %v2844 = vlaneseq
        %v2845 = vshrl.u32 %v2844, 7
        %v2846 = vsub.s32 0, %v2845
        %v2847 = vrot.slane %v2734, %v2846
        %v2848 = vlaneseq
        %v2849 = vshrl.u32 %v2848, 7
        %v2850 = vsub.s32 0, %v2849
        %v2851 = vrot.slane %v2758, %v2850
        %v2852 = vlaneseq
        %v2853 = vshrl.u32 %v2852, 7
        %v2854 = vsub.s32 0, %v2853
        %v2855 = vrot.slane %v2772, %v2854
        %v2856 = vlaneseq
        %v2857 = vshrl.u32 %v2856, 7
        %v2858 = vsub.s32 0, %v2857
        %v2859 = vrot.slane %v2780, %v2858
        %v2860 = vlaneseq
        %v2861 = vshrl.u32 %v2860, 7
        %v2862 = vsub.s32 0, %v2861
        %v2863 = vrot.slane %v2782, %v2862
        %v2864 = vlaneseq
        %v2865 = vshrl.u32 %v2864, 7
        %v2866 = vsub.s32 0, %v2865
        %v2867 = vrot.slane %v2765, %v2866
        %v2868 = vlaneseq
        %v2869 = vshrl.u32 %v2868, 7
        %v2870 = vsub.s32 0, %v2869
        %v2871 = vrot.slane %v2779, %v2870
        %v2872 = vlaneseq
        %v2873 = vshrl.u32 %v2872, 7
        %v2874 = vsub.s32 0, %v2873
        %v2875 = vrot.slane %v2781, %v2874
        %v2876 = vlaneseq
        %v2877 = vshrl.u32 %v2876, 7
        %v2878 = vsub.s32 0, %v2877
        %v2879 = vrot.slane %v2783, %v2878
        %2880 = vset.pattern.permute.xlu0 0
        %2881 = vperm.xlu0 %2880, %v2787
        %v2882 = vpop.permute.xlu0 %2881
        %2884 = vset.pattern.permute.xlu0 0
        %2885 = vperm.xlu0 %2884, %v2791
        %v2886 = vpop.permute.xlu0 %2885
        %2888 = vset.pattern.permute.xlu0 0
        %2889 = vperm.xlu0 %2888, %v2795
        %v2890 = vpop.permute.xlu0 %2889
        %2892 = vset.pattern.permute.xlu0 0
        %2893 = vperm.xlu0 %2892, %v2799
        %v2894 = vpop.permute.xlu0 %2893
        %2896 = vset.pattern.permute.xlu0 0
        %2897 = vperm.xlu0 %2896, %v2803
        %v2898 = vpop.permute.xlu0 %2897
        %2900 = vset.pattern.permute.xlu0 0
        %2901 = vperm.xlu0 %2900, %v2807
        %v2902 = vpop.permute.xlu0 %2901
        %2904 = vset.pattern.permute.xlu0 0
        %2905 = vperm.xlu0 %2904, %v2811
        %v2906 = vpop.permute.xlu0 %2905
        %2908 = vset.pattern.permute.xlu0 0
        %2909 = vperm.xlu0 %2908, %v2815
        %v2910 = vpop.permute.xlu0 %2909
        %2912 = vset.pattern.permute.xlu0 0
        %2913 = vperm.xlu0 %2912, %v2819
        %v2914 = vpop.permute.xlu0 %2913
        %2916 = vset.pattern.permute.xlu0 0
        %2917 = vperm.xlu0 %2916, %v2823
        %v2918 = vpop.permute.xlu0 %2917
        %2920 = vset.pattern.permute.xlu0 0
        %2921 = vperm.xlu0 %2920, %v2827
        %v2922 = vpop.permute.xlu0 %2921
        %2924 = vset.pattern.permute.xlu0 0
        %2925 = vperm.xlu0 %2924, %v2831
        %v2926 = vpop.permute.xlu0 %2925
        %2928 = vset.pattern.permute.xlu0 0
        %2929 = vperm.xlu0 %2928, %v2835
        %v2930 = vpop.permute.xlu0 %2929
        %2932 = vset.pattern.permute.xlu0 0
        %2933 = vperm.xlu0 %2932, %v2839
        %v2934 = vpop.permute.xlu0 %2933
        %2936 = vset.pattern.permute.xlu0 0
        %2937 = vperm.xlu0 %2936, %v2843
        %v2938 = vpop.permute.xlu0 %2937
        %2940 = vset.pattern.permute.xlu0 0
        %2941 = vperm.xlu0 %2940, %v2847
        %v2942 = vpop.permute.xlu0 %2941
        %2944 = vset.pattern.permute.xlu0 0
        %2945 = vperm.xlu0 %2944, %v2851
        %v2946 = vpop.permute.xlu0 %2945
        %2948 = vset.pattern.permute.xlu0 0
        %2949 = vperm.xlu0 %2948, %v2855
        %v2950 = vpop.permute.xlu0 %2949
        %2952 = vset.pattern.permute.xlu0 0
        %2953 = vperm.xlu0 %2952, %v2859
        %v2954 = vpop.permute.xlu0 %2953
        %2956 = vset.pattern.permute.xlu0 0
        %2957 = vperm.xlu0 %2956, %v2863
        %v2958 = vpop.permute.xlu0 %2957
        %2960 = vset.pattern.permute.xlu0 0
        %2961 = vperm.xlu0 %2960, %v2867
        %v2962 = vpop.permute.xlu0 %2961
        %2964 = vset.pattern.permute.xlu0 0
        %2965 = vperm.xlu0 %2964, %v2871
        %v2966 = vpop.permute.xlu0 %2965
        %2968 = vset.pattern.permute.xlu0 0
        %2969 = vperm.xlu0 %2968, %v2875
        %v2970 = vpop.permute.xlu0 %2969
        %2972 = vset.pattern.permute.xlu0 0
        %2973 = vperm.xlu0 %2972, %v2879
        %v2974 = vpop.permute.xlu0 %2973
        %v2976 = vmul.f32 %v2238, %v2882
        %v2977 = vmul.f32 %v2240, %v2886
        %v2978 = vmul.f32 %v2242, %v2890
        %v2979 = vmul.f32 %v2244, %v2894
        %v2980 = vmul.f32 %v2246, %v2898
        %v2981 = vmul.f32 %v2248, %v2902
        %v2982 = vmul.f32 %v2250, %v2906
        %v2983 = vmul.f32 %v2252, %v2910
        %v2984 = vmul.f32 %v2254, %v2914
        %v2985 = vmul.f32 %v2256, %v2918
        %v2986 = vmul.f32 %v2258, %v2922
        %v2987 = vmul.f32 %v2260, %v2926
        %v2988 = vmul.f32 %v2262, %v2930
        %v2989 = vmul.f32 %v2264, %v2934
        %v2990 = vmul.f32 %v2266, %v2938
        %v2991 = vmul.f32 %v2268, %v2942
        %v2992 = vmul.f32 %v2270, %v2946
        %v2993 = vmul.f32 %v2272, %v2950
        %v2994 = vmul.f32 %v2274, %v2954
        %v2995 = vmul.f32 %v2276, %v2958
        %v2996 = vmul.f32 %v2278, %v2962
        %v2997 = vmul.f32 %v2280, %v2966
        %v2998 = vmul.f32 %v2282, %v2970
        %v2999 = vmul.f32 %v2284, %v2974
        %v3000 = vadd.f32 %v2537, %v2976
        %v3001 = vadd.f32 %v2541, %v2977
        %v3002 = vadd.f32 %v2545, %v2978
        %v3003 = vadd.f32 %v2549, %v2979
        %v3004 = vadd.f32 %v2553, %v2980
        %v3005 = vadd.f32 %v2557, %v2981
        %v3006 = vadd.f32 %v2561, %v2982
        %v3007 = vadd.f32 %v2565, %v2983
        %v3008 = vadd.f32 %v2569, %v2984
        %v3009 = vadd.f32 %v2573, %v2985
        %v3010 = vadd.f32 %v2577, %v2986
        %v3011 = vadd.f32 %v2581, %v2987
        %v3012 = vadd.f32 %v2585, %v2988
        %v3013 = vadd.f32 %v2589, %v2989
        %v3014 = vadd.f32 %v2593, %v2990
        %v3015 = vadd.f32 %v2597, %v2991
        %v3016 = vadd.f32 %v2601, %v2992
        %v3017 = vadd.f32 %v2605, %v2993
        %v3018 = vadd.f32 %v2609, %v2994
        %v3019 = vadd.f32 %v2613, %v2995
        %v3020 = vadd.f32 %v2617, %v2996
        %v3021 = vadd.f32 %v2621, %v2997
        %v3022 = vadd.f32 %v2625, %v2998
        %v3023 = vadd.f32 %v2629, %v2999
        %v3024 = vld [vmem:[%s5] sm:$0xff]
        %v3025 = vld [vmem:[%s5 + $0x8] sm:$0xff]
        %v3026 = vld [vmem:[%s5 + $0x10] sm:$0xff]
        %v3030 = vcombine.high %v3024, %v3024
        %v3032 = vunpack.c.l.s4 1966171168
        %v3033 = vunpack.c.0.s8 %v3032
        %v3034 = vlaneseq
        %v3035 = vshrl.u32 %v3034, 7
        %v3036 = vsub.s32 %v3033, %v3035
        %v3037 = vrot.slane %v3024, %v3036
        %v3039 = vunpack.c.l.s4 1966171168
        %v3040 = vunpack.c.0.s8 %v3039
        %v3041 = vlaneseq
        %v3042 = vshrl.u32 %v3041, 7
        %v3043 = vsub.s32 %v3040, %v3042
        %v3044 = vrot.slane %v3030, %v3043
        %v3045 = vcombine.high %v3037, %v3037
        %v3046 = vcombine.high %v3044, %v3044
        %v3048 = vunpack.c.l.s4 1966171168
        %v3049 = vunpack.c.0.s8 %v3048
        %v3050 = vlaneseq
        %v3051 = vshrl.u32 %v3050, 7
        %v3052 = vsub.s32 %v3049, %v3051
        %v3053 = vrot.slane %v3037, %v3052
        %v3055 = vunpack.c.l.s4 1966171168
        %v3056 = vunpack.c.0.s8 %v3055
        %v3057 = vlaneseq
        %v3058 = vshrl.u32 %v3057, 7
        %v3059 = vsub.s32 %v3056, %v3058
        %v3060 = vrot.slane %v3044, %v3059
        %v3062 = vunpack.c.l.s4 1966171168
        %v3063 = vunpack.c.0.s8 %v3062
        %v3064 = vlaneseq
        %v3065 = vshrl.u32 %v3064, 7
        %v3066 = vsub.s32 %v3063, %v3065
        %v3067 = vrot.slane %v3045, %v3066
        %v3069 = vunpack.c.l.s4 1966171168
        %v3070 = vunpack.c.0.s8 %v3069
        %v3071 = vlaneseq
        %v3072 = vshrl.u32 %v3071, 7
        %v3073 = vsub.s32 %v3070, %v3072
        %v3074 = vrot.slane %v3046, %v3073
        %v3075 = vcombine.high %v3053, %v3053
        %v3076 = vcombine.high %v3060, %v3060
        %v3077 = vcombine.high %v3067, %v3067
        %v3078 = vcombine.high %v3074, %v3074
        %v3079 = vcombine.high %v3025, %v3025
        %v3081 = vunpack.c.l.s4 1966171168
        %v3082 = vunpack.c.0.s8 %v3081
        %v3083 = vlaneseq
        %v3084 = vshrl.u32 %v3083, 7
        %v3085 = vsub.s32 %v3082, %v3084
        %v3086 = vrot.slane %v3025, %v3085
        %v3088 = vunpack.c.l.s4 1966171168
        %v3089 = vunpack.c.0.s8 %v3088
        %v3090 = vlaneseq
        %v3091 = vshrl.u32 %v3090, 7
        %v3092 = vsub.s32 %v3089, %v3091
        %v3093 = vrot.slane %v3079, %v3092
        %v3094 = vcombine.high %v3086, %v3086
        %v3095 = vcombine.high %v3093, %v3093
        %v3097 = vunpack.c.l.s4 1966171168
        %v3098 = vunpack.c.0.s8 %v3097
        %v3099 = vlaneseq
        %v3100 = vshrl.u32 %v3099, 7
        %v3101 = vsub.s32 %v3098, %v3100
        %v3102 = vrot.slane %v3086, %v3101
        %v3104 = vunpack.c.l.s4 1966171168
        %v3105 = vunpack.c.0.s8 %v3104
        %v3106 = vlaneseq
        %v3107 = vshrl.u32 %v3106, 7
        %v3108 = vsub.s32 %v3105, %v3107
        %v3109 = vrot.slane %v3093, %v3108
        %v3111 = vunpack.c.l.s4 1966171168
        %v3112 = vunpack.c.0.s8 %v3111
        %v3113 = vlaneseq
        %v3114 = vshrl.u32 %v3113, 7
        %v3115 = vsub.s32 %v3112, %v3114
        %v3116 = vrot.slane %v3094, %v3115
        %v3118 = vunpack.c.l.s4 1966171168
        %v3119 = vunpack.c.0.s8 %v3118
        %v3120 = vlaneseq
        %v3121 = vshrl.u32 %v3120, 7
        %v3122 = vsub.s32 %v3119, %v3121
        %v3123 = vrot.slane %v3095, %v3122
        %v3124 = vcombine.high %v3102, %v3102
        %v3125 = vcombine.high %v3109, %v3109
        %v3126 = vcombine.high %v3116, %v3116
        %v3127 = vcombine.high %v3123, %v3123
        %v3128 = vcombine.high %v3026, %v3026
        %v3130 = vunpack.c.l.s4 1966171168
        %v3131 = vunpack.c.0.s8 %v3130
        %v3132 = vlaneseq
        %v3133 = vshrl.u32 %v3132, 7
        %v3134 = vsub.s32 %v3131, %v3133
        %v3135 = vrot.slane %v3026, %v3134
        %v3137 = vunpack.c.l.s4 1966171168
        %v3138 = vunpack.c.0.s8 %v3137
        %v3139 = vlaneseq
        %v3140 = vshrl.u32 %v3139, 7
        %v3141 = vsub.s32 %v3138, %v3140
        %v3142 = vrot.slane %v3128, %v3141
        %v3143 = vcombine.high %v3135, %v3135
        %v3144 = vcombine.high %v3142, %v3142
        %v3146 = vunpack.c.l.s4 1966171168
        %v3147 = vunpack.c.0.s8 %v3146
        %v3148 = vlaneseq
        %v3149 = vshrl.u32 %v3148, 7
        %v3150 = vsub.s32 %v3147, %v3149
        %v3151 = vrot.slane %v3135, %v3150
        %v3153 = vunpack.c.l.s4 1966171168
        %v3154 = vunpack.c.0.s8 %v3153
        %v3155 = vlaneseq
        %v3156 = vshrl.u32 %v3155, 7
        %v3157 = vsub.s32 %v3154, %v3156
        %v3158 = vrot.slane %v3142, %v3157
        %v3160 = vunpack.c.l.s4 1966171168
        %v3161 = vunpack.c.0.s8 %v3160
        %v3162 = vlaneseq
        %v3163 = vshrl.u32 %v3162, 7
        %v3164 = vsub.s32 %v3161, %v3163
        %v3165 = vrot.slane %v3143, %v3164
        %v3167 = vunpack.c.l.s4 1966171168
        %v3168 = vunpack.c.0.s8 %v3167
        %v3169 = vlaneseq
        %v3170 = vshrl.u32 %v3169, 7
        %v3171 = vsub.s32 %v3168, %v3170
        %v3172 = vrot.slane %v3144, %v3171
        %v3173 = vcombine.high %v3151, %v3151
        %v3174 = vcombine.high %v3158, %v3158
        %v3175 = vcombine.high %v3165, %v3165
        %v3176 = vcombine.high %v3172, %v3172
        %v3177 = vlaneseq
        %v3178 = vshrl.u32 %v3177, 7
        %v3179 = vsub.s32 0, %v3178
        %v3180 = vrot.slane %v3053, %v3179
        %v3181 = vlaneseq
        %v3182 = vshrl.u32 %v3181, 7
        %v3183 = vsub.s32 0, %v3182
        %v3184 = vrot.slane %v3067, %v3183
        %v3185 = vlaneseq
        %v3186 = vshrl.u32 %v3185, 7
        %v3187 = vsub.s32 0, %v3186
        %v3188 = vrot.slane %v3075, %v3187
        %v3189 = vlaneseq
        %v3190 = vshrl.u32 %v3189, 7
        %v3191 = vsub.s32 0, %v3190
        %v3192 = vrot.slane %v3077, %v3191
        %v3193 = vlaneseq
        %v3194 = vshrl.u32 %v3193, 7
        %v3195 = vsub.s32 0, %v3194
        %v3196 = vrot.slane %v3060, %v3195
        %v3197 = vlaneseq
        %v3198 = vshrl.u32 %v3197, 7
        %v3199 = vsub.s32 0, %v3198
        %v3200 = vrot.slane %v3074, %v3199
        %v3201 = vlaneseq
        %v3202 = vshrl.u32 %v3201, 7
        %v3203 = vsub.s32 0, %v3202
        %v3204 = vrot.slane %v3076, %v3203
        %v3205 = vlaneseq
        %v3206 = vshrl.u32 %v3205, 7
        %v3207 = vsub.s32 0, %v3206
        %v3208 = vrot.slane %v3078, %v3207
        %v3209 = vlaneseq
        %v3210 = vshrl.u32 %v3209, 7
        %v3211 = vsub.s32 0, %v3210
        %v3212 = vrot.slane %v3102, %v3211
        %v3213 = vlaneseq
        %v3214 = vshrl.u32 %v3213, 7
        %v3215 = vsub.s32 0, %v3214
        %v3216 = vrot.slane %v3116, %v3215
        %v3217 = vlaneseq
        %v3218 = vshrl.u32 %v3217, 7
        %v3219 = vsub.s32 0, %v3218
        %v3220 = vrot.slane %v3124, %v3219
        %v3221 = vlaneseq
        %v3222 = vshrl.u32 %v3221, 7
        %v3223 = vsub.s32 0, %v3222
        %v3224 = vrot.slane %v3126, %v3223
        %v3225 = vlaneseq
        %v3226 = vshrl.u32 %v3225, 7
        %v3227 = vsub.s32 0, %v3226
        %v3228 = vrot.slane %v3109, %v3227
        %v3229 = vlaneseq
        %v3230 = vshrl.u32 %v3229, 7
        %v3231 = vsub.s32 0, %v3230
        %v3232 = vrot.slane %v3123, %v3231
        %v3233 = vlaneseq
        %v3234 = vshrl.u32 %v3233, 7
        %v3235 = vsub.s32 0, %v3234
        %v3236 = vrot.slane %v3125, %v3235
        %v3237 = vlaneseq
        %v3238 = vshrl.u32 %v3237, 7
        %v3239 = vsub.s32 0, %v3238
        %v3240 = vrot.slane %v3127, %v3239
        %v3241 = vlaneseq
        %v3242 = vshrl.u32 %v3241, 7
        %v3243 = vsub.s32 0, %v3242
        %v3244 = vrot.slane %v3151, %v3243
        %v3245 = vlaneseq
        %v3246 = vshrl.u32 %v3245, 7
        %v3247 = vsub.s32 0, %v3246
        %v3248 = vrot.slane %v3165, %v3247
        %v3249 = vlaneseq
        %v3250 = vshrl.u32 %v3249, 7
        %v3251 = vsub.s32 0, %v3250
        %v3252 = vrot.slane %v3173, %v3251
        %v3253 = vlaneseq
        %v3254 = vshrl.u32 %v3253, 7
        %v3255 = vsub.s32 0, %v3254
        %v3256 = vrot.slane %v3175, %v3255
        %v3257 = vlaneseq
        %v3258 = vshrl.u32 %v3257, 7
        %v3259 = vsub.s32 0, %v3258
        %v3260 = vrot.slane %v3158, %v3259
        %v3261 = vlaneseq
        %v3262 = vshrl.u32 %v3261, 7
        %v3263 = vsub.s32 0, %v3262
        %v3264 = vrot.slane %v3172, %v3263
        %v3265 = vlaneseq
        %v3266 = vshrl.u32 %v3265, 7
        %v3267 = vsub.s32 0, %v3266
        %v3268 = vrot.slane %v3174, %v3267
        %v3269 = vlaneseq
        %v3270 = vshrl.u32 %v3269, 7
        %v3271 = vsub.s32 0, %v3270
        %v3272 = vrot.slane %v3176, %v3271
        %3273 = vset.pattern.permute.xlu0 1
        %3274 = vperm.xlu0 %3273, %v3180
        %v3275 = vpop.permute.xlu0 %3274
        %3277 = vset.pattern.permute.xlu0 1
        %3278 = vperm.xlu0 %3277, %v3184
        %v3279 = vpop.permute.xlu0 %3278
        %3281 = vset.pattern.permute.xlu0 1
        %3282 = vperm.xlu0 %3281, %v3188
        %v3283 = vpop.permute.xlu0 %3282
        %3285 = vset.pattern.permute.xlu0 1
        %3286 = vperm.xlu0 %3285, %v3192
        %v3287 = vpop.permute.xlu0 %3286
        %3289 = vset.pattern.permute.xlu0 1
        %3290 = vperm.xlu0 %3289, %v3196
        %v3291 = vpop.permute.xlu0 %3290
        %3293 = vset.pattern.permute.xlu0 1
        %3294 = vperm.xlu0 %3293, %v3200
        %v3295 = vpop.permute.xlu0 %3294
        %3297 = vset.pattern.permute.xlu0 1
        %3298 = vperm.xlu0 %3297, %v3204
        %v3299 = vpop.permute.xlu0 %3298
        %3301 = vset.pattern.permute.xlu0 1
        %3302 = vperm.xlu0 %3301, %v3208
        %v3303 = vpop.permute.xlu0 %3302
        %3305 = vset.pattern.permute.xlu0 1
        %3306 = vperm.xlu0 %3305, %v3212
        %v3307 = vpop.permute.xlu0 %3306
        %3309 = vset.pattern.permute.xlu0 1
        %3310 = vperm.xlu0 %3309, %v3216
        %v3311 = vpop.permute.xlu0 %3310
        %3313 = vset.pattern.permute.xlu0 1
        %3314 = vperm.xlu0 %3313, %v3220
        %v3315 = vpop.permute.xlu0 %3314
        %3317 = vset.pattern.permute.xlu0 1
        %3318 = vperm.xlu0 %3317, %v3224
        %v3319 = vpop.permute.xlu0 %3318
        %3321 = vset.pattern.permute.xlu0 1
        %3322 = vperm.xlu0 %3321, %v3228
        %v3323 = vpop.permute.xlu0 %3322
        %3325 = vset.pattern.permute.xlu0 1
        %3326 = vperm.xlu0 %3325, %v3232
        %v3327 = vpop.permute.xlu0 %3326
        %3329 = vset.pattern.permute.xlu0 1
        %3330 = vperm.xlu0 %3329, %v3236
        %v3331 = vpop.permute.xlu0 %3330
        %3333 = vset.pattern.permute.xlu0 1
        %3334 = vperm.xlu0 %3333, %v3240
        %v3335 = vpop.permute.xlu0 %3334
        %3337 = vset.pattern.permute.xlu0 1
        %3338 = vperm.xlu0 %3337, %v3244
        %v3339 = vpop.permute.xlu0 %3338
        %3341 = vset.pattern.permute.xlu0 1
        %3342 = vperm.xlu0 %3341, %v3248
        %v3343 = vpop.permute.xlu0 %3342
        %3345 = vset.pattern.permute.xlu0 1
        %3346 = vperm.xlu0 %3345, %v3252
        %v3347 = vpop.permute.xlu0 %3346
        %3349 = vset.pattern.permute.xlu0 1
        %3350 = vperm.xlu0 %3349, %v3256
        %v3351 = vpop.permute.xlu0 %3350
        %3353 = vset.pattern.permute.xlu0 1
        %3354 = vperm.xlu0 %3353, %v3260
        %v3355 = vpop.permute.xlu0 %3354
        %3357 = vset.pattern.permute.xlu0 1
        %3358 = vperm.xlu0 %3357, %v3264
        %v3359 = vpop.permute.xlu0 %3358
        %3361 = vset.pattern.permute.xlu0 1
        %3362 = vperm.xlu0 %3361, %v3268
        %v3363 = vpop.permute.xlu0 %3362
        %3365 = vset.pattern.permute.xlu0 1
        %3366 = vperm.xlu0 %3365, %v3272
        %v3367 = vpop.permute.xlu0 %3366
        %v3369 = vmul.f32 %v2238, %v3275
        %v3370 = vmul.f32 %v2240, %v3279
        %v3371 = vmul.f32 %v2242, %v3283
        %v3372 = vmul.f32 %v2244, %v3287
        %v3373 = vmul.f32 %v2246, %v3291
        %v3374 = vmul.f32 %v2248, %v3295
        %v3375 = vmul.f32 %v2250, %v3299
        %v3376 = vmul.f32 %v2252, %v3303
        %v3377 = vmul.f32 %v2254, %v3307
        %v3378 = vmul.f32 %v2256, %v3311
        %v3379 = vmul.f32 %v2258, %v3315
        %v3380 = vmul.f32 %v2260, %v3319
        %v3381 = vmul.f32 %v2262, %v3323
        %v3382 = vmul.f32 %v2264, %v3327
        %v3383 = vmul.f32 %v2266, %v3331
        %v3384 = vmul.f32 %v2268, %v3335
        %v3385 = vmul.f32 %v2270, %v3339
        %v3386 = vmul.f32 %v2272, %v3343
        %v3387 = vmul.f32 %v2274, %v3347
        %v3388 = vmul.f32 %v2276, %v3351
        %v3389 = vmul.f32 %v2278, %v3355
        %v3390 = vmul.f32 %v2280, %v3359
        %v3391 = vmul.f32 %v2282, %v3363
        %v3392 = vmul.f32 %v2284, %v3367
        %3417 = vrot.lane.b32.xlu0 %v3369, 127
        %v3418 = vpop.permute.xlu0 %3417
        %3419 = vrot.lane.b32.xlu0 %v3370, 127
        %v3420 = vpop.permute.xlu0 %3419
        %3421 = vrot.lane.b32.xlu0 %v3371, 127
        %v3422 = vpop.permute.xlu0 %3421
        %3423 = vrot.lane.b32.xlu0 %v3372, 127
        %v3424 = vpop.permute.xlu0 %3423
        %3425 = vrot.lane.b32.xlu0 %v3373, 127
        %v3426 = vpop.permute.xlu0 %3425
        %3427 = vrot.lane.b32.xlu0 %v3374, 127
        %v3428 = vpop.permute.xlu0 %3427
        %3429 = vrot.lane.b32.xlu0 %v3375, 127
        %v3430 = vpop.permute.xlu0 %3429
        %3431 = vrot.lane.b32.xlu0 %v3376, 127
        %v3432 = vpop.permute.xlu0 %3431
        %3433 = vrot.lane.b32.xlu0 %v3377, 127
        %v3434 = vpop.permute.xlu0 %3433
        %3435 = vrot.lane.b32.xlu0 %v3378, 127
        %v3436 = vpop.permute.xlu0 %3435
        %3437 = vrot.lane.b32.xlu0 %v3379, 127
        %v3438 = vpop.permute.xlu0 %3437
        %3439 = vrot.lane.b32.xlu0 %v3380, 127
        %v3440 = vpop.permute.xlu0 %3439
        %3441 = vrot.lane.b32.xlu0 %v3381, 127
        %v3442 = vpop.permute.xlu0 %3441
        %3443 = vrot.lane.b32.xlu0 %v3382, 127
        %v3444 = vpop.permute.xlu0 %3443
        %3445 = vrot.lane.b32.xlu0 %v3383, 127
        %v3446 = vpop.permute.xlu0 %3445
        %3447 = vrot.lane.b32.xlu0 %v3384, 127
        %v3448 = vpop.permute.xlu0 %3447
        %3449 = vrot.lane.b32.xlu0 %v3385, 127
        %v3450 = vpop.permute.xlu0 %3449
        %3451 = vrot.lane.b32.xlu0 %v3386, 127
        %v3452 = vpop.permute.xlu0 %3451
        %3453 = vrot.lane.b32.xlu0 %v3387, 127
        %v3454 = vpop.permute.xlu0 %3453
        %3455 = vrot.lane.b32.xlu0 %v3388, 127
        %v3456 = vpop.permute.xlu0 %3455
        %3457 = vrot.lane.b32.xlu0 %v3389, 127
        %v3458 = vpop.permute.xlu0 %3457
        %3459 = vrot.lane.b32.xlu0 %v3390, 127
        %v3460 = vpop.permute.xlu0 %3459
        %3461 = vrot.lane.b32.xlu0 %v3391, 127
        %v3462 = vpop.permute.xlu0 %3461
        %3463 = vrot.lane.b32.xlu0 %v3392, 127
        %v3464 = vpop.permute.xlu0 %3463
        %v3489 = vadd.f32 %v3000, %v3418
        %v3490 = vadd.f32 %v3001, %v3420
        %v3491 = vadd.f32 %v3002, %v3422
        %v3492 = vadd.f32 %v3003, %v3424
        %v3493 = vadd.f32 %v3004, %v3426
        %v3494 = vadd.f32 %v3005, %v3428
        %v3495 = vadd.f32 %v3006, %v3430
        %v3496 = vadd.f32 %v3007, %v3432
        %v3497 = vadd.f32 %v3008, %v3434
        %v3498 = vadd.f32 %v3009, %v3436
        %v3499 = vadd.f32 %v3010, %v3438
        %v3500 = vadd.f32 %v3011, %v3440
        %v3501 = vadd.f32 %v3012, %v3442
        %v3502 = vadd.f32 %v3013, %v3444
        %v3503 = vadd.f32 %v3014, %v3446
        %v3504 = vadd.f32 %v3015, %v3448
        %v3505 = vadd.f32 %v3016, %v3450
        %v3506 = vadd.f32 %v3017, %v3452
        %v3507 = vadd.f32 %v3018, %v3454
        %v3508 = vadd.f32 %v3019, %v3456
        %v3509 = vadd.f32 %v3020, %v3458
        %v3510 = vadd.f32 %v3021, %v3460
        %v3511 = vadd.f32 %v3022, %v3462
        %v3512 = vadd.f32 %v3023, %v3464
        %v3513 = vld [vmem:[%s5] sm:$0xff]
        %v3514 = vld [vmem:[%s5 + $0x8] sm:$0xff]
        %v3515 = vld [vmem:[%s5 + $0x10] sm:$0xff]
        %v3519 = vcombine.high %v3513, %v3513
        %v3521 = vunpack.c.l.s4 1966171168
        %v3522 = vunpack.c.0.s8 %v3521
        %v3523 = vlaneseq
        %v3524 = vshrl.u32 %v3523, 7
        %v3525 = vsub.s32 %v3522, %v3524
        %v3526 = vrot.slane %v3513, %v3525
        %v3528 = vunpack.c.l.s4 1966171168
        %v3529 = vunpack.c.0.s8 %v3528
        %v3530 = vlaneseq
        %v3531 = vshrl.u32 %v3530, 7
        %v3532 = vsub.s32 %v3529, %v3531
        %v3533 = vrot.slane %v3519, %v3532
        %v3534 = vcombine.high %v3526, %v3526
        %v3535 = vcombine.high %v3533, %v3533
        %v3537 = vunpack.c.l.s4 1966171168
        %v3538 = vunpack.c.0.s8 %v3537
        %v3539 = vlaneseq
        %v3540 = vshrl.u32 %v3539, 7
        %v3541 = vsub.s32 %v3538, %v3540
        %v3542 = vrot.slane %v3526, %v3541
        %v3544 = vunpack.c.l.s4 1966171168
        %v3545 = vunpack.c.0.s8 %v3544
        %v3546 = vlaneseq
        %v3547 = vshrl.u32 %v3546, 7
        %v3548 = vsub.s32 %v3545, %v3547
        %v3549 = vrot.slane %v3533, %v3548
        %v3551 = vunpack.c.l.s4 1966171168
        %v3552 = vunpack.c.0.s8 %v3551
        %v3553 = vlaneseq
        %v3554 = vshrl.u32 %v3553, 7
        %v3555 = vsub.s32 %v3552, %v3554
        %v3556 = vrot.slane %v3534, %v3555
        %v3558 = vunpack.c.l.s4 1966171168
        %v3559 = vunpack.c.0.s8 %v3558
        %v3560 = vlaneseq
        %v3561 = vshrl.u32 %v3560, 7
        %v3562 = vsub.s32 %v3559, %v3561
        %v3563 = vrot.slane %v3535, %v3562
        %v3564 = vcombine.high %v3542, %v3542
        %v3565 = vcombine.high %v3549, %v3549
        %v3566 = vcombine.high %v3556, %v3556
        %v3567 = vcombine.high %v3563, %v3563
        %v3568 = vcombine.high %v3514, %v3514
        %v3570 = vunpack.c.l.s4 1966171168
        %v3571 = vunpack.c.0.s8 %v3570
        %v3572 = vlaneseq
        %v3573 = vshrl.u32 %v3572, 7
        %v3574 = vsub.s32 %v3571, %v3573
        %v3575 = vrot.slane %v3514, %v3574
        %v3577 = vunpack.c.l.s4 1966171168
        %v3578 = vunpack.c.0.s8 %v3577
        %v3579 = vlaneseq
        %v3580 = vshrl.u32 %v3579, 7
        %v3581 = vsub.s32 %v3578, %v3580
        %v3582 = vrot.slane %v3568, %v3581
        %v3583 = vcombine.high %v3575, %v3575
        %v3584 = vcombine.high %v3582, %v3582
        %v3586 = vunpack.c.l.s4 1966171168
        %v3587 = vunpack.c.0.s8 %v3586
        %v3588 = vlaneseq
        %v3589 = vshrl.u32 %v3588, 7
        %v3590 = vsub.s32 %v3587, %v3589
        %v3591 = vrot.slane %v3575, %v3590
        %v3593 = vunpack.c.l.s4 1966171168
        %v3594 = vunpack.c.0.s8 %v3593
        %v3595 = vlaneseq
        %v3596 = vshrl.u32 %v3595, 7
        %v3597 = vsub.s32 %v3594, %v3596
        %v3598 = vrot.slane %v3582, %v3597
        %v3600 = vunpack.c.l.s4 1966171168
        %v3601 = vunpack.c.0.s8 %v3600
        %v3602 = vlaneseq
        %v3603 = vshrl.u32 %v3602, 7
        %v3604 = vsub.s32 %v3601, %v3603
        %v3605 = vrot.slane %v3583, %v3604
        %v3607 = vunpack.c.l.s4 1966171168
        %v3608 = vunpack.c.0.s8 %v3607
        %v3609 = vlaneseq
        %v3610 = vshrl.u32 %v3609, 7
        %v3611 = vsub.s32 %v3608, %v3610
        %v3612 = vrot.slane %v3584, %v3611
        %v3613 = vcombine.high %v3591, %v3591
        %v3614 = vcombine.high %v3598, %v3598
        %v3615 = vcombine.high %v3605, %v3605
        %v3616 = vcombine.high %v3612, %v3612
        %v3617 = vcombine.high %v3515, %v3515
        %v3619 = vunpack.c.l.s4 1966171168
        %v3620 = vunpack.c.0.s8 %v3619
        %v3621 = vlaneseq
        %v3622 = vshrl.u32 %v3621, 7
        %v3623 = vsub.s32 %v3620, %v3622
        %v3624 = vrot.slane %v3515, %v3623
        %v3626 = vunpack.c.l.s4 1966171168
        %v3627 = vunpack.c.0.s8 %v3626
        %v3628 = vlaneseq
        %v3629 = vshrl.u32 %v3628, 7
        %v3630 = vsub.s32 %v3627, %v3629
        %v3631 = vrot.slane %v3617, %v3630
        %v3632 = vcombine.high %v3624, %v3624
        %v3633 = vcombine.high %v3631, %v3631
        %v3635 = vunpack.c.l.s4 1966171168
        %v3636 = vunpack.c.0.s8 %v3635
        %v3637 = vlaneseq
        %v3638 = vshrl.u32 %v3637, 7
        %v3639 = vsub.s32 %v3636, %v3638
        %v3640 = vrot.slane %v3624, %v3639
        %v3642 = vunpack.c.l.s4 1966171168
        %v3643 = vunpack.c.0.s8 %v3642
        %v3644 = vlaneseq
        %v3645 = vshrl.u32 %v3644, 7
        %v3646 = vsub.s32 %v3643, %v3645
        %v3647 = vrot.slane %v3631, %v3646
        %v3649 = vunpack.c.l.s4 1966171168
        %v3650 = vunpack.c.0.s8 %v3649
        %v3651 = vlaneseq
        %v3652 = vshrl.u32 %v3651, 7
        %v3653 = vsub.s32 %v3650, %v3652
        %v3654 = vrot.slane %v3632, %v3653
        %v3656 = vunpack.c.l.s4 1966171168
        %v3657 = vunpack.c.0.s8 %v3656
        %v3658 = vlaneseq
        %v3659 = vshrl.u32 %v3658, 7
        %v3660 = vsub.s32 %v3657, %v3659
        %v3661 = vrot.slane %v3633, %v3660
        %v3662 = vcombine.high %v3640, %v3640
        %v3663 = vcombine.high %v3647, %v3647
        %v3664 = vcombine.high %v3654, %v3654
        %v3665 = vcombine.high %v3661, %v3661
        %v3666 = vlaneseq
        %v3667 = vshrl.u32 %v3666, 7
        %v3668 = vsub.s32 0, %v3667
        %v3669 = vrot.slane %v3542, %v3668
        %v3670 = vlaneseq
        %v3671 = vshrl.u32 %v3670, 7
        %v3672 = vsub.s32 0, %v3671
        %v3673 = vrot.slane %v3556, %v3672
        %v3674 = vlaneseq
        %v3675 = vshrl.u32 %v3674, 7
        %v3676 = vsub.s32 0, %v3675
        %v3677 = vrot.slane %v3564, %v3676
        %v3678 = vlaneseq
        %v3679 = vshrl.u32 %v3678, 7
        %v3680 = vsub.s32 0, %v3679
        %v3681 = vrot.slane %v3566, %v3680
        %v3682 = vlaneseq
        %v3683 = vshrl.u32 %v3682, 7
        %v3684 = vsub.s32 0, %v3683
        %v3685 = vrot.slane %v3549, %v3684
        %v3686 = vlaneseq
        %v3687 = vshrl.u32 %v3686, 7
        %v3688 = vsub.s32 0, %v3687
        %v3689 = vrot.slane %v3563, %v3688
        %v3690 = vlaneseq
        %v3691 = vshrl.u32 %v3690, 7
        %v3692 = vsub.s32 0, %v3691
        %v3693 = vrot.slane %v3565, %v3692
        %v3694 = vlaneseq
        %v3695 = vshrl.u32 %v3694, 7
        %v3696 = vsub.s32 0, %v3695
        %v3697 = vrot.slane %v3567, %v3696
        %v3698 = vlaneseq
        %v3699 = vshrl.u32 %v3698, 7
        %v3700 = vsub.s32 0, %v3699
        %v3701 = vrot.slane %v3591, %v3700
        %v3702 = vlaneseq
        %v3703 = vshrl.u32 %v3702, 7
        %v3704 = vsub.s32 0, %v3703
        %v3705 = vrot.slane %v3605, %v3704
        %v3706 = vlaneseq
        %v3707 = vshrl.u32 %v3706, 7
        %v3708 = vsub.s32 0, %v3707
        %v3709 = vrot.slane %v3613, %v3708
        %v3710 = vlaneseq
        %v3711 = vshrl.u32 %v3710, 7
        %v3712 = vsub.s32 0, %v3711
        %v3713 = vrot.slane %v3615, %v3712
        %v3714 = vlaneseq
        %v3715 = vshrl.u32 %v3714, 7
        %v3716 = vsub.s32 0, %v3715
        %v3717 = vrot.slane %v3598, %v3716
        %v3718 = vlaneseq
        %v3719 = vshrl.u32 %v3718, 7
        %v3720 = vsub.s32 0, %v3719
        %v3721 = vrot.slane %v3612, %v3720
        %v3722 = vlaneseq
        %v3723 = vshrl.u32 %v3722, 7
        %v3724 = vsub.s32 0, %v3723
        %v3725 = vrot.slane %v3614, %v3724
        %v3726 = vlaneseq
        %v3727 = vshrl.u32 %v3726, 7
        %v3728 = vsub.s32 0, %v3727
        %v3729 = vrot.slane %v3616, %v3728
        %v3730 = vlaneseq
        %v3731 = vshrl.u32 %v3730, 7
        %v3732 = vsub.s32 0, %v3731
        %v3733 = vrot.slane %v3640, %v3732
        %v3734 = vlaneseq
        %v3735 = vshrl.u32 %v3734, 7
        %v3736 = vsub.s32 0, %v3735
        %v3737 = vrot.slane %v3654, %v3736
        %v3738 = vlaneseq
        %v3739 = vshrl.u32 %v3738, 7
        %v3740 = vsub.s32 0, %v3739
        %v3741 = vrot.slane %v3662, %v3740
        %v3742 = vlaneseq
        %v3743 = vshrl.u32 %v3742, 7
        %v3744 = vsub.s32 0, %v3743
        %v3745 = vrot.slane %v3664, %v3744
        %v3746 = vlaneseq
        %v3747 = vshrl.u32 %v3746, 7
        %v3748 = vsub.s32 0, %v3747
        %v3749 = vrot.slane %v3647, %v3748
        %v3750 = vlaneseq
        %v3751 = vshrl.u32 %v3750, 7
        %v3752 = vsub.s32 0, %v3751
        %v3753 = vrot.slane %v3661, %v3752
        %v3754 = vlaneseq
        %v3755 = vshrl.u32 %v3754, 7
        %v3756 = vsub.s32 0, %v3755
        %v3757 = vrot.slane %v3663, %v3756
        %v3758 = vlaneseq
        %v3759 = vshrl.u32 %v3758, 7
        %v3760 = vsub.s32 0, %v3759
        %v3761 = vrot.slane %v3665, %v3760
        %3762 = vset.pattern.permute.xlu0 2
        %3763 = vperm.xlu0 %3762, %v3669
        %v3764 = vpop.permute.xlu0 %3763
        %3766 = vset.pattern.permute.xlu0 2
        %3767 = vperm.xlu0 %3766, %v3673
        %v3768 = vpop.permute.xlu0 %3767
        %3770 = vset.pattern.permute.xlu0 2
        %3771 = vperm.xlu0 %3770, %v3677
        %v3772 = vpop.permute.xlu0 %3771
        %3774 = vset.pattern.permute.xlu0 2
        %3775 = vperm.xlu0 %3774, %v3681
        %v3776 = vpop.permute.xlu0 %3775
        %3778 = vset.pattern.permute.xlu0 2
        %3779 = vperm.xlu0 %3778, %v3685
        %v3780 = vpop.permute.xlu0 %3779
        %3782 = vset.pattern.permute.xlu0 2
        %3783 = vperm.xlu0 %3782, %v3689
        %v3784 = vpop.permute.xlu0 %3783
        %3786 = vset.pattern.permute.xlu0 2
        %3787 = vperm.xlu0 %3786, %v3693
        %v3788 = vpop.permute.xlu0 %3787
        %3790 = vset.pattern.permute.xlu0 2
        %3791 = vperm.xlu0 %3790, %v3697
        %v3792 = vpop.permute.xlu0 %3791
        %3794 = vset.pattern.permute.xlu0 2
        %3795 = vperm.xlu0 %3794, %v3701
        %v3796 = vpop.permute.xlu0 %3795
        %3798 = vset.pattern.permute.xlu0 2
        %3799 = vperm.xlu0 %3798, %v3705
        %v3800 = vpop.permute.xlu0 %3799
        %3802 = vset.pattern.permute.xlu0 2
        %3803 = vperm.xlu0 %3802, %v3709
        %v3804 = vpop.permute.xlu0 %3803
        %3806 = vset.pattern.permute.xlu0 2
        %3807 = vperm.xlu0 %3806, %v3713
        %v3808 = vpop.permute.xlu0 %3807
        %3810 = vset.pattern.permute.xlu0 2
        %3811 = vperm.xlu0 %3810, %v3717
        %v3812 = vpop.permute.xlu0 %3811
        %3814 = vset.pattern.permute.xlu0 2
        %3815 = vperm.xlu0 %3814, %v3721
        %v3816 = vpop.permute.xlu0 %3815
        %3818 = vset.pattern.permute.xlu0 2
        %3819 = vperm.xlu0 %3818, %v3725
        %v3820 = vpop.permute.xlu0 %3819
        %3822 = vset.pattern.permute.xlu0 2
        %3823 = vperm.xlu0 %3822, %v3729
        %v3824 = vpop.permute.xlu0 %3823
        %3826 = vset.pattern.permute.xlu0 2
        %3827 = vperm.xlu0 %3826, %v3733
        %v3828 = vpop.permute.xlu0 %3827
        %3830 = vset.pattern.permute.xlu0 2
        %3831 = vperm.xlu0 %3830, %v3737
        %v3832 = vpop.permute.xlu0 %3831
        %3834 = vset.pattern.permute.xlu0 2
        %3835 = vperm.xlu0 %3834, %v3741
        %v3836 = vpop.permute.xlu0 %3835
        %3838 = vset.pattern.permute.xlu0 2
        %3839 = vperm.xlu0 %3838, %v3745
        %v3840 = vpop.permute.xlu0 %3839
        %3842 = vset.pattern.permute.xlu0 2
        %3843 = vperm.xlu0 %3842, %v3749
        %v3844 = vpop.permute.xlu0 %3843
        %3846 = vset.pattern.permute.xlu0 2
        %3847 = vperm.xlu0 %3846, %v3753
        %v3848 = vpop.permute.xlu0 %3847
        %3850 = vset.pattern.permute.xlu0 2
        %3851 = vperm.xlu0 %3850, %v3757
        %v3852 = vpop.permute.xlu0 %3851
        %3854 = vset.pattern.permute.xlu0 2
        %3855 = vperm.xlu0 %3854, %v3761
        %v3856 = vpop.permute.xlu0 %3855
        %v3858 = vmul.f32 %v2238, %v3764
        %v3859 = vmul.f32 %v2240, %v3768
        %v3860 = vmul.f32 %v2242, %v3772
        %v3861 = vmul.f32 %v2244, %v3776
        %v3862 = vmul.f32 %v2246, %v3780
        %v3863 = vmul.f32 %v2248, %v3784
        %v3864 = vmul.f32 %v2250, %v3788
        %v3865 = vmul.f32 %v2252, %v3792
        %v3866 = vmul.f32 %v2254, %v3796
        %v3867 = vmul.f32 %v2256, %v3800
        %v3868 = vmul.f32 %v2258, %v3804
        %v3869 = vmul.f32 %v2260, %v3808
        %v3870 = vmul.f32 %v2262, %v3812
        %v3871 = vmul.f32 %v2264, %v3816
        %v3872 = vmul.f32 %v2266, %v3820
        %v3873 = vmul.f32 %v2268, %v3824
        %v3874 = vmul.f32 %v2270, %v3828
        %v3875 = vmul.f32 %v2272, %v3832
        %v3876 = vmul.f32 %v2274, %v3836
        %v3877 = vmul.f32 %v2276, %v3840
        %v3878 = vmul.f32 %v2278, %v3844
        %v3879 = vmul.f32 %v2280, %v3848
        %v3880 = vmul.f32 %v2282, %v3852
        %v3881 = vmul.f32 %v2284, %v3856
        %3906 = vrot.lane.b32.xlu0 %v3858, 126
        %v3907 = vpop.permute.xlu0 %3906
        %3908 = vrot.lane.b32.xlu0 %v3859, 126
        %v3909 = vpop.permute.xlu0 %3908
        %3910 = vrot.lane.b32.xlu0 %v3860, 126
        %v3911 = vpop.permute.xlu0 %3910
        %3912 = vrot.lane.b32.xlu0 %v3861, 126
        %v3913 = vpop.permute.xlu0 %3912
        %3914 = vrot.lane.b32.xlu0 %v3862, 126
        %v3915 = vpop.permute.xlu0 %3914
        %3916 = vrot.lane.b32.xlu0 %v3863, 126
        %v3917 = vpop.permute.xlu0 %3916
        %3918 = vrot.lane.b32.xlu0 %v3864, 126
        %v3919 = vpop.permute.xlu0 %3918
        %3920 = vrot.lane.b32.xlu0 %v3865, 126
        %v3921 = vpop.permute.xlu0 %3920
        %3922 = vrot.lane.b32.xlu0 %v3866, 126
        %v3923 = vpop.permute.xlu0 %3922
        %3924 = vrot.lane.b32.xlu0 %v3867, 126
        %v3925 = vpop.permute.xlu0 %3924
        %3926 = vrot.lane.b32.xlu0 %v3868, 126
        %v3927 = vpop.permute.xlu0 %3926
        %3928 = vrot.lane.b32.xlu0 %v3869, 126
        %v3929 = vpop.permute.xlu0 %3928
        %3930 = vrot.lane.b32.xlu0 %v3870, 126
        %v3931 = vpop.permute.xlu0 %3930
        %3932 = vrot.lane.b32.xlu0 %v3871, 126
        %v3933 = vpop.permute.xlu0 %3932
        %3934 = vrot.lane.b32.xlu0 %v3872, 126
        %v3935 = vpop.permute.xlu0 %3934
        %3936 = vrot.lane.b32.xlu0 %v3873, 126
        %v3937 = vpop.permute.xlu0 %3936
        %3938 = vrot.lane.b32.xlu0 %v3874, 126
        %v3939 = vpop.permute.xlu0 %3938
        %3940 = vrot.lane.b32.xlu0 %v3875, 126
        %v3941 = vpop.permute.xlu0 %3940
        %3942 = vrot.lane.b32.xlu0 %v3876, 126
        %v3943 = vpop.permute.xlu0 %3942
        %3944 = vrot.lane.b32.xlu0 %v3877, 126
        %v3945 = vpop.permute.xlu0 %3944
        %3946 = vrot.lane.b32.xlu0 %v3878, 126
        %v3947 = vpop.permute.xlu0 %3946
        %3948 = vrot.lane.b32.xlu0 %v3879, 126
        %v3949 = vpop.permute.xlu0 %3948
        %3950 = vrot.lane.b32.xlu0 %v3880, 126
        %v3951 = vpop.permute.xlu0 %3950
        %3952 = vrot.lane.b32.xlu0 %v3881, 126
        %v3953 = vpop.permute.xlu0 %3952
        %v3978 = vadd.f32 %v3489, %v3907
        %v3979 = vadd.f32 %v3490, %v3909
        %v3980 = vadd.f32 %v3491, %v3911
        %v3981 = vadd.f32 %v3492, %v3913
        %v3982 = vadd.f32 %v3493, %v3915
        %v3983 = vadd.f32 %v3494, %v3917
        %v3984 = vadd.f32 %v3495, %v3919
        %v3985 = vadd.f32 %v3496, %v3921
        %v3986 = vadd.f32 %v3497, %v3923
        %v3987 = vadd.f32 %v3498, %v3925
        %v3988 = vadd.f32 %v3499, %v3927
        %v3989 = vadd.f32 %v3500, %v3929
        %v3990 = vadd.f32 %v3501, %v3931
        %v3991 = vadd.f32 %v3502, %v3933
        %v3992 = vadd.f32 %v3503, %v3935
        %v3993 = vadd.f32 %v3504, %v3937
        %v3994 = vadd.f32 %v3505, %v3939
        %v3995 = vadd.f32 %v3506, %v3941
        %v3996 = vadd.f32 %v3507, %v3943
        %v3997 = vadd.f32 %v3508, %v3945
        %v3998 = vadd.f32 %v3509, %v3947
        %v3999 = vadd.f32 %v3510, %v3949
        %v4000 = vadd.f32 %v3511, %v3951
        %v4001 = vadd.f32 %v3512, %v3953
        %v4002 = vld [vmem:[%s5] sm:$0xff]
        %v4003 = vld [vmem:[%s5 + $0x8] sm:$0xff]
        %v4004 = vld [vmem:[%s5 + $0x10] sm:$0xff]
        %v4008 = vcombine.high %v4002, %v4002
        %v4010 = vunpack.c.l.s4 1966171168
        %v4011 = vunpack.c.0.s8 %v4010
        %v4012 = vlaneseq
        %v4013 = vshrl.u32 %v4012, 7
        %v4014 = vsub.s32 %v4011, %v4013
        %v4015 = vrot.slane %v4002, %v4014
        %v4017 = vunpack.c.l.s4 1966171168
        %v4018 = vunpack.c.0.s8 %v4017
        %v4019 = vlaneseq
        %v4020 = vshrl.u32 %v4019, 7
        %v4021 = vsub.s32 %v4018, %v4020
        %v4022 = vrot.slane %v4008, %v4021
        %v4023 = vcombine.high %v4015, %v4015
        %v4024 = vcombine.high %v4022, %v4022
        %v4026 = vunpack.c.l.s4 1966171168
        %v4027 = vunpack.c.0.s8 %v4026
        %v4028 = vlaneseq
        %v4029 = vshrl.u32 %v4028, 7
        %v4030 = vsub.s32 %v4027, %v4029
        %v4031 = vrot.slane %v4015, %v4030
        %v4033 = vunpack.c.l.s4 1966171168
        %v4034 = vunpack.c.0.s8 %v4033
        %v4035 = vlaneseq
        %v4036 = vshrl.u32 %v4035, 7
        %v4037 = vsub.s32 %v4034, %v4036
        %v4038 = vrot.slane %v4022, %v4037
        %v4040 = vunpack.c.l.s4 1966171168
        %v4041 = vunpack.c.0.s8 %v4040
        %v4042 = vlaneseq
        %v4043 = vshrl.u32 %v4042, 7
        %v4044 = vsub.s32 %v4041, %v4043
        %v4045 = vrot.slane %v4023, %v4044
        %v4047 = vunpack.c.l.s4 1966171168
        %v4048 = vunpack.c.0.s8 %v4047
        %v4049 = vlaneseq
        %v4050 = vshrl.u32 %v4049, 7
        %v4051 = vsub.s32 %v4048, %v4050
        %v4052 = vrot.slane %v4024, %v4051
        %v4053 = vcombine.high %v4031, %v4031
        %v4054 = vcombine.high %v4038, %v4038
        %v4055 = vcombine.high %v4045, %v4045
        %v4056 = vcombine.high %v4052, %v4052
        %v4057 = vcombine.high %v4003, %v4003
        %v4059 = vunpack.c.l.s4 1966171168
        %v4060 = vunpack.c.0.s8 %v4059
        %v4061 = vlaneseq
        %v4062 = vshrl.u32 %v4061, 7
        %v4063 = vsub.s32 %v4060, %v4062
        %v4064 = vrot.slane %v4003, %v4063
        %v4066 = vunpack.c.l.s4 1966171168
        %v4067 = vunpack.c.0.s8 %v4066
        %v4068 = vlaneseq
        %v4069 = vshrl.u32 %v4068, 7
        %v4070 = vsub.s32 %v4067, %v4069
        %v4071 = vrot.slane %v4057, %v4070
        %v4072 = vcombine.high %v4064, %v4064
        %v4073 = vcombine.high %v4071, %v4071
        %v4075 = vunpack.c.l.s4 1966171168
        %v4076 = vunpack.c.0.s8 %v4075
        %v4077 = vlaneseq
        %v4078 = vshrl.u32 %v4077, 7
        %v4079 = vsub.s32 %v4076, %v4078
        %v4080 = vrot.slane %v4064, %v4079
        %v4082 = vunpack.c.l.s4 1966171168
        %v4083 = vunpack.c.0.s8 %v4082
        %v4084 = vlaneseq
        %v4085 = vshrl.u32 %v4084, 7
        %v4086 = vsub.s32 %v4083, %v4085
        %v4087 = vrot.slane %v4071, %v4086
        %v4089 = vunpack.c.l.s4 1966171168
        %v4090 = vunpack.c.0.s8 %v4089
        %v4091 = vlaneseq
        %v4092 = vshrl.u32 %v4091, 7
        %v4093 = vsub.s32 %v4090, %v4092
        %v4094 = vrot.slane %v4072, %v4093
        %v4096 = vunpack.c.l.s4 1966171168
        %v4097 = vunpack.c.0.s8 %v4096
        %v4098 = vlaneseq
        %v4099 = vshrl.u32 %v4098, 7
        %v4100 = vsub.s32 %v4097, %v4099
        %v4101 = vrot.slane %v4073, %v4100
        %v4102 = vcombine.high %v4080, %v4080
        %v4103 = vcombine.high %v4087, %v4087
        %v4104 = vcombine.high %v4094, %v4094
        %v4105 = vcombine.high %v4101, %v4101
        %v4106 = vcombine.high %v4004, %v4004
        %v4108 = vunpack.c.l.s4 1966171168
        %v4109 = vunpack.c.0.s8 %v4108
        %v4110 = vlaneseq
        %v4111 = vshrl.u32 %v4110, 7
        %v4112 = vsub.s32 %v4109, %v4111
        %v4113 = vrot.slane %v4004, %v4112
        %v4115 = vunpack.c.l.s4 1966171168
        %v4116 = vunpack.c.0.s8 %v4115
        %v4117 = vlaneseq
        %v4118 = vshrl.u32 %v4117, 7
        %v4119 = vsub.s32 %v4116, %v4118
        %v4120 = vrot.slane %v4106, %v4119
        %v4121 = vcombine.high %v4113, %v4113
        %v4122 = vcombine.high %v4120, %v4120
        %v4124 = vunpack.c.l.s4 1966171168
        %v4125 = vunpack.c.0.s8 %v4124
        %v4126 = vlaneseq
        %v4127 = vshrl.u32 %v4126, 7
        %v4128 = vsub.s32 %v4125, %v4127
        %v4129 = vrot.slane %v4113, %v4128
        %v4131 = vunpack.c.l.s4 1966171168
        %v4132 = vunpack.c.0.s8 %v4131
        %v4133 = vlaneseq
        %v4134 = vshrl.u32 %v4133, 7
        %v4135 = vsub.s32 %v4132, %v4134
        %v4136 = vrot.slane %v4120, %v4135
        %v4138 = vunpack.c.l.s4 1966171168
        %v4139 = vunpack.c.0.s8 %v4138
        %v4140 = vlaneseq
        %v4141 = vshrl.u32 %v4140, 7
        %v4142 = vsub.s32 %v4139, %v4141
        %v4143 = vrot.slane %v4121, %v4142
        %v4145 = vunpack.c.l.s4 1966171168
        %v4146 = vunpack.c.0.s8 %v4145
        %v4147 = vlaneseq
        %v4148 = vshrl.u32 %v4147, 7
        %v4149 = vsub.s32 %v4146, %v4148
        %v4150 = vrot.slane %v4122, %v4149
        %v4151 = vcombine.high %v4129, %v4129
        %v4152 = vcombine.high %v4136, %v4136
        %v4153 = vcombine.high %v4143, %v4143
        %v4154 = vcombine.high %v4150, %v4150
        %v4155 = vlaneseq
        %v4156 = vshrl.u32 %v4155, 7
        %v4157 = vsub.s32 0, %v4156
        %v4158 = vrot.slane %v4031, %v4157
        %v4159 = vlaneseq
        %v4160 = vshrl.u32 %v4159, 7
        %v4161 = vsub.s32 0, %v4160
        %v4162 = vrot.slane %v4045, %v4161
        %v4163 = vlaneseq
        %v4164 = vshrl.u32 %v4163, 7
        %v4165 = vsub.s32 0, %v4164
        %v4166 = vrot.slane %v4053, %v4165
        %v4167 = vlaneseq
        %v4168 = vshrl.u32 %v4167, 7
        %v4169 = vsub.s32 0, %v4168
        %v4170 = vrot.slane %v4055, %v4169
        %v4171 = vlaneseq
        %v4172 = vshrl.u32 %v4171, 7
        %v4173 = vsub.s32 0, %v4172
        %v4174 = vrot.slane %v4038, %v4173
        %v4175 = vlaneseq
        %v4176 = vshrl.u32 %v4175, 7
        %v4177 = vsub.s32 0, %v4176
        %v4178 = vrot.slane %v4052, %v4177
        %v4179 = vlaneseq
        %v4180 = vshrl.u32 %v4179, 7
        %v4181 = vsub.s32 0, %v4180
        %v4182 = vrot.slane %v4054, %v4181
        %v4183 = vlaneseq
        %v4184 = vshrl.u32 %v4183, 7
        %v4185 = vsub.s32 0, %v4184
        %v4186 = vrot.slane %v4056, %v4185
        %v4187 = vlaneseq
        %v4188 = vshrl.u32 %v4187, 7
        %v4189 = vsub.s32 0, %v4188
        %v4190 = vrot.slane %v4080, %v4189
        %v4191 = vlaneseq
        %v4192 = vshrl.u32 %v4191, 7
        %v4193 = vsub.s32 0, %v4192
        %v4194 = vrot.slane %v4094, %v4193
        %v4195 = vlaneseq
        %v4196 = vshrl.u32 %v4195, 7
        %v4197 = vsub.s32 0, %v4196
        %v4198 = vrot.slane %v4102, %v4197
        %v4199 = vlaneseq
        %v4200 = vshrl.u32 %v4199, 7
        %v4201 = vsub.s32 0, %v4200
        %v4202 = vrot.slane %v4104, %v4201
        %v4203 = vlaneseq
        %v4204 = vshrl.u32 %v4203, 7
        %v4205 = vsub.s32 0, %v4204
        %v4206 = vrot.slane %v4087, %v4205
        %v4207 = vlaneseq
        %v4208 = vshrl.u32 %v4207, 7
        %v4209 = vsub.s32 0, %v4208
        %v4210 = vrot.slane %v4101, %v4209
        %v4211 = vlaneseq
        %v4212 = vshrl.u32 %v4211, 7
        %v4213 = vsub.s32 0, %v4212
        %v4214 = vrot.slane %v4103, %v4213
        %v4215 = vlaneseq
        %v4216 = vshrl.u32 %v4215, 7
        %v4217 = vsub.s32 0, %v4216
        %v4218 = vrot.slane %v4105, %v4217
        %v4219 = vlaneseq
        %v4220 = vshrl.u32 %v4219, 7
        %v4221 = vsub.s32 0, %v4220
        %v4222 = vrot.slane %v4129, %v4221
        %v4223 = vlaneseq
        %v4224 = vshrl.u32 %v4223, 7
        %v4225 = vsub.s32 0, %v4224
        %v4226 = vrot.slane %v4143, %v4225
        %v4227 = vlaneseq
        %v4228 = vshrl.u32 %v4227, 7
        %v4229 = vsub.s32 0, %v4228
        %v4230 = vrot.slane %v4151, %v4229
        %v4231 = vlaneseq
        %v4232 = vshrl.u32 %v4231, 7
        %v4233 = vsub.s32 0, %v4232
        %v4234 = vrot.slane %v4153, %v4233
        %v4235 = vlaneseq
        %v4236 = vshrl.u32 %v4235, 7
        %v4237 = vsub.s32 0, %v4236
        %v4238 = vrot.slane %v4136, %v4237
        %v4239 = vlaneseq
        %v4240 = vshrl.u32 %v4239, 7
        %v4241 = vsub.s32 0, %v4240
        %v4242 = vrot.slane %v4150, %v4241
        %v4243 = vlaneseq
        %v4244 = vshrl.u32 %v4243, 7
        %v4245 = vsub.s32 0, %v4244
        %v4246 = vrot.slane %v4152, %v4245
        %v4247 = vlaneseq
        %v4248 = vshrl.u32 %v4247, 7
        %v4249 = vsub.s32 0, %v4248
        %v4250 = vrot.slane %v4154, %v4249
        %4251 = vset.pattern.permute.xlu0 3
        %4252 = vperm.xlu0 %4251, %v4158
        %v4253 = vpop.permute.xlu0 %4252
        %4255 = vset.pattern.permute.xlu0 3
        %4256 = vperm.xlu0 %4255, %v4162
        %v4257 = vpop.permute.xlu0 %4256
        %4259 = vset.pattern.permute.xlu0 3
        %4260 = vperm.xlu0 %4259, %v4166
        %v4261 = vpop.permute.xlu0 %4260
        %4263 = vset.pattern.permute.xlu0 3
        %4264 = vperm.xlu0 %4263, %v4170
        %v4265 = vpop.permute.xlu0 %4264
        %4267 = vset.pattern.permute.xlu0 3
        %4268 = vperm.xlu0 %4267, %v4174
        %v4269 = vpop.permute.xlu0 %4268
        %4271 = vset.pattern.permute.xlu0 3
        %4272 = vperm.xlu0 %4271, %v4178
        %v4273 = vpop.permute.xlu0 %4272
        %4275 = vset.pattern.permute.xlu0 3
        %4276 = vperm.xlu0 %4275, %v4182
        %v4277 = vpop.permute.xlu0 %4276
        %4279 = vset.pattern.permute.xlu0 3
        %4280 = vperm.xlu0 %4279, %v4186
        %v4281 = vpop.permute.xlu0 %4280
        %4283 = vset.pattern.permute.xlu0 3
        %4284 = vperm.xlu0 %4283, %v4190
        %v4285 = vpop.permute.xlu0 %4284
        %4287 = vset.pattern.permute.xlu0 3
        %4288 = vperm.xlu0 %4287, %v4194
        %v4289 = vpop.permute.xlu0 %4288
        %4291 = vset.pattern.permute.xlu0 3
        %4292 = vperm.xlu0 %4291, %v4198
        %v4293 = vpop.permute.xlu0 %4292
        %4295 = vset.pattern.permute.xlu0 3
        %4296 = vperm.xlu0 %4295, %v4202
        %v4297 = vpop.permute.xlu0 %4296
        %4299 = vset.pattern.permute.xlu0 3
        %4300 = vperm.xlu0 %4299, %v4206
        %v4301 = vpop.permute.xlu0 %4300
        %4303 = vset.pattern.permute.xlu0 3
        %4304 = vperm.xlu0 %4303, %v4210
        %v4305 = vpop.permute.xlu0 %4304
        %4307 = vset.pattern.permute.xlu0 3
        %4308 = vperm.xlu0 %4307, %v4214
        %v4309 = vpop.permute.xlu0 %4308
        %4311 = vset.pattern.permute.xlu0 3
        %4312 = vperm.xlu0 %4311, %v4218
        %v4313 = vpop.permute.xlu0 %4312
        %4315 = vset.pattern.permute.xlu0 3
        %4316 = vperm.xlu0 %4315, %v4222
        %v4317 = vpop.permute.xlu0 %4316
        %4319 = vset.pattern.permute.xlu0 3
        %4320 = vperm.xlu0 %4319, %v4226
        %v4321 = vpop.permute.xlu0 %4320
        %4323 = vset.pattern.permute.xlu0 3
        %4324 = vperm.xlu0 %4323, %v4230
        %v4325 = vpop.permute.xlu0 %4324
        %4327 = vset.pattern.permute.xlu0 3
        %4328 = vperm.xlu0 %4327, %v4234
        %v4329 = vpop.permute.xlu0 %4328
        %4331 = vset.pattern.permute.xlu0 3
        %4332 = vperm.xlu0 %4331, %v4238
        %v4333 = vpop.permute.xlu0 %4332
        %4335 = vset.pattern.permute.xlu0 3
        %4336 = vperm.xlu0 %4335, %v4242
        %v4337 = vpop.permute.xlu0 %4336
        %4339 = vset.pattern.permute.xlu0 3
        %4340 = vperm.xlu0 %4339, %v4246
        %v4341 = vpop.permute.xlu0 %4340
        %4343 = vset.pattern.permute.xlu0 3
        %4344 = vperm.xlu0 %4343, %v4250
        %v4345 = vpop.permute.xlu0 %4344
        %v4347 = vmul.f32 %v2238, %v4253
        %v4348 = vmul.f32 %v2239, %v4253
        %v4349 = vmul.f32 %v2240, %v4257
        %v4350 = vmul.f32 %v2241, %v4257
        %v4351 = vmul.f32 %v2242, %v4261
        %v4352 = vmul.f32 %v2243, %v4261
        %v4353 = vmul.f32 %v2244, %v4265
        %v4354 = vmul.f32 %v2245, %v4265
        %v4355 = vmul.f32 %v2246, %v4269
        %v4356 = vmul.f32 %v2247, %v4269
        %v4357 = vmul.f32 %v2248, %v4273
        %v4358 = vmul.f32 %v2249, %v4273
        %v4359 = vmul.f32 %v2250, %v4277
        %v4360 = vmul.f32 %v2251, %v4277
        %v4361 = vmul.f32 %v2252, %v4281
        %v4362 = vmul.f32 %v2253, %v4281
        %v4363 = vmul.f32 %v2254, %v4285
        %v4364 = vmul.f32 %v2255, %v4285
        %v4365 = vmul.f32 %v2256, %v4289
        %v4366 = vmul.f32 %v2257, %v4289
        %v4367 = vmul.f32 %v2258, %v4293
        %v4368 = vmul.f32 %v2259, %v4293
        %v4369 = vmul.f32 %v2260, %v4297
        %v4370 = vmul.f32 %v2261, %v4297
        %v4371 = vmul.f32 %v2262, %v4301
        %v4372 = vmul.f32 %v2263, %v4301
        %v4373 = vmul.f32 %v2264, %v4305
        %v4374 = vmul.f32 %v2265, %v4305
        %v4375 = vmul.f32 %v2266, %v4309
        %v4376 = vmul.f32 %v2267, %v4309
        %v4377 = vmul.f32 %v2268, %v4313
        %v4378 = vmul.f32 %v2269, %v4313
        %v4379 = vmul.f32 %v2270, %v4317
        %v4380 = vmul.f32 %v2271, %v4317
        %v4381 = vmul.f32 %v2272, %v4321
        %v4382 = vmul.f32 %v2273, %v4321
        %v4383 = vmul.f32 %v2274, %v4325
        %v4384 = vmul.f32 %v2275, %v4325
        %v4385 = vmul.f32 %v2276, %v4329
        %v4386 = vmul.f32 %v2277, %v4329
        %v4387 = vmul.f32 %v2278, %v4333
        %v4388 = vmul.f32 %v2279, %v4333
        %v4389 = vmul.f32 %v2280, %v4337
        %v4390 = vmul.f32 %v2281, %v4337
        %v4391 = vmul.f32 %v2282, %v4341
        %v4392 = vmul.f32 %v2283, %v4341
        %v4393 = vmul.f32 %v2284, %v4345
        %v4394 = vmul.f32 %v2285, %v4345
        %vm4443 = vcmask 1046528
        %v4444 = vrot.slane %v4347, 1
        %v4445 = vrot.slane %v4348, 1
        %v4446 = vsel %vm4443, %v4444, %v4445
        %v4447 = vrot.slane %v4349, 1
        %v4448 = vrot.slane %v4350, 1
        %v4449 = vsel %vm4443, %v4447, %v4448
        %v4450 = vrot.slane %v4351, 1
        %v4451 = vrot.slane %v4352, 1
        %v4452 = vsel %vm4443, %v4450, %v4451
        %v4453 = vrot.slane %v4353, 1
        %v4454 = vrot.slane %v4354, 1
        %v4455 = vsel %vm4443, %v4453, %v4454
        %v4456 = vrot.slane %v4355, 1
        %v4457 = vrot.slane %v4356, 1
        %v4458 = vsel %vm4443, %v4456, %v4457
        %v4459 = vrot.slane %v4357, 1
        %v4460 = vrot.slane %v4358, 1
        %v4461 = vsel %vm4443, %v4459, %v4460
        %v4462 = vrot.slane %v4359, 1
        %v4463 = vrot.slane %v4360, 1
        %v4464 = vsel %vm4443, %v4462, %v4463
        %v4465 = vrot.slane %v4361, 1
        %v4466 = vrot.slane %v4362, 1
        %v4467 = vsel %vm4443, %v4465, %v4466
        %v4468 = vrot.slane %v4363, 1
        %v4469 = vrot.slane %v4364, 1
        %v4470 = vsel %vm4443, %v4468, %v4469
        %v4471 = vrot.slane %v4365, 1
        %v4472 = vrot.slane %v4366, 1
        %v4473 = vsel %vm4443, %v4471, %v4472
        %v4474 = vrot.slane %v4367, 1
        %v4475 = vrot.slane %v4368, 1
        %v4476 = vsel %vm4443, %v4474, %v4475
        %v4477 = vrot.slane %v4369, 1
        %v4478 = vrot.slane %v4370, 1
        %v4479 = vsel %vm4443, %v4477, %v4478
        %v4480 = vrot.slane %v4371, 1
        %v4481 = vrot.slane %v4372, 1
        %v4482 = vsel %vm4443, %v4480, %v4481
        %v4483 = vrot.slane %v4373, 1
        %v4484 = vrot.slane %v4374, 1
        %v4485 = vsel %vm4443, %v4483, %v4484
        %v4486 = vrot.slane %v4375, 1
        %v4487 = vrot.slane %v4376, 1
        %v4488 = vsel %vm4443, %v4486, %v4487
        %v4489 = vrot.slane %v4377, 1
        %v4490 = vrot.slane %v4378, 1
        %v4491 = vsel %vm4443, %v4489, %v4490
        %v4492 = vrot.slane %v4379, 1
        %v4493 = vrot.slane %v4380, 1
        %v4494 = vsel %vm4443, %v4492, %v4493
        %v4495 = vrot.slane %v4381, 1
        %v4496 = vrot.slane %v4382, 1
        %v4497 = vsel %vm4443, %v4495, %v4496
        %v4498 = vrot.slane %v4383, 1
        %v4499 = vrot.slane %v4384, 1
        %v4500 = vsel %vm4443, %v4498, %v4499
        %v4501 = vrot.slane %v4385, 1
        %v4502 = vrot.slane %v4386, 1
        %v4503 = vsel %vm4443, %v4501, %v4502
        %v4504 = vrot.slane %v4387, 1
        %v4505 = vrot.slane %v4388, 1
        %v4506 = vsel %vm4443, %v4504, %v4505
        %v4507 = vrot.slane %v4389, 1
        %v4508 = vrot.slane %v4390, 1
        %v4509 = vsel %vm4443, %v4507, %v4508
        %v4510 = vrot.slane %v4391, 1
        %v4511 = vrot.slane %v4392, 1
        %v4512 = vsel %vm4443, %v4510, %v4511
        %v4513 = vrot.slane %v4393, 1
        %v4514 = vrot.slane %v4394, 1
        %v4515 = vsel %vm4443, %v4513, %v4514
        %v4540 = vadd.f32 %v3978, %v4446
        %v4541 = vadd.f32 %v3979, %v4449
        %v4542 = vadd.f32 %v3980, %v4452
        %v4543 = vadd.f32 %v3981, %v4455
        %v4544 = vadd.f32 %v3982, %v4458
        %v4545 = vadd.f32 %v3983, %v4461
        %v4546 = vadd.f32 %v3984, %v4464
        %v4547 = vadd.f32 %v3985, %v4467
        %v4548 = vadd.f32 %v3986, %v4470
        %v4549 = vadd.f32 %v3987, %v4473
        %v4550 = vadd.f32 %v3988, %v4476
        %v4551 = vadd.f32 %v3989, %v4479
        %v4552 = vadd.f32 %v3990, %v4482
        %v4553 = vadd.f32 %v3991, %v4485
        %v4554 = vadd.f32 %v3992, %v4488
        %v4555 = vadd.f32 %v3993, %v4491
        %v4556 = vadd.f32 %v3994, %v4494
        %v4557 = vadd.f32 %v3995, %v4497
        %v4558 = vadd.f32 %v3996, %v4500
        %v4559 = vadd.f32 %v3997, %v4503
        %v4560 = vadd.f32 %v3998, %v4506
        %v4561 = vadd.f32 %v3999, %v4509
        %v4562 = vadd.f32 %v4000, %v4512
        %v4563 = vadd.f32 %v4001, %v4515
        %v4564 = vld [vmem:[%s5] sm:$0xff]
        %v4565 = vld [vmem:[%s5 + $0x8] sm:$0xff]
        %v4566 = vld [vmem:[%s5 + $0x10] sm:$0xff]
        %v4570 = vcombine.high %v4564, %v4564
        %v4572 = vunpack.c.l.s4 1966171168
        %v4573 = vunpack.c.0.s8 %v4572
        %v4574 = vlaneseq
        %v4575 = vshrl.u32 %v4574, 7
        %v4576 = vsub.s32 %v4573, %v4575
        %v4577 = vrot.slane %v4564, %v4576
        %v4579 = vunpack.c.l.s4 1966171168
        %v4580 = vunpack.c.0.s8 %v4579
        %v4581 = vlaneseq
        %v4582 = vshrl.u32 %v4581, 7
        %v4583 = vsub.s32 %v4580, %v4582
        %v4584 = vrot.slane %v4570, %v4583
        %v4585 = vcombine.high %v4577, %v4577
        %v4586 = vcombine.high %v4584, %v4584
        %v4588 = vunpack.c.l.s4 1966171168
        %v4589 = vunpack.c.0.s8 %v4588
        %v4590 = vlaneseq
        %v4591 = vshrl.u32 %v4590, 7
        %v4592 = vsub.s32 %v4589, %v4591
        %v4593 = vrot.slane %v4577, %v4592
        %v4595 = vunpack.c.l.s4 1966171168
        %v4596 = vunpack.c.0.s8 %v4595
        %v4597 = vlaneseq
        %v4598 = vshrl.u32 %v4597, 7
        %v4599 = vsub.s32 %v4596, %v4598
        %v4600 = vrot.slane %v4584, %v4599
        %v4602 = vunpack.c.l.s4 1966171168
        %v4603 = vunpack.c.0.s8 %v4602
        %v4604 = vlaneseq
        %v4605 = vshrl.u32 %v4604, 7
        %v4606 = vsub.s32 %v4603, %v4605
        %v4607 = vrot.slane %v4585, %v4606
        %v4609 = vunpack.c.l.s4 1966171168
        %v4610 = vunpack.c.0.s8 %v4609
        %v4611 = vlaneseq
        %v4612 = vshrl.u32 %v4611, 7
        %v4613 = vsub.s32 %v4610, %v4612
        %v4614 = vrot.slane %v4586, %v4613
        %v4615 = vcombine.high %v4593, %v4593
        %v4616 = vcombine.high %v4600, %v4600
        %v4617 = vcombine.high %v4607, %v4607
        %v4618 = vcombine.high %v4614, %v4614
        %v4619 = vcombine.high %v4565, %v4565
        %v4621 = vunpack.c.l.s4 1966171168
        %v4622 = vunpack.c.0.s8 %v4621
        %v4623 = vlaneseq
        %v4624 = vshrl.u32 %v4623, 7
        %v4625 = vsub.s32 %v4622, %v4624
        %v4626 = vrot.slane %v4565, %v4625
        %v4628 = vunpack.c.l.s4 1966171168
        %v4629 = vunpack.c.0.s8 %v4628
        %v4630 = vlaneseq
        %v4631 = vshrl.u32 %v4630, 7
        %v4632 = vsub.s32 %v4629, %v4631
        %v4633 = vrot.slane %v4619, %v4632
        %v4634 = vcombine.high %v4626, %v4626
        %v4635 = vcombine.high %v4633, %v4633
        %v4637 = vunpack.c.l.s4 1966171168
        %v4638 = vunpack.c.0.s8 %v4637
        %v4639 = vlaneseq
        %v4640 = vshrl.u32 %v4639, 7
        %v4641 = vsub.s32 %v4638, %v4640
        %v4642 = vrot.slane %v4626, %v4641
        %v4644 = vunpack.c.l.s4 1966171168
        %v4645 = vunpack.c.0.s8 %v4644
        %v4646 = vlaneseq
        %v4647 = vshrl.u32 %v4646, 7
        %v4648 = vsub.s32 %v4645, %v4647
        %v4649 = vrot.slane %v4633, %v4648
        %v4651 = vunpack.c.l.s4 1966171168
        %v4652 = vunpack.c.0.s8 %v4651
        %v4653 = vlaneseq
        %v4654 = vshrl.u32 %v4653, 7
        %v4655 = vsub.s32 %v4652, %v4654
        %v4656 = vrot.slane %v4634, %v4655
        %v4658 = vunpack.c.l.s4 1966171168
        %v4659 = vunpack.c.0.s8 %v4658
        %v4660 = vlaneseq
        %v4661 = vshrl.u32 %v4660, 7
        %v4662 = vsub.s32 %v4659, %v4661
        %v4663 = vrot.slane %v4635, %v4662
        %v4664 = vcombine.high %v4642, %v4642
        %v4665 = vcombine.high %v4649, %v4649
        %v4666 = vcombine.high %v4656, %v4656
        %v4667 = vcombine.high %v4663, %v4663
        %v4668 = vcombine.high %v4566, %v4566
        %v4670 = vunpack.c.l.s4 1966171168
        %v4671 = vunpack.c.0.s8 %v4670
        %v4672 = vlaneseq
        %v4673 = vshrl.u32 %v4672, 7
        %v4674 = vsub.s32 %v4671, %v4673
        %v4675 = vrot.slane %v4566, %v4674
        %v4677 = vunpack.c.l.s4 1966171168
        %v4678 = vunpack.c.0.s8 %v4677
        %v4679 = vlaneseq
        %v4680 = vshrl.u32 %v4679, 7
        %v4681 = vsub.s32 %v4678, %v4680
        %v4682 = vrot.slane %v4668, %v4681
        %v4683 = vcombine.high %v4675, %v4675
        %v4684 = vcombine.high %v4682, %v4682
        %v4686 = vunpack.c.l.s4 1966171168
        %v4687 = vunpack.c.0.s8 %v4686
        %v4688 = vlaneseq
        %v4689 = vshrl.u32 %v4688, 7
        %v4690 = vsub.s32 %v4687, %v4689
        %v4691 = vrot.slane %v4675, %v4690
        %v4693 = vunpack.c.l.s4 1966171168
        %v4694 = vunpack.c.0.s8 %v4693
        %v4695 = vlaneseq
        %v4696 = vshrl.u32 %v4695, 7
        %v4697 = vsub.s32 %v4694, %v4696
        %v4698 = vrot.slane %v4682, %v4697
        %v4700 = vunpack.c.l.s4 1966171168
        %v4701 = vunpack.c.0.s8 %v4700
        %v4702 = vlaneseq
        %v4703 = vshrl.u32 %v4702, 7
        %v4704 = vsub.s32 %v4701, %v4703
        %v4705 = vrot.slane %v4683, %v4704
        %v4707 = vunpack.c.l.s4 1966171168
        %v4708 = vunpack.c.0.s8 %v4707
        %v4709 = vlaneseq
        %v4710 = vshrl.u32 %v4709, 7
        %v4711 = vsub.s32 %v4708, %v4710
        %v4712 = vrot.slane %v4684, %v4711
        %v4713 = vcombine.high %v4691, %v4691
        %v4714 = vcombine.high %v4698, %v4698
        %v4715 = vcombine.high %v4705, %v4705
        %v4716 = vcombine.high %v4712, %v4712
        %v4717 = vlaneseq
        %v4718 = vshrl.u32 %v4717, 7
        %v4719 = vsub.s32 0, %v4718
        %v4720 = vrot.slane %v4593, %v4719
        %v4721 = vlaneseq
        %v4722 = vshrl.u32 %v4721, 7
        %v4723 = vsub.s32 0, %v4722
        %v4724 = vrot.slane %v4607, %v4723
        %v4725 = vlaneseq
        %v4726 = vshrl.u32 %v4725, 7
        %v4727 = vsub.s32 0, %v4726
        %v4728 = vrot.slane %v4615, %v4727
        %v4729 = vlaneseq
        %v4730 = vshrl.u32 %v4729, 7
        %v4731 = vsub.s32 0, %v4730
        %v4732 = vrot.slane %v4617, %v4731
        %v4733 = vlaneseq
        %v4734 = vshrl.u32 %v4733, 7
        %v4735 = vsub.s32 0, %v4734
        %v4736 = vrot.slane %v4600, %v4735
        %v4737 = vlaneseq
        %v4738 = vshrl.u32 %v4737, 7
        %v4739 = vsub.s32 0, %v4738
        %v4740 = vrot.slane %v4614, %v4739
        %v4741 = vlaneseq
        %v4742 = vshrl.u32 %v4741, 7
        %v4743 = vsub.s32 0, %v4742
        %v4744 = vrot.slane %v4616, %v4743
        %v4745 = vlaneseq
        %v4746 = vshrl.u32 %v4745, 7
        %v4747 = vsub.s32 0, %v4746
        %v4748 = vrot.slane %v4618, %v4747
        %v4749 = vlaneseq
        %v4750 = vshrl.u32 %v4749, 7
        %v4751 = vsub.s32 0, %v4750
        %v4752 = vrot.slane %v4642, %v4751
        %v4753 = vlaneseq
        %v4754 = vshrl.u32 %v4753, 7
        %v4755 = vsub.s32 0, %v4754
        %v4756 = vrot.slane %v4656, %v4755
        %v4757 = vlaneseq
        %v4758 = vshrl.u32 %v4757, 7
        %v4759 = vsub.s32 0, %v4758
        %v4760 = vrot.slane %v4664, %v4759
        %v4761 = vlaneseq
        %v4762 = vshrl.u32 %v4761, 7
        %v4763 = vsub.s32 0, %v4762
        %v4764 = vrot.slane %v4666, %v4763
        %v4765 = vlaneseq
        %v4766 = vshrl.u32 %v4765, 7
        %v4767 = vsub.s32 0, %v4766
        %v4768 = vrot.slane %v4649, %v4767
        %v4769 = vlaneseq
        %v4770 = vshrl.u32 %v4769, 7
        %v4771 = vsub.s32 0, %v4770
        %v4772 = vrot.slane %v4663, %v4771
        %v4773 = vlaneseq
        %v4774 = vshrl.u32 %v4773, 7
        %v4775 = vsub.s32 0, %v4774
        %v4776 = vrot.slane %v4665, %v4775
        %v4777 = vlaneseq
        %v4778 = vshrl.u32 %v4777, 7
        %v4779 = vsub.s32 0, %v4778
        %v4780 = vrot.slane %v4667, %v4779
        %v4781 = vlaneseq
        %v4782 = vshrl.u32 %v4781, 7
        %v4783 = vsub.s32 0, %v4782
        %v4784 = vrot.slane %v4691, %v4783
        %v4785 = vlaneseq
        %v4786 = vshrl.u32 %v4785, 7
        %v4787 = vsub.s32 0, %v4786
        %v4788 = vrot.slane %v4705, %v4787
        %v4789 = vlaneseq
        %v4790 = vshrl.u32 %v4789, 7
        %v4791 = vsub.s32 0, %v4790
        %v4792 = vrot.slane %v4713, %v4791
        %v4793 = vlaneseq
        %v4794 = vshrl.u32 %v4793, 7
        %v4795 = vsub.s32 0, %v4794
        %v4796 = vrot.slane %v4715, %v4795
        %v4797 = vlaneseq
        %v4798 = vshrl.u32 %v4797, 7
        %v4799 = vsub.s32 0, %v4798
        %v4800 = vrot.slane %v4698, %v4799
        %v4801 = vlaneseq
        %v4802 = vshrl.u32 %v4801, 7
        %v4803 = vsub.s32 0, %v4802
        %v4804 = vrot.slane %v4712, %v4803
        %v4805 = vlaneseq
        %v4806 = vshrl.u32 %v4805, 7
        %v4807 = vsub.s32 0, %v4806
        %v4808 = vrot.slane %v4714, %v4807
        %v4809 = vlaneseq
        %v4810 = vshrl.u32 %v4809, 7
        %v4811 = vsub.s32 0, %v4810
        %v4812 = vrot.slane %v4716, %v4811
        %4813 = vset.pattern.permute.xlu0 4
        %4814 = vperm.xlu0 %4813, %v4720
        %v4815 = vpop.permute.xlu0 %4814
        %4817 = vset.pattern.permute.xlu0 4
        %4818 = vperm.xlu0 %4817, %v4724
        %v4819 = vpop.permute.xlu0 %4818
        %4821 = vset.pattern.permute.xlu0 4
        %4822 = vperm.xlu0 %4821, %v4728
        %v4823 = vpop.permute.xlu0 %4822
        %4825 = vset.pattern.permute.xlu0 4
        %4826 = vperm.xlu0 %4825, %v4732
        %v4827 = vpop.permute.xlu0 %4826
        %4829 = vset.pattern.permute.xlu0 4
        %4830 = vperm.xlu0 %4829, %v4736
        %v4831 = vpop.permute.xlu0 %4830
        %4833 = vset.pattern.permute.xlu0 4
        %4834 = vperm.xlu0 %4833, %v4740
        %v4835 = vpop.permute.xlu0 %4834
        %4837 = vset.pattern.permute.xlu0 4
        %4838 = vperm.xlu0 %4837, %v4744
        %v4839 = vpop.permute.xlu0 %4838
        %4841 = vset.pattern.permute.xlu0 4
        %4842 = vperm.xlu0 %4841, %v4748
        %v4843 = vpop.permute.xlu0 %4842
        %4845 = vset.pattern.permute.xlu0 4
        %4846 = vperm.xlu0 %4845, %v4752
        %v4847 = vpop.permute.xlu0 %4846
        %4849 = vset.pattern.permute.xlu0 4
        %4850 = vperm.xlu0 %4849, %v4756
        %v4851 = vpop.permute.xlu0 %4850
        %4853 = vset.pattern.permute.xlu0 4
        %4854 = vperm.xlu0 %4853, %v4760
        %v4855 = vpop.permute.xlu0 %4854
        %4857 = vset.pattern.permute.xlu0 4
        %4858 = vperm.xlu0 %4857, %v4764
        %v4859 = vpop.permute.xlu0 %4858
        %4861 = vset.pattern.permute.xlu0 4
        %4862 = vperm.xlu0 %4861, %v4768
        %v4863 = vpop.permute.xlu0 %4862
        %4865 = vset.pattern.permute.xlu0 4
        %4866 = vperm.xlu0 %4865, %v4772
        %v4867 = vpop.permute.xlu0 %4866
        %4869 = vset.pattern.permute.xlu0 4
        %4870 = vperm.xlu0 %4869, %v4776
        %v4871 = vpop.permute.xlu0 %4870
        %4873 = vset.pattern.permute.xlu0 4
        %4874 = vperm.xlu0 %4873, %v4780
        %v4875 = vpop.permute.xlu0 %4874
        %4877 = vset.pattern.permute.xlu0 4
        %4878 = vperm.xlu0 %4877, %v4784
        %v4879 = vpop.permute.xlu0 %4878
        %4881 = vset.pattern.permute.xlu0 4
        %4882 = vperm.xlu0 %4881, %v4788
        %v4883 = vpop.permute.xlu0 %4882
        %4885 = vset.pattern.permute.xlu0 4
        %4886 = vperm.xlu0 %4885, %v4792
        %v4887 = vpop.permute.xlu0 %4886
        %4889 = vset.pattern.permute.xlu0 4
        %4890 = vperm.xlu0 %4889, %v4796
        %v4891 = vpop.permute.xlu0 %4890
        %4893 = vset.pattern.permute.xlu0 4
        %4894 = vperm.xlu0 %4893, %v4800
        %v4895 = vpop.permute.xlu0 %4894
        %4897 = vset.pattern.permute.xlu0 4
        %4898 = vperm.xlu0 %4897, %v4804
        %v4899 = vpop.permute.xlu0 %4898
        %4901 = vset.pattern.permute.xlu0 4
        %4902 = vperm.xlu0 %4901, %v4808
        %v4903 = vpop.permute.xlu0 %4902
        %4905 = vset.pattern.permute.xlu0 4
        %4906 = vperm.xlu0 %4905, %v4812
        %v4907 = vpop.permute.xlu0 %4906
        %v4909 = vmul.f32 %v2238, %v4815
        %v4910 = vmul.f32 %v2239, %v4815
        %v4911 = vmul.f32 %v2240, %v4819
        %v4912 = vmul.f32 %v2241, %v4819
        %v4913 = vmul.f32 %v2242, %v4823
        %v4914 = vmul.f32 %v2243, %v4823
        %v4915 = vmul.f32 %v2244, %v4827
        %v4916 = vmul.f32 %v2245, %v4827
        %v4917 = vmul.f32 %v2246, %v4831
        %v4918 = vmul.f32 %v2247, %v4831
        %v4919 = vmul.f32 %v2248, %v4835
        %v4920 = vmul.f32 %v2249, %v4835
        %v4921 = vmul.f32 %v2250, %v4839
        %v4922 = vmul.f32 %v2251, %v4839
        %v4923 = vmul.f32 %v2252, %v4843
        %v4924 = vmul.f32 %v2253, %v4843
        %v4925 = vmul.f32 %v2254, %v4847
        %v4926 = vmul.f32 %v2255, %v4847
        %v4927 = vmul.f32 %v2256, %v4851
        %v4928 = vmul.f32 %v2257, %v4851
        %v4929 = vmul.f32 %v2258, %v4855
        %v4930 = vmul.f32 %v2259, %v4855
        %v4931 = vmul.f32 %v2260, %v4859
        %v4932 = vmul.f32 %v2261, %v4859
        %v4933 = vmul.f32 %v2262, %v4863
        %v4934 = vmul.f32 %v2263, %v4863
        %v4935 = vmul.f32 %v2264, %v4867
        %v4936 = vmul.f32 %v2265, %v4867
        %v4937 = vmul.f32 %v2266, %v4871
        %v4938 = vmul.f32 %v2267, %v4871
        %v4939 = vmul.f32 %v2268, %v4875
        %v4940 = vmul.f32 %v2269, %v4875
        %v4941 = vmul.f32 %v2270, %v4879
        %v4942 = vmul.f32 %v2271, %v4879
        %v4943 = vmul.f32 %v2272, %v4883
        %v4944 = vmul.f32 %v2273, %v4883
        %v4945 = vmul.f32 %v2274, %v4887
        %v4946 = vmul.f32 %v2275, %v4887
        %v4947 = vmul.f32 %v2276, %v4891
        %v4948 = vmul.f32 %v2277, %v4891
        %v4949 = vmul.f32 %v2278, %v4895
        %v4950 = vmul.f32 %v2279, %v4895
        %v4951 = vmul.f32 %v2280, %v4899
        %v4952 = vmul.f32 %v2281, %v4899
        %v4953 = vmul.f32 %v2282, %v4903
        %v4954 = vmul.f32 %v2283, %v4903
        %v4955 = vmul.f32 %v2284, %v4907
        %v4956 = vmul.f32 %v2285, %v4907
        %v5005 = vrot.slane %v4909, 1
        %v5006 = vrot.slane %v4910, 1
        %v5007 = vsel %vm4443, %v5005, %v5006
        %v5008 = vrot.slane %v4911, 1
        %v5009 = vrot.slane %v4912, 1
        %v5010 = vsel %vm4443, %v5008, %v5009
        %v5011 = vrot.slane %v4913, 1
        %v5012 = vrot.slane %v4914, 1
        %v5013 = vsel %vm4443, %v5011, %v5012
        %v5014 = vrot.slane %v4915, 1
        %v5015 = vrot.slane %v4916, 1
        %v5016 = vsel %vm4443, %v5014, %v5015
        %v5017 = vrot.slane %v4917, 1
        %v5018 = vrot.slane %v4918, 1
        %v5019 = vsel %vm4443, %v5017, %v5018
        %v5020 = vrot.slane %v4919, 1
        %v5021 = vrot.slane %v4920, 1
        %v5022 = vsel %vm4443, %v5020, %v5021
        %v5023 = vrot.slane %v4921, 1
        %v5024 = vrot.slane %v4922, 1
        %v5025 = vsel %vm4443, %v5023, %v5024
        %v5026 = vrot.slane %v4923, 1
        %v5027 = vrot.slane %v4924, 1
        %v5028 = vsel %vm4443, %v5026, %v5027
        %v5029 = vrot.slane %v4925, 1
        %v5030 = vrot.slane %v4926, 1
        %v5031 = vsel %vm4443, %v5029, %v5030
        %v5032 = vrot.slane %v4927, 1
        %v5033 = vrot.slane %v4928, 1
        %v5034 = vsel %vm4443, %v5032, %v5033
        %v5035 = vrot.slane %v4929, 1
        %v5036 = vrot.slane %v4930, 1
        %v5037 = vsel %vm4443, %v5035, %v5036
        %v5038 = vrot.slane %v4931, 1
        %v5039 = vrot.slane %v4932, 1
        %v5040 = vsel %vm4443, %v5038, %v5039
        %v5041 = vrot.slane %v4933, 1
        %v5042 = vrot.slane %v4934, 1
        %v5043 = vsel %vm4443, %v5041, %v5042
        %v5044 = vrot.slane %v4935, 1
        %v5045 = vrot.slane %v4936, 1
        %v5046 = vsel %vm4443, %v5044, %v5045
        %v5047 = vrot.slane %v4937, 1
        %v5048 = vrot.slane %v4938, 1
        %v5049 = vsel %vm4443, %v5047, %v5048
        %v5050 = vrot.slane %v4939, 1
        %v5051 = vrot.slane %v4940, 1
        %v5052 = vsel %vm4443, %v5050, %v5051
        %v5053 = vrot.slane %v4941, 1
        %v5054 = vrot.slane %v4942, 1
        %v5055 = vsel %vm4443, %v5053, %v5054
        %v5056 = vrot.slane %v4943, 1
        %v5057 = vrot.slane %v4944, 1
        %v5058 = vsel %vm4443, %v5056, %v5057
        %v5059 = vrot.slane %v4945, 1
        %v5060 = vrot.slane %v4946, 1
        %v5061 = vsel %vm4443, %v5059, %v5060
        %v5062 = vrot.slane %v4947, 1
        %v5063 = vrot.slane %v4948, 1
        %v5064 = vsel %vm4443, %v5062, %v5063
        %v5065 = vrot.slane %v4949, 1
        %v5066 = vrot.slane %v4950, 1
        %v5067 = vsel %vm4443, %v5065, %v5066
        %v5068 = vrot.slane %v4951, 1
        %v5069 = vrot.slane %v4952, 1
        %v5070 = vsel %vm4443, %v5068, %v5069
        %v5071 = vrot.slane %v4953, 1
        %v5072 = vrot.slane %v4954, 1
        %v5073 = vsel %vm4443, %v5071, %v5072
        %v5074 = vrot.slane %v4955, 1
        %v5075 = vrot.slane %v4956, 1
        %v5076 = vsel %vm4443, %v5074, %v5075
        %5077 = vrot.lane.b32.xlu0 %v5007, 127
        %v5078 = vpop.permute.xlu0 %5077
        %5079 = vrot.lane.b32.xlu0 %v5010, 127
        %v5080 = vpop.permute.xlu0 %5079
        %5081 = vrot.lane.b32.xlu0 %v5013, 127
        %v5082 = vpop.permute.xlu0 %5081
        %5083 = vrot.lane.b32.xlu0 %v5016, 127
        %v5084 = vpop.permute.xlu0 %5083
        %5085 = vrot.lane.b32.xlu0 %v5019, 127
        %v5086 = vpop.permute.xlu0 %5085
        %5087 = vrot.lane.b32.xlu0 %v5022, 127
        %v5088 = vpop.permute.xlu0 %5087
        %5089 = vrot.lane.b32.xlu0 %v5025, 127
        %v5090 = vpop.permute.xlu0 %5089
        %5091 = vrot.lane.b32.xlu0 %v5028, 127
        %v5092 = vpop.permute.xlu0 %5091
        %5093 = vrot.lane.b32.xlu0 %v5031, 127
        %v5094 = vpop.permute.xlu0 %5093
        %5095 = vrot.lane.b32.xlu0 %v5034, 127
        %v5096 = vpop.permute.xlu0 %5095
        %5097 = vrot.lane.b32.xlu0 %v5037, 127
        %v5098 = vpop.permute.xlu0 %5097
        %5099 = vrot.lane.b32.xlu0 %v5040, 127
        %v5100 = vpop.permute.xlu0 %5099
        %5101 = vrot.lane.b32.xlu0 %v5043, 127
        %v5102 = vpop.permute.xlu0 %5101
        %5103 = vrot.lane.b32.xlu0 %v5046, 127
        %v5104 = vpop.permute.xlu0 %5103
        %5105 = vrot.lane.b32.xlu0 %v5049, 127
        %v5106 = vpop.permute.xlu0 %5105
        %5107 = vrot.lane.b32.xlu0 %v5052, 127
        %v5108 = vpop.permute.xlu0 %5107
        %5109 = vrot.lane.b32.xlu0 %v5055, 127
        %v5110 = vpop.permute.xlu0 %5109
        %5111 = vrot.lane.b32.xlu0 %v5058, 127
        %v5112 = vpop.permute.xlu0 %5111
        %5113 = vrot.lane.b32.xlu0 %v5061, 127
        %v5114 = vpop.permute.xlu0 %5113
        %5115 = vrot.lane.b32.xlu0 %v5064, 127
        %v5116 = vpop.permute.xlu0 %5115
        %5117 = vrot.lane.b32.xlu0 %v5067, 127
        %v5118 = vpop.permute.xlu0 %5117
        %5119 = vrot.lane.b32.xlu0 %v5070, 127
        %v5120 = vpop.permute.xlu0 %5119
        %5121 = vrot.lane.b32.xlu0 %v5073, 127
        %v5122 = vpop.permute.xlu0 %5121
        %5123 = vrot.lane.b32.xlu0 %v5076, 127
        %v5124 = vpop.permute.xlu0 %5123
        %v5149 = vadd.f32 %v4540, %v5078
        %v5150 = vadd.f32 %v4541, %v5080
        %v5151 = vadd.f32 %v4542, %v5082
        %v5152 = vadd.f32 %v4543, %v5084
        %v5153 = vadd.f32 %v4544, %v5086
        %v5154 = vadd.f32 %v4545, %v5088
        %v5155 = vadd.f32 %v4546, %v5090
        %v5156 = vadd.f32 %v4547, %v5092
        %v5157 = vadd.f32 %v4548, %v5094
        %v5158 = vadd.f32 %v4549, %v5096
        %v5159 = vadd.f32 %v4550, %v5098
        %v5160 = vadd.f32 %v4551, %v5100
        %v5161 = vadd.f32 %v4552, %v5102
        %v5162 = vadd.f32 %v4553, %v5104
        %v5163 = vadd.f32 %v4554, %v5106
        %v5164 = vadd.f32 %v4555, %v5108
        %v5165 = vadd.f32 %v4556, %v5110
        %v5166 = vadd.f32 %v4557, %v5112
        %v5167 = vadd.f32 %v4558, %v5114
        %v5168 = vadd.f32 %v4559, %v5116
        %v5169 = vadd.f32 %v4560, %v5118
        %v5170 = vadd.f32 %v4561, %v5120
        %v5171 = vadd.f32 %v4562, %v5122
        %v5172 = vadd.f32 %v4563, %v5124
        %v5173 = vld [vmem:[%s5] sm:$0xff]
        %v5174 = vld [vmem:[%s5 + $0x8] sm:$0xff]
        %v5175 = vld [vmem:[%s5 + $0x10] sm:$0xff]
        %v5179 = vcombine.high %v5173, %v5173
        %v5181 = vunpack.c.l.s4 1966171168
        %v5182 = vunpack.c.0.s8 %v5181
        %v5183 = vlaneseq
        %v5184 = vshrl.u32 %v5183, 7
        %v5185 = vsub.s32 %v5182, %v5184
        %v5186 = vrot.slane %v5173, %v5185
        %v5188 = vunpack.c.l.s4 1966171168
        %v5189 = vunpack.c.0.s8 %v5188
        %v5190 = vlaneseq
        %v5191 = vshrl.u32 %v5190, 7
        %v5192 = vsub.s32 %v5189, %v5191
        %v5193 = vrot.slane %v5179, %v5192
        %v5194 = vcombine.high %v5186, %v5186
        %v5195 = vcombine.high %v5193, %v5193
        %v5197 = vunpack.c.l.s4 1966171168
        %v5198 = vunpack.c.0.s8 %v5197
        %v5199 = vlaneseq
        %v5200 = vshrl.u32 %v5199, 7
        %v5201 = vsub.s32 %v5198, %v5200
        %v5202 = vrot.slane %v5186, %v5201
        %v5204 = vunpack.c.l.s4 1966171168
        %v5205 = vunpack.c.0.s8 %v5204
        %v5206 = vlaneseq
        %v5207 = vshrl.u32 %v5206, 7
        %v5208 = vsub.s32 %v5205, %v5207
        %v5209 = vrot.slane %v5193, %v5208
        %v5211 = vunpack.c.l.s4 1966171168
        %v5212 = vunpack.c.0.s8 %v5211
        %v5213 = vlaneseq
        %v5214 = vshrl.u32 %v5213, 7
        %v5215 = vsub.s32 %v5212, %v5214
        %v5216 = vrot.slane %v5194, %v5215
        %v5218 = vunpack.c.l.s4 1966171168
        %v5219 = vunpack.c.0.s8 %v5218
        %v5220 = vlaneseq
        %v5221 = vshrl.u32 %v5220, 7
        %v5222 = vsub.s32 %v5219, %v5221
        %v5223 = vrot.slane %v5195, %v5222
        %v5224 = vcombine.high %v5202, %v5202
        %v5225 = vcombine.high %v5209, %v5209
        %v5226 = vcombine.high %v5216, %v5216
        %v5227 = vcombine.high %v5223, %v5223
        %v5228 = vcombine.high %v5174, %v5174
        %v5230 = vunpack.c.l.s4 1966171168
        %v5231 = vunpack.c.0.s8 %v5230
        %v5232 = vlaneseq
        %v5233 = vshrl.u32 %v5232, 7
        %v5234 = vsub.s32 %v5231, %v5233
        %v5235 = vrot.slane %v5174, %v5234
        %v5237 = vunpack.c.l.s4 1966171168
        %v5238 = vunpack.c.0.s8 %v5237
        %v5239 = vlaneseq
        %v5240 = vshrl.u32 %v5239, 7
        %v5241 = vsub.s32 %v5238, %v5240
        %v5242 = vrot.slane %v5228, %v5241
        %v5243 = vcombine.high %v5235, %v5235
        %v5244 = vcombine.high %v5242, %v5242
        %v5246 = vunpack.c.l.s4 1966171168
        %v5247 = vunpack.c.0.s8 %v5246
        %v5248 = vlaneseq
        %v5249 = vshrl.u32 %v5248, 7
        %v5250 = vsub.s32 %v5247, %v5249
        %v5251 = vrot.slane %v5235, %v5250
        %v5253 = vunpack.c.l.s4 1966171168
        %v5254 = vunpack.c.0.s8 %v5253
        %v5255 = vlaneseq
        %v5256 = vshrl.u32 %v5255, 7
        %v5257 = vsub.s32 %v5254, %v5256
        %v5258 = vrot.slane %v5242, %v5257
        %v5260 = vunpack.c.l.s4 1966171168
        %v5261 = vunpack.c.0.s8 %v5260
        %v5262 = vlaneseq
        %v5263 = vshrl.u32 %v5262, 7
        %v5264 = vsub.s32 %v5261, %v5263
        %v5265 = vrot.slane %v5243, %v5264
        %v5267 = vunpack.c.l.s4 1966171168
        %v5268 = vunpack.c.0.s8 %v5267
        %v5269 = vlaneseq
        %v5270 = vshrl.u32 %v5269, 7
        %v5271 = vsub.s32 %v5268, %v5270
        %v5272 = vrot.slane %v5244, %v5271
        %v5273 = vcombine.high %v5251, %v5251
        %v5274 = vcombine.high %v5258, %v5258
        %v5275 = vcombine.high %v5265, %v5265
        %v5276 = vcombine.high %v5272, %v5272
        %v5277 = vcombine.high %v5175, %v5175
        %v5279 = vunpack.c.l.s4 1966171168
        %v5280 = vunpack.c.0.s8 %v5279
        %v5281 = vlaneseq
        %v5282 = vshrl.u32 %v5281, 7
        %v5283 = vsub.s32 %v5280, %v5282
        %v5284 = vrot.slane %v5175, %v5283
        %v5286 = vunpack.c.l.s4 1966171168
        %v5287 = vunpack.c.0.s8 %v5286
        %v5288 = vlaneseq
        %v5289 = vshrl.u32 %v5288, 7
        %v5290 = vsub.s32 %v5287, %v5289
        %v5291 = vrot.slane %v5277, %v5290
        %v5292 = vcombine.high %v5284, %v5284
        %v5293 = vcombine.high %v5291, %v5291
        %v5295 = vunpack.c.l.s4 1966171168
        %v5296 = vunpack.c.0.s8 %v5295
        %v5297 = vlaneseq
        %v5298 = vshrl.u32 %v5297, 7
        %v5299 = vsub.s32 %v5296, %v5298
        %v5300 = vrot.slane %v5284, %v5299
        %v5302 = vunpack.c.l.s4 1966171168
        %v5303 = vunpack.c.0.s8 %v5302
        %v5304 = vlaneseq
        %v5305 = vshrl.u32 %v5304, 7
        %v5306 = vsub.s32 %v5303, %v5305
        %v5307 = vrot.slane %v5291, %v5306
        %v5309 = vunpack.c.l.s4 1966171168
        %v5310 = vunpack.c.0.s8 %v5309
        %v5311 = vlaneseq
        %v5312 = vshrl.u32 %v5311, 7
        %v5313 = vsub.s32 %v5310, %v5312
        %v5314 = vrot.slane %v5292, %v5313
        %v5316 = vunpack.c.l.s4 1966171168
        %v5317 = vunpack.c.0.s8 %v5316
        %v5318 = vlaneseq
        %v5319 = vshrl.u32 %v5318, 7
        %v5320 = vsub.s32 %v5317, %v5319
        %v5321 = vrot.slane %v5293, %v5320
        %v5322 = vcombine.high %v5300, %v5300
        %v5323 = vcombine.high %v5307, %v5307
        %v5324 = vcombine.high %v5314, %v5314
        %v5325 = vcombine.high %v5321, %v5321
        %v5326 = vlaneseq
        %v5327 = vshrl.u32 %v5326, 7
        %v5328 = vsub.s32 0, %v5327
        %v5329 = vrot.slane %v5202, %v5328
        %v5330 = vlaneseq
        %v5331 = vshrl.u32 %v5330, 7
        %v5332 = vsub.s32 0, %v5331
        %v5333 = vrot.slane %v5216, %v5332
        %v5334 = vlaneseq
        %v5335 = vshrl.u32 %v5334, 7
        %v5336 = vsub.s32 0, %v5335
        %v5337 = vrot.slane %v5224, %v5336
        %v5338 = vlaneseq
        %v5339 = vshrl.u32 %v5338, 7
        %v5340 = vsub.s32 0, %v5339
        %v5341 = vrot.slane %v5226, %v5340
        %v5342 = vlaneseq
        %v5343 = vshrl.u32 %v5342, 7
        %v5344 = vsub.s32 0, %v5343
        %v5345 = vrot.slane %v5209, %v5344
        %v5346 = vlaneseq
        %v5347 = vshrl.u32 %v5346, 7
        %v5348 = vsub.s32 0, %v5347
        %v5349 = vrot.slane %v5223, %v5348
        %v5350 = vlaneseq
        %v5351 = vshrl.u32 %v5350, 7
        %v5352 = vsub.s32 0, %v5351
        %v5353 = vrot.slane %v5225, %v5352
        %v5354 = vlaneseq
        %v5355 = vshrl.u32 %v5354, 7
        %v5356 = vsub.s32 0, %v5355
        %v5357 = vrot.slane %v5227, %v5356
        %v5358 = vlaneseq
        %v5359 = vshrl.u32 %v5358, 7
        %v5360 = vsub.s32 0, %v5359
        %v5361 = vrot.slane %v5251, %v5360
        %v5362 = vlaneseq
        %v5363 = vshrl.u32 %v5362, 7
        %v5364 = vsub.s32 0, %v5363
        %v5365 = vrot.slane %v5265, %v5364
        %v5366 = vlaneseq
        %v5367 = vshrl.u32 %v5366, 7
        %v5368 = vsub.s32 0, %v5367
        %v5369 = vrot.slane %v5273, %v5368
        %v5370 = vlaneseq
        %v5371 = vshrl.u32 %v5370, 7
        %v5372 = vsub.s32 0, %v5371
        %v5373 = vrot.slane %v5275, %v5372
        %v5374 = vlaneseq
        %v5375 = vshrl.u32 %v5374, 7
        %v5376 = vsub.s32 0, %v5375
        %v5377 = vrot.slane %v5258, %v5376
        %v5378 = vlaneseq
        %v5379 = vshrl.u32 %v5378, 7
        %v5380 = vsub.s32 0, %v5379
        %v5381 = vrot.slane %v5272, %v5380
        %v5382 = vlaneseq
        %v5383 = vshrl.u32 %v5382, 7
        %v5384 = vsub.s32 0, %v5383
        %v5385 = vrot.slane %v5274, %v5384
        %v5386 = vlaneseq
        %v5387 = vshrl.u32 %v5386, 7
        %v5388 = vsub.s32 0, %v5387
        %v5389 = vrot.slane %v5276, %v5388
        %v5390 = vlaneseq
        %v5391 = vshrl.u32 %v5390, 7
        %v5392 = vsub.s32 0, %v5391
        %v5393 = vrot.slane %v5300, %v5392
        %v5394 = vlaneseq
        %v5395 = vshrl.u32 %v5394, 7
        %v5396 = vsub.s32 0, %v5395
        %v5397 = vrot.slane %v5314, %v5396
        %v5398 = vlaneseq
        %v5399 = vshrl.u32 %v5398, 7
        %v5400 = vsub.s32 0, %v5399
        %v5401 = vrot.slane %v5322, %v5400
        %v5402 = vlaneseq
        %v5403 = vshrl.u32 %v5402, 7
        %v5404 = vsub.s32 0, %v5403
        %v5405 = vrot.slane %v5324, %v5404
        %v5406 = vlaneseq
        %v5407 = vshrl.u32 %v5406, 7
        %v5408 = vsub.s32 0, %v5407
        %v5409 = vrot.slane %v5307, %v5408
        %v5410 = vlaneseq
        %v5411 = vshrl.u32 %v5410, 7
        %v5412 = vsub.s32 0, %v5411
        %v5413 = vrot.slane %v5321, %v5412
        %v5414 = vlaneseq
        %v5415 = vshrl.u32 %v5414, 7
        %v5416 = vsub.s32 0, %v5415
        %v5417 = vrot.slane %v5323, %v5416
        %v5418 = vlaneseq
        %v5419 = vshrl.u32 %v5418, 7
        %v5420 = vsub.s32 0, %v5419
        %v5421 = vrot.slane %v5325, %v5420
        %5422 = vset.pattern.permute.xlu0 5
        %5423 = vperm.xlu0 %5422, %v5329
        %v5424 = vpop.permute.xlu0 %5423
        %5426 = vset.pattern.permute.xlu0 5
        %5427 = vperm.xlu0 %5426, %v5333
        %v5428 = vpop.permute.xlu0 %5427
        %5430 = vset.pattern.permute.xlu0 5
        %5431 = vperm.xlu0 %5430, %v5337
        %v5432 = vpop.permute.xlu0 %5431
        %5434 = vset.pattern.permute.xlu0 5
        %5435 = vperm.xlu0 %5434, %v5341
        %v5436 = vpop.permute.xlu0 %5435
        %5438 = vset.pattern.permute.xlu0 5
        %5439 = vperm.xlu0 %5438, %v5345
        %v5440 = vpop.permute.xlu0 %5439
        %5442 = vset.pattern.permute.xlu0 5
        %5443 = vperm.xlu0 %5442, %v5349
        %v5444 = vpop.permute.xlu0 %5443
        %5446 = vset.pattern.permute.xlu0 5
        %5447 = vperm.xlu0 %5446, %v5353
        %v5448 = vpop.permute.xlu0 %5447
        %5450 = vset.pattern.permute.xlu0 5
        %5451 = vperm.xlu0 %5450, %v5357
        %v5452 = vpop.permute.xlu0 %5451
        %5454 = vset.pattern.permute.xlu0 5
        %5455 = vperm.xlu0 %5454, %v5361
        %v5456 = vpop.permute.xlu0 %5455
        %5458 = vset.pattern.permute.xlu0 5
        %5459 = vperm.xlu0 %5458, %v5365
        %v5460 = vpop.permute.xlu0 %5459
        %5462 = vset.pattern.permute.xlu0 5
        %5463 = vperm.xlu0 %5462, %v5369
        %v5464 = vpop.permute.xlu0 %5463
        %5466 = vset.pattern.permute.xlu0 5
        %5467 = vperm.xlu0 %5466, %v5373
        %v5468 = vpop.permute.xlu0 %5467
        %5470 = vset.pattern.permute.xlu0 5
        %5471 = vperm.xlu0 %5470, %v5377
        %v5472 = vpop.permute.xlu0 %5471
        %5474 = vset.pattern.permute.xlu0 5
        %5475 = vperm.xlu0 %5474, %v5381
        %v5476 = vpop.permute.xlu0 %5475
        %5478 = vset.pattern.permute.xlu0 5
        %5479 = vperm.xlu0 %5478, %v5385
        %v5480 = vpop.permute.xlu0 %5479
        %5482 = vset.pattern.permute.xlu0 5
        %5483 = vperm.xlu0 %5482, %v5389
        %v5484 = vpop.permute.xlu0 %5483
        %5486 = vset.pattern.permute.xlu0 5
        %5487 = vperm.xlu0 %5486, %v5393
        %v5488 = vpop.permute.xlu0 %5487
        %5490 = vset.pattern.permute.xlu0 5
        %5491 = vperm.xlu0 %5490, %v5397
        %v5492 = vpop.permute.xlu0 %5491
        %5494 = vset.pattern.permute.xlu0 5
        %5495 = vperm.xlu0 %5494, %v5401
        %v5496 = vpop.permute.xlu0 %5495
        %5498 = vset.pattern.permute.xlu0 5
        %5499 = vperm.xlu0 %5498, %v5405
        %v5500 = vpop.permute.xlu0 %5499
        %5502 = vset.pattern.permute.xlu0 5
        %5503 = vperm.xlu0 %5502, %v5409
        %v5504 = vpop.permute.xlu0 %5503
        %5506 = vset.pattern.permute.xlu0 5
        %5507 = vperm.xlu0 %5506, %v5413
        %v5508 = vpop.permute.xlu0 %5507
        %5510 = vset.pattern.permute.xlu0 5
        %5511 = vperm.xlu0 %5510, %v5417
        %v5512 = vpop.permute.xlu0 %5511
        %5514 = vset.pattern.permute.xlu0 5
        %5515 = vperm.xlu0 %5514, %v5421
        %v5516 = vpop.permute.xlu0 %5515
        %v5518 = vmul.f32 %v2238, %v5424
        %v5519 = vmul.f32 %v2239, %v5424
        %v5520 = vmul.f32 %v2240, %v5428
        %v5521 = vmul.f32 %v2241, %v5428
        %v5522 = vmul.f32 %v2242, %v5432
        %v5523 = vmul.f32 %v2243, %v5432
        %v5524 = vmul.f32 %v2244, %v5436
        %v5525 = vmul.f32 %v2245, %v5436
        %v5526 = vmul.f32 %v2246, %v5440
        %v5527 = vmul.f32 %v2247, %v5440
        %v5528 = vmul.f32 %v2248, %v5444
        %v5529 = vmul.f32 %v2249, %v5444
        %v5530 = vmul.f32 %v2250, %v5448
        %v5531 = vmul.f32 %v2251, %v5448
        %v5532 = vmul.f32 %v2252, %v5452
        %v5533 = vmul.f32 %v2253, %v5452
        %v5534 = vmul.f32 %v2254, %v5456
        %v5535 = vmul.f32 %v2255, %v5456
        %v5536 = vmul.f32 %v2256, %v5460
        %v5537 = vmul.f32 %v2257, %v5460
        %v5538 = vmul.f32 %v2258, %v5464
        %v5539 = vmul.f32 %v2259, %v5464
        %v5540 = vmul.f32 %v2260, %v5468
        %v5541 = vmul.f32 %v2261, %v5468
        %v5542 = vmul.f32 %v2262, %v5472
        %v5543 = vmul.f32 %v2263, %v5472
        %v5544 = vmul.f32 %v2264, %v5476
        %v5545 = vmul.f32 %v2265, %v5476
        %v5546 = vmul.f32 %v2266, %v5480
        %v5547 = vmul.f32 %v2267, %v5480
        %v5548 = vmul.f32 %v2268, %v5484
        %v5549 = vmul.f32 %v2269, %v5484
        %v5550 = vmul.f32 %v2270, %v5488
        %v5551 = vmul.f32 %v2271, %v5488
        %v5552 = vmul.f32 %v2272, %v5492
        %v5553 = vmul.f32 %v2273, %v5492
        %v5554 = vmul.f32 %v2274, %v5496
        %v5555 = vmul.f32 %v2275, %v5496
        %v5556 = vmul.f32 %v2276, %v5500
        %v5557 = vmul.f32 %v2277, %v5500
        %v5558 = vmul.f32 %v2278, %v5504
        %v5559 = vmul.f32 %v2279, %v5504
        %v5560 = vmul.f32 %v2280, %v5508
        %v5561 = vmul.f32 %v2281, %v5508
        %v5562 = vmul.f32 %v2282, %v5512
        %v5563 = vmul.f32 %v2283, %v5512
        %v5564 = vmul.f32 %v2284, %v5516
        %v5565 = vmul.f32 %v2285, %v5516
        %v5614 = vrot.slane %v5518, 1
        %v5615 = vrot.slane %v5519, 1
        %v5616 = vsel %vm4443, %v5614, %v5615
        %v5617 = vrot.slane %v5520, 1
        %v5618 = vrot.slane %v5521, 1
        %v5619 = vsel %vm4443, %v5617, %v5618
        %v5620 = vrot.slane %v5522, 1
        %v5621 = vrot.slane %v5523, 1
        %v5622 = vsel %vm4443, %v5620, %v5621
        %v5623 = vrot.slane %v5524, 1
        %v5624 = vrot.slane %v5525, 1
        %v5625 = vsel %vm4443, %v5623, %v5624
        %v5626 = vrot.slane %v5526, 1
        %v5627 = vrot.slane %v5527, 1
        %v5628 = vsel %vm4443, %v5626, %v5627
        %v5629 = vrot.slane %v5528, 1
        %v5630 = vrot.slane %v5529, 1
        %v5631 = vsel %vm4443, %v5629, %v5630
        %v5632 = vrot.slane %v5530, 1
        %v5633 = vrot.slane %v5531, 1
        %v5634 = vsel %vm4443, %v5632, %v5633
        %v5635 = vrot.slane %v5532, 1
        %v5636 = vrot.slane %v5533, 1
        %v5637 = vsel %vm4443, %v5635, %v5636
        %v5638 = vrot.slane %v5534, 1
        %v5639 = vrot.slane %v5535, 1
        %v5640 = vsel %vm4443, %v5638, %v5639
        %v5641 = vrot.slane %v5536, 1
        %v5642 = vrot.slane %v5537, 1
        %v5643 = vsel %vm4443, %v5641, %v5642
        %v5644 = vrot.slane %v5538, 1
        %v5645 = vrot.slane %v5539, 1
        %v5646 = vsel %vm4443, %v5644, %v5645
        %v5647 = vrot.slane %v5540, 1
        %v5648 = vrot.slane %v5541, 1
        %v5649 = vsel %vm4443, %v5647, %v5648
        %v5650 = vrot.slane %v5542, 1
        %v5651 = vrot.slane %v5543, 1
        %v5652 = vsel %vm4443, %v5650, %v5651
        %v5653 = vrot.slane %v5544, 1
        %v5654 = vrot.slane %v5545, 1
        %v5655 = vsel %vm4443, %v5653, %v5654
        %v5656 = vrot.slane %v5546, 1
        %v5657 = vrot.slane %v5547, 1
        %v5658 = vsel %vm4443, %v5656, %v5657
        %v5659 = vrot.slane %v5548, 1
        %v5660 = vrot.slane %v5549, 1
        %v5661 = vsel %vm4443, %v5659, %v5660
        %v5662 = vrot.slane %v5550, 1
        %v5663 = vrot.slane %v5551, 1
        %v5664 = vsel %vm4443, %v5662, %v5663
        %v5665 = vrot.slane %v5552, 1
        %v5666 = vrot.slane %v5553, 1
        %v5667 = vsel %vm4443, %v5665, %v5666
        %v5668 = vrot.slane %v5554, 1
        %v5669 = vrot.slane %v5555, 1
        %v5670 = vsel %vm4443, %v5668, %v5669
        %v5671 = vrot.slane %v5556, 1
        %v5672 = vrot.slane %v5557, 1
        %v5673 = vsel %vm4443, %v5671, %v5672
        %v5674 = vrot.slane %v5558, 1
        %v5675 = vrot.slane %v5559, 1
        %v5676 = vsel %vm4443, %v5674, %v5675
        %v5677 = vrot.slane %v5560, 1
        %v5678 = vrot.slane %v5561, 1
        %v5679 = vsel %vm4443, %v5677, %v5678
        %v5680 = vrot.slane %v5562, 1
        %v5681 = vrot.slane %v5563, 1
        %v5682 = vsel %vm4443, %v5680, %v5681
        %v5683 = vrot.slane %v5564, 1
        %v5684 = vrot.slane %v5565, 1
        %v5685 = vsel %vm4443, %v5683, %v5684
        %5686 = vrot.lane.b32.xlu0 %v5616, 126
        %v5687 = vpop.permute.xlu0 %5686
        %5688 = vrot.lane.b32.xlu0 %v5619, 126
        %v5689 = vpop.permute.xlu0 %5688
        %5690 = vrot.lane.b32.xlu0 %v5622, 126
        %v5691 = vpop.permute.xlu0 %5690
        %5692 = vrot.lane.b32.xlu0 %v5625, 126
        %v5693 = vpop.permute.xlu0 %5692
        %5694 = vrot.lane.b32.xlu0 %v5628, 126
        %v5695 = vpop.permute.xlu0 %5694
        %5696 = vrot.lane.b32.xlu0 %v5631, 126
        %v5697 = vpop.permute.xlu0 %5696
        %5698 = vrot.lane.b32.xlu0 %v5634, 126
        %v5699 = vpop.permute.xlu0 %5698
        %5700 = vrot.lane.b32.xlu0 %v5637, 126
        %v5701 = vpop.permute.xlu0 %5700
        %5702 = vrot.lane.b32.xlu0 %v5640, 126
        %v5703 = vpop.permute.xlu0 %5702
        %5704 = vrot.lane.b32.xlu0 %v5643, 126
        %v5705 = vpop.permute.xlu0 %5704
        %5706 = vrot.lane.b32.xlu0 %v5646, 126
        %v5707 = vpop.permute.xlu0 %5706
        %5708 = vrot.lane.b32.xlu0 %v5649, 126
        %v5709 = vpop.permute.xlu0 %5708
        %5710 = vrot.lane.b32.xlu0 %v5652, 126
        %v5711 = vpop.permute.xlu0 %5710
        %5712 = vrot.lane.b32.xlu0 %v5655, 126
        %v5713 = vpop.permute.xlu0 %5712
        %5714 = vrot.lane.b32.xlu0 %v5658, 126
        %v5715 = vpop.permute.xlu0 %5714
        %5716 = vrot.lane.b32.xlu0 %v5661, 126
        %v5717 = vpop.permute.xlu0 %5716
        %5718 = vrot.lane.b32.xlu0 %v5664, 126
        %v5719 = vpop.permute.xlu0 %5718
        %5720 = vrot.lane.b32.xlu0 %v5667, 126
        %v5721 = vpop.permute.xlu0 %5720
        %5722 = vrot.lane.b32.xlu0 %v5670, 126
        %v5723 = vpop.permute.xlu0 %5722
        %5724 = vrot.lane.b32.xlu0 %v5673, 126
        %v5725 = vpop.permute.xlu0 %5724
        %5726 = vrot.lane.b32.xlu0 %v5676, 126
        %v5727 = vpop.permute.xlu0 %5726
        %5728 = vrot.lane.b32.xlu0 %v5679, 126
        %v5729 = vpop.permute.xlu0 %5728
        %5730 = vrot.lane.b32.xlu0 %v5682, 126
        %v5731 = vpop.permute.xlu0 %5730
        %5732 = vrot.lane.b32.xlu0 %v5685, 126
        %v5733 = vpop.permute.xlu0 %5732
        %v5758 = vadd.f32 %v5149, %v5687
        %v5759 = vadd.f32 %v5150, %v5689
        %v5760 = vadd.f32 %v5151, %v5691
        %v5761 = vadd.f32 %v5152, %v5693
        %v5762 = vadd.f32 %v5153, %v5695
        %v5763 = vadd.f32 %v5154, %v5697
        %v5764 = vadd.f32 %v5155, %v5699
        %v5765 = vadd.f32 %v5156, %v5701
        %v5766 = vadd.f32 %v5157, %v5703
        %v5767 = vadd.f32 %v5158, %v5705
        %v5768 = vadd.f32 %v5159, %v5707
        %v5769 = vadd.f32 %v5160, %v5709
        %v5770 = vadd.f32 %v5161, %v5711
        %v5771 = vadd.f32 %v5162, %v5713
        %v5772 = vadd.f32 %v5163, %v5715
        %v5773 = vadd.f32 %v5164, %v5717
        %v5774 = vadd.f32 %v5165, %v5719
        %v5775 = vadd.f32 %v5166, %v5721
        %v5776 = vadd.f32 %v5167, %v5723
        %v5777 = vadd.f32 %v5168, %v5725
        %v5778 = vadd.f32 %v5169, %v5727
        %v5779 = vadd.f32 %v5170, %v5729
        %v5780 = vadd.f32 %v5171, %v5731
        %v5781 = vadd.f32 %v5172, %v5733
        %v5782 = vld [vmem:[%s5] sm:$0xff]
        %v5783 = vld [vmem:[%s5 + $0x8] sm:$0xff]
        %v5784 = vld [vmem:[%s5 + $0x10] sm:$0xff]
        %v5788 = vcombine.high %v5782, %v5782
        %v5790 = vunpack.c.l.s4 1966171168
        %v5791 = vunpack.c.0.s8 %v5790
        %v5792 = vlaneseq
        %v5793 = vshrl.u32 %v5792, 7
        %v5794 = vsub.s32 %v5791, %v5793
        %v5795 = vrot.slane %v5782, %v5794
        %v5797 = vunpack.c.l.s4 1966171168
        %v5798 = vunpack.c.0.s8 %v5797
        %v5799 = vlaneseq
        %v5800 = vshrl.u32 %v5799, 7
        %v5801 = vsub.s32 %v5798, %v5800
        %v5802 = vrot.slane %v5788, %v5801
        %v5803 = vcombine.high %v5795, %v5795
        %v5804 = vcombine.high %v5802, %v5802
        %v5806 = vunpack.c.l.s4 1966171168
        %v5807 = vunpack.c.0.s8 %v5806
        %v5808 = vlaneseq
        %v5809 = vshrl.u32 %v5808, 7
        %v5810 = vsub.s32 %v5807, %v5809
        %v5811 = vrot.slane %v5795, %v5810
        %v5813 = vunpack.c.l.s4 1966171168
        %v5814 = vunpack.c.0.s8 %v5813
        %v5815 = vlaneseq
        %v5816 = vshrl.u32 %v5815, 7
        %v5817 = vsub.s32 %v5814, %v5816
        %v5818 = vrot.slane %v5802, %v5817
        %v5820 = vunpack.c.l.s4 1966171168
        %v5821 = vunpack.c.0.s8 %v5820
        %v5822 = vlaneseq
        %v5823 = vshrl.u32 %v5822, 7
        %v5824 = vsub.s32 %v5821, %v5823
        %v5825 = vrot.slane %v5803, %v5824
        %v5827 = vunpack.c.l.s4 1966171168
        %v5828 = vunpack.c.0.s8 %v5827
        %v5829 = vlaneseq
        %v5830 = vshrl.u32 %v5829, 7
        %v5831 = vsub.s32 %v5828, %v5830
        %v5832 = vrot.slane %v5804, %v5831
        %v5833 = vcombine.high %v5811, %v5811
        %v5834 = vcombine.high %v5818, %v5818
        %v5835 = vcombine.high %v5825, %v5825
        %v5836 = vcombine.high %v5832, %v5832
        %v5837 = vcombine.high %v5783, %v5783
        %v5839 = vunpack.c.l.s4 1966171168
        %v5840 = vunpack.c.0.s8 %v5839
        %v5841 = vlaneseq
        %v5842 = vshrl.u32 %v5841, 7
        %v5843 = vsub.s32 %v5840, %v5842
        %v5844 = vrot.slane %v5783, %v5843
        %v5846 = vunpack.c.l.s4 1966171168
        %v5847 = vunpack.c.0.s8 %v5846
        %v5848 = vlaneseq
        %v5849 = vshrl.u32 %v5848, 7
        %v5850 = vsub.s32 %v5847, %v5849
        %v5851 = vrot.slane %v5837, %v5850
        %v5852 = vcombine.high %v5844, %v5844
        %v5853 = vcombine.high %v5851, %v5851
        %v5855 = vunpack.c.l.s4 1966171168
        %v5856 = vunpack.c.0.s8 %v5855
        %v5857 = vlaneseq
        %v5858 = vshrl.u32 %v5857, 7
        %v5859 = vsub.s32 %v5856, %v5858
        %v5860 = vrot.slane %v5844, %v5859
        %v5862 = vunpack.c.l.s4 1966171168
        %v5863 = vunpack.c.0.s8 %v5862
        %v5864 = vlaneseq
        %v5865 = vshrl.u32 %v5864, 7
        %v5866 = vsub.s32 %v5863, %v5865
        %v5867 = vrot.slane %v5851, %v5866
        %v5869 = vunpack.c.l.s4 1966171168
        %v5870 = vunpack.c.0.s8 %v5869
        %v5871 = vlaneseq
        %v5872 = vshrl.u32 %v5871, 7
        %v5873 = vsub.s32 %v5870, %v5872
        %v5874 = vrot.slane %v5852, %v5873
        %v5876 = vunpack.c.l.s4 1966171168
        %v5877 = vunpack.c.0.s8 %v5876
        %v5878 = vlaneseq
        %v5879 = vshrl.u32 %v5878, 7
        %v5880 = vsub.s32 %v5877, %v5879
        %v5881 = vrot.slane %v5853, %v5880
        %v5882 = vcombine.high %v5860, %v5860
        %v5883 = vcombine.high %v5867, %v5867
        %v5884 = vcombine.high %v5874, %v5874
        %v5885 = vcombine.high %v5881, %v5881
        %v5886 = vcombine.high %v5784, %v5784
        %v5888 = vunpack.c.l.s4 1966171168
        %v5889 = vunpack.c.0.s8 %v5888
        %v5890 = vlaneseq
        %v5891 = vshrl.u32 %v5890, 7
        %v5892 = vsub.s32 %v5889, %v5891
        %v5893 = vrot.slane %v5784, %v5892
        %v5895 = vunpack.c.l.s4 1966171168
        %v5896 = vunpack.c.0.s8 %v5895
        %v5897 = vlaneseq
        %v5898 = vshrl.u32 %v5897, 7
        %v5899 = vsub.s32 %v5896, %v5898
        %v5900 = vrot.slane %v5886, %v5899
        %v5901 = vcombine.high %v5893, %v5893
        %v5902 = vcombine.high %v5900, %v5900
        %v5904 = vunpack.c.l.s4 1966171168
        %v5905 = vunpack.c.0.s8 %v5904
        %v5906 = vlaneseq
        %v5907 = vshrl.u32 %v5906, 7
        %v5908 = vsub.s32 %v5905, %v5907
        %v5909 = vrot.slane %v5893, %v5908
        %v5911 = vunpack.c.l.s4 1966171168
        %v5912 = vunpack.c.0.s8 %v5911
        %v5913 = vlaneseq
        %v5914 = vshrl.u32 %v5913, 7
        %v5915 = vsub.s32 %v5912, %v5914
        %v5916 = vrot.slane %v5900, %v5915
        %v5918 = vunpack.c.l.s4 1966171168
        %v5919 = vunpack.c.0.s8 %v5918
        %v5920 = vlaneseq
        %v5921 = vshrl.u32 %v5920, 7
        %v5922 = vsub.s32 %v5919, %v5921
        %v5923 = vrot.slane %v5901, %v5922
        %v5925 = vunpack.c.l.s4 1966171168
        %v5926 = vunpack.c.0.s8 %v5925
        %v5927 = vlaneseq
        %v5928 = vshrl.u32 %v5927, 7
        %v5929 = vsub.s32 %v5926, %v5928
        %v5930 = vrot.slane %v5902, %v5929
        %v5931 = vcombine.high %v5909, %v5909
        %v5932 = vcombine.high %v5916, %v5916
        %v5933 = vcombine.high %v5923, %v5923
        %v5934 = vcombine.high %v5930, %v5930
        %v5935 = vlaneseq
        %v5936 = vshrl.u32 %v5935, 7
        %v5937 = vsub.s32 0, %v5936
        %v5938 = vrot.slane %v5811, %v5937
        %v5939 = vlaneseq
        %v5940 = vshrl.u32 %v5939, 7
        %v5941 = vsub.s32 0, %v5940
        %v5942 = vrot.slane %v5825, %v5941
        %v5943 = vlaneseq
        %v5944 = vshrl.u32 %v5943, 7
        %v5945 = vsub.s32 0, %v5944
        %v5946 = vrot.slane %v5833, %v5945
        %v5947 = vlaneseq
        %v5948 = vshrl.u32 %v5947, 7
        %v5949 = vsub.s32 0, %v5948
        %v5950 = vrot.slane %v5835, %v5949
        %v5951 = vlaneseq
        %v5952 = vshrl.u32 %v5951, 7
        %v5953 = vsub.s32 0, %v5952
        %v5954 = vrot.slane %v5818, %v5953
        %v5955 = vlaneseq
        %v5956 = vshrl.u32 %v5955, 7
        %v5957 = vsub.s32 0, %v5956
        %v5958 = vrot.slane %v5832, %v5957
        %v5959 = vlaneseq
        %v5960 = vshrl.u32 %v5959, 7
        %v5961 = vsub.s32 0, %v5960
        %v5962 = vrot.slane %v5834, %v5961
        %v5963 = vlaneseq
        %v5964 = vshrl.u32 %v5963, 7
        %v5965 = vsub.s32 0, %v5964
        %v5966 = vrot.slane %v5836, %v5965
        %v5967 = vlaneseq
        %v5968 = vshrl.u32 %v5967, 7
        %v5969 = vsub.s32 0, %v5968
        %v5970 = vrot.slane %v5860, %v5969
        %v5971 = vlaneseq
        %v5972 = vshrl.u32 %v5971, 7
        %v5973 = vsub.s32 0, %v5972
        %v5974 = vrot.slane %v5874, %v5973
        %v5975 = vlaneseq
        %v5976 = vshrl.u32 %v5975, 7
        %v5977 = vsub.s32 0, %v5976
        %v5978 = vrot.slane %v5882, %v5977
        %v5979 = vlaneseq
        %v5980 = vshrl.u32 %v5979, 7
        %v5981 = vsub.s32 0, %v5980
        %v5982 = vrot.slane %v5884, %v5981
        %v5983 = vlaneseq
        %v5984 = vshrl.u32 %v5983, 7
        %v5985 = vsub.s32 0, %v5984
        %v5986 = vrot.slane %v5867, %v5985
        %v5987 = vlaneseq
        %v5988 = vshrl.u32 %v5987, 7
        %v5989 = vsub.s32 0, %v5988
        %v5990 = vrot.slane %v5881, %v5989
        %v5991 = vlaneseq
        %v5992 = vshrl.u32 %v5991, 7
        %v5993 = vsub.s32 0, %v5992
        %v5994 = vrot.slane %v5883, %v5993
        %v5995 = vlaneseq
        %v5996 = vshrl.u32 %v5995, 7
        %v5997 = vsub.s32 0, %v5996
        %v5998 = vrot.slane %v5885, %v5997
        %v5999 = vlaneseq
        %v6000 = vshrl.u32 %v5999, 7
        %v6001 = vsub.s32 0, %v6000
        %v6002 = vrot.slane %v5909, %v6001
        %v6003 = vlaneseq
        %v6004 = vshrl.u32 %v6003, 7
        %v6005 = vsub.s32 0, %v6004
        %v6006 = vrot.slane %v5923, %v6005
        %v6007 = vlaneseq
        %v6008 = vshrl.u32 %v6007, 7
        %v6009 = vsub.s32 0, %v6008
        %v6010 = vrot.slane %v5931, %v6009
        %v6011 = vlaneseq
        %v6012 = vshrl.u32 %v6011, 7
        %v6013 = vsub.s32 0, %v6012
        %v6014 = vrot.slane %v5933, %v6013
        %v6015 = vlaneseq
        %v6016 = vshrl.u32 %v6015, 7
        %v6017 = vsub.s32 0, %v6016
        %v6018 = vrot.slane %v5916, %v6017
        %v6019 = vlaneseq
        %v6020 = vshrl.u32 %v6019, 7
        %v6021 = vsub.s32 0, %v6020
        %v6022 = vrot.slane %v5930, %v6021
        %v6023 = vlaneseq
        %v6024 = vshrl.u32 %v6023, 7
        %v6025 = vsub.s32 0, %v6024
        %v6026 = vrot.slane %v5932, %v6025
        %v6027 = vlaneseq
        %v6028 = vshrl.u32 %v6027, 7
        %v6029 = vsub.s32 0, %v6028
        %v6030 = vrot.slane %v5934, %v6029
        %6031 = vset.pattern.permute.xlu0 6
        %6032 = vperm.xlu0 %6031, %v5938
        %v6033 = vpop.permute.xlu0 %6032
        %6035 = vset.pattern.permute.xlu0 6
        %6036 = vperm.xlu0 %6035, %v5942
        %v6037 = vpop.permute.xlu0 %6036
        %6039 = vset.pattern.permute.xlu0 6
        %6040 = vperm.xlu0 %6039, %v5946
        %v6041 = vpop.permute.xlu0 %6040
        %6043 = vset.pattern.permute.xlu0 6
        %6044 = vperm.xlu0 %6043, %v5950
        %v6045 = vpop.permute.xlu0 %6044
        %6047 = vset.pattern.permute.xlu0 6
        %6048 = vperm.xlu0 %6047, %v5954
        %v6049 = vpop.permute.xlu0 %6048
        %6051 = vset.pattern.permute.xlu0 6
        %6052 = vperm.xlu0 %6051, %v5958
        %v6053 = vpop.permute.xlu0 %6052
        %6055 = vset.pattern.permute.xlu0 6
        %6056 = vperm.xlu0 %6055, %v5962
        %v6057 = vpop.permute.xlu0 %6056
        %6059 = vset.pattern.permute.xlu0 6
        %6060 = vperm.xlu0 %6059, %v5966
        %v6061 = vpop.permute.xlu0 %6060
        %6063 = vset.pattern.permute.xlu0 6
        %6064 = vperm.xlu0 %6063, %v5970
        %v6065 = vpop.permute.xlu0 %6064
        %6067 = vset.pattern.permute.xlu0 6
        %6068 = vperm.xlu0 %6067, %v5974
        %v6069 = vpop.permute.xlu0 %6068
        %6071 = vset.pattern.permute.xlu0 6
        %6072 = vperm.xlu0 %6071, %v5978
        %v6073 = vpop.permute.xlu0 %6072
        %6075 = vset.pattern.permute.xlu0 6
        %6076 = vperm.xlu0 %6075, %v5982
        %v6077 = vpop.permute.xlu0 %6076
        %6079 = vset.pattern.permute.xlu0 6
        %6080 = vperm.xlu0 %6079, %v5986
        %v6081 = vpop.permute.xlu0 %6080
        %6083 = vset.pattern.permute.xlu0 6
        %6084 = vperm.xlu0 %6083, %v5990
        %v6085 = vpop.permute.xlu0 %6084
        %6087 = vset.pattern.permute.xlu0 6
        %6088 = vperm.xlu0 %6087, %v5994
        %v6089 = vpop.permute.xlu0 %6088
        %6091 = vset.pattern.permute.xlu0 6
        %6092 = vperm.xlu0 %6091, %v5998
        %v6093 = vpop.permute.xlu0 %6092
        %6095 = vset.pattern.permute.xlu0 6
        %6096 = vperm.xlu0 %6095, %v6002
        %v6097 = vpop.permute.xlu0 %6096
        %6099 = vset.pattern.permute.xlu0 6
        %6100 = vperm.xlu0 %6099, %v6006
        %v6101 = vpop.permute.xlu0 %6100
        %6103 = vset.pattern.permute.xlu0 6
        %6104 = vperm.xlu0 %6103, %v6010
        %v6105 = vpop.permute.xlu0 %6104
        %6107 = vset.pattern.permute.xlu0 6
        %6108 = vperm.xlu0 %6107, %v6014
        %v6109 = vpop.permute.xlu0 %6108
        %6111 = vset.pattern.permute.xlu0 6
        %6112 = vperm.xlu0 %6111, %v6018
        %v6113 = vpop.permute.xlu0 %6112
        %6115 = vset.pattern.permute.xlu0 6
        %6116 = vperm.xlu0 %6115, %v6022
        %v6117 = vpop.permute.xlu0 %6116
        %6119 = vset.pattern.permute.xlu0 6
        %6120 = vperm.xlu0 %6119, %v6026
        %v6121 = vpop.permute.xlu0 %6120
        %6123 = vset.pattern.permute.xlu0 6
        %6124 = vperm.xlu0 %6123, %v6030
        %v6125 = vpop.permute.xlu0 %6124
        %v6127 = vmul.f32 %v2238, %v6033
        %v6128 = vmul.f32 %v2239, %v6033
        %v6129 = vmul.f32 %v2240, %v6037
        %v6130 = vmul.f32 %v2241, %v6037
        %v6131 = vmul.f32 %v2242, %v6041
        %v6132 = vmul.f32 %v2243, %v6041
        %v6133 = vmul.f32 %v2244, %v6045
        %v6134 = vmul.f32 %v2245, %v6045
        %v6135 = vmul.f32 %v2246, %v6049
        %v6136 = vmul.f32 %v2247, %v6049
        %v6137 = vmul.f32 %v2248, %v6053
        %v6138 = vmul.f32 %v2249, %v6053
        %v6139 = vmul.f32 %v2250, %v6057
        %v6140 = vmul.f32 %v2251, %v6057
        %v6141 = vmul.f32 %v2252, %v6061
        %v6142 = vmul.f32 %v2253, %v6061
        %v6143 = vmul.f32 %v2254, %v6065
        %v6144 = vmul.f32 %v2255, %v6065
        %v6145 = vmul.f32 %v2256, %v6069
        %v6146 = vmul.f32 %v2257, %v6069
        %v6147 = vmul.f32 %v2258, %v6073
        %v6148 = vmul.f32 %v2259, %v6073
        %v6149 = vmul.f32 %v2260, %v6077
        %v6150 = vmul.f32 %v2261, %v6077
        %v6151 = vmul.f32 %v2262, %v6081
        %v6152 = vmul.f32 %v2263, %v6081
        %v6153 = vmul.f32 %v2264, %v6085
        %v6154 = vmul.f32 %v2265, %v6085
        %v6155 = vmul.f32 %v2266, %v6089
        %v6156 = vmul.f32 %v2267, %v6089
        %v6157 = vmul.f32 %v2268, %v6093
        %v6158 = vmul.f32 %v2269, %v6093
        %v6159 = vmul.f32 %v2270, %v6097
        %v6160 = vmul.f32 %v2271, %v6097
        %v6161 = vmul.f32 %v2272, %v6101
        %v6162 = vmul.f32 %v2273, %v6101
        %v6163 = vmul.f32 %v2274, %v6105
        %v6164 = vmul.f32 %v2275, %v6105
        %v6165 = vmul.f32 %v2276, %v6109
        %v6166 = vmul.f32 %v2277, %v6109
        %v6167 = vmul.f32 %v2278, %v6113
        %v6168 = vmul.f32 %v2279, %v6113
        %v6169 = vmul.f32 %v2280, %v6117
        %v6170 = vmul.f32 %v2281, %v6117
        %v6171 = vmul.f32 %v2282, %v6121
        %v6172 = vmul.f32 %v2283, %v6121
        %v6173 = vmul.f32 %v2284, %v6125
        %v6174 = vmul.f32 %v2285, %v6125
        %vm6223 = vcmask 1045504
        %v6224 = vrot.slane %v6127, 2
        %v6225 = vrot.slane %v6128, 2
        %v6226 = vsel %vm6223, %v6224, %v6225
        %v6227 = vrot.slane %v6129, 2
        %v6228 = vrot.slane %v6130, 2
        %v6229 = vsel %vm6223, %v6227, %v6228
        %v6230 = vrot.slane %v6131, 2
        %v6231 = vrot.slane %v6132, 2
        %v6232 = vsel %vm6223, %v6230, %v6231
        %v6233 = vrot.slane %v6133, 2
        %v6234 = vrot.slane %v6134, 2
        %v6235 = vsel %vm6223, %v6233, %v6234
        %v6236 = vrot.slane %v6135, 2
        %v6237 = vrot.slane %v6136, 2
        %v6238 = vsel %vm6223, %v6236, %v6237
        %v6239 = vrot.slane %v6137, 2
        %v6240 = vrot.slane %v6138, 2
        %v6241 = vsel %vm6223, %v6239, %v6240
        %v6242 = vrot.slane %v6139, 2
        %v6243 = vrot.slane %v6140, 2
        %v6244 = vsel %vm6223, %v6242, %v6243
        %v6245 = vrot.slane %v6141, 2
        %v6246 = vrot.slane %v6142, 2
        %v6247 = vsel %vm6223, %v6245, %v6246
        %v6248 = vrot.slane %v6143, 2
        %v6249 = vrot.slane %v6144, 2
        %v6250 = vsel %vm6223, %v6248, %v6249
        %v6251 = vrot.slane %v6145, 2
        %v6252 = vrot.slane %v6146, 2
        %v6253 = vsel %vm6223, %v6251, %v6252
        %v6254 = vrot.slane %v6147, 2
        %v6255 = vrot.slane %v6148, 2
        %v6256 = vsel %vm6223, %v6254, %v6255
        %v6257 = vrot.slane %v6149, 2
        %v6258 = vrot.slane %v6150, 2
        %v6259 = vsel %vm6223, %v6257, %v6258
        %v6260 = vrot.slane %v6151, 2
        %v6261 = vrot.slane %v6152, 2
        %v6262 = vsel %vm6223, %v6260, %v6261
        %v6263 = vrot.slane %v6153, 2
        %v6264 = vrot.slane %v6154, 2
        %v6265 = vsel %vm6223, %v6263, %v6264
        %v6266 = vrot.slane %v6155, 2
        %v6267 = vrot.slane %v6156, 2
        %v6268 = vsel %vm6223, %v6266, %v6267
        %v6269 = vrot.slane %v6157, 2
        %v6270 = vrot.slane %v6158, 2
        %v6271 = vsel %vm6223, %v6269, %v6270
        %v6272 = vrot.slane %v6159, 2
        %v6273 = vrot.slane %v6160, 2
        %v6274 = vsel %vm6223, %v6272, %v6273
        %v6275 = vrot.slane %v6161, 2
        %v6276 = vrot.slane %v6162, 2
        %v6277 = vsel %vm6223, %v6275, %v6276
        %v6278 = vrot.slane %v6163, 2
        %v6279 = vrot.slane %v6164, 2
        %v6280 = vsel %vm6223, %v6278, %v6279
        %v6281 = vrot.slane %v6165, 2
        %v6282 = vrot.slane %v6166, 2
        %v6283 = vsel %vm6223, %v6281, %v6282
        %v6284 = vrot.slane %v6167, 2
        %v6285 = vrot.slane %v6168, 2
        %v6286 = vsel %vm6223, %v6284, %v6285
        %v6287 = vrot.slane %v6169, 2
        %v6288 = vrot.slane %v6170, 2
        %v6289 = vsel %vm6223, %v6287, %v6288
        %v6290 = vrot.slane %v6171, 2
        %v6291 = vrot.slane %v6172, 2
        %v6292 = vsel %vm6223, %v6290, %v6291
        %v6293 = vrot.slane %v6173, 2
        %v6294 = vrot.slane %v6174, 2
        %v6295 = vsel %vm6223, %v6293, %v6294
        %v6320 = vadd.f32 %v5758, %v6226
        %v6321 = vadd.f32 %v5759, %v6229
        %v6322 = vadd.f32 %v5760, %v6232
        %v6323 = vadd.f32 %v5761, %v6235
        %v6324 = vadd.f32 %v5762, %v6238
        %v6325 = vadd.f32 %v5763, %v6241
        %v6326 = vadd.f32 %v5764, %v6244
        %v6327 = vadd.f32 %v5765, %v6247
        %v6328 = vadd.f32 %v5766, %v6250
        %v6329 = vadd.f32 %v5767, %v6253
        %v6330 = vadd.f32 %v5768, %v6256
        %v6331 = vadd.f32 %v5769, %v6259
        %v6332 = vadd.f32 %v5770, %v6262
        %v6333 = vadd.f32 %v5771, %v6265
        %v6334 = vadd.f32 %v5772, %v6268
        %v6335 = vadd.f32 %v5773, %v6271
        %v6336 = vadd.f32 %v5774, %v6274
        %v6337 = vadd.f32 %v5775, %v6277
        %v6338 = vadd.f32 %v5776, %v6280
        %v6339 = vadd.f32 %v5777, %v6283
        %v6340 = vadd.f32 %v5778, %v6286
        %v6341 = vadd.f32 %v5779, %v6289
        %v6342 = vadd.f32 %v5780, %v6292
        %v6343 = vadd.f32 %v5781, %v6295
        %v6344 = vld [vmem:[%s5] sm:$0xff]
        %v6345 = vld [vmem:[%s5 + $0x8] sm:$0xff]
        %v6346 = vld [vmem:[%s5 + $0x10] sm:$0xff]
        %v6350 = vcombine.high %v6344, %v6344
        %v6352 = vunpack.c.l.s4 1966171168
        %v6353 = vunpack.c.0.s8 %v6352
        %v6354 = vlaneseq
        %v6355 = vshrl.u32 %v6354, 7
        %v6356 = vsub.s32 %v6353, %v6355
        %v6357 = vrot.slane %v6344, %v6356
        %v6359 = vunpack.c.l.s4 1966171168
        %v6360 = vunpack.c.0.s8 %v6359
        %v6361 = vlaneseq
        %v6362 = vshrl.u32 %v6361, 7
        %v6363 = vsub.s32 %v6360, %v6362
        %v6364 = vrot.slane %v6350, %v6363
        %v6365 = vcombine.high %v6357, %v6357
        %v6366 = vcombine.high %v6364, %v6364
        %v6368 = vunpack.c.l.s4 1966171168
        %v6369 = vunpack.c.0.s8 %v6368
        %v6370 = vlaneseq
        %v6371 = vshrl.u32 %v6370, 7
        %v6372 = vsub.s32 %v6369, %v6371
        %v6373 = vrot.slane %v6357, %v6372
        %v6375 = vunpack.c.l.s4 1966171168
        %v6376 = vunpack.c.0.s8 %v6375
        %v6377 = vlaneseq
        %v6378 = vshrl.u32 %v6377, 7
        %v6379 = vsub.s32 %v6376, %v6378
        %v6380 = vrot.slane %v6364, %v6379
        %v6382 = vunpack.c.l.s4 1966171168
        %v6383 = vunpack.c.0.s8 %v6382
        %v6384 = vlaneseq
        %v6385 = vshrl.u32 %v6384, 7
        %v6386 = vsub.s32 %v6383, %v6385
        %v6387 = vrot.slane %v6365, %v6386
        %v6389 = vunpack.c.l.s4 1966171168
        %v6390 = vunpack.c.0.s8 %v6389
        %v6391 = vlaneseq
        %v6392 = vshrl.u32 %v6391, 7
        %v6393 = vsub.s32 %v6390, %v6392
        %v6394 = vrot.slane %v6366, %v6393
        %v6395 = vcombine.high %v6373, %v6373
        %v6396 = vcombine.high %v6380, %v6380
        %v6397 = vcombine.high %v6387, %v6387
        %v6398 = vcombine.high %v6394, %v6394
        %v6399 = vcombine.high %v6345, %v6345
        %v6401 = vunpack.c.l.s4 1966171168
        %v6402 = vunpack.c.0.s8 %v6401
        %v6403 = vlaneseq
        %v6404 = vshrl.u32 %v6403, 7
        %v6405 = vsub.s32 %v6402, %v6404
        %v6406 = vrot.slane %v6345, %v6405
        %v6408 = vunpack.c.l.s4 1966171168
        %v6409 = vunpack.c.0.s8 %v6408
        %v6410 = vlaneseq
        %v6411 = vshrl.u32 %v6410, 7
        %v6412 = vsub.s32 %v6409, %v6411
        %v6413 = vrot.slane %v6399, %v6412
        %v6414 = vcombine.high %v6406, %v6406
        %v6415 = vcombine.high %v6413, %v6413
        %v6417 = vunpack.c.l.s4 1966171168
        %v6418 = vunpack.c.0.s8 %v6417
        %v6419 = vlaneseq
        %v6420 = vshrl.u32 %v6419, 7
        %v6421 = vsub.s32 %v6418, %v6420
        %v6422 = vrot.slane %v6406, %v6421
        %v6424 = vunpack.c.l.s4 1966171168
        %v6425 = vunpack.c.0.s8 %v6424
        %v6426 = vlaneseq
        %v6427 = vshrl.u32 %v6426, 7
        %v6428 = vsub.s32 %v6425, %v6427
        %v6429 = vrot.slane %v6413, %v6428
        %v6431 = vunpack.c.l.s4 1966171168
        %v6432 = vunpack.c.0.s8 %v6431
        %v6433 = vlaneseq
        %v6434 = vshrl.u32 %v6433, 7
        %v6435 = vsub.s32 %v6432, %v6434
        %v6436 = vrot.slane %v6414, %v6435
        %v6438 = vunpack.c.l.s4 1966171168
        %v6439 = vunpack.c.0.s8 %v6438
        %v6440 = vlaneseq
        %v6441 = vshrl.u32 %v6440, 7
        %v6442 = vsub.s32 %v6439, %v6441
        %v6443 = vrot.slane %v6415, %v6442
        %v6444 = vcombine.high %v6422, %v6422
        %v6445 = vcombine.high %v6429, %v6429
        %v6446 = vcombine.high %v6436, %v6436
        %v6447 = vcombine.high %v6443, %v6443
        %v6448 = vcombine.high %v6346, %v6346
        %v6450 = vunpack.c.l.s4 1966171168
        %v6451 = vunpack.c.0.s8 %v6450
        %v6452 = vlaneseq
        %v6453 = vshrl.u32 %v6452, 7
        %v6454 = vsub.s32 %v6451, %v6453
        %v6455 = vrot.slane %v6346, %v6454
        %v6457 = vunpack.c.l.s4 1966171168
        %v6458 = vunpack.c.0.s8 %v6457
        %v6459 = vlaneseq
        %v6460 = vshrl.u32 %v6459, 7
        %v6461 = vsub.s32 %v6458, %v6460
        %v6462 = vrot.slane %v6448, %v6461
        %v6463 = vcombine.high %v6455, %v6455
        %v6464 = vcombine.high %v6462, %v6462
        %v6466 = vunpack.c.l.s4 1966171168
        %v6467 = vunpack.c.0.s8 %v6466
        %v6468 = vlaneseq
        %v6469 = vshrl.u32 %v6468, 7
        %v6470 = vsub.s32 %v6467, %v6469
        %v6471 = vrot.slane %v6455, %v6470
        %v6473 = vunpack.c.l.s4 1966171168
        %v6474 = vunpack.c.0.s8 %v6473
        %v6475 = vlaneseq
        %v6476 = vshrl.u32 %v6475, 7
        %v6477 = vsub.s32 %v6474, %v6476
        %v6478 = vrot.slane %v6462, %v6477
        %v6480 = vunpack.c.l.s4 1966171168
        %v6481 = vunpack.c.0.s8 %v6480
        %v6482 = vlaneseq
        %v6483 = vshrl.u32 %v6482, 7
        %v6484 = vsub.s32 %v6481, %v6483
        %v6485 = vrot.slane %v6463, %v6484
        %v6487 = vunpack.c.l.s4 1966171168
        %v6488 = vunpack.c.0.s8 %v6487
        %v6489 = vlaneseq
        %v6490 = vshrl.u32 %v6489, 7
        %v6491 = vsub.s32 %v6488, %v6490
        %v6492 = vrot.slane %v6464, %v6491
        %v6493 = vcombine.high %v6471, %v6471
        %v6494 = vcombine.high %v6478, %v6478
        %v6495 = vcombine.high %v6485, %v6485
        %v6496 = vcombine.high %v6492, %v6492
        %v6497 = vlaneseq
        %v6498 = vshrl.u32 %v6497, 7
        %v6499 = vsub.s32 0, %v6498
        %v6500 = vrot.slane %v6373, %v6499
        %v6501 = vlaneseq
        %v6502 = vshrl.u32 %v6501, 7
        %v6503 = vsub.s32 0, %v6502
        %v6504 = vrot.slane %v6387, %v6503
        %v6505 = vlaneseq
        %v6506 = vshrl.u32 %v6505, 7
        %v6507 = vsub.s32 0, %v6506
        %v6508 = vrot.slane %v6395, %v6507
        %v6509 = vlaneseq
        %v6510 = vshrl.u32 %v6509, 7
        %v6511 = vsub.s32 0, %v6510
        %v6512 = vrot.slane %v6397, %v6511
        %v6513 = vlaneseq
        %v6514 = vshrl.u32 %v6513, 7
        %v6515 = vsub.s32 0, %v6514
        %v6516 = vrot.slane %v6380, %v6515
        %v6517 = vlaneseq
        %v6518 = vshrl.u32 %v6517, 7
        %v6519 = vsub.s32 0, %v6518
        %v6520 = vrot.slane %v6394, %v6519
        %v6521 = vlaneseq
        %v6522 = vshrl.u32 %v6521, 7
        %v6523 = vsub.s32 0, %v6522
        %v6524 = vrot.slane %v6396, %v6523
        %v6525 = vlaneseq
        %v6526 = vshrl.u32 %v6525, 7
        %v6527 = vsub.s32 0, %v6526
        %v6528 = vrot.slane %v6398, %v6527
        %v6529 = vlaneseq
        %v6530 = vshrl.u32 %v6529, 7
        %v6531 = vsub.s32 0, %v6530
        %v6532 = vrot.slane %v6422, %v6531
        %v6533 = vlaneseq
        %v6534 = vshrl.u32 %v6533, 7
        %v6535 = vsub.s32 0, %v6534
        %v6536 = vrot.slane %v6436, %v6535
        %v6537 = vlaneseq
        %v6538 = vshrl.u32 %v6537, 7
        %v6539 = vsub.s32 0, %v6538
        %v6540 = vrot.slane %v6444, %v6539
        %v6541 = vlaneseq
        %v6542 = vshrl.u32 %v6541, 7
        %v6543 = vsub.s32 0, %v6542
        %v6544 = vrot.slane %v6446, %v6543
        %v6545 = vlaneseq
        %v6546 = vshrl.u32 %v6545, 7
        %v6547 = vsub.s32 0, %v6546
        %v6548 = vrot.slane %v6429, %v6547
        %v6549 = vlaneseq
        %v6550 = vshrl.u32 %v6549, 7
        %v6551 = vsub.s32 0, %v6550
        %v6552 = vrot.slane %v6443, %v6551
        %v6553 = vlaneseq
        %v6554 = vshrl.u32 %v6553, 7
        %v6555 = vsub.s32 0, %v6554
        %v6556 = vrot.slane %v6445, %v6555
        %v6557 = vlaneseq
        %v6558 = vshrl.u32 %v6557, 7
        %v6559 = vsub.s32 0, %v6558
        %v6560 = vrot.slane %v6447, %v6559
        %v6561 = vlaneseq
        %v6562 = vshrl.u32 %v6561, 7
        %v6563 = vsub.s32 0, %v6562
        %v6564 = vrot.slane %v6471, %v6563
        %v6565 = vlaneseq
        %v6566 = vshrl.u32 %v6565, 7
        %v6567 = vsub.s32 0, %v6566
        %v6568 = vrot.slane %v6485, %v6567
        %v6569 = vlaneseq
        %v6570 = vshrl.u32 %v6569, 7
        %v6571 = vsub.s32 0, %v6570
        %v6572 = vrot.slane %v6493, %v6571
        %v6573 = vlaneseq
        %v6574 = vshrl.u32 %v6573, 7
        %v6575 = vsub.s32 0, %v6574
        %v6576 = vrot.slane %v6495, %v6575
        %v6577 = vlaneseq
        %v6578 = vshrl.u32 %v6577, 7
        %v6579 = vsub.s32 0, %v6578
        %v6580 = vrot.slane %v6478, %v6579
        %v6581 = vlaneseq
        %v6582 = vshrl.u32 %v6581, 7
        %v6583 = vsub.s32 0, %v6582
        %v6584 = vrot.slane %v6492, %v6583
        %v6585 = vlaneseq
        %v6586 = vshrl.u32 %v6585, 7
        %v6587 = vsub.s32 0, %v6586
        %v6588 = vrot.slane %v6494, %v6587
        %v6589 = vlaneseq
        %v6590 = vshrl.u32 %v6589, 7
        %v6591 = vsub.s32 0, %v6590
        %v6592 = vrot.slane %v6496, %v6591
        %6593 = vset.pattern.permute.xlu0 7
        %6594 = vperm.xlu0 %6593, %v6500
        %v6595 = vpop.permute.xlu0 %6594
        %6597 = vset.pattern.permute.xlu0 7
        %6598 = vperm.xlu0 %6597, %v6504
        %v6599 = vpop.permute.xlu0 %6598
        %6601 = vset.pattern.permute.xlu0 7
        %6602 = vperm.xlu0 %6601, %v6508
        %v6603 = vpop.permute.xlu0 %6602
        %6605 = vset.pattern.permute.xlu0 7
        %6606 = vperm.xlu0 %6605, %v6512
        %v6607 = vpop.permute.xlu0 %6606
        %6609 = vset.pattern.permute.xlu0 7
        %6610 = vperm.xlu0 %6609, %v6516
        %v6611 = vpop.permute.xlu0 %6610
        %6613 = vset.pattern.permute.xlu0 7
        %6614 = vperm.xlu0 %6613, %v6520
        %v6615 = vpop.permute.xlu0 %6614
        %6617 = vset.pattern.permute.xlu0 7
        %6618 = vperm.xlu0 %6617, %v6524
        %v6619 = vpop.permute.xlu0 %6618
        %6621 = vset.pattern.permute.xlu0 7
        %6622 = vperm.xlu0 %6621, %v6528
        %v6623 = vpop.permute.xlu0 %6622
        %6625 = vset.pattern.permute.xlu0 7
        %6626 = vperm.xlu0 %6625, %v6532
        %v6627 = vpop.permute.xlu0 %6626
        %6629 = vset.pattern.permute.xlu0 7
        %6630 = vperm.xlu0 %6629, %v6536
        %v6631 = vpop.permute.xlu0 %6630
        %6633 = vset.pattern.permute.xlu0 7
        %6634 = vperm.xlu0 %6633, %v6540
        %v6635 = vpop.permute.xlu0 %6634
        %6637 = vset.pattern.permute.xlu0 7
        %6638 = vperm.xlu0 %6637, %v6544
        %v6639 = vpop.permute.xlu0 %6638
        %6641 = vset.pattern.permute.xlu0 7
        %6642 = vperm.xlu0 %6641, %v6548
        %v6643 = vpop.permute.xlu0 %6642
        %6645 = vset.pattern.permute.xlu0 7
        %6646 = vperm.xlu0 %6645, %v6552
        %v6647 = vpop.permute.xlu0 %6646
        %6649 = vset.pattern.permute.xlu0 7
        %6650 = vperm.xlu0 %6649, %v6556
        %v6651 = vpop.permute.xlu0 %6650
        %6653 = vset.pattern.permute.xlu0 7
        %6654 = vperm.xlu0 %6653, %v6560
        %v6655 = vpop.permute.xlu0 %6654
        %6657 = vset.pattern.permute.xlu0 7
        %6658 = vperm.xlu0 %6657, %v6564
        %v6659 = vpop.permute.xlu0 %6658
        %6661 = vset.pattern.permute.xlu0 7
        %6662 = vperm.xlu0 %6661, %v6568
        %v6663 = vpop.permute.xlu0 %6662
        %6665 = vset.pattern.permute.xlu0 7
        %6666 = vperm.xlu0 %6665, %v6572
        %v6667 = vpop.permute.xlu0 %6666
        %6669 = vset.pattern.permute.xlu0 7
        %6670 = vperm.xlu0 %6669, %v6576
        %v6671 = vpop.permute.xlu0 %6670
        %6673 = vset.pattern.permute.xlu0 7
        %6674 = vperm.xlu0 %6673, %v6580
        %v6675 = vpop.permute.xlu0 %6674
        %6677 = vset.pattern.permute.xlu0 7
        %6678 = vperm.xlu0 %6677, %v6584
        %v6679 = vpop.permute.xlu0 %6678
        %6681 = vset.pattern.permute.xlu0 7
        %6682 = vperm.xlu0 %6681, %v6588
        %v6683 = vpop.permute.xlu0 %6682
        %6685 = vset.pattern.permute.xlu0 7
        %6686 = vperm.xlu0 %6685, %v6592
        %v6687 = vpop.permute.xlu0 %6686
        %v6689 = vmul.f32 %v2238, %v6595
        %v6690 = vmul.f32 %v2239, %v6595
        %v6691 = vmul.f32 %v2240, %v6599
        %v6692 = vmul.f32 %v2241, %v6599
        %v6693 = vmul.f32 %v2242, %v6603
        %v6694 = vmul.f32 %v2243, %v6603
        %v6695 = vmul.f32 %v2244, %v6607
        %v6696 = vmul.f32 %v2245, %v6607
        %v6697 = vmul.f32 %v2246, %v6611
        %v6698 = vmul.f32 %v2247, %v6611
        %v6699 = vmul.f32 %v2248, %v6615
        %v6700 = vmul.f32 %v2249, %v6615
        %v6701 = vmul.f32 %v2250, %v6619
        %v6702 = vmul.f32 %v2251, %v6619
        %v6703 = vmul.f32 %v2252, %v6623
        %v6704 = vmul.f32 %v2253, %v6623
        %v6705 = vmul.f32 %v2254, %v6627
        %v6706 = vmul.f32 %v2255, %v6627
        %v6707 = vmul.f32 %v2256, %v6631
        %v6708 = vmul.f32 %v2257, %v6631
        %v6709 = vmul.f32 %v2258, %v6635
        %v6710 = vmul.f32 %v2259, %v6635
        %v6711 = vmul.f32 %v2260, %v6639
        %v6712 = vmul.f32 %v2261, %v6639
        %v6713 = vmul.f32 %v2262, %v6643
        %v6714 = vmul.f32 %v2263, %v6643
        %v6715 = vmul.f32 %v2264, %v6647
        %v6716 = vmul.f32 %v2265, %v6647
        %v6717 = vmul.f32 %v2266, %v6651
        %v6718 = vmul.f32 %v2267, %v6651
        %v6719 = vmul.f32 %v2268, %v6655
        %v6720 = vmul.f32 %v2269, %v6655
        %v6721 = vmul.f32 %v2270, %v6659
        %v6722 = vmul.f32 %v2271, %v6659
        %v6723 = vmul.f32 %v2272, %v6663
        %v6724 = vmul.f32 %v2273, %v6663
        %v6725 = vmul.f32 %v2274, %v6667
        %v6726 = vmul.f32 %v2275, %v6667
        %v6727 = vmul.f32 %v2276, %v6671
        %v6728 = vmul.f32 %v2277, %v6671
        %v6729 = vmul.f32 %v2278, %v6675
        %v6730 = vmul.f32 %v2279, %v6675
        %v6731 = vmul.f32 %v2280, %v6679
        %v6732 = vmul.f32 %v2281, %v6679
        %v6733 = vmul.f32 %v2282, %v6683
        %v6734 = vmul.f32 %v2283, %v6683
        %v6735 = vmul.f32 %v2284, %v6687
        %v6736 = vmul.f32 %v2285, %v6687
        %v6785 = vrot.slane %v6689, 2
        %v6786 = vrot.slane %v6690, 2
        %v6787 = vsel %vm6223, %v6785, %v6786
        %v6788 = vrot.slane %v6691, 2
        %v6789 = vrot.slane %v6692, 2
        %v6790 = vsel %vm6223, %v6788, %v6789
        %v6791 = vrot.slane %v6693, 2
        %v6792 = vrot.slane %v6694, 2
        %v6793 = vsel %vm6223, %v6791, %v6792
        %v6794 = vrot.slane %v6695, 2
        %v6795 = vrot.slane %v6696, 2
        %v6796 = vsel %vm6223, %v6794, %v6795
        %v6797 = vrot.slane %v6697, 2
        %v6798 = vrot.slane %v6698, 2
        %v6799 = vsel %vm6223, %v6797, %v6798
        %v6800 = vrot.slane %v6699, 2
        %v6801 = vrot.slane %v6700, 2
        %v6802 = vsel %vm6223, %v6800, %v6801
        %v6803 = vrot.slane %v6701, 2
        %v6804 = vrot.slane %v6702, 2
        %v6805 = vsel %vm6223, %v6803, %v6804
        %v6806 = vrot.slane %v6703, 2
        %v6807 = vrot.slane %v6704, 2
        %v6808 = vsel %vm6223, %v6806, %v6807
        %v6809 = vrot.slane %v6705, 2
        %v6810 = vrot.slane %v6706, 2
        %v6811 = vsel %vm6223, %v6809, %v6810
        %v6812 = vrot.slane %v6707, 2
        %v6813 = vrot.slane %v6708, 2
        %v6814 = vsel %vm6223, %v6812, %v6813
        %v6815 = vrot.slane %v6709, 2
        %v6816 = vrot.slane %v6710, 2
        %v6817 = vsel %vm6223, %v6815, %v6816
        %v6818 = vrot.slane %v6711, 2
        %v6819 = vrot.slane %v6712, 2
        %v6820 = vsel %vm6223, %v6818, %v6819
        %v6821 = vrot.slane %v6713, 2
        %v6822 = vrot.slane %v6714, 2
        %v6823 = vsel %vm6223, %v6821, %v6822
        %v6824 = vrot.slane %v6715, 2
        %v6825 = vrot.slane %v6716, 2
        %v6826 = vsel %vm6223, %v6824, %v6825
        %v6827 = vrot.slane %v6717, 2
        %v6828 = vrot.slane %v6718, 2
        %v6829 = vsel %vm6223, %v6827, %v6828
        %v6830 = vrot.slane %v6719, 2
        %v6831 = vrot.slane %v6720, 2
        %v6832 = vsel %vm6223, %v6830, %v6831
        %v6833 = vrot.slane %v6721, 2
        %v6834 = vrot.slane %v6722, 2
        %v6835 = vsel %vm6223, %v6833, %v6834
        %v6836 = vrot.slane %v6723, 2
        %v6837 = vrot.slane %v6724, 2
        %v6838 = vsel %vm6223, %v6836, %v6837
        %v6839 = vrot.slane %v6725, 2
        %v6840 = vrot.slane %v6726, 2
        %v6841 = vsel %vm6223, %v6839, %v6840
        %v6842 = vrot.slane %v6727, 2
        %v6843 = vrot.slane %v6728, 2
        %v6844 = vsel %vm6223, %v6842, %v6843
        %v6845 = vrot.slane %v6729, 2
        %v6846 = vrot.slane %v6730, 2
        %v6847 = vsel %vm6223, %v6845, %v6846
        %v6848 = vrot.slane %v6731, 2
        %v6849 = vrot.slane %v6732, 2
        %v6850 = vsel %vm6223, %v6848, %v6849
        %v6851 = vrot.slane %v6733, 2
        %v6852 = vrot.slane %v6734, 2
        %v6853 = vsel %vm6223, %v6851, %v6852
        %v6854 = vrot.slane %v6735, 2
        %v6855 = vrot.slane %v6736, 2
        %v6856 = vsel %vm6223, %v6854, %v6855
        %6857 = vrot.lane.b32.xlu0 %v6787, 127
        %v6858 = vpop.permute.xlu0 %6857
        %6859 = vrot.lane.b32.xlu0 %v6790, 127
        %v6860 = vpop.permute.xlu0 %6859
        %6861 = vrot.lane.b32.xlu0 %v6793, 127
        %v6862 = vpop.permute.xlu0 %6861
        %6863 = vrot.lane.b32.xlu0 %v6796, 127
        %v6864 = vpop.permute.xlu0 %6863
        %6865 = vrot.lane.b32.xlu0 %v6799, 127
        %v6866 = vpop.permute.xlu0 %6865
        %6867 = vrot.lane.b32.xlu0 %v6802, 127
        %v6868 = vpop.permute.xlu0 %6867
        %6869 = vrot.lane.b32.xlu0 %v6805, 127
        %v6870 = vpop.permute.xlu0 %6869
        %6871 = vrot.lane.b32.xlu0 %v6808, 127
        %v6872 = vpop.permute.xlu0 %6871
        %6873 = vrot.lane.b32.xlu0 %v6811, 127
        %v6874 = vpop.permute.xlu0 %6873
        %6875 = vrot.lane.b32.xlu0 %v6814, 127
        %v6876 = vpop.permute.xlu0 %6875
        %6877 = vrot.lane.b32.xlu0 %v6817, 127
        %v6878 = vpop.permute.xlu0 %6877
        %6879 = vrot.lane.b32.xlu0 %v6820, 127
        %v6880 = vpop.permute.xlu0 %6879
        %6881 = vrot.lane.b32.xlu0 %v6823, 127
        %v6882 = vpop.permute.xlu0 %6881
        %6883 = vrot.lane.b32.xlu0 %v6826, 127
        %v6884 = vpop.permute.xlu0 %6883
        %6885 = vrot.lane.b32.xlu0 %v6829, 127
        %v6886 = vpop.permute.xlu0 %6885
        %6887 = vrot.lane.b32.xlu0 %v6832, 127
        %v6888 = vpop.permute.xlu0 %6887
        %6889 = vrot.lane.b32.xlu0 %v6835, 127
        %v6890 = vpop.permute.xlu0 %6889
        %6891 = vrot.lane.b32.xlu0 %v6838, 127
        %v6892 = vpop.permute.xlu0 %6891
        %6893 = vrot.lane.b32.xlu0 %v6841, 127
        %v6894 = vpop.permute.xlu0 %6893
        %6895 = vrot.lane.b32.xlu0 %v6844, 127
        %v6896 = vpop.permute.xlu0 %6895
        %6897 = vrot.lane.b32.xlu0 %v6847, 127
        %v6898 = vpop.permute.xlu0 %6897
        %6899 = vrot.lane.b32.xlu0 %v6850, 127
        %v6900 = vpop.permute.xlu0 %6899
        %6901 = vrot.lane.b32.xlu0 %v6853, 127
        %v6902 = vpop.permute.xlu0 %6901
        %6903 = vrot.lane.b32.xlu0 %v6856, 127
        %v6904 = vpop.permute.xlu0 %6903
        %v6929 = vadd.f32 %v6320, %v6858
        %v6930 = vadd.f32 %v6321, %v6860
        %v6931 = vadd.f32 %v6322, %v6862
        %v6932 = vadd.f32 %v6323, %v6864
        %v6933 = vadd.f32 %v6324, %v6866
        %v6934 = vadd.f32 %v6325, %v6868
        %v6935 = vadd.f32 %v6326, %v6870
        %v6936 = vadd.f32 %v6327, %v6872
        %v6937 = vadd.f32 %v6328, %v6874
        %v6938 = vadd.f32 %v6329, %v6876
        %v6939 = vadd.f32 %v6330, %v6878
        %v6940 = vadd.f32 %v6331, %v6880
        %v6941 = vadd.f32 %v6332, %v6882
        %v6942 = vadd.f32 %v6333, %v6884
        %v6943 = vadd.f32 %v6334, %v6886
        %v6944 = vadd.f32 %v6335, %v6888
        %v6945 = vadd.f32 %v6336, %v6890
        %v6946 = vadd.f32 %v6337, %v6892
        %v6947 = vadd.f32 %v6338, %v6894
        %v6948 = vadd.f32 %v6339, %v6896
        %v6949 = vadd.f32 %v6340, %v6898
        %v6950 = vadd.f32 %v6341, %v6900
        %v6951 = vadd.f32 %v6342, %v6902
        %v6952 = vadd.f32 %v6343, %v6904
        %v6953 = vld [vmem:[%s5] sm:$0xff]
        %v6954 = vld [vmem:[%s5 + $0x8] sm:$0xff]
        %v6955 = vld [vmem:[%s5 + $0x10] sm:$0xff]
        %v6959 = vcombine.high %v6953, %v6953
        %v6961 = vunpack.c.l.s4 1966171168
        %v6962 = vunpack.c.0.s8 %v6961
        %v6963 = vlaneseq
        %v6964 = vshrl.u32 %v6963, 7
        %v6965 = vsub.s32 %v6962, %v6964
        %v6966 = vrot.slane %v6953, %v6965
        %v6968 = vunpack.c.l.s4 1966171168
        %v6969 = vunpack.c.0.s8 %v6968
        %v6970 = vlaneseq
        %v6971 = vshrl.u32 %v6970, 7
        %v6972 = vsub.s32 %v6969, %v6971
        %v6973 = vrot.slane %v6959, %v6972
        %v6974 = vcombine.high %v6966, %v6966
        %v6975 = vcombine.high %v6973, %v6973
        %v6977 = vunpack.c.l.s4 1966171168
        %v6978 = vunpack.c.0.s8 %v6977
        %v6979 = vlaneseq
        %v6980 = vshrl.u32 %v6979, 7
        %v6981 = vsub.s32 %v6978, %v6980
        %v6982 = vrot.slane %v6966, %v6981
        %v6984 = vunpack.c.l.s4 1966171168
        %v6985 = vunpack.c.0.s8 %v6984
        %v6986 = vlaneseq
        %v6987 = vshrl.u32 %v6986, 7
        %v6988 = vsub.s32 %v6985, %v6987
        %v6989 = vrot.slane %v6973, %v6988
        %v6991 = vunpack.c.l.s4 1966171168
        %v6992 = vunpack.c.0.s8 %v6991
        %v6993 = vlaneseq
        %v6994 = vshrl.u32 %v6993, 7
        %v6995 = vsub.s32 %v6992, %v6994
        %v6996 = vrot.slane %v6974, %v6995
        %v6998 = vunpack.c.l.s4 1966171168
        %v6999 = vunpack.c.0.s8 %v6998
        %v7000 = vlaneseq
        %v7001 = vshrl.u32 %v7000, 7
        %v7002 = vsub.s32 %v6999, %v7001
        %v7003 = vrot.slane %v6975, %v7002
        %v7004 = vcombine.high %v6982, %v6982
        %v7005 = vcombine.high %v6989, %v6989
        %v7006 = vcombine.high %v6996, %v6996
        %v7007 = vcombine.high %v7003, %v7003
        %v7008 = vcombine.high %v6954, %v6954
        %v7010 = vunpack.c.l.s4 1966171168
        %v7011 = vunpack.c.0.s8 %v7010
        %v7012 = vlaneseq
        %v7013 = vshrl.u32 %v7012, 7
        %v7014 = vsub.s32 %v7011, %v7013
        %v7015 = vrot.slane %v6954, %v7014
        %v7017 = vunpack.c.l.s4 1966171168
        %v7018 = vunpack.c.0.s8 %v7017
        %v7019 = vlaneseq
        %v7020 = vshrl.u32 %v7019, 7
        %v7021 = vsub.s32 %v7018, %v7020
        %v7022 = vrot.slane %v7008, %v7021
        %v7023 = vcombine.high %v7015, %v7015
        %v7024 = vcombine.high %v7022, %v7022
        %v7026 = vunpack.c.l.s4 1966171168
        %v7027 = vunpack.c.0.s8 %v7026
        %v7028 = vlaneseq
        %v7029 = vshrl.u32 %v7028, 7
        %v7030 = vsub.s32 %v7027, %v7029
        %v7031 = vrot.slane %v7015, %v7030
        %v7033 = vunpack.c.l.s4 1966171168
        %v7034 = vunpack.c.0.s8 %v7033
        %v7035 = vlaneseq
        %v7036 = vshrl.u32 %v7035, 7
        %v7037 = vsub.s32 %v7034, %v7036
        %v7038 = vrot.slane %v7022, %v7037
        %v7040 = vunpack.c.l.s4 1966171168
        %v7041 = vunpack.c.0.s8 %v7040
        %v7042 = vlaneseq
        %v7043 = vshrl.u32 %v7042, 7
        %v7044 = vsub.s32 %v7041, %v7043
        %v7045 = vrot.slane %v7023, %v7044
        %v7047 = vunpack.c.l.s4 1966171168
        %v7048 = vunpack.c.0.s8 %v7047
        %v7049 = vlaneseq
        %v7050 = vshrl.u32 %v7049, 7
        %v7051 = vsub.s32 %v7048, %v7050
        %v7052 = vrot.slane %v7024, %v7051
        %v7053 = vcombine.high %v7031, %v7031
        %v7054 = vcombine.high %v7038, %v7038
        %v7055 = vcombine.high %v7045, %v7045
        %v7056 = vcombine.high %v7052, %v7052
        %v7057 = vcombine.high %v6955, %v6955
        %v7059 = vunpack.c.l.s4 1966171168
        %v7060 = vunpack.c.0.s8 %v7059
        %v7061 = vlaneseq
        %v7062 = vshrl.u32 %v7061, 7
        %v7063 = vsub.s32 %v7060, %v7062
        %v7064 = vrot.slane %v6955, %v7063
        %v7066 = vunpack.c.l.s4 1966171168
        %v7067 = vunpack.c.0.s8 %v7066
        %v7068 = vlaneseq
        %v7069 = vshrl.u32 %v7068, 7
        %v7070 = vsub.s32 %v7067, %v7069
        %v7071 = vrot.slane %v7057, %v7070
        %v7072 = vcombine.high %v7064, %v7064
        %v7073 = vcombine.high %v7071, %v7071
        %v7075 = vunpack.c.l.s4 1966171168
        %v7076 = vunpack.c.0.s8 %v7075
        %v7077 = vlaneseq
        %v7078 = vshrl.u32 %v7077, 7
        %v7079 = vsub.s32 %v7076, %v7078
        %v7080 = vrot.slane %v7064, %v7079
        %v7082 = vunpack.c.l.s4 1966171168
        %v7083 = vunpack.c.0.s8 %v7082
        %v7084 = vlaneseq
        %v7085 = vshrl.u32 %v7084, 7
        %v7086 = vsub.s32 %v7083, %v7085
        %v7087 = vrot.slane %v7071, %v7086
        %v7089 = vunpack.c.l.s4 1966171168
        %v7090 = vunpack.c.0.s8 %v7089
        %v7091 = vlaneseq
        %v7092 = vshrl.u32 %v7091, 7
        %v7093 = vsub.s32 %v7090, %v7092
        %v7094 = vrot.slane %v7072, %v7093
        %v7096 = vunpack.c.l.s4 1966171168
        %v7097 = vunpack.c.0.s8 %v7096
        %v7098 = vlaneseq
        %v7099 = vshrl.u32 %v7098, 7
        %v7100 = vsub.s32 %v7097, %v7099
        %v7101 = vrot.slane %v7073, %v7100
        %v7102 = vcombine.high %v7080, %v7080
        %v7103 = vcombine.high %v7087, %v7087
        %v7104 = vcombine.high %v7094, %v7094
        %v7105 = vcombine.high %v7101, %v7101
        %v7106 = vlaneseq
        %v7107 = vshrl.u32 %v7106, 7
        %v7108 = vsub.s32 0, %v7107
        %v7109 = vrot.slane %v6982, %v7108
        %v7110 = vlaneseq
        %v7111 = vshrl.u32 %v7110, 7
        %v7112 = vsub.s32 0, %v7111
        %v7113 = vrot.slane %v6996, %v7112
        %v7114 = vlaneseq
        %v7115 = vshrl.u32 %v7114, 7
        %v7116 = vsub.s32 0, %v7115
        %v7117 = vrot.slane %v7004, %v7116
        %v7118 = vlaneseq
        %v7119 = vshrl.u32 %v7118, 7
        %v7120 = vsub.s32 0, %v7119
        %v7121 = vrot.slane %v7006, %v7120
        %v7122 = vlaneseq
        %v7123 = vshrl.u32 %v7122, 7
        %v7124 = vsub.s32 0, %v7123
        %v7125 = vrot.slane %v6989, %v7124
        %v7126 = vlaneseq
        %v7127 = vshrl.u32 %v7126, 7
        %v7128 = vsub.s32 0, %v7127
        %v7129 = vrot.slane %v7003, %v7128
        %v7130 = vlaneseq
        %v7131 = vshrl.u32 %v7130, 7
        %v7132 = vsub.s32 0, %v7131
        %v7133 = vrot.slane %v7005, %v7132
        %v7134 = vlaneseq
        %v7135 = vshrl.u32 %v7134, 7
        %v7136 = vsub.s32 0, %v7135
        %v7137 = vrot.slane %v7007, %v7136
        %v7138 = vlaneseq
        %v7139 = vshrl.u32 %v7138, 7
        %v7140 = vsub.s32 0, %v7139
        %v7141 = vrot.slane %v7031, %v7140
        %v7142 = vlaneseq
        %v7143 = vshrl.u32 %v7142, 7
        %v7144 = vsub.s32 0, %v7143
        %v7145 = vrot.slane %v7045, %v7144
        %v7146 = vlaneseq
        %v7147 = vshrl.u32 %v7146, 7
        %v7148 = vsub.s32 0, %v7147
        %v7149 = vrot.slane %v7053, %v7148
        %v7150 = vlaneseq
        %v7151 = vshrl.u32 %v7150, 7
        %v7152 = vsub.s32 0, %v7151
        %v7153 = vrot.slane %v7055, %v7152
        %v7154 = vlaneseq
        %v7155 = vshrl.u32 %v7154, 7
        %v7156 = vsub.s32 0, %v7155
        %v7157 = vrot.slane %v7038, %v7156
        %v7158 = vlaneseq
        %v7159 = vshrl.u32 %v7158, 7
        %v7160 = vsub.s32 0, %v7159
        %v7161 = vrot.slane %v7052, %v7160
        %v7162 = vlaneseq
        %v7163 = vshrl.u32 %v7162, 7
        %v7164 = vsub.s32 0, %v7163
        %v7165 = vrot.slane %v7054, %v7164
        %v7166 = vlaneseq
        %v7167 = vshrl.u32 %v7166, 7
        %v7168 = vsub.s32 0, %v7167
        %v7169 = vrot.slane %v7056, %v7168
        %v7170 = vlaneseq
        %v7171 = vshrl.u32 %v7170, 7
        %v7172 = vsub.s32 0, %v7171
        %v7173 = vrot.slane %v7080, %v7172
        %v7174 = vlaneseq
        %v7175 = vshrl.u32 %v7174, 7
        %v7176 = vsub.s32 0, %v7175
        %v7177 = vrot.slane %v7094, %v7176
        %v7178 = vlaneseq
        %v7179 = vshrl.u32 %v7178, 7
        %v7180 = vsub.s32 0, %v7179
        %v7181 = vrot.slane %v7102, %v7180
        %v7182 = vlaneseq
        %v7183 = vshrl.u32 %v7182, 7
        %v7184 = vsub.s32 0, %v7183
        %v7185 = vrot.slane %v7104, %v7184
        %v7186 = vlaneseq
        %v7187 = vshrl.u32 %v7186, 7
        %v7188 = vsub.s32 0, %v7187
        %v7189 = vrot.slane %v7087, %v7188
        %v7190 = vlaneseq
        %v7191 = vshrl.u32 %v7190, 7
        %v7192 = vsub.s32 0, %v7191
        %v7193 = vrot.slane %v7101, %v7192
        %v7194 = vlaneseq
        %v7195 = vshrl.u32 %v7194, 7
        %v7196 = vsub.s32 0, %v7195
        %v7197 = vrot.slane %v7103, %v7196
        %v7198 = vlaneseq
        %v7199 = vshrl.u32 %v7198, 7
        %v7200 = vsub.s32 0, %v7199
        %v7201 = vrot.slane %v7105, %v7200
        %7202 = vset.pattern.permute.xlu0 8
        %7203 = vperm.xlu0 %7202, %v7109
        %v7204 = vpop.permute.xlu0 %7203
        %7206 = vset.pattern.permute.xlu0 8
        %7207 = vperm.xlu0 %7206, %v7113
        %v7208 = vpop.permute.xlu0 %7207
        %7210 = vset.pattern.permute.xlu0 8
        %7211 = vperm.xlu0 %7210, %v7117
        %v7212 = vpop.permute.xlu0 %7211
        %7214 = vset.pattern.permute.xlu0 8
        %7215 = vperm.xlu0 %7214, %v7121
        %v7216 = vpop.permute.xlu0 %7215
        %7218 = vset.pattern.permute.xlu0 8
        %7219 = vperm.xlu0 %7218, %v7125
        %v7220 = vpop.permute.xlu0 %7219
        %7222 = vset.pattern.permute.xlu0 8
        %7223 = vperm.xlu0 %7222, %v7129
        %v7224 = vpop.permute.xlu0 %7223
        %7226 = vset.pattern.permute.xlu0 8
        %7227 = vperm.xlu0 %7226, %v7133
        %v7228 = vpop.permute.xlu0 %7227
        %7230 = vset.pattern.permute.xlu0 8
        %7231 = vperm.xlu0 %7230, %v7137
        %v7232 = vpop.permute.xlu0 %7231
        %7234 = vset.pattern.permute.xlu0 8
        %7235 = vperm.xlu0 %7234, %v7141
        %v7236 = vpop.permute.xlu0 %7235
        %7238 = vset.pattern.permute.xlu0 8
        %7239 = vperm.xlu0 %7238, %v7145
        %v7240 = vpop.permute.xlu0 %7239
        %7242 = vset.pattern.permute.xlu0 8
        %7243 = vperm.xlu0 %7242, %v7149
        %v7244 = vpop.permute.xlu0 %7243
        %7246 = vset.pattern.permute.xlu0 8
        %7247 = vperm.xlu0 %7246, %v7153
        %v7248 = vpop.permute.xlu0 %7247
        %7250 = vset.pattern.permute.xlu0 8
        %7251 = vperm.xlu0 %7250, %v7157
        %v7252 = vpop.permute.xlu0 %7251
        %7254 = vset.pattern.permute.xlu0 8
        %7255 = vperm.xlu0 %7254, %v7161
        %v7256 = vpop.permute.xlu0 %7255
        %7258 = vset.pattern.permute.xlu0 8
        %7259 = vperm.xlu0 %7258, %v7165
        %v7260 = vpop.permute.xlu0 %7259
        %7262 = vset.pattern.permute.xlu0 8
        %7263 = vperm.xlu0 %7262, %v7169
        %v7264 = vpop.permute.xlu0 %7263
        %7266 = vset.pattern.permute.xlu0 8
        %7267 = vperm.xlu0 %7266, %v7173
        %v7268 = vpop.permute.xlu0 %7267
        %7270 = vset.pattern.permute.xlu0 8
        %7271 = vperm.xlu0 %7270, %v7177
        %v7272 = vpop.permute.xlu0 %7271
        %7274 = vset.pattern.permute.xlu0 8
        %7275 = vperm.xlu0 %7274, %v7181
        %v7276 = vpop.permute.xlu0 %7275
        %7278 = vset.pattern.permute.xlu0 8
        %7279 = vperm.xlu0 %7278, %v7185
        %v7280 = vpop.permute.xlu0 %7279
        %7282 = vset.pattern.permute.xlu0 8
        %7283 = vperm.xlu0 %7282, %v7189
        %v7284 = vpop.permute.xlu0 %7283
        %7286 = vset.pattern.permute.xlu0 8
        %7287 = vperm.xlu0 %7286, %v7193
        %v7288 = vpop.permute.xlu0 %7287
        %7290 = vset.pattern.permute.xlu0 8
        %7291 = vperm.xlu0 %7290, %v7197
        %v7292 = vpop.permute.xlu0 %7291
        %7294 = vset.pattern.permute.xlu0 8
        %7295 = vperm.xlu0 %7294, %v7201
        %v7296 = vpop.permute.xlu0 %7295
        %v7298 = vmul.f32 %v2238, %v7204
        %v7299 = vmul.f32 %v2239, %v7204
        %v7300 = vmul.f32 %v2240, %v7208
        %v7301 = vmul.f32 %v2241, %v7208
        %v7302 = vmul.f32 %v2242, %v7212
        %v7303 = vmul.f32 %v2243, %v7212
        %v7304 = vmul.f32 %v2244, %v7216
        %v7305 = vmul.f32 %v2245, %v7216
        %v7306 = vmul.f32 %v2246, %v7220
        %v7307 = vmul.f32 %v2247, %v7220
        %v7308 = vmul.f32 %v2248, %v7224
        %v7309 = vmul.f32 %v2249, %v7224
        %v7310 = vmul.f32 %v2250, %v7228
        %v7311 = vmul.f32 %v2251, %v7228
        %v7312 = vmul.f32 %v2252, %v7232
        %v7313 = vmul.f32 %v2253, %v7232
        %v7314 = vmul.f32 %v2254, %v7236
        %v7315 = vmul.f32 %v2255, %v7236
        %v7316 = vmul.f32 %v2256, %v7240
        %v7317 = vmul.f32 %v2257, %v7240
        %v7318 = vmul.f32 %v2258, %v7244
        %v7319 = vmul.f32 %v2259, %v7244
        %v7320 = vmul.f32 %v2260, %v7248
        %v7321 = vmul.f32 %v2261, %v7248
        %v7322 = vmul.f32 %v2262, %v7252
        %v7323 = vmul.f32 %v2263, %v7252
        %v7324 = vmul.f32 %v2264, %v7256
        %v7325 = vmul.f32 %v2265, %v7256
        %v7326 = vmul.f32 %v2266, %v7260
        %v7327 = vmul.f32 %v2267, %v7260
        %v7328 = vmul.f32 %v2268, %v7264
        %v7329 = vmul.f32 %v2269, %v7264
        %v7330 = vmul.f32 %v2270, %v7268
        %v7331 = vmul.f32 %v2271, %v7268
        %v7332 = vmul.f32 %v2272, %v7272
        %v7333 = vmul.f32 %v2273, %v7272
        %v7334 = vmul.f32 %v2274, %v7276
        %v7335 = vmul.f32 %v2275, %v7276
        %v7336 = vmul.f32 %v2276, %v7280
        %v7337 = vmul.f32 %v2277, %v7280
        %v7338 = vmul.f32 %v2278, %v7284
        %v7339 = vmul.f32 %v2279, %v7284
        %v7340 = vmul.f32 %v2280, %v7288
        %v7341 = vmul.f32 %v2281, %v7288
        %v7342 = vmul.f32 %v2282, %v7292
        %v7343 = vmul.f32 %v2283, %v7292
        %v7344 = vmul.f32 %v2284, %v7296
        %v7345 = vmul.f32 %v2285, %v7296
        %v7394 = vrot.slane %v7298, 2
        %v7395 = vrot.slane %v7299, 2
        %v7396 = vsel %vm6223, %v7394, %v7395
        %v7397 = vrot.slane %v7300, 2
        %v7398 = vrot.slane %v7301, 2
        %v7399 = vsel %vm6223, %v7397, %v7398
        %v7400 = vrot.slane %v7302, 2
        %v7401 = vrot.slane %v7303, 2
        %v7402 = vsel %vm6223, %v7400, %v7401
        %v7403 = vrot.slane %v7304, 2
        %v7404 = vrot.slane %v7305, 2
        %v7405 = vsel %vm6223, %v7403, %v7404
        %v7406 = vrot.slane %v7306, 2
        %v7407 = vrot.slane %v7307, 2
        %v7408 = vsel %vm6223, %v7406, %v7407
        %v7409 = vrot.slane %v7308, 2
        %v7410 = vrot.slane %v7309, 2
        %v7411 = vsel %vm6223, %v7409, %v7410
        %v7412 = vrot.slane %v7310, 2
        %v7413 = vrot.slane %v7311, 2
        %v7414 = vsel %vm6223, %v7412, %v7413
        %v7415 = vrot.slane %v7312, 2
        %v7416 = vrot.slane %v7313, 2
        %v7417 = vsel %vm6223, %v7415, %v7416
        %v7418 = vrot.slane %v7314, 2
        %v7419 = vrot.slane %v7315, 2
        %v7420 = vsel %vm6223, %v7418, %v7419
        %v7421 = vrot.slane %v7316, 2
        %v7422 = vrot.slane %v7317, 2
        %v7423 = vsel %vm6223, %v7421, %v7422
        %v7424 = vrot.slane %v7318, 2
        %v7425 = vrot.slane %v7319, 2
        %v7426 = vsel %vm6223, %v7424, %v7425
        %v7427 = vrot.slane %v7320, 2
        %v7428 = vrot.slane %v7321, 2
        %v7429 = vsel %vm6223, %v7427, %v7428
        %v7430 = vrot.slane %v7322, 2
        %v7431 = vrot.slane %v7323, 2
        %v7432 = vsel %vm6223, %v7430, %v7431
        %v7433 = vrot.slane %v7324, 2
        %v7434 = vrot.slane %v7325, 2
        %v7435 = vsel %vm6223, %v7433, %v7434
        %v7436 = vrot.slane %v7326, 2
        %v7437 = vrot.slane %v7327, 2
        %v7438 = vsel %vm6223, %v7436, %v7437
        %v7439 = vrot.slane %v7328, 2
        %v7440 = vrot.slane %v7329, 2
        %v7441 = vsel %vm6223, %v7439, %v7440
        %v7442 = vrot.slane %v7330, 2
        %v7443 = vrot.slane %v7331, 2
        %v7444 = vsel %vm6223, %v7442, %v7443
        %v7445 = vrot.slane %v7332, 2
        %v7446 = vrot.slane %v7333, 2
        %v7447 = vsel %vm6223, %v7445, %v7446
        %v7448 = vrot.slane %v7334, 2
        %v7449 = vrot.slane %v7335, 2
        %v7450 = vsel %vm6223, %v7448, %v7449
        %v7451 = vrot.slane %v7336, 2
        %v7452 = vrot.slane %v7337, 2
        %v7453 = vsel %vm6223, %v7451, %v7452
        %v7454 = vrot.slane %v7338, 2
        %v7455 = vrot.slane %v7339, 2
        %v7456 = vsel %vm6223, %v7454, %v7455
        %v7457 = vrot.slane %v7340, 2
        %v7458 = vrot.slane %v7341, 2
        %v7459 = vsel %vm6223, %v7457, %v7458
        %v7460 = vrot.slane %v7342, 2
        %v7461 = vrot.slane %v7343, 2
        %v7462 = vsel %vm6223, %v7460, %v7461
        %v7463 = vrot.slane %v7344, 2
        %v7464 = vrot.slane %v7345, 2
        %v7465 = vsel %vm6223, %v7463, %v7464
        %7466 = vrot.lane.b32.xlu0 %v7396, 126
        %v7467 = vpop.permute.xlu0 %7466
        %7468 = vrot.lane.b32.xlu0 %v7399, 126
        %v7469 = vpop.permute.xlu0 %7468
        %7470 = vrot.lane.b32.xlu0 %v7402, 126
        %v7471 = vpop.permute.xlu0 %7470
        %7472 = vrot.lane.b32.xlu0 %v7405, 126
        %v7473 = vpop.permute.xlu0 %7472
        %7474 = vrot.lane.b32.xlu0 %v7408, 126
        %v7475 = vpop.permute.xlu0 %7474
        %7476 = vrot.lane.b32.xlu0 %v7411, 126
        %v7477 = vpop.permute.xlu0 %7476
        %7478 = vrot.lane.b32.xlu0 %v7414, 126
        %v7479 = vpop.permute.xlu0 %7478
        %7480 = vrot.lane.b32.xlu0 %v7417, 126
        %v7481 = vpop.permute.xlu0 %7480
        %7482 = vrot.lane.b32.xlu0 %v7420, 126
        %v7483 = vpop.permute.xlu0 %7482
        %7484 = vrot.lane.b32.xlu0 %v7423, 126
        %v7485 = vpop.permute.xlu0 %7484
        %7486 = vrot.lane.b32.xlu0 %v7426, 126
        %v7487 = vpop.permute.xlu0 %7486
        %7488 = vrot.lane.b32.xlu0 %v7429, 126
        %v7489 = vpop.permute.xlu0 %7488
        %7490 = vrot.lane.b32.xlu0 %v7432, 126
        %v7491 = vpop.permute.xlu0 %7490
        %7492 = vrot.lane.b32.xlu0 %v7435, 126
        %v7493 = vpop.permute.xlu0 %7492
        %7494 = vrot.lane.b32.xlu0 %v7438, 126
        %v7495 = vpop.permute.xlu0 %7494
        %7496 = vrot.lane.b32.xlu0 %v7441, 126
        %v7497 = vpop.permute.xlu0 %7496
        %7498 = vrot.lane.b32.xlu0 %v7444, 126
        %v7499 = vpop.permute.xlu0 %7498
        %7500 = vrot.lane.b32.xlu0 %v7447, 126
        %v7501 = vpop.permute.xlu0 %7500
        %7502 = vrot.lane.b32.xlu0 %v7450, 126
        %v7503 = vpop.permute.xlu0 %7502
        %7504 = vrot.lane.b32.xlu0 %v7453, 126
        %v7505 = vpop.permute.xlu0 %7504
        %7506 = vrot.lane.b32.xlu0 %v7456, 126
        %v7507 = vpop.permute.xlu0 %7506
        %7508 = vrot.lane.b32.xlu0 %v7459, 126
        %v7509 = vpop.permute.xlu0 %7508
        %7510 = vrot.lane.b32.xlu0 %v7462, 126
        %v7511 = vpop.permute.xlu0 %7510
        %7512 = vrot.lane.b32.xlu0 %v7465, 126
        %v7513 = vpop.permute.xlu0 %7512
        %v7538 = vadd.f32 %v6929, %v7467
        %v7539 = vadd.f32 %v6930, %v7469
        %v7540 = vadd.f32 %v6931, %v7471
        %v7541 = vadd.f32 %v6932, %v7473
        %v7542 = vadd.f32 %v6933, %v7475
        %v7543 = vadd.f32 %v6934, %v7477
        %v7544 = vadd.f32 %v6935, %v7479
        %v7545 = vadd.f32 %v6936, %v7481
        %v7546 = vadd.f32 %v6937, %v7483
        %v7547 = vadd.f32 %v6938, %v7485
        %v7548 = vadd.f32 %v6939, %v7487
        %v7549 = vadd.f32 %v6940, %v7489
        %v7550 = vadd.f32 %v6941, %v7491
        %v7551 = vadd.f32 %v6942, %v7493
        %v7552 = vadd.f32 %v6943, %v7495
        %v7553 = vadd.f32 %v6944, %v7497
        %v7554 = vadd.f32 %v6945, %v7499
        %v7555 = vadd.f32 %v6946, %v7501
        %v7556 = vadd.f32 %v6947, %v7503
        %v7557 = vadd.f32 %v6948, %v7505
        %v7558 = vadd.f32 %v6949, %v7507
        %v7559 = vadd.f32 %v6950, %v7509
        %v7560 = vadd.f32 %v6951, %v7511
        %v7561 = vadd.f32 %v6952, %v7513
        %7562 = vst.msk [vmem:[%s410] sm:$0xff] %vm601, %v7538
        %7563 = vst.msk [vmem:[%s410 + $0x8] sm:$0xff] %vm601, %v7539
        %7564 = vst.msk [vmem:[%s410 + $0x10] sm:$0xff] %vm601, %v7540
        %7565 = vst.msk [vmem:[%s410 + $0x18] sm:$0xff] %vm601, %v7541
        %7566 = vst.msk [vmem:[%s410 + $0x20] sm:$0xff] %vm601, %v7542
        %7567 = vst.msk [vmem:[%s410 + $0x28] sm:$0xff] %vm601, %v7543
        %7568 = vst.msk [vmem:[%s410 + $0x30] sm:$0xff] %vm601, %v7544
        %7569 = vst.msk [vmem:[%s410 + $0x38] sm:$0xff] %vm601, %v7545
        %7570 = vst.msk [vmem:[%s410 + $0x40] sm:$0xff] %vm601, %v7546
        %7571 = vst.msk [vmem:[%s410 + $0x48] sm:$0xff] %vm601, %v7547
        %7572 = vst.msk [vmem:[%s410 + $0x50] sm:$0xff] %vm601, %v7548
        %7573 = vst.msk [vmem:[%s410 + $0x58] sm:$0xff] %vm601, %v7549
        %7574 = vst.msk [vmem:[%s410 + $0x60] sm:$0xff] %vm601, %v7550
        %7575 = vst.msk [vmem:[%s410 + $0x68] sm:$0xff] %vm601, %v7551
        %7576 = vst.msk [vmem:[%s410 + $0x70] sm:$0xff] %vm601, %v7552
        %7577 = vst.msk [vmem:[%s410 + $0x78] sm:$0xff] %vm601, %v7553
        %7578 = vst.msk [vmem:[%s410 + $0x80] sm:$0xff] %vm601, %v7554
        %7579 = vst.msk [vmem:[%s410 + $0x88] sm:$0xff] %vm601, %v7555
        %7580 = vst.msk [vmem:[%s410 + $0x90] sm:$0xff] %vm601, %v7556
        %7581 = vst.msk [vmem:[%s410 + $0x98] sm:$0xff] %vm601, %v7557
        %7582 = vst.msk [vmem:[%s410 + $0xa0] sm:$0xff] %vm601, %v7558
        %7583 = vst.msk [vmem:[%s410 + $0xa8] sm:$0xff] %vm601, %v7559
        %7584 = vst.msk [vmem:[%s410 + $0xb0] sm:$0xff] %vm601, %v7560
        %7585 = vst.msk [vmem:[%s410 + $0xb8] sm:$0xff] %vm601, %v7561
        %s7586 = sand.u32 %s226, 1
        %s7587 = sand.u32 %s226, 1
        %s7588 = smul.addr %s7587, 192
        %s7589 = scalar_lea.vmem [#allocation7], %s7588
        // Predicated region
        $region61: #{attention_forward.3} parent=47 // pred_check
          %p7590 = pneg %p236
        $region62: #{attention_forward.3} parent=47 // pred_check_branch
          %7592 = sbr.rel (%p7590) target = $region64
        $region63: #{attention_forward.3} parent=47 // pred_region
          %s7593 = smul.addr %s28, 48
          %s7594 = sadd.s32 %s29, %s7593
          %s7595 = smul.addr %s7594, 8
          %s7596 = scalar_lea.vmem %s7, %s7595
          // Predicated region
          $region65: #{attention_forward.3} parent=63 // pred_check
            _
          $region66: #{attention_forward.3} parent=63 // pred_check_branch
            %7598 = sbr.rel (0) target = $region68
          $region67: #{attention_forward.3} parent=63 // pred_region
            // Predicated region
            $region69: #{attention_forward.3} parent=67 // pred_check
              _
            $region70: #{attention_forward.3} parent=67 // pred_check_branch
              %7600 = sbr.rel (0) target = $region72
            $region71: #{attention_forward.3} parent=67 // pred_region
              // Predicated region
              $region84: #{attention_forward.3} parent=71 // pred_check
                _
              $region85: #{attention_forward.3} parent=71 // pred_check_branch
                %7661 = sbr.rel (0) target = $region87
              $region86: #{attention_forward.3} parent=71 // pred_region
                loop: start=0, step=1, limit=1
                $region88: #{attention_forward.3} parent=86 // loop_pre_header
                  _
                $region89: #{attention_forward.3} parent=86 // loop_header
                  %s7663 = sphi 0, %s7667
                  %p7664 = scmp.ge.s32.totalorder %s7663, 1
                  %s7668 = sphi %s7589, %s7589
                  %s7669 = sphi %s7596, %s7596
                $region90: #{attention_forward.3} parent=86 // loop_header_branch
                  %7666 = sbr.rel (%p7664) target = $region94
                $region91: #{attention_forward.3} parent=86 // loop_body
                  %v7670 = vld [vmem:[%s7668] sm:$0xff]
                  %7671 = vst [vmem:[%s7669] sm:$0xff] %v7670
                  %v7672 = vld [vmem:[%s7668 + $0x8] sm:$0xff]
                  %7673 = vst [vmem:[%s7669 + $0x10] sm:$0xff] %v7672
                  %v7674 = vld [vmem:[%s7668 + $0x10] sm:$0xff]
                  %7675 = vst [vmem:[%s7669 + $0x20] sm:$0xff] %v7674
                  %v7676 = vld [vmem:[%s7668 + $0x18] sm:$0xff]
                  %7677 = vst [vmem:[%s7669 + $0x30] sm:$0xff] %v7676
                  %v7678 = vld [vmem:[%s7668 + $0x20] sm:$0xff]
                  %7679 = vst [vmem:[%s7669 + $0x40] sm:$0xff] %v7678
                  %v7680 = vld [vmem:[%s7668 + $0x28] sm:$0xff]
                  %7681 = vst [vmem:[%s7669 + $0x50] sm:$0xff] %v7680
                  %v7682 = vld [vmem:[%s7668 + $0x30] sm:$0xff]
                  %7683 = vst [vmem:[%s7669 + $0x60] sm:$0xff] %v7682
                  %v7684 = vld [vmem:[%s7668 + $0x38] sm:$0xff]
                  %7685 = vst [vmem:[%s7669 + $0x70] sm:$0xff] %v7684
                  %v7686 = vld [vmem:[%s7668 + $0x40] sm:$0xff]
                  %7687 = vst [vmem:[%s7669 + $0x80] sm:$0xff] %v7686
                  %v7688 = vld [vmem:[%s7668 + $0x48] sm:$0xff]
                  %7689 = vst [vmem:[%s7669 + $0x90] sm:$0xff] %v7688
                  %v7690 = vld [vmem:[%s7668 + $0x50] sm:$0xff]
                  %7691 = vst [vmem:[%s7669 + $0xa0] sm:$0xff] %v7690
                  %v7692 = vld [vmem:[%s7668 + $0x58] sm:$0xff]
                  %7693 = vst [vmem:[%s7669 + $0xb0] sm:$0xff] %v7692
                  %v7694 = vld [vmem:[%s7668 + $0x60] sm:$0xff]
                  %7695 = vst [vmem:[%s7669 + $0xc0] sm:$0xff] %v7694
                  %v7696 = vld [vmem:[%s7668 + $0x68] sm:$0xff]
                  %7697 = vst [vmem:[%s7669 + $0xd0] sm:$0xff] %v7696
                  %v7698 = vld [vmem:[%s7668 + $0x70] sm:$0xff]
                  %7699 = vst [vmem:[%s7669 + $0xe0] sm:$0xff] %v7698
                  %v7700 = vld [vmem:[%s7668 + $0x78] sm:$0xff]
                  %7701 = vst [vmem:[%s7669 + $0xf0] sm:$0xff] %v7700
                  %v7702 = vld [vmem:[%s7668 + $0x80] sm:$0xff]
                  %7703 = vst [vmem:[%s7669 + $0x100] sm:$0xff] %v7702
                  %v7704 = vld [vmem:[%s7668 + $0x88] sm:$0xff]
                  %7705 = vst [vmem:[%s7669 + $0x110] sm:$0xff] %v7704
                  %v7706 = vld [vmem:[%s7668 + $0x90] sm:$0xff]
                  %7707 = vst [vmem:[%s7669 + $0x120] sm:$0xff] %v7706
                  %v7708 = vld [vmem:[%s7668 + $0x98] sm:$0xff]
                  %7709 = vst [vmem:[%s7669 + $0x130] sm:$0xff] %v7708
                  %v7710 = vld [vmem:[%s7668 + $0xa0] sm:$0xff]
                  %7711 = vst [vmem:[%s7669 + $0x140] sm:$0xff] %v7710
                  %v7712 = vld [vmem:[%s7668 + $0xa8] sm:$0xff]
                  %7713 = vst [vmem:[%s7669 + $0x150] sm:$0xff] %v7712
                  %v7714 = vld [vmem:[%s7668 + $0xb0] sm:$0xff]
                  %7715 = vst [vmem:[%s7669 + $0x160] sm:$0xff] %v7714
                  %v7716 = vld [vmem:[%s7668 + $0xb8] sm:$0xff]
                  %7717 = vst [vmem:[%s7669 + $0x170] sm:$0xff] %v7716
                $region92: #{attention_forward.3} parent=86 // loop_footer
                  %s7667 = sadd.s32 1, %s7663
                $region93: #{attention_forward.3} parent=86 // loop_footer_branch
                  %7662 = sbr.rel target = $region89
                $region94: #{attention_forward.3} parent=86 // loop_exit
                  _
              $region87: #{attention_forward.3} parent=71 // pred_fallthru
                _
              // Predicated region
              $region95: #{attention_forward.3} parent=71 // pred_check
                _
              $region96: #{attention_forward.3} parent=71 // pred_check_branch
                %7719 = sbr.rel target = $region98
              $region97: #{attention_forward.3} parent=71 // pred_region
                _
              $region98: #{attention_forward.3} parent=71 // pred_fallthru
                _
            $region72: #{attention_forward.3} parent=67 // pred_fallthru
              _
            // Predicated region
            $region73: #{attention_forward.3} parent=67 // pred_check
              _
            $region74: #{attention_forward.3} parent=67 // pred_check_branch
              %7602 = sbr.rel target = $region76
            $region75: #{attention_forward.3} parent=67 // pred_region
              loop: start=0, step=1, limit=1
              $region77: #{attention_forward.3} parent=75 // loop_pre_header
                _
              $region78: #{attention_forward.3} parent=75 // loop_header
                %s7605 = sphi 0, %s7609
                %p7606 = scmp.ge.s32.totalorder %s7605, 1
                %s7610 = sphi %s7589, %s7589
                %s7611 = sphi %s7596, %s7596
              $region79: #{attention_forward.3} parent=75 // loop_header_branch
                %7608 = sbr.rel (%p7606) target = $region83
              $region80: #{attention_forward.3} parent=75 // loop_body
                %v7612 = vld [vmem:[%s7610] sm:$0xff]
                %7613 = vst [vmem:[%s7611] sm:$0xff] %v7612
                %v7614 = vld [vmem:[%s7610 + $0x8] sm:$0xff]
                %7615 = vst [vmem:[%s7611 + $0x10] sm:$0xff] %v7614
                %v7616 = vld [vmem:[%s7610 + $0x10] sm:$0xff]
                %7617 = vst [vmem:[%s7611 + $0x20] sm:$0xff] %v7616
                %v7618 = vld [vmem:[%s7610 + $0x18] sm:$0xff]
                %7619 = vst [vmem:[%s7611 + $0x30] sm:$0xff] %v7618
                %v7620 = vld [vmem:[%s7610 + $0x20] sm:$0xff]
                %7621 = vst [vmem:[%s7611 + $0x40] sm:$0xff] %v7620
                %v7622 = vld [vmem:[%s7610 + $0x28] sm:$0xff]
                %7623 = vst [vmem:[%s7611 + $0x50] sm:$0xff] %v7622
                %v7624 = vld [vmem:[%s7610 + $0x30] sm:$0xff]
                %7625 = vst [vmem:[%s7611 + $0x60] sm:$0xff] %v7624
                %v7626 = vld [vmem:[%s7610 + $0x38] sm:$0xff]
                %7627 = vst [vmem:[%s7611 + $0x70] sm:$0xff] %v7626
                %v7628 = vld [vmem:[%s7610 + $0x40] sm:$0xff]
                %7629 = vst [vmem:[%s7611 + $0x80] sm:$0xff] %v7628
                %v7630 = vld [vmem:[%s7610 + $0x48] sm:$0xff]
                %7631 = vst [vmem:[%s7611 + $0x90] sm:$0xff] %v7630
                %v7632 = vld [vmem:[%s7610 + $0x50] sm:$0xff]
                %7633 = vst [vmem:[%s7611 + $0xa0] sm:$0xff] %v7632
                %v7634 = vld [vmem:[%s7610 + $0x58] sm:$0xff]
                %7635 = vst [vmem:[%s7611 + $0xb0] sm:$0xff] %v7634
                %v7636 = vld [vmem:[%s7610 + $0x60] sm:$0xff]
                %7637 = vst [vmem:[%s7611 + $0xc0] sm:$0xff] %v7636
                %v7638 = vld [vmem:[%s7610 + $0x68] sm:$0xff]
                %7639 = vst [vmem:[%s7611 + $0xd0] sm:$0xff] %v7638
                %v7640 = vld [vmem:[%s7610 + $0x70] sm:$0xff]
                %7641 = vst [vmem:[%s7611 + $0xe0] sm:$0xff] %v7640
                %v7642 = vld [vmem:[%s7610 + $0x78] sm:$0xff]
                %7643 = vst [vmem:[%s7611 + $0xf0] sm:$0xff] %v7642
                %v7644 = vld [vmem:[%s7610 + $0x80] sm:$0xff]
                %7645 = vst [vmem:[%s7611 + $0x100] sm:$0xff] %v7644
                %v7646 = vld [vmem:[%s7610 + $0x88] sm:$0xff]
                %7647 = vst [vmem:[%s7611 + $0x110] sm:$0xff] %v7646
                %v7648 = vld [vmem:[%s7610 + $0x90] sm:$0xff]
                %7649 = vst [vmem:[%s7611 + $0x120] sm:$0xff] %v7648
                %v7650 = vld [vmem:[%s7610 + $0x98] sm:$0xff]
                %7651 = vst [vmem:[%s7611 + $0x130] sm:$0xff] %v7650
                %v7652 = vld [vmem:[%s7610 + $0xa0] sm:$0xff]
                %7653 = vst [vmem:[%s7611 + $0x140] sm:$0xff] %v7652
                %v7654 = vld [vmem:[%s7610 + $0xa8] sm:$0xff]
                %7655 = vst [vmem:[%s7611 + $0x150] sm:$0xff] %v7654
                %v7656 = vld [vmem:[%s7610 + $0xb0] sm:$0xff]
                %7657 = vst [vmem:[%s7611 + $0x160] sm:$0xff] %v7656
                %v7658 = vld [vmem:[%s7610 + $0xb8] sm:$0xff]
                %7659 = vst [vmem:[%s7611 + $0x170] sm:$0xff] %v7658
              $region81: #{attention_forward.3} parent=75 // loop_footer
                %s7609 = sadd.s32 1, %s7605
              $region82: #{attention_forward.3} parent=75 // loop_footer_branch
                %7604 = sbr.rel target = $region78
              $region83: #{attention_forward.3} parent=75 // loop_exit
                _
            $region76: #{attention_forward.3} parent=67 // pred_fallthru
              _
          $region68: #{attention_forward.3} parent=63 // pred_fallthru
            _
          %7720 = vnop
        $region64: #{attention_forward.3} parent=47 // pred_fallthru
          _
      $region48: #{attention_forward.3} parent=5 // pred_fallthru
        _
      %p7721 = scmp.le.s32.totalorder 2, %s19
      // Predicated region
      $region99: #{attention_forward.3} parent=5 // pred_check
        %p7722 = pneg %p7721
      $region100: #{attention_forward.3} parent=5 // pred_check_branch
        %7724 = sbr.rel (%p7722) target = $region102
      $region101: #{attention_forward.3} parent=5 // pred_region
        %s7725 = ssub.s32 %s19, 2
        // Predicated region
        $region103: #{attention_forward.3} parent=101 // pred_check
          %p7726 = pneg %p242
        $region104: #{attention_forward.3} parent=101 // pred_check_branch
          %7728 = sbr.rel (%p7726) target = $region106
        $region105: #{attention_forward.3} parent=101 // pred_region
          %s7729 = sand.u32 %s227, 1
          %s7730 = sand.u32 %s227, 1
          %s7731 = smul.addr %s7730, 192
          %s7732 = scalar_lea.vmem [#allocation7], %s7731
        $region106: #{attention_forward.3} parent=101 // pred_fallthru
          _
      $region102: #{attention_forward.3} parent=5 // pred_fallthru
        _
    $region6: #{attention_forward.3} parent=1 // loop_footer
      %s23 = sadd.s32 1, %s19
    $region7: #{attention_forward.3} parent=1 // loop_footer_branch
      %18 = sbr.rel target = $region3
    $region8: #{attention_forward.3} parent=1 // loop_exit
      _
    %7733 = vsyncpa [#allocation3], 1
    %s7734 = scalar_lea.sflag [#allocation3], 1
    %7735 = vsyncpa %s7734, 1
    %7736 = vsyncpa [#allocation5], 1
    %s7737 = scalar_lea.sflag [#allocation5], 1
    %7738 = vsyncpa %s7737, 1

</llo_original>
